<compile_context>
chip_gen: v7x
topology: tpu7x:2x2x1
jax: 0.10.0
libtpu: 0.0.40
codegen_flags: <defaults>
</compile_context>

<pallas_src>
import functools

import jax
import jax.numpy as jnp
from jax.experimental import pallas as pl
from jax.experimental.pallas import tpu as pltpu

LANES = 128   # TPU lane width; all merged weights / feature buffers are padded to it
TAPS = 9      # 3x3 conv taps


# --------------------------------------------------------------------------- #
# Fused Pallas kernel: whole SRN forward for ONE image per grid step
# --------------------------------------------------------------------------- #
def _srn_kernel(xcol_ref, w1_ref, b1_ref, w0m_ref, b0m_ref, w1m_ref, b1m_ref,
                wrs_ref, brs_ref, wh_ref, bh_ref,
                pfs0_ref, pss0_ref, pfs1_ref, pss1_ref,
                pa_ref, pb_ref, pa1_ref, pb1_ref, slab_ref,
                *, H, W, A):
    H2, W2 = H // 2, W // 2
    M0, M1 = H * W, H2 * W2

    def zero_halo(ref, h, w):
        # only the 1-pixel halo is zeroed; the interior is fully overwritten below
        ref[0:1, :, :] = jnp.zeros((1, w + 2, LANES), jnp.float32)
        ref[h + 1:h + 2, :, :] = jnp.zeros((1, w + 2, LANES), jnp.float32)
        ref[1:h + 1, 0:1, :] = jnp.zeros((h, 1, LANES), jnp.float32)
        ref[1:h + 1, w + 1:w + 2, :] = jnp.zeros((h, 1, LANES), jnp.float32)

    def im2col(src_ref, h, w, m):
        # shared lane-dense im2col slab: tap t occupies lanes [t*128, (t+1)*128)
        for ky in range(3):
            for kx in range(3):
                t = ky * 3 + kx
                slab_ref[0:m, t * LANES:(t + 1) * LANES] = (
                    src_ref[ky:ky + h, kx:kx + w, :].reshape(m, LANES))

    def conv(m, wref, bref):
        acc = jnp.dot(slab_ref[0:m, :], wref[...],
                      preferred_element_type=jnp.float32)
        return jnp.maximum(acc + bref[...], 0.0)

    def heads(z):
        # merged 1x1 cls/loc heads; the weight only reads the rpn-hidden lane group
        # [64,96) (all other rows are zero).  Sigmoid fused onto the cls lanes.
        p = jnp.dot(z, wh_ref[...], preferred_element_type=jnp.float32) + bh_ref[...]
        lane = jax.lax.broadcasted_iota(jnp.int32, p.shape, 1)
        return jnp.where(lane < A, 1.0 / (1.0 + jnp.exp(-p)), p)

    zero_halo(pa_ref, H, W)
    zero_halo(pb_ref, H, W)
    zero_halo(pa1_ref, H2, W2)
    zero_halo(pb1_ref, H2, W2)

    # -------------------------- level 0 --------------------------
    # conv1 from the wrapper-built im2col of the raw image (lanes [0, 9*Cin) real)
    f0 = jnp.maximum(
        jnp.dot(xcol_ref[0], w1_ref[...], preferred_element_type=jnp.float32)
        + b1_ref[...], 0.0)                              # f0 in lanes [0, 32)
    pa_ref[1:H + 1, 1:W + 1, :] = f0.reshape(H, W, LANES)

    # one shared im2col of f0, one merged matmul: conv2 | conv_ss | rpn_conv(fs0)
    im2col(pa_ref, H, W, M0)
    m0 = conv(M0, w0m_ref, b0m_ref)    # lanes: [0,32)=conv2, [32,64)=ss0, [64,96)=rpn-hid fs0
    pfs0_ref[0, :, :] = heads(m0)

    # ss0 stream: store the full merged map; wrs only reads lane group [32,64)
    pb_ref[1:H + 1, 1:W + 1, :] = m0.reshape(H, W, LANES)
    im2col(pb_ref, H, W, M0)
    pss0_ref[0, :, :] = heads(conv(M0, wrs_ref, brs_ref))

    # ---------- level 1: in-kernel stride-2 subsample of conv2 ----------
    f1 = m0.reshape(H2, 2, W2, 2, LANES)[:, 0, :, 0, :]  # even rows / even cols
    pa1_ref[1:H2 + 1, 1:W2 + 1, :] = f1

    im2col(pa1_ref, H2, W2, M1)
    m1 = conv(M1, w1m_ref, b1m_ref)    # lanes: [32,64)=ss1, [64,96)=rpn-hid fs1
    pfs1_ref[0, :, :] = heads(m1)

    pb1_ref[1:H2 + 1, 1:W2 + 1, :] = m1.reshape(H2, W2, LANES)
    im2col(pb1_ref, H2, W2, M1)
    pss1_ref[0, :, :] = heads(conv(M1, wrs_ref, brs_ref))


# --------------------------------------------------------------------------- #
# pallas_call wrapper
# --------------------------------------------------------------------------- #
def srn_pallas(x_col, packed, *, H, W, A):
    N = x_col.shape[0]
    H2, W2 = H // 2, W // 2
    M0, M1 = H * W, H2 * W2

    kernel = functools.partial(_srn_kernel, H=H, W=W, A=A)

    def bcast(shape):
        nd = len(shape)
        return pl.BlockSpec(shape, lambda i: (0,) * nd)

    out_shape = tuple(jax.ShapeDtypeStruct((N, m, LANES), jnp.float32)
                      for m in (M0, M0, M1, M1))
    out_specs = tuple(pl.BlockSpec((1, m, LANES), lambda i: (i, 0, 0))
                      for m in (M0, M0, M1, M1))

    return pl.pallas_call(
        kernel,
        out_shape=out_shape,
        grid=(N,),
        in_specs=[pl.BlockSpec((1, M0, LANES), lambda i: (i, 0, 0))]
                 + [bcast(w.shape) for w in packed],
        out_specs=out_specs,
        scratch_shapes=[
            pltpu.VMEM((H + 2, W + 2, LANES), jnp.float32),    # padded f0
            pltpu.VMEM((H + 2, W + 2, LANES), jnp.float32),    # padded level-0 merged map
            pltpu.VMEM((H2 + 2, W2 + 2, LANES), jnp.float32),  # padded f1
            pltpu.VMEM((H2 + 2, W2 + 2, LANES), jnp.float32),  # padded level-1 merged map
            pltpu.VMEM((M0, TAPS * LANES), jnp.float32),       # shared im2col slab
        ],
        compiler_params=pltpu.CompilerParams(
            dimension_semantics=("parallel",)),
    )(x_col, *packed)


# --------------------------------------------------------------------------- #
# Wrapper-side packing (XLA, once per forward)
# --------------------------------------------------------------------------- #
def _im2col_input(x_nhwc):
    """XLA-side im2col of the tiny raw image: (N,H,W,Cin) -> (N, H*W, 128) lane-padded."""
    N, H, W, Cin = x_nhwc.shape
    xp = jnp.pad(x_nhwc, ((0, 0), (1, 1), (1, 1), (0, 0)))
    taps = [xp[:, ky:ky + H, kx:kx + W, :] for ky in range(3) for kx in range(3)]
    col = jnp.concatenate(taps, axis=-1).reshape(N, H * W, TAPS * Cin)
    return jnp.pad(col, ((0, 0), (0, 0), (0, LANES - TAPS * Cin)))


def _pack_params(p, A):
    """Pack conv / head weights into lane-dense merged MXU operands."""
    Cin = p["conv1_w"].shape[2]
    C = p["conv1_w"].shape[3]
    assert 3 * C <= LANES and TAPS * Cin <= LANES and 5 * A <= LANES

    def place(dst, w, in_off, out_off):
        ci, co = w.shape[2], w.shape[3]
        for ky in range(3):
            for kx in range(3):
                r = (ky * 3 + kx) * LANES + in_off
                dst = dst.at[r:r + ci, out_off:out_off + co].set(w[ky, kx])
        return dst

    # conv1: (M,128) im2col @ (128,128) -> f0 in lanes [0, C)
    w1p = jnp.zeros((LANES, LANES), jnp.float32)
    w1p = w1p.at[:TAPS * Cin, :C].set(p["conv1_w"].reshape(TAPS * Cin, C))
    b1p = jnp.zeros((1, LANES), jnp.float32).at[:, :C].set(p["conv1_b"])

    # level-0 merged conv on f0 (input lanes [0,C)):
    #   out lanes [0,C)=conv2, [C,2C)=conv_ss, [2C,3C)=rpn_conv
    w0m = jnp.zeros((TAPS * LANES, LANES), jnp.float32)
    w0m = place(w0m, p["conv2_w"], 0, 0)
    w0m = place(w0m, p["conv_ss_w"], 0, C)
    w0m = place(w0m, p["rpn_conv_w"], 0, 2 * C)
    b0m = (jnp.zeros((1, LANES), jnp.float32)
           .at[:, 0:C].set(p["conv2_b"])
           .at[:, C:2 * C].set(p["conv_ss_b"])
           .at[:, 2 * C:3 * C].set(p["rpn_conv_b"]))

    # level-1 merged conv on f1 (input lanes [0,C)): out [C,2C)=conv_ss, [2C,3C)=rpn_conv
    w1m = jnp.zeros((TAPS * LANES, LANES), jnp.float32)
    w1m = place(w1m, p["conv_ss_w"], 0, C)
    w1m = place(w1m, p["rpn_conv_w"], 0, 2 * C)
    b1m = (jnp.zeros((1, LANES), jnp.float32)
           .at[:, C:2 * C].set(p["conv_ss_b"])
           .at[:, 2 * C:3 * C].set(p["rpn_conv_b"]))

    # rpn conv for the ss streams: reads input lanes [C,2C), writes hidden to [2C,3C)
    wrs = jnp.zeros((TAPS * LANES, LANES), jnp.float32)
    wrs = place(wrs, p["rpn_conv_w"], C, 2 * C)
    brs = jnp.zeros((1, LANES), jnp.float32).at[:, 2 * C:3 * C].set(p["rpn_conv_b"])

    # merged 1x1 heads: read hidden lanes [2C,3C); out lanes [0,A)=cls, [A,5A)=loc
    whp = jnp.zeros((LANES, LANES), jnp.float32)
    whp = (whp.at[2 * C:3 * C, :A].set(p["rpn_cls_w"])
              .at[2 * C:3 * C, A:5 * A].set(p["rpn_loc_w"]))
    bhp = (jnp.zeros((1, LANES), jnp.float32)
           .at[:, :A].set(p["rpn_cls_b"])
           .at[:, A:5 * A].set(p["rpn_loc_b"]))

    return (w1p, b1p, w0m, b0m, w1m, b1m, wrs, brs, whp, bhp)


def _unpack_preds(pred_flat, N, H, W, A):
    """Slice the lane-padded merged head back into (cls NCHW, loc NCHW)."""
    pred = pred_flat.reshape(N, H, W, LANES)
    cls = jnp.transpose(pred[..., :A], (0, 3, 1, 2))              # (N, A, H, W)
    loc = jnp.transpose(pred[..., A:5 * A], (0, 3, 1, 2))         # (N, 4A, H, W)
    return cls, loc


# --------------------------------------------------------------------------- #
# SRN forward
# --------------------------------------------------------------------------- #
def srn_forward(x_nchw, params):
    """Mirrors SRN.forward: 2-stream / 2-level pyramid -> shared RPN -> sigmoid(cls)."""
    A = params["rpn_cls_w"].shape[-1]
    N, _, H, W = x_nchw.shape
    assert H % 2 == 0 and W % 2 == 0 and (H * W) % 8 == 0

    x = jnp.transpose(x_nchw, (0, 2, 3, 1))            # NCHW -> NHWC at the boundary
    x_col = _im2col_input(x)
    packed = _pack_params(params, A)
    pfs0, pss0, pfs1, pss1 = srn_pallas(x_col, packed, H=H, W=W, A=A)

    rpn_pred_fs = [_unpack_preds(pfs0, N, H, W, A),
                   _unpack_preds(pfs1, N, H // 2, W // 2, A)]
    rpn_pred_ss = [_unpack_preds(pss0, N, H, W, A),
                   _unpack_preds(pss1, N, H // 2, W // 2, A)]

    # TODO(synk): _multi_proposals (compute_rpn_proposals, per-class NMS, numpy argsort+topN,
    # variable-length cat) has data-dependent shapes and an undefined external dependency;
    # the per-level sigmoid(cls)/loc maps it would consume are returned instead.
    return {
        "losses": [],
        "predict": [rpn_pred_fs, rpn_pred_ss],
        "accuracy": [],
        "accuracy_neg": [],
    }


# --------------------------------------------------------------------------- #
# Pure-JAX (XLA) reference of the same concrete instantiation
# --------------------------------------------------------------------------- #
def srn_reference(x_nchw, p):
    A = p["rpn_cls_w"].shape[-1]
    x = jnp.transpose(x_nchw, (0, 2, 3, 1))
    hi = jax.lax.Precision.HIGHEST

    def conv(z, w, b):
        y = jax.lax.conv_general_dilated(
            z, w, (1, 1), ((1, 1), (1, 1)),
            dimension_numbers=("NHWC", "HWIO", "NHWC"), precision=hi)
        return jax.nn.relu(y + b.reshape(1, 1, 1, -1))

    def rpn(feat):
        h = conv(feat, p["rpn_conv_w"], p["rpn_conv_b"])
        cls = jnp.einsum("nhwc,ca->nhwa", h, p["rpn_cls_w"],
                         precision=hi) + p["rpn_cls_b"].reshape(1, 1, 1, -1)
        loc = jnp.einsum("nhwc,ca->nhwa", h, p["rpn_loc_w"],
                         precision=hi) + p["rpn_loc_b"].reshape(1, 1, 1, -1)
        return (jnp.transpose(jax.nn.sigmoid(cls), (0, 3, 1, 2)),
                jnp.transpose(loc, (0, 3, 1, 2)))

    f0 = conv(x, p["conv1_w"], p["conv1_b"])
    f1 = conv(f0, p["conv2_w"], p["conv2_b"])[:, ::2, ::2, :]
    ss0 = conv(f0, p["conv_ss_w"], p["conv_ss_b"])
    ss1 = conv(f1, p["conv_ss_w"], p["conv_ss_b"])
    return [rpn(f0), rpn(f1)], [rpn(ss0), rpn(ss1)]


# --------------------------------------------------------------------------- #
# Deterministic parameter init
# --------------------------------------------------------------------------- #
def init_params(key, cin=4, c=32, num_anchors=3):
    ks = jax.random.split(key, 6)

    def w(k, shape, fan_in):
        return jax.random.normal(k, shape, jnp.float32) * (1.0 / jnp.sqrt(fan_in))

    return {
        "conv1_w": w(ks[0], (3, 3, cin, c), 9 * cin),
        "conv1_b": jnp.zeros((1, c), jnp.float32),
        "conv2_w": w(ks[1], (3, 3, c, c), 9 * c),
        "conv2_b": jnp.zeros((1, c), jnp.float32),
        "conv_ss_w": w(ks[2], (3, 3, c, c), 9 * c),
        "conv_ss_b": jnp.zeros((1, c), jnp.float32),
        "rpn_conv_w": w(ks[3], (3, 3, c, c), 9 * c),
        "rpn_conv_b": jnp.zeros((1, c), jnp.float32),
        "rpn_cls_w": w(ks[4], (c, num_anchors), c),
        "rpn_cls_b": jnp.zeros((1, num_anchors), jnp.float32),
        "rpn_loc_w": w(ks[5], (c, 4 * num_anchors), c),
        "rpn_loc_b": jnp.zeros((1, 4 * num_anchors), jnp.float32),
    }


if __name__ == "__main__":
    key = jax.random.PRNGKey(0)
    k_x, k_p = jax.random.split(key)

    # PyTorch-style NCHW image input: batch=2, channels=4, spatial=16x16
    x = jax.random.normal(k_x, (2, 4, 16, 16), jnp.float32)
    params = init_params(k_p)

    fwd = jax.jit(srn_forward)
    outputs = jax.block_until_ready(fwd(x, params))

    # sanity: shapes, finiteness, sigmoid range
    expected = [((2, 3, 16, 16), (2, 12, 16, 16)), ((2, 3, 8, 8), (2, 12, 8, 8))]
    ok = True
    for stream in outputs["predict"]:
        for level, (cls, loc) in enumerate(stream):
            ok &= cls.shape == expected[level][0]
            ok &= loc.shape == expected[level][1]
            ok &= bool(jnp.all(jnp.isfinite(cls))) and bool(jnp.all(jnp.isfinite(loc)))
            ok &= bool(jnp.all((cls >= 0.0) & (cls <= 1.0)))

    # numerical check against the pure-JAX reference of the same instantiation
    ref_fs, ref_ss = srn_reference(x, params)
    for got_stream, ref_stream in zip(outputs["predict"], (ref_fs, ref_ss)):
        for (g_cls, g_loc), (r_cls, r_loc) in zip(got_stream, ref_stream):
            ok &= bool(jnp.allclose(g_cls, r_cls, rtol=3e-2, atol=3e-2))
            ok &= bool(jnp.allclose(g_loc, r_loc, rtol=3e-2, atol=3e-2))

    assert ok, "SRN Pallas forward mismatch"
    print("KERNEL_OK")
</pallas_src>

<mosaic_0001>
module attributes {stable_mosaic.version = 11 : i64} {
  func.func @_srn_kernel(%arg0: i32, %arg1: memref<1x256x128xf32, #tpu.memory_space<vmem>>, %arg2: memref<128x128xf32, #tpu.memory_space<vmem>>, %arg3: memref<1x128xf32, #tpu.memory_space<vmem>>, %arg4: memref<1152x128xf32, #tpu.memory_space<vmem>>, %arg5: memref<1x128xf32, #tpu.memory_space<vmem>>, %arg6: memref<1152x128xf32, #tpu.memory_space<vmem>>, %arg7: memref<1x128xf32, #tpu.memory_space<vmem>>, %arg8: memref<1152x128xf32, #tpu.memory_space<vmem>>, %arg9: memref<1x128xf32, #tpu.memory_space<vmem>>, %arg10: memref<128x128xf32, #tpu.memory_space<vmem>>, %arg11: memref<1x128xf32, #tpu.memory_space<vmem>>, %arg12: memref<1x256x128xf32, #tpu.memory_space<vmem>>, %arg13: memref<1x256x128xf32, #tpu.memory_space<vmem>>, %arg14: memref<1x64x128xf32, #tpu.memory_space<vmem>>, %arg15: memref<1x64x128xf32, #tpu.memory_space<vmem>>, %arg16: memref<18x18x128xf32, #tpu.memory_space<vmem>>, %arg17: memref<18x18x128xf32, #tpu.memory_space<vmem>>, %arg18: memref<10x10x128xf32, #tpu.memory_space<vmem>>, %arg19: memref<10x10x128xf32, #tpu.memory_space<vmem>>, %arg20: memref<256x1152xf32, #tpu.memory_space<vmem>>) attributes {dimension_semantics = [#tpu.dimension_semantics<parallel>], iteration_bounds = array<i64: 2>, scalar_prefetch = 0 : i64, scratch_operands = 5 : i64, tpu.core_type = #tpu.core_type<tc>, window_params = [{transform_indices = @transform_0, window_bounds = array<i64: 1, 256, 128>}, {pipeline_mode = #tpu.pipeline_mode<synchronous>, transform_indices = @transform_1, window_bounds = array<i64: 128, 128>}, {pipeline_mode = #tpu.pipeline_mode<synchronous>, transform_indices = @transform_2, window_bounds = array<i64: 1, 128>}, {pipeline_mode = #tpu.pipeline_mode<synchronous>, transform_indices = @transform_3, window_bounds = array<i64: 1152, 128>}, {pipeline_mode = #tpu.pipeline_mode<synchronous>, transform_indices = @transform_4, window_bounds = array<i64: 1, 128>}, {pipeline_mode = #tpu.pipeline_mode<synchronous>, transform_indices = @transform_5, window_bounds = array<i64: 1152, 128>}, {pipeline_mode = #tpu.pipeline_mode<synchronous>, transform_indices = @transform_6, window_bounds = array<i64: 1, 128>}, {pipeline_mode = #tpu.pipeline_mode<synchronous>, transform_indices = @transform_7, window_bounds = array<i64: 1152, 128>}, {pipeline_mode = #tpu.pipeline_mode<synchronous>, transform_indices = @transform_8, window_bounds = array<i64: 1, 128>}, {pipeline_mode = #tpu.pipeline_mode<synchronous>, transform_indices = @transform_9, window_bounds = array<i64: 128, 128>}, {pipeline_mode = #tpu.pipeline_mode<synchronous>, transform_indices = @transform_10, window_bounds = array<i64: 1, 128>}, {transform_indices = @transform_11, window_bounds = array<i64: 1, 256, 128>}, {transform_indices = @transform_12, window_bounds = array<i64: 1, 256, 128>}, {transform_indices = @transform_13, window_bounds = array<i64: 1, 64, 128>}, {transform_indices = @transform_14, window_bounds = array<i64: 1, 64, 128>}]} {
    %cst = arith.constant 0.000000e+00 : f32
    %0 = vector.broadcast %cst : f32 to vector<1x18x128xf32>
    %c0 = arith.constant 0 : index
    %c0_0 = arith.constant 0 : index
    %c0_1 = arith.constant 0 : index
    %1 = vector.load %arg16[%c0, %c0_0, %c0_1] : memref<18x18x128xf32, #tpu.memory_space<vmem>>, vector<1x18x128xf32>
    tpu.vector_store %arg16[%c0, %c0_0, %c0_1], %0 {strides = array<i32>} : memref<18x18x128xf32, #tpu.memory_space<vmem>>, vector<1x18x128xf32>,
    %cst_2 = arith.constant 0.000000e+00 : f32
    %2 = vector.broadcast %cst_2 : f32 to vector<1x18x128xf32>
    %c17 = arith.constant 17 : index
    %c0_3 = arith.constant 0 : index
    %c0_4 = arith.constant 0 : index
    %3 = vector.load %arg16[%c17, %c0_3, %c0_4] : memref<18x18x128xf32, #tpu.memory_space<vmem>>, vector<1x18x128xf32>
    tpu.vector_store %arg16[%c17, %c0_3, %c0_4], %2 {strides = array<i32>} : memref<18x18x128xf32, #tpu.memory_space<vmem>>, vector<1x18x128xf32>,
    %cst_5 = arith.constant 0.000000e+00 : f32
    %4 = vector.broadcast %cst_5 : f32 to vector<16x1x128xf32>
    %c1 = arith.constant 1 : index
    %c0_6 = arith.constant 0 : index
    %c0_7 = arith.constant 0 : index
    %5 = vector.load %arg16[%c1, %c0_6, %c0_7] : memref<18x18x128xf32, #tpu.memory_space<vmem>>, vector<16x1x128xf32>
    tpu.vector_store %arg16[%c1, %c0_6, %c0_7], %4 {strides = array<i32>} : memref<18x18x128xf32, #tpu.memory_space<vmem>>, vector<16x1x128xf32>,
    %cst_8 = arith.constant 0.000000e+00 : f32
    %6 = vector.broadcast %cst_8 : f32 to vector<16x1x128xf32>
    %c1_9 = arith.constant 1 : index
    %c17_10 = arith.constant 17 : index
    %c0_11 = arith.constant 0 : index
    %7 = vector.load %arg16[%c1_9, %c17_10, %c0_11] : memref<18x18x128xf32, #tpu.memory_space<vmem>>, vector<16x1x128xf32>
    tpu.vector_store %arg16[%c1_9, %c17_10, %c0_11], %6 {strides = array<i32>} : memref<18x18x128xf32, #tpu.memory_space<vmem>>, vector<16x1x128xf32>,
    %cst_12 = arith.constant 0.000000e+00 : f32
    %8 = vector.broadcast %cst_12 : f32 to vector<1x18x128xf32>
    %c0_13 = arith.constant 0 : index
    %c0_14 = arith.constant 0 : index
    %c0_15 = arith.constant 0 : index
    %9 = vector.load %arg17[%c0_13, %c0_14, %c0_15] : memref<18x18x128xf32, #tpu.memory_space<vmem>>, vector<1x18x128xf32>
    tpu.vector_store %arg17[%c0_13, %c0_14, %c0_15], %8 {strides = array<i32>} : memref<18x18x128xf32, #tpu.memory_space<vmem>>, vector<1x18x128xf32>,
    %cst_16 = arith.constant 0.000000e+00 : f32
    %10 = vector.broadcast %cst_16 : f32 to vector<1x18x128xf32>
    %c17_17 = arith.constant 17 : index
    %c0_18 = arith.constant 0 : index
    %c0_19 = arith.constant 0 : index
    %11 = vector.load %arg17[%c17_17, %c0_18, %c0_19] : memref<18x18x128xf32, #tpu.memory_space<vmem>>, vector<1x18x128xf32>
    tpu.vector_store %arg17[%c17_17, %c0_18, %c0_19], %10 {strides = array<i32>} : memref<18x18x128xf32, #tpu.memory_space<vmem>>, vector<1x18x128xf32>,
    %cst_20 = arith.constant 0.000000e+00 : f32
    %12 = vector.broadcast %cst_20 : f32 to vector<16x1x128xf32>
    %c1_21 = arith.constant 1 : index
    %c0_22 = arith.constant 0 : index
    %c0_23 = arith.constant 0 : index
    %13 = vector.load %arg17[%c1_21, %c0_22, %c0_23] : memref<18x18x128xf32, #tpu.memory_space<vmem>>, vector<16x1x128xf32>
    tpu.vector_store %arg17[%c1_21, %c0_22, %c0_23], %12 {strides = array<i32>} : memref<18x18x128xf32, #tpu.memory_space<vmem>>, vector<16x1x128xf32>,
    %cst_24 = arith.constant 0.000000e+00 : f32
    %14 = vector.broadcast %cst_24 : f32 to vector<16x1x128xf32>
    %c1_25 = arith.constant 1 : index
    %c17_26 = arith.constant 17 : index
    %c0_27 = arith.constant 0 : index
    %15 = vector.load %arg17[%c1_25, %c17_26, %c0_27] : memref<18x18x128xf32, #tpu.memory_space<vmem>>, vector<16x1x128xf32>
    tpu.vector_store %arg17[%c1_25, %c17_26, %c0_27], %14 {strides = array<i32>} : memref<18x18x128xf32, #tpu.memory_space<vmem>>, vector<16x1x128xf32>,
    %cst_28 = arith.constant 0.000000e+00 : f32
    %16 = vector.broadcast %cst_28 : f32 to vector<1x10x128xf32>
    %c0_29 = arith.constant 0 : index
    %c0_30 = arith.constant 0 : index
    %c0_31 = arith.constant 0 : index
    %17 = vector.load %arg18[%c0_29, %c0_30, %c0_31] : memref<10x10x128xf32, #tpu.memory_space<vmem>>, vector<1x10x128xf32>
    tpu.vector_store %arg18[%c0_29, %c0_30, %c0_31], %16 {strides = array<i32>} : memref<10x10x128xf32, #tpu.memory_space<vmem>>, vector<1x10x128xf32>,
    %cst_32 = arith.constant 0.000000e+00 : f32
    %18 = vector.broadcast %cst_32 : f32 to vector<1x10x128xf32>
    %c9 = arith.constant 9 : index
    %c0_33 = arith.constant 0 : index
    %c0_34 = arith.constant 0 : index
    %19 = vector.load %arg18[%c9, %c0_33, %c0_34] : memref<10x10x128xf32, #tpu.memory_space<vmem>>, vector<1x10x128xf32>
    tpu.vector_store %arg18[%c9, %c0_33, %c0_34], %18 {strides = array<i32>} : memref<10x10x128xf32, #tpu.memory_space<vmem>>, vector<1x10x128xf32>,
    %cst_35 = arith.constant 0.000000e+00 : f32
    %20 = vector.broadcast %cst_35 : f32 to vector<8x1x128xf32>
    %c1_36 = arith.constant 1 : index
    %c0_37 = arith.constant 0 : index
    %c0_38 = arith.constant 0 : index
    %21 = vector.load %arg18[%c1_36, %c0_37, %c0_38] : memref<10x10x128xf32, #tpu.memory_space<vmem>>, vector<8x1x128xf32>
    tpu.vector_store %arg18[%c1_36, %c0_37, %c0_38], %20 {strides = array<i32>} : memref<10x10x128xf32, #tpu.memory_space<vmem>>, vector<8x1x128xf32>,
    %cst_39 = arith.constant 0.000000e+00 : f32
    %22 = vector.broadcast %cst_39 : f32 to vector<8x1x128xf32>
    %c1_40 = arith.constant 1 : index
    %c9_41 = arith.constant 9 : index
    %c0_42 = arith.constant 0 : index
    %23 = vector.load %arg18[%c1_40, %c9_41, %c0_42] : memref<10x10x128xf32, #tpu.memory_space<vmem>>, vector<8x1x128xf32>
    tpu.vector_store %arg18[%c1_40, %c9_41, %c0_42], %22 {strides = array<i32>} : memref<10x10x128xf32, #tpu.memory_space<vmem>>, vector<8x1x128xf32>,
    %cst_43 = arith.constant 0.000000e+00 : f32
    %24 = vector.broadcast %cst_43 : f32 to vector<1x10x128xf32>
    %c0_44 = arith.constant 0 : index
    %c0_45 = arith.constant 0 : index
    %c0_46 = arith.constant 0 : index
    %25 = vector.load %arg19[%c0_44, %c0_45, %c0_46] : memref<10x10x128xf32, #tpu.memory_space<vmem>>, vector<1x10x128xf32>
    tpu.vector_store %arg19[%c0_44, %c0_45, %c0_46], %24 {strides = array<i32>} : memref<10x10x128xf32, #tpu.memory_space<vmem>>, vector<1x10x128xf32>,
    %cst_47 = arith.constant 0.000000e+00 : f32
    %26 = vector.broadcast %cst_47 : f32 to vector<1x10x128xf32>
    %c9_48 = arith.constant 9 : index
    %c0_49 = arith.constant 0 : index
    %c0_50 = arith.constant 0 : index
    %27 = vector.load %arg19[%c9_48, %c0_49, %c0_50] : memref<10x10x128xf32, #tpu.memory_space<vmem>>, vector<1x10x128xf32>
    tpu.vector_store %arg19[%c9_48, %c0_49, %c0_50], %26 {strides = array<i32>} : memref<10x10x128xf32, #tpu.memory_space<vmem>>, vector<1x10x128xf32>,
    %cst_51 = arith.constant 0.000000e+00 : f32
    %28 = vector.broadcast %cst_51 : f32 to vector<8x1x128xf32>
    %c1_52 = arith.constant 1 : index
    %c0_53 = arith.constant 0 : index
    %c0_54 = arith.constant 0 : index
    %29 = vector.load %arg19[%c1_52, %c0_53, %c0_54] : memref<10x10x128xf32, #tpu.memory_space<vmem>>, vector<8x1x128xf32>
    tpu.vector_store %arg19[%c1_52, %c0_53, %c0_54], %28 {strides = array<i32>} : memref<10x10x128xf32, #tpu.memory_space<vmem>>, vector<8x1x128xf32>,
    %cst_55 = arith.constant 0.000000e+00 : f32
    %30 = vector.broadcast %cst_55 : f32 to vector<8x1x128xf32>
    %c1_56 = arith.constant 1 : index
    %c9_57 = arith.constant 9 : index
    %c0_58 = arith.constant 0 : index
    %31 = vector.load %arg19[%c1_56, %c9_57, %c0_58] : memref<10x10x128xf32, #tpu.memory_space<vmem>>, vector<8x1x128xf32>
    tpu.vector_store %arg19[%c1_56, %c9_57, %c0_58], %30 {strides = array<i32>} : memref<10x10x128xf32, #tpu.memory_space<vmem>>, vector<8x1x128xf32>,
    %c0_59 = arith.constant 0 : index
    %c0_60 = arith.constant 0 : index
    %c0_61 = arith.constant 0 : index
    %32 = vector.load %arg1[%c0_59, %c0_60, %c0_61] : memref<1x256x128xf32, #tpu.memory_space<vmem>>, vector<1x256x128xf32>
    %33 = vector.shape_cast %32 : vector<1x256x128xf32> to vector<256x128xf32>
    %c0_62 = arith.constant 0 : index
    %c0_63 = arith.constant 0 : index
    %34 = vector.load %arg2[%c0_62, %c0_63] : memref<128x128xf32, #tpu.memory_space<vmem>>, vector<128x128xf32>
    %cst_64 = arith.constant dense<0.000000e+00> : vector<256x128xf32>
    %35 = tpu.matmul %33, %34, %cst_64 {dimension_numbers = #tpu.dot_dimension_numbers<[1], [0], [0], [1], [0, 0, 1, 1], [], []>} : vector<256x128xf32>, vector<128x128xf32>, vector<256x128xf32> -> vector<256x128xf32>
    %c0_65 = arith.constant 0 : index
    %c0_66 = arith.constant 0 : index
    %36 = vector.load %arg3[%c0_65, %c0_66] : memref<1x128xf32, #tpu.memory_space<vmem>>, vector<1x128xf32>
    %37 = vector.broadcast %36 : vector<1x128xf32> to vector<256x128xf32>
    %38 = arith.addf %35, %37 : vector<256x128xf32>
    %cst_67 = arith.constant 0.000000e+00 : f32
    %39 = vector.broadcast %cst_67 : f32 to vector<256x128xf32>
    %40 = arith.maximumf %38, %39 : vector<256x128xf32>
    %41 = vector.shape_cast %40 : vector<256x128xf32> to vector<16x16x128xf32>
    %c1_68 = arith.constant 1 : index
    %c1_69 = arith.constant 1 : index
    %c0_70 = arith.constant 0 : index
    %42 = vector.load %arg16[%c1_68, %c1_69, %c0_70] : memref<18x18x128xf32, #tpu.memory_space<vmem>>, vector<16x16x128xf32>
    tpu.vector_store %arg16[%c1_68, %c1_69, %c0_70], %41 {strides = array<i32>} : memref<18x18x128xf32, #tpu.memory_space<vmem>>, vector<16x16x128xf32>,
    %c0_71 = arith.constant 0 : index
    %c0_72 = arith.constant 0 : index
    %c0_73 = arith.constant 0 : index
    %43 = vector.load %arg16[%c0_71, %c0_72, %c0_73] : memref<18x18x128xf32, #tpu.memory_space<vmem>>, vector<16x16x128xf32>
    %44 = vector.shape_cast %43 : vector<16x16x128xf32> to vector<256x128xf32>
    %c0_74 = arith.constant 0 : index
    %c0_75 = arith.constant 0 : index
    %45 = vector.load %arg20[%c0_74, %c0_75] : memref<256x1152xf32, #tpu.memory_space<vmem>>, vector<256x128xf32>
    tpu.vector_store %arg20[%c0_74, %c0_75], %44 {strides = array<i32>} : memref<256x1152xf32, #tpu.memory_space<vmem>>, vector<256x128xf32>,
    %c0_76 = arith.constant 0 : index
    %c1_77 = arith.constant 1 : index
    %c0_78 = arith.constant 0 : index
    %46 = vector.load %arg16[%c0_76, %c1_77, %c0_78] : memref<18x18x128xf32, #tpu.memory_space<vmem>>, vector<16x16x128xf32>
    %47 = vector.shape_cast %46 : vector<16x16x128xf32> to vector<256x128xf32>
    %c0_79 = arith.constant 0 : index
    %c128 = arith.constant 128 : index
    %48 = vector.load %arg20[%c0_79, %c128] : memref<256x1152xf32, #tpu.memory_space<vmem>>, vector<256x128xf32>
    tpu.vector_store %arg20[%c0_79, %c128], %47 {strides = array<i32>} : memref<256x1152xf32, #tpu.memory_space<vmem>>, vector<256x128xf32>,
    %c0_80 = arith.constant 0 : index
    %c2 = arith.constant 2 : index
    %c0_81 = arith.constant 0 : index
    %49 = vector.load %arg16[%c0_80, %c2, %c0_81] : memref<18x18x128xf32, #tpu.memory_space<vmem>>, vector<16x16x128xf32>
    %50 = vector.shape_cast %49 : vector<16x16x128xf32> to vector<256x128xf32>
    %c0_82 = arith.constant 0 : index
    %c256 = arith.constant 256 : index
    %51 = vector.load %arg20[%c0_82, %c256] : memref<256x1152xf32, #tpu.memory_space<vmem>>, vector<256x128xf32>
    tpu.vector_store %arg20[%c0_82, %c256], %50 {strides = array<i32>} : memref<256x1152xf32, #tpu.memory_space<vmem>>, vector<256x128xf32>,
    %c1_83 = arith.constant 1 : index
    %c0_84 = arith.constant 0 : index
    %c0_85 = arith.constant 0 : index
    %52 = vector.load %arg16[%c1_83, %c0_84, %c0_85] : memref<18x18x128xf32, #tpu.memory_space<vmem>>, vector<16x16x128xf32>
    %53 = vector.shape_cast %52 : vector<16x16x128xf32> to vector<256x128xf32>
    %c0_86 = arith.constant 0 : index
    %c384 = arith.constant 384 : index
    %54 = vector.load %arg20[%c0_86, %c384] : memref<256x1152xf32, #tpu.memory_space<vmem>>, vector<256x128xf32>
    tpu.vector_store %arg20[%c0_86, %c384], %53 {strides = array<i32>} : memref<256x1152xf32, #tpu.memory_space<vmem>>, vector<256x128xf32>,
    %c1_87 = arith.constant 1 : index
    %c1_88 = arith.constant 1 : index
    %c0_89 = arith.constant 0 : index
    %55 = vector.load %arg16[%c1_87, %c1_88, %c0_89] : memref<18x18x128xf32, #tpu.memory_space<vmem>>, vector<16x16x128xf32>
    %56 = vector.shape_cast %55 : vector<16x16x128xf32> to vector<256x128xf32>
    %c0_90 = arith.constant 0 : index
    %c512 = arith.constant 512 : index
    %57 = vector.load %arg20[%c0_90, %c512] : memref<256x1152xf32, #tpu.memory_space<vmem>>, vector<256x128xf32>
    tpu.vector_store %arg20[%c0_90, %c512], %56 {strides = array<i32>} : memref<256x1152xf32, #tpu.memory_space<vmem>>, vector<256x128xf32>,
    %c1_91 = arith.constant 1 : index
    %c2_92 = arith.constant 2 : index
    %c0_93 = arith.constant 0 : index
    %58 = vector.load %arg16[%c1_91, %c2_92, %c0_93] : memref<18x18x128xf32, #tpu.memory_space<vmem>>, vector<16x16x128xf32>
    %59 = vector.shape_cast %58 : vector<16x16x128xf32> to vector<256x128xf32>
    %c0_94 = arith.constant 0 : index
    %c640 = arith.constant 640 : index
    %60 = vector.load %arg20[%c0_94, %c640] : memref<256x1152xf32, #tpu.memory_space<vmem>>, vector<256x128xf32>
    tpu.vector_store %arg20[%c0_94, %c640], %59 {strides = array<i32>} : memref<256x1152xf32, #tpu.memory_space<vmem>>, vector<256x128xf32>,
    %c2_95 = arith.constant 2 : index
    %c0_96 = arith.constant 0 : index
    %c0_97 = arith.constant 0 : index
    %61 = vector.load %arg16[%c2_95, %c0_96, %c0_97] : memref<18x18x128xf32, #tpu.memory_space<vmem>>, vector<16x16x128xf32>
    %62 = vector.shape_cast %61 : vector<16x16x128xf32> to vector<256x128xf32>
    %c0_98 = arith.constant 0 : index
    %c768 = arith.constant 768 : index
    %63 = vector.load %arg20[%c0_98, %c768] : memref<256x1152xf32, #tpu.memory_space<vmem>>, vector<256x128xf32>
    tpu.vector_store %arg20[%c0_98, %c768], %62 {strides = array<i32>} : memref<256x1152xf32, #tpu.memory_space<vmem>>, vector<256x128xf32>,
    %c2_99 = arith.constant 2 : index
    %c1_100 = arith.constant 1 : index
    %c0_101 = arith.constant 0 : index
    %64 = vector.load %arg16[%c2_99, %c1_100, %c0_101] : memref<18x18x128xf32, #tpu.memory_space<vmem>>, vector<16x16x128xf32>
    %65 = vector.shape_cast %64 : vector<16x16x128xf32> to vector<256x128xf32>
    %c0_102 = arith.constant 0 : index
    %c896 = arith.constant 896 : index
    %66 = vector.load %arg20[%c0_102, %c896] : memref<256x1152xf32, #tpu.memory_space<vmem>>, vector<256x128xf32>
    tpu.vector_store %arg20[%c0_102, %c896], %65 {strides = array<i32>} : memref<256x1152xf32, #tpu.memory_space<vmem>>, vector<256x128xf32>,
    %c2_103 = arith.constant 2 : index
    %c2_104 = arith.constant 2 : index
    %c0_105 = arith.constant 0 : index
    %67 = vector.load %arg16[%c2_103, %c2_104, %c0_105] : memref<18x18x128xf32, #tpu.memory_space<vmem>>, vector<16x16x128xf32>
    %68 = vector.shape_cast %67 : vector<16x16x128xf32> to vector<256x128xf32>
    %c0_106 = arith.constant 0 : index
    %c1024 = arith.constant 1024 : index
    %69 = vector.load %arg20[%c0_106, %c1024] : memref<256x1152xf32, #tpu.memory_space<vmem>>, vector<256x128xf32>
    tpu.vector_store %arg20[%c0_106, %c1024], %68 {strides = array<i32>} : memref<256x1152xf32, #tpu.memory_space<vmem>>, vector<256x128xf32>,
    %c0_107 = arith.constant 0 : index
    %c0_108 = arith.constant 0 : index
    %70 = vector.load %arg20[%c0_107, %c0_108] : memref<256x1152xf32, #tpu.memory_space<vmem>>, vector<256x1152xf32>
    %c0_109 = arith.constant 0 : index
    %c0_110 = arith.constant 0 : index
    %71 = vector.load %arg4[%c0_109, %c0_110] : memref<1152x128xf32, #tpu.memory_space<vmem>>, vector<1152x128xf32>
    %cst_111 = arith.constant dense<0.000000e+00> : vector<256x128xf32>
    %72 = tpu.matmul %70, %71, %cst_111 {dimension_numbers = #tpu.dot_dimension_numbers<[1], [0], [0], [1], [0, 0, 1, 1], [], []>} : vector<256x1152xf32>, vector<1152x128xf32>, vector<256x128xf32> -> vector<256x128xf32>
    %c0_112 = arith.constant 0 : index
    %c0_113 = arith.constant 0 : index
    %73 = vector.load %arg5[%c0_112, %c0_113] : memref<1x128xf32, #tpu.memory_space<vmem>>, vector<1x128xf32>
    %74 = vector.broadcast %73 : vector<1x128xf32> to vector<256x128xf32>
    %75 = arith.addf %72, %74 : vector<256x128xf32>
    %cst_114 = arith.constant 0.000000e+00 : f32
    %76 = vector.broadcast %cst_114 : f32 to vector<256x128xf32>
    %77 = arith.maximumf %75, %76 : vector<256x128xf32>
    %c0_115 = arith.constant 0 : index
    %c0_116 = arith.constant 0 : index
    %78 = vector.load %arg10[%c0_115, %c0_116] : memref<128x128xf32, #tpu.memory_space<vmem>>, vector<128x128xf32>
    %cst_117 = arith.constant dense<0.000000e+00> : vector<256x128xf32>
    %79 = tpu.matmul %77, %78, %cst_117 {dimension_numbers = #tpu.dot_dimension_numbers<[1], [0], [0], [1], [0, 0, 1, 1], [], []>} : vector<256x128xf32>, vector<128x128xf32>, vector<256x128xf32> -> vector<256x128xf32>
    %c0_118 = arith.constant 0 : index
    %c0_119 = arith.constant 0 : index
    %80 = vector.load %arg11[%c0_118, %c0_119] : memref<1x128xf32, #tpu.memory_space<vmem>>, vector<1x128xf32>
    %81 = vector.broadcast %80 : vector<1x128xf32> to vector<256x128xf32>
    %82 = arith.addf %79, %81 : vector<256x128xf32>
    %83 = tpu.iota {dimensions = array<i32: 1>} : vector<256x128xi32>
    %c3_i32 = arith.constant 3 : i32
    %84 = vector.broadcast %c3_i32 : i32 to vector<256x128xi32>
    %85 = arith.cmpi slt, %83, %84 : vector<256x128xi32>
    %cst_120 = arith.constant 0.000000e+00 : f32
    %86 = vector.broadcast %cst_120 : f32 to vector<256x128xf32>
    %87 = arith.subf %86, %82 : vector<256x128xf32>
    %88 = math.exp %87 : vector<256x128xf32>
    %cst_121 = arith.constant 1.000000e+00 : f32
    %89 = vector.broadcast %cst_121 : f32 to vector<256x128xf32>
    %90 = arith.addf %89, %88 : vector<256x128xf32>
    %cst_122 = arith.constant 1.000000e+00 : f32
    %91 = vector.broadcast %cst_122 : f32 to vector<256x128xf32>
    %92 = arith.divf %91, %90 : vector<256x128xf32>
    %93 = arith.select %85, %92, %82 : vector<256x128xi1>, vector<256x128xf32>
    %c0_123 = arith.constant 0 : index
    %c0_124 = arith.constant 0 : index
    %c0_125 = arith.constant 0 : index
    %94 = vector.load %arg12[%c0_123, %c0_124, %c0_125] : memref<1x256x128xf32, #tpu.memory_space<vmem>>, vector<1x256x128xf32>
    %95 = vector.shape_cast %94 : vector<1x256x128xf32> to vector<256x128xf32>
    %96 = vector.shape_cast %93 : vector<256x128xf32> to vector<1x256x128xf32>
    tpu.vector_store %arg12[%c0_123, %c0_124, %c0_125], %96 {strides = array<i32>} : memref<1x256x128xf32, #tpu.memory_space<vmem>>, vector<1x256x128xf32>,
    %97 = vector.shape_cast %77 : vector<256x128xf32> to vector<16x16x128xf32>
    %c1_126 = arith.constant 1 : index
    %c1_127 = arith.constant 1 : index
    %c0_128 = arith.constant 0 : index
    %98 = vector.load %arg17[%c1_126, %c1_127, %c0_128] : memref<18x18x128xf32, #tpu.memory_space<vmem>>, vector<16x16x128xf32>
    tpu.vector_store %arg17[%c1_126, %c1_127, %c0_128], %97 {strides = array<i32>} : memref<18x18x128xf32, #tpu.memory_space<vmem>>, vector<16x16x128xf32>,
    %c0_129 = arith.constant 0 : index
    %c0_130 = arith.constant 0 : index
    %c0_131 = arith.constant 0 : index
    %99 = vector.load %arg17[%c0_129, %c0_130, %c0_131] : memref<18x18x128xf32, #tpu.memory_space<vmem>>, vector<16x16x128xf32>
    %100 = vector.shape_cast %99 : vector<16x16x128xf32> to vector<256x128xf32>
    %c0_132 = arith.constant 0 : index
    %c0_133 = arith.constant 0 : index
    %101 = vector.load %arg20[%c0_132, %c0_133] : memref<256x1152xf32, #tpu.memory_space<vmem>>, vector<256x128xf32>
    tpu.vector_store %arg20[%c0_132, %c0_133], %100 {strides = array<i32>} : memref<256x1152xf32, #tpu.memory_space<vmem>>, vector<256x128xf32>,
    %c0_134 = arith.constant 0 : index
    %c1_135 = arith.constant 1 : index
    %c0_136 = arith.constant 0 : index
    %102 = vector.load %arg17[%c0_134, %c1_135, %c0_136] : memref<18x18x128xf32, #tpu.memory_space<vmem>>, vector<16x16x128xf32>
    %103 = vector.shape_cast %102 : vector<16x16x128xf32> to vector<256x128xf32>
    %c0_137 = arith.constant 0 : index
    %c128_138 = arith.constant 128 : index
    %104 = vector.load %arg20[%c0_137, %c128_138] : memref<256x1152xf32, #tpu.memory_space<vmem>>, vector<256x128xf32>
    tpu.vector_store %arg20[%c0_137, %c128_138], %103 {strides = array<i32>} : memref<256x1152xf32, #tpu.memory_space<vmem>>, vector<256x128xf32>,
    %c0_139 = arith.constant 0 : index
    %c2_140 = arith.constant 2 : index
    %c0_141 = arith.constant 0 : index
    %105 = vector.load %arg17[%c0_139, %c2_140, %c0_141] : memref<18x18x128xf32, #tpu.memory_space<vmem>>, vector<16x16x128xf32>
    %106 = vector.shape_cast %105 : vector<16x16x128xf32> to vector<256x128xf32>
    %c0_142 = arith.constant 0 : index
    %c256_143 = arith.constant 256 : index
    %107 = vector.load %arg20[%c0_142, %c256_143] : memref<256x1152xf32, #tpu.memory_space<vmem>>, vector<256x128xf32>
    tpu.vector_store %arg20[%c0_142, %c256_143], %106 {strides = array<i32>} : memref<256x1152xf32, #tpu.memory_space<vmem>>, vector<256x128xf32>,
    %c1_144 = arith.constant 1 : index
    %c0_145 = arith.constant 0 : index
    %c0_146 = arith.constant 0 : index
    %108 = vector.load %arg17[%c1_144, %c0_145, %c0_146] : memref<18x18x128xf32, #tpu.memory_space<vmem>>, vector<16x16x128xf32>
    %109 = vector.shape_cast %108 : vector<16x16x128xf32> to vector<256x128xf32>
    %c0_147 = arith.constant 0 : index
    %c384_148 = arith.constant 384 : index
    %110 = vector.load %arg20[%c0_147, %c384_148] : memref<256x1152xf32, #tpu.memory_space<vmem>>, vector<256x128xf32>
    tpu.vector_store %arg20[%c0_147, %c384_148], %109 {strides = array<i32>} : memref<256x1152xf32, #tpu.memory_space<vmem>>, vector<256x128xf32>,
    %c1_149 = arith.constant 1 : index
    %c1_150 = arith.constant 1 : index
    %c0_151 = arith.constant 0 : index
    %111 = vector.load %arg17[%c1_149, %c1_150, %c0_151] : memref<18x18x128xf32, #tpu.memory_space<vmem>>, vector<16x16x128xf32>
    %112 = vector.shape_cast %111 : vector<16x16x128xf32> to vector<256x128xf32>
    %c0_152 = arith.constant 0 : index
    %c512_153 = arith.constant 512 : index
    %113 = vector.load %arg20[%c0_152, %c512_153] : memref<256x1152xf32, #tpu.memory_space<vmem>>, vector<256x128xf32>
    tpu.vector_store %arg20[%c0_152, %c512_153], %112 {strides = array<i32>} : memref<256x1152xf32, #tpu.memory_space<vmem>>, vector<256x128xf32>,
    %c1_154 = arith.constant 1 : index
    %c2_155 = arith.constant 2 : index
    %c0_156 = arith.constant 0 : index
    %114 = vector.load %arg17[%c1_154, %c2_155, %c0_156] : memref<18x18x128xf32, #tpu.memory_space<vmem>>, vector<16x16x128xf32>
    %115 = vector.shape_cast %114 : vector<16x16x128xf32> to vector<256x128xf32>
    %c0_157 = arith.constant 0 : index
    %c640_158 = arith.constant 640 : index
    %116 = vector.load %arg20[%c0_157, %c640_158] : memref<256x1152xf32, #tpu.memory_space<vmem>>, vector<256x128xf32>
    tpu.vector_store %arg20[%c0_157, %c640_158], %115 {strides = array<i32>} : memref<256x1152xf32, #tpu.memory_space<vmem>>, vector<256x128xf32>,
    %c2_159 = arith.constant 2 : index
    %c0_160 = arith.constant 0 : index
    %c0_161 = arith.constant 0 : index
    %117 = vector.load %arg17[%c2_159, %c0_160, %c0_161] : memref<18x18x128xf32, #tpu.memory_space<vmem>>, vector<16x16x128xf32>
    %118 = vector.shape_cast %117 : vector<16x16x128xf32> to vector<256x128xf32>
    %c0_162 = arith.constant 0 : index
    %c768_163 = arith.constant 768 : index
    %119 = vector.load %arg20[%c0_162, %c768_163] : memref<256x1152xf32, #tpu.memory_space<vmem>>, vector<256x128xf32>
    tpu.vector_store %arg20[%c0_162, %c768_163], %118 {strides = array<i32>} : memref<256x1152xf32, #tpu.memory_space<vmem>>, vector<256x128xf32>,
    %c2_164 = arith.constant 2 : index
    %c1_165 = arith.constant 1 : index
    %c0_166 = arith.constant 0 : index
    %120 = vector.load %arg17[%c2_164, %c1_165, %c0_166] : memref<18x18x128xf32, #tpu.memory_space<vmem>>, vector<16x16x128xf32>
    %121 = vector.shape_cast %120 : vector<16x16x128xf32> to vector<256x128xf32>
    %c0_167 = arith.constant 0 : index
    %c896_168 = arith.constant 896 : index
    %122 = vector.load %arg20[%c0_167, %c896_168] : memref<256x1152xf32, #tpu.memory_space<vmem>>, vector<256x128xf32>
    tpu.vector_store %arg20[%c0_167, %c896_168], %121 {strides = array<i32>} : memref<256x1152xf32, #tpu.memory_space<vmem>>, vector<256x128xf32>,
    %c2_169 = arith.constant 2 : index
    %c2_170 = arith.constant 2 : index
    %c0_171 = arith.constant 0 : index
    %123 = vector.load %arg17[%c2_169, %c2_170, %c0_171] : memref<18x18x128xf32, #tpu.memory_space<vmem>>, vector<16x16x128xf32>
    %124 = vector.shape_cast %123 : vector<16x16x128xf32> to vector<256x128xf32>
    %c0_172 = arith.constant 0 : index
    %c1024_173 = arith.constant 1024 : index
    %125 = vector.load %arg20[%c0_172, %c1024_173] : memref<256x1152xf32, #tpu.memory_space<vmem>>, vector<256x128xf32>
    tpu.vector_store %arg20[%c0_172, %c1024_173], %124 {strides = array<i32>} : memref<256x1152xf32, #tpu.memory_space<vmem>>, vector<256x128xf32>,
    %c0_174 = arith.constant 0 : index
    %c0_175 = arith.constant 0 : index
    %126 = vector.load %arg20[%c0_174, %c0_175] : memref<256x1152xf32, #tpu.memory_space<vmem>>, vector<256x1152xf32>
    %c0_176 = arith.constant 0 : index
    %c0_177 = arith.constant 0 : index
    %127 = vector.load %arg8[%c0_176, %c0_177] : memref<1152x128xf32, #tpu.memory_space<vmem>>, vector<1152x128xf32>
    %cst_178 = arith.constant dense<0.000000e+00> : vector<256x128xf32>
    %128 = tpu.matmul %126, %127, %cst_178 {dimension_numbers = #tpu.dot_dimension_numbers<[1], [0], [0], [1], [0, 0, 1, 1], [], []>} : vector<256x1152xf32>, vector<1152x128xf32>, vector<256x128xf32> -> vector<256x128xf32>
    %c0_179 = arith.constant 0 : index
    %c0_180 = arith.constant 0 : index
    %129 = vector.load %arg9[%c0_179, %c0_180] : memref<1x128xf32, #tpu.memory_space<vmem>>, vector<1x128xf32>
    %130 = vector.broadcast %129 : vector<1x128xf32> to vector<256x128xf32>
    %131 = arith.addf %128, %130 : vector<256x128xf32>
    %cst_181 = arith.constant 0.000000e+00 : f32
    %132 = vector.broadcast %cst_181 : f32 to vector<256x128xf32>
    %133 = arith.maximumf %131, %132 : vector<256x128xf32>
    %c0_182 = arith.constant 0 : index
    %c0_183 = arith.constant 0 : index
    %134 = vector.load %arg10[%c0_182, %c0_183] : memref<128x128xf32, #tpu.memory_space<vmem>>, vector<128x128xf32>
    %cst_184 = arith.constant dense<0.000000e+00> : vector<256x128xf32>
    %135 = tpu.matmul %133, %134, %cst_184 {dimension_numbers = #tpu.dot_dimension_numbers<[1], [0], [0], [1], [0, 0, 1, 1], [], []>} : vector<256x128xf32>, vector<128x128xf32>, vector<256x128xf32> -> vector<256x128xf32>
    %c0_185 = arith.constant 0 : index
    %c0_186 = arith.constant 0 : index
    %136 = vector.load %arg11[%c0_185, %c0_186] : memref<1x128xf32, #tpu.memory_space<vmem>>, vector<1x128xf32>
    %137 = vector.broadcast %136 : vector<1x128xf32> to vector<256x128xf32>
    %138 = arith.addf %135, %137 : vector<256x128xf32>
    %139 = tpu.iota {dimensions = array<i32: 1>} : vector<256x128xi32>
    %c3_i32_187 = arith.constant 3 : i32
    %140 = vector.broadcast %c3_i32_187 : i32 to vector<256x128xi32>
    %141 = arith.cmpi slt, %139, %140 : vector<256x128xi32>
    %cst_188 = arith.constant 0.000000e+00 : f32
    %142 = vector.broadcast %cst_188 : f32 to vector<256x128xf32>
    %143 = arith.subf %142, %138 : vector<256x128xf32>
    %144 = math.exp %143 : vector<256x128xf32>
    %cst_189 = arith.constant 1.000000e+00 : f32
    %145 = vector.broadcast %cst_189 : f32 to vector<256x128xf32>
    %146 = arith.addf %145, %144 : vector<256x128xf32>
    %cst_190 = arith.constant 1.000000e+00 : f32
    %147 = vector.broadcast %cst_190 : f32 to vector<256x128xf32>
    %148 = arith.divf %147, %146 : vector<256x128xf32>
    %149 = arith.select %141, %148, %138 : vector<256x128xi1>, vector<256x128xf32>
    %c0_191 = arith.constant 0 : index
    %c0_192 = arith.constant 0 : index
    %c0_193 = arith.constant 0 : index
    %150 = vector.load %arg13[%c0_191, %c0_192, %c0_193] : memref<1x256x128xf32, #tpu.memory_space<vmem>>, vector<1x256x128xf32>
    %151 = vector.shape_cast %150 : vector<1x256x128xf32> to vector<256x128xf32>
    %152 = vector.shape_cast %149 : vector<256x128xf32> to vector<1x256x128xf32>
    tpu.vector_store %arg13[%c0_191, %c0_192, %c0_193], %152 {strides = array<i32>} : memref<1x256x128xf32, #tpu.memory_space<vmem>>, vector<1x256x128xf32>,
    %153 = vector.shape_cast %77 : vector<256x128xf32> to vector<8x2x8x2x128xf32>
    %154 = vector.extract_strided_slice %153 {offsets = [0, 0, 0, 0, 0], sizes = [8, 1, 8, 1, 128], strides = [1, 1, 1, 1, 1]} : vector<8x2x8x2x128xf32> to vector<8x1x8x1x128xf32>
    %155 = vector.shape_cast %154 : vector<8x1x8x1x128xf32> to vector<8x8x128xf32>
    %c1_194 = arith.constant 1 : index
    %c1_195 = arith.constant 1 : index
    %c0_196 = arith.constant 0 : index
    %156 = vector.load %arg18[%c1_194, %c1_195, %c0_196] : memref<10x10x128xf32, #tpu.memory_space<vmem>>, vector<8x8x128xf32>
    tpu.vector_store %arg18[%c1_194, %c1_195, %c0_196], %155 {strides = array<i32>} : memref<10x10x128xf32, #tpu.memory_space<vmem>>, vector<8x8x128xf32>,
    %c0_197 = arith.constant 0 : index
    %c0_198 = arith.constant 0 : index
    %c0_199 = arith.constant 0 : index
    %157 = vector.load %arg18[%c0_197, %c0_198, %c0_199] : memref<10x10x128xf32, #tpu.memory_space<vmem>>, vector<8x8x128xf32>
    %158 = vector.shape_cast %157 : vector<8x8x128xf32> to vector<64x128xf32>
    %c0_200 = arith.constant 0 : index
    %c0_201 = arith.constant 0 : index
    %159 = vector.load %arg20[%c0_200, %c0_201] : memref<256x1152xf32, #tpu.memory_space<vmem>>, vector<64x128xf32>
    tpu.vector_store %arg20[%c0_200, %c0_201], %158 {strides = array<i32>} : memref<256x1152xf32, #tpu.memory_space<vmem>>, vector<64x128xf32>,
    %c0_202 = arith.constant 0 : index
    %c1_203 = arith.constant 1 : index
    %c0_204 = arith.constant 0 : index
    %160 = vector.load %arg18[%c0_202, %c1_203, %c0_204] : memref<10x10x128xf32, #tpu.memory_space<vmem>>, vector<8x8x128xf32>
    %161 = vector.shape_cast %160 : vector<8x8x128xf32> to vector<64x128xf32>
    %c0_205 = arith.constant 0 : index
    %c128_206 = arith.constant 128 : index
    %162 = vector.load %arg20[%c0_205, %c128_206] : memref<256x1152xf32, #tpu.memory_space<vmem>>, vector<64x128xf32>
    tpu.vector_store %arg20[%c0_205, %c128_206], %161 {strides = array<i32>} : memref<256x1152xf32, #tpu.memory_space<vmem>>, vector<64x128xf32>,
    %c0_207 = arith.constant 0 : index
    %c2_208 = arith.constant 2 : index
    %c0_209 = arith.constant 0 : index
    %163 = vector.load %arg18[%c0_207, %c2_208, %c0_209] : memref<10x10x128xf32, #tpu.memory_space<vmem>>, vector<8x8x128xf32>
    %164 = vector.shape_cast %163 : vector<8x8x128xf32> to vector<64x128xf32>
    %c0_210 = arith.constant 0 : index
    %c256_211 = arith.constant 256 : index
    %165 = vector.load %arg20[%c0_210, %c256_211] : memref<256x1152xf32, #tpu.memory_space<vmem>>, vector<64x128xf32>
    tpu.vector_store %arg20[%c0_210, %c256_211], %164 {strides = array<i32>} : memref<256x1152xf32, #tpu.memory_space<vmem>>, vector<64x128xf32>,
    %c1_212 = arith.constant 1 : index
    %c0_213 = arith.constant 0 : index
    %c0_214 = arith.constant 0 : index
    %166 = vector.load %arg18[%c1_212, %c0_213, %c0_214] : memref<10x10x128xf32, #tpu.memory_space<vmem>>, vector<8x8x128xf32>
    %167 = vector.shape_cast %166 : vector<8x8x128xf32> to vector<64x128xf32>
    %c0_215 = arith.constant 0 : index
    %c384_216 = arith.constant 384 : index
    %168 = vector.load %arg20[%c0_215, %c384_216] : memref<256x1152xf32, #tpu.memory_space<vmem>>, vector<64x128xf32>
    tpu.vector_store %arg20[%c0_215, %c384_216], %167 {strides = array<i32>} : memref<256x1152xf32, #tpu.memory_space<vmem>>, vector<64x128xf32>,
    %c1_217 = arith.constant 1 : index
    %c1_218 = arith.constant 1 : index
    %c0_219 = arith.constant 0 : index
    %169 = vector.load %arg18[%c1_217, %c1_218, %c0_219] : memref<10x10x128xf32, #tpu.memory_space<vmem>>, vector<8x8x128xf32>
    %170 = vector.shape_cast %169 : vector<8x8x128xf32> to vector<64x128xf32>
    %c0_220 = arith.constant 0 : index
    %c512_221 = arith.constant 512 : index
    %171 = vector.load %arg20[%c0_220, %c512_221] : memref<256x1152xf32, #tpu.memory_space<vmem>>, vector<64x128xf32>
    tpu.vector_store %arg20[%c0_220, %c512_221], %170 {strides = array<i32>} : memref<256x1152xf32, #tpu.memory_space<vmem>>, vector<64x128xf32>,
    %c1_222 = arith.constant 1 : index
    %c2_223 = arith.constant 2 : index
    %c0_224 = arith.constant 0 : index
    %172 = vector.load %arg18[%c1_222, %c2_223, %c0_224] : memref<10x10x128xf32, #tpu.memory_space<vmem>>, vector<8x8x128xf32>
    %173 = vector.shape_cast %172 : vector<8x8x128xf32> to vector<64x128xf32>
    %c0_225 = arith.constant 0 : index
    %c640_226 = arith.constant 640 : index
    %174 = vector.load %arg20[%c0_225, %c640_226] : memref<256x1152xf32, #tpu.memory_space<vmem>>, vector<64x128xf32>
    tpu.vector_store %arg20[%c0_225, %c640_226], %173 {strides = array<i32>} : memref<256x1152xf32, #tpu.memory_space<vmem>>, vector<64x128xf32>,
    %c2_227 = arith.constant 2 : index
    %c0_228 = arith.constant 0 : index
    %c0_229 = arith.constant 0 : index
    %175 = vector.load %arg18[%c2_227, %c0_228, %c0_229] : memref<10x10x128xf32, #tpu.memory_space<vmem>>, vector<8x8x128xf32>
    %176 = vector.shape_cast %175 : vector<8x8x128xf32> to vector<64x128xf32>
    %c0_230 = arith.constant 0 : index
    %c768_231 = arith.constant 768 : index
    %177 = vector.load %arg20[%c0_230, %c768_231] : memref<256x1152xf32, #tpu.memory_space<vmem>>, vector<64x128xf32>
    tpu.vector_store %arg20[%c0_230, %c768_231], %176 {strides = array<i32>} : memref<256x1152xf32, #tpu.memory_space<vmem>>, vector<64x128xf32>,
    %c2_232 = arith.constant 2 : index
    %c1_233 = arith.constant 1 : index
    %c0_234 = arith.constant 0 : index
    %178 = vector.load %arg18[%c2_232, %c1_233, %c0_234] : memref<10x10x128xf32, #tpu.memory_space<vmem>>, vector<8x8x128xf32>
    %179 = vector.shape_cast %178 : vector<8x8x128xf32> to vector<64x128xf32>
    %c0_235 = arith.constant 0 : index
    %c896_236 = arith.constant 896 : index
    %180 = vector.load %arg20[%c0_235, %c896_236] : memref<256x1152xf32, #tpu.memory_space<vmem>>, vector<64x128xf32>
    tpu.vector_store %arg20[%c0_235, %c896_236], %179 {strides = array<i32>} : memref<256x1152xf32, #tpu.memory_space<vmem>>, vector<64x128xf32>,
    %c2_237 = arith.constant 2 : index
    %c2_238 = arith.constant 2 : index
    %c0_239 = arith.constant 0 : index
    %181 = vector.load %arg18[%c2_237, %c2_238, %c0_239] : memref<10x10x128xf32, #tpu.memory_space<vmem>>, vector<8x8x128xf32>
    %182 = vector.shape_cast %181 : vector<8x8x128xf32> to vector<64x128xf32>
    %c0_240 = arith.constant 0 : index
    %c1024_241 = arith.constant 1024 : index
    %183 = vector.load %arg20[%c0_240, %c1024_241] : memref<256x1152xf32, #tpu.memory_space<vmem>>, vector<64x128xf32>
    tpu.vector_store %arg20[%c0_240, %c1024_241], %182 {strides = array<i32>} : memref<256x1152xf32, #tpu.memory_space<vmem>>, vector<64x128xf32>,
    %c0_242 = arith.constant 0 : index
    %c0_243 = arith.constant 0 : index
    %184 = vector.load %arg20[%c0_242, %c0_243] : memref<256x1152xf32, #tpu.memory_space<vmem>>, vector<64x1152xf32>
    %c0_244 = arith.constant 0 : index
    %c0_245 = arith.constant 0 : index
    %185 = vector.load %arg6[%c0_244, %c0_245] : memref<1152x128xf32, #tpu.memory_space<vmem>>, vector<1152x128xf32>
    %cst_246 = arith.constant dense<0.000000e+00> : vector<64x128xf32>
    %186 = tpu.matmul %184, %185, %cst_246 {dimension_numbers = #tpu.dot_dimension_numbers<[1], [0], [0], [1], [0, 0, 1, 1], [], []>} : vector<64x1152xf32>, vector<1152x128xf32>, vector<64x128xf32> -> vector<64x128xf32>
    %c0_247 = arith.constant 0 : index
    %c0_248 = arith.constant 0 : index
    %187 = vector.load %arg7[%c0_247, %c0_248] : memref<1x128xf32, #tpu.memory_space<vmem>>, vector<1x128xf32>
    %188 = vector.broadcast %187 : vector<1x128xf32> to vector<64x128xf32>
    %189 = arith.addf %186, %188 : vector<64x128xf32>
    %cst_249 = arith.constant 0.000000e+00 : f32
    %190 = vector.broadcast %cst_249 : f32 to vector<64x128xf32>
    %191 = arith.maximumf %189, %190 : vector<64x128xf32>
    %c0_250 = arith.constant 0 : index
    %c0_251 = arith.constant 0 : index
    %192 = vector.load %arg10[%c0_250, %c0_251] : memref<128x128xf32, #tpu.memory_space<vmem>>, vector<128x128xf32>
    %cst_252 = arith.constant dense<0.000000e+00> : vector<64x128xf32>
    %193 = tpu.matmul %191, %192, %cst_252 {dimension_numbers = #tpu.dot_dimension_numbers<[1], [0], [0], [1], [0, 0, 1, 1], [], []>} : vector<64x128xf32>, vector<128x128xf32>, vector<64x128xf32> -> vector<64x128xf32>
    %c0_253 = arith.constant 0 : index
    %c0_254 = arith.constant 0 : index
    %194 = vector.load %arg11[%c0_253, %c0_254] : memref<1x128xf32, #tpu.memory_space<vmem>>, vector<1x128xf32>
    %195 = vector.broadcast %194 : vector<1x128xf32> to vector<64x128xf32>
    %196 = arith.addf %193, %195 : vector<64x128xf32>
    %197 = tpu.iota {dimensions = array<i32: 1>} : vector<64x128xi32>
    %c3_i32_255 = arith.constant 3 : i32
    %198 = vector.broadcast %c3_i32_255 : i32 to vector<64x128xi32>
    %199 = arith.cmpi slt, %197, %198 : vector<64x128xi32>
    %cst_256 = arith.constant 0.000000e+00 : f32
    %200 = vector.broadcast %cst_256 : f32 to vector<64x128xf32>
    %201 = arith.subf %200, %196 : vector<64x128xf32>
    %202 = math.exp %201 : vector<64x128xf32>
    %cst_257 = arith.constant 1.000000e+00 : f32
    %203 = vector.broadcast %cst_257 : f32 to vector<64x128xf32>
    %204 = arith.addf %203, %202 : vector<64x128xf32>
    %cst_258 = arith.constant 1.000000e+00 : f32
    %205 = vector.broadcast %cst_258 : f32 to vector<64x128xf32>
    %206 = arith.divf %205, %204 : vector<64x128xf32>
    %207 = arith.select %199, %206, %196 : vector<64x128xi1>, vector<64x128xf32>
    %c0_259 = arith.constant 0 : index
    %c0_260 = arith.constant 0 : index
    %c0_261 = arith.constant 0 : index
    %208 = vector.load %arg14[%c0_259, %c0_260, %c0_261] : memref<1x64x128xf32, #tpu.memory_space<vmem>>, vector<1x64x128xf32>
    %209 = vector.shape_cast %208 : vector<1x64x128xf32> to vector<64x128xf32>
    %210 = vector.shape_cast %207 : vector<64x128xf32> to vector<1x64x128xf32>
    tpu.vector_store %arg14[%c0_259, %c0_260, %c0_261], %210 {strides = array<i32>} : memref<1x64x128xf32, #tpu.memory_space<vmem>>, vector<1x64x128xf32>,
    %211 = vector.shape_cast %191 : vector<64x128xf32> to vector<8x8x128xf32>
    %c1_262 = arith.constant 1 : index
    %c1_263 = arith.constant 1 : index
    %c0_264 = arith.constant 0 : index
    %212 = vector.load %arg19[%c1_262, %c1_263, %c0_264] : memref<10x10x128xf32, #tpu.memory_space<vmem>>, vector<8x8x128xf32>
    tpu.vector_store %arg19[%c1_262, %c1_263, %c0_264], %211 {strides = array<i32>} : memref<10x10x128xf32, #tpu.memory_space<vmem>>, vector<8x8x128xf32>,
    %c0_265 = arith.constant 0 : index
    %c0_266 = arith.constant 0 : index
    %c0_267 = arith.constant 0 : index
    %213 = vector.load %arg19[%c0_265, %c0_266, %c0_267] : memref<10x10x128xf32, #tpu.memory_space<vmem>>, vector<8x8x128xf32>
    %214 = vector.shape_cast %213 : vector<8x8x128xf32> to vector<64x128xf32>
    %c0_268 = arith.constant 0 : index
    %c0_269 = arith.constant 0 : index
    %215 = vector.load %arg20[%c0_268, %c0_269] : memref<256x1152xf32, #tpu.memory_space<vmem>>, vector<64x128xf32>
    tpu.vector_store %arg20[%c0_268, %c0_269], %214 {strides = array<i32>} : memref<256x1152xf32, #tpu.memory_space<vmem>>, vector<64x128xf32>,
    %c0_270 = arith.constant 0 : index
    %c1_271 = arith.constant 1 : index
    %c0_272 = arith.constant 0 : index
    %216 = vector.load %arg19[%c0_270, %c1_271, %c0_272] : memref<10x10x128xf32, #tpu.memory_space<vmem>>, vector<8x8x128xf32>
    %217 = vector.shape_cast %216 : vector<8x8x128xf32> to vector<64x128xf32>
    %c0_273 = arith.constant 0 : index
    %c128_274 = arith.constant 128 : index
    %218 = vector.load %arg20[%c0_273, %c128_274] : memref<256x1152xf32, #tpu.memory_space<vmem>>, vector<64x128xf32>
    tpu.vector_store %arg20[%c0_273, %c128_274], %217 {strides = array<i32>} : memref<256x1152xf32, #tpu.memory_space<vmem>>, vector<64x128xf32>,
    %c0_275 = arith.constant 0 : index
    %c2_276 = arith.constant 2 : index
    %c0_277 = arith.constant 0 : index
    %219 = vector.load %arg19[%c0_275, %c2_276, %c0_277] : memref<10x10x128xf32, #tpu.memory_space<vmem>>, vector<8x8x128xf32>
    %220 = vector.shape_cast %219 : vector<8x8x128xf32> to vector<64x128xf32>
    %c0_278 = arith.constant 0 : index
    %c256_279 = arith.constant 256 : index
    %221 = vector.load %arg20[%c0_278, %c256_279] : memref<256x1152xf32, #tpu.memory_space<vmem>>, vector<64x128xf32>
    tpu.vector_store %arg20[%c0_278, %c256_279], %220 {strides = array<i32>} : memref<256x1152xf32, #tpu.memory_space<vmem>>, vector<64x128xf32>,
    %c1_280 = arith.constant 1 : index
    %c0_281 = arith.constant 0 : index
    %c0_282 = arith.constant 0 : index
    %222 = vector.load %arg19[%c1_280, %c0_281, %c0_282] : memref<10x10x128xf32, #tpu.memory_space<vmem>>, vector<8x8x128xf32>
    %223 = vector.shape_cast %222 : vector<8x8x128xf32> to vector<64x128xf32>
    %c0_283 = arith.constant 0 : index
    %c384_284 = arith.constant 384 : index
    %224 = vector.load %arg20[%c0_283, %c384_284] : memref<256x1152xf32, #tpu.memory_space<vmem>>, vector<64x128xf32>
    tpu.vector_store %arg20[%c0_283, %c384_284], %223 {strides = array<i32>} : memref<256x1152xf32, #tpu.memory_space<vmem>>, vector<64x128xf32>,
    %c1_285 = arith.constant 1 : index
    %c1_286 = arith.constant 1 : index
    %c0_287 = arith.constant 0 : index
    %225 = vector.load %arg19[%c1_285, %c1_286, %c0_287] : memref<10x10x128xf32, #tpu.memory_space<vmem>>, vector<8x8x128xf32>
    %226 = vector.shape_cast %225 : vector<8x8x128xf32> to vector<64x128xf32>
    %c0_288 = arith.constant 0 : index
    %c512_289 = arith.constant 512 : index
    %227 = vector.load %arg20[%c0_288, %c512_289] : memref<256x1152xf32, #tpu.memory_space<vmem>>, vector<64x128xf32>
    tpu.vector_store %arg20[%c0_288, %c512_289], %226 {strides = array<i32>} : memref<256x1152xf32, #tpu.memory_space<vmem>>, vector<64x128xf32>,
    %c1_290 = arith.constant 1 : index
    %c2_291 = arith.constant 2 : index
    %c0_292 = arith.constant 0 : index
    %228 = vector.load %arg19[%c1_290, %c2_291, %c0_292] : memref<10x10x128xf32, #tpu.memory_space<vmem>>, vector<8x8x128xf32>
    %229 = vector.shape_cast %228 : vector<8x8x128xf32> to vector<64x128xf32>
    %c0_293 = arith.constant 0 : index
    %c640_294 = arith.constant 640 : index
    %230 = vector.load %arg20[%c0_293, %c640_294] : memref<256x1152xf32, #tpu.memory_space<vmem>>, vector<64x128xf32>
    tpu.vector_store %arg20[%c0_293, %c640_294], %229 {strides = array<i32>} : memref<256x1152xf32, #tpu.memory_space<vmem>>, vector<64x128xf32>,
    %c2_295 = arith.constant 2 : index
    %c0_296 = arith.constant 0 : index
    %c0_297 = arith.constant 0 : index
    %231 = vector.load %arg19[%c2_295, %c0_296, %c0_297] : memref<10x10x128xf32, #tpu.memory_space<vmem>>, vector<8x8x128xf32>
    %232 = vector.shape_cast %231 : vector<8x8x128xf32> to vector<64x128xf32>
    %c0_298 = arith.constant 0 : index
    %c768_299 = arith.constant 768 : index
    %233 = vector.load %arg20[%c0_298, %c768_299] : memref<256x1152xf32, #tpu.memory_space<vmem>>, vector<64x128xf32>
    tpu.vector_store %arg20[%c0_298, %c768_299], %232 {strides = array<i32>} : memref<256x1152xf32, #tpu.memory_space<vmem>>, vector<64x128xf32>,
    %c2_300 = arith.constant 2 : index
    %c1_301 = arith.constant 1 : index
    %c0_302 = arith.constant 0 : index
    %234 = vector.load %arg19[%c2_300, %c1_301, %c0_302] : memref<10x10x128xf32, #tpu.memory_space<vmem>>, vector<8x8x128xf32>
    %235 = vector.shape_cast %234 : vector<8x8x128xf32> to vector<64x128xf32>
    %c0_303 = arith.constant 0 : index
    %c896_304 = arith.constant 896 : index
    %236 = vector.load %arg20[%c0_303, %c896_304] : memref<256x1152xf32, #tpu.memory_space<vmem>>, vector<64x128xf32>
    tpu.vector_store %arg20[%c0_303, %c896_304], %235 {strides = array<i32>} : memref<256x1152xf32, #tpu.memory_space<vmem>>, vector<64x128xf32>,
    %c2_305 = arith.constant 2 : index
    %c2_306 = arith.constant 2 : index
    %c0_307 = arith.constant 0 : index
    %237 = vector.load %arg19[%c2_305, %c2_306, %c0_307] : memref<10x10x128xf32, #tpu.memory_space<vmem>>, vector<8x8x128xf32>
    %238 = vector.shape_cast %237 : vector<8x8x128xf32> to vector<64x128xf32>
    %c0_308 = arith.constant 0 : index
    %c1024_309 = arith.constant 1024 : index
    %239 = vector.load %arg20[%c0_308, %c1024_309] : memref<256x1152xf32, #tpu.memory_space<vmem>>, vector<64x128xf32>
    tpu.vector_store %arg20[%c0_308, %c1024_309], %238 {strides = array<i32>} : memref<256x1152xf32, #tpu.memory_space<vmem>>, vector<64x128xf32>,
    %c0_310 = arith.constant 0 : index
    %c0_311 = arith.constant 0 : index
    %240 = vector.load %arg20[%c0_310, %c0_311] : memref<256x1152xf32, #tpu.memory_space<vmem>>, vector<64x1152xf32>
    %c0_312 = arith.constant 0 : index
    %c0_313 = arith.constant 0 : index
    %241 = vector.load %arg8[%c0_312, %c0_313] : memref<1152x128xf32, #tpu.memory_space<vmem>>, vector<1152x128xf32>
    %cst_314 = arith.constant dense<0.000000e+00> : vector<64x128xf32>
    %242 = tpu.matmul %240, %241, %cst_314 {dimension_numbers = #tpu.dot_dimension_numbers<[1], [0], [0], [1], [0, 0, 1, 1], [], []>} : vector<64x1152xf32>, vector<1152x128xf32>, vector<64x128xf32> -> vector<64x128xf32>
    %c0_315 = arith.constant 0 : index
    %c0_316 = arith.constant 0 : index
    %243 = vector.load %arg9[%c0_315, %c0_316] : memref<1x128xf32, #tpu.memory_space<vmem>>, vector<1x128xf32>
    %244 = vector.broadcast %243 : vector<1x128xf32> to vector<64x128xf32>
    %245 = arith.addf %242, %244 : vector<64x128xf32>
    %cst_317 = arith.constant 0.000000e+00 : f32
    %246 = vector.broadcast %cst_317 : f32 to vector<64x128xf32>
    %247 = arith.maximumf %245, %246 : vector<64x128xf32>
    %c0_318 = arith.constant 0 : index
    %c0_319 = arith.constant 0 : index
    %248 = vector.load %arg10[%c0_318, %c0_319] : memref<128x128xf32, #tpu.memory_space<vmem>>, vector<128x128xf32>
    %cst_320 = arith.constant dense<0.000000e+00> : vector<64x128xf32>
    %249 = tpu.matmul %247, %248, %cst_320 {dimension_numbers = #tpu.dot_dimension_numbers<[1], [0], [0], [1], [0, 0, 1, 1], [], []>} : vector<64x128xf32>, vector<128x128xf32>, vector<64x128xf32> -> vector<64x128xf32>
    %c0_321 = arith.constant 0 : index
    %c0_322 = arith.constant 0 : index
    %250 = vector.load %arg11[%c0_321, %c0_322] : memref<1x128xf32, #tpu.memory_space<vmem>>, vector<1x128xf32>
    %251 = vector.broadcast %250 : vector<1x128xf32> to vector<64x128xf32>
    %252 = arith.addf %249, %251 : vector<64x128xf32>
    %253 = tpu.iota {dimensions = array<i32: 1>} : vector<64x128xi32>
    %c3_i32_323 = arith.constant 3 : i32
    %254 = vector.broadcast %c3_i32_323 : i32 to vector<64x128xi32>
    %255 = arith.cmpi slt, %253, %254 : vector<64x128xi32>
    %cst_324 = arith.constant 0.000000e+00 : f32
    %256 = vector.broadcast %cst_324 : f32 to vector<64x128xf32>
    %257 = arith.subf %256, %252 : vector<64x128xf32>
    %258 = math.exp %257 : vector<64x128xf32>
    %cst_325 = arith.constant 1.000000e+00 : f32
    %259 = vector.broadcast %cst_325 : f32 to vector<64x128xf32>
    %260 = arith.addf %259, %258 : vector<64x128xf32>
    %cst_326 = arith.constant 1.000000e+00 : f32
    %261 = vector.broadcast %cst_326 : f32 to vector<64x128xf32>
    %262 = arith.divf %261, %260 : vector<64x128xf32>
    %263 = arith.select %255, %262, %252 : vector<64x128xi1>, vector<64x128xf32>
    %c0_327 = arith.constant 0 : index
    %c0_328 = arith.constant 0 : index
    %c0_329 = arith.constant 0 : index
    %264 = vector.load %arg15[%c0_327, %c0_328, %c0_329] : memref<1x64x128xf32, #tpu.memory_space<vmem>>, vector<1x64x128xf32>
    %265 = vector.shape_cast %264 : vector<1x64x128xf32> to vector<64x128xf32>
    %266 = vector.shape_cast %263 : vector<64x128xf32> to vector<1x64x128xf32>
    tpu.vector_store %arg15[%c0_327, %c0_328, %c0_329], %266 {strides = array<i32>} : memref<1x64x128xf32, #tpu.memory_space<vmem>>, vector<1x64x128xf32>,
    return
  }
  func.func @transform_0(%arg0: i32) -> (i32, i32, i32) {
    %c0_i32 = arith.constant 0 : i32
    %c0_i32_0 = arith.constant 0 : i32
    %c0_i32_1 = arith.constant 0 : i32
    return %arg0, %c0_i32, %c0_i32_0 : i32, i32, i32
  }
  func.func @transform_1(%arg0: i32) -> (i32, i32) {
    %c0_i32 = arith.constant 0 : i32
    %c0_i32_0 = arith.constant 0 : i32
    %c0_i32_1 = arith.constant 0 : i32
    return %c0_i32, %c0_i32_0 : i32, i32
  }
  func.func @transform_2(%arg0: i32) -> (i32, i32) {
    %c0_i32 = arith.constant 0 : i32
    %c0_i32_0 = arith.constant 0 : i32
    %c0_i32_1 = arith.constant 0 : i32
    return %c0_i32, %c0_i32_0 : i32, i32
  }
  func.func @transform_3(%arg0: i32) -> (i32, i32) {
    %c0_i32 = arith.constant 0 : i32
    %c0_i32_0 = arith.constant 0 : i32
    %c0_i32_1 = arith.constant 0 : i32
    return %c0_i32, %c0_i32_0 : i32, i32
  }
  func.func @transform_4(%arg0: i32) -> (i32, i32) {
    %c0_i32 = arith.constant 0 : i32
    %c0_i32_0 = arith.constant 0 : i32
    %c0_i32_1 = arith.constant 0 : i32
    return %c0_i32, %c0_i32_0 : i32, i32
  }
  func.func @transform_5(%arg0: i32) -> (i32, i32) {
    %c0_i32 = arith.constant 0 : i32
    %c0_i32_0 = arith.constant 0 : i32
    %c0_i32_1 = arith.constant 0 : i32
    return %c0_i32, %c0_i32_0 : i32, i32
  }
  func.func @transform_6(%arg0: i32) -> (i32, i32) {
    %c0_i32 = arith.constant 0 : i32
    %c0_i32_0 = arith.constant 0 : i32
    %c0_i32_1 = arith.constant 0 : i32
    return %c0_i32, %c0_i32_0 : i32, i32
  }
  func.func @transform_7(%arg0: i32) -> (i32, i32) {
    %c0_i32 = arith.constant 0 : i32
    %c0_i32_0 = arith.constant 0 : i32
    %c0_i32_1 = arith.constant 0 : i32
    return %c0_i32, %c0_i32_0 : i32, i32
  }
  func.func @transform_8(%arg0: i32) -> (i32, i32) {
    %c0_i32 = arith.constant 0 : i32
    %c0_i32_0 = arith.constant 0 : i32
    %c0_i32_1 = arith.constant 0 : i32
    return %c0_i32, %c0_i32_0 : i32, i32
  }
  func.func @transform_9(%arg0: i32) -> (i32, i32) {
    %c0_i32 = arith.constant 0 : i32
    %c0_i32_0 = arith.constant 0 : i32
    %c0_i32_1 = arith.constant 0 : i32
    return %c0_i32, %c0_i32_0 : i32, i32
  }
  func.func @transform_10(%arg0: i32) -> (i32, i32) {
    %c0_i32 = arith.constant 0 : i32
    %c0_i32_0 = arith.constant 0 : i32
    %c0_i32_1 = arith.constant 0 : i32
    return %c0_i32, %c0_i32_0 : i32, i32
  }
  func.func @transform_11(%arg0: i32) -> (i32, i32, i32) {
    %c0_i32 = arith.constant 0 : i32
    %c0_i32_0 = arith.constant 0 : i32
    %c0_i32_1 = arith.constant 0 : i32
    return %arg0, %c0_i32, %c0_i32_0 : i32, i32, i32
  }
  func.func @transform_12(%arg0: i32) -> (i32, i32, i32) {
    %c0_i32 = arith.constant 0 : i32
    %c0_i32_0 = arith.constant 0 : i32
    %c0_i32_1 = arith.constant 0 : i32
    return %arg0, %c0_i32, %c0_i32_0 : i32, i32, i32
  }
  func.func @transform_13(%arg0: i32) -> (i32, i32, i32) {
    %c0_i32 = arith.constant 0 : i32
    %c0_i32_0 = arith.constant 0 : i32
    %c0_i32_1 = arith.constant 0 : i32
    return %arg0, %c0_i32, %c0_i32_0 : i32, i32, i32
  }
  func.func @transform_14(%arg0: i32) -> (i32, i32, i32) {
    %c0_i32 = arith.constant 0 : i32
    %c0_i32_0 = arith.constant 0 : i32
    %c0_i32_1 = arith.constant 0 : i32
    return %arg0, %c0_i32, %c0_i32_0 : i32, i32, i32
  }
}

</mosaic_0001>

<llo_original>
// kernel: srn_forward.1
$region0: #{srn_forward.1}
  #allocation0 [shape = 'u32[]', space=smem, size = 0x4, offset = 0x4, fixed_abs, tag = 'smem constant byte address 0x4 - core index']
  #allocation1 [shape = 'u32[144,128]{1,0:T(1,128)}', space=vmem, size = 0x12000, scoped, tag = 'internal scratch']
  #allocation2 [shape = 'f32[18,18,128]{2,1,0:T(8,128)}', space=vmem, size = 0x36000, scoped, tag = 'scratch operand']
  #allocation3 [shape = 'f32[18,18,128]{2,1,0:T(8,128)}', space=vmem, size = 0x36000, scoped, tag = 'scratch operand']
  #allocation4 [shape = 'f32[10,10,128]{2,1,0:T(8,128)}', space=vmem, size = 0x14000, scoped, tag = 'scratch operand']
  #allocation5 [shape = 'f32[10,10,128]{2,1,0:T(8,128)}', space=vmem, size = 0x14000, scoped, tag = 'scratch operand']
  #allocation6 [shape = 'f32[256,1152]{1,0:T(8,128)}', space=vmem, size = 0x120000, scoped, tag = 'scratch operand']
  %s0 = inlined_call_operand.vmem [shape: f32[2,256,128], index: 0, kind: input, shape index: {}]
  %s1 = inlined_call_operand.vmem [shape: f32[128,128], index: 1, kind: input, shape index: {}]
  %s2 = inlined_call_operand.vmem [shape: f32[1,128], index: 2, kind: input, shape index: {}]
  %s3 = inlined_call_operand.vmem [shape: f32[1152,128], index: 3, kind: input, shape index: {}]
  %s4 = inlined_call_operand.vmem [shape: f32[1,128], index: 4, kind: input, shape index: {}]
  %s5 = inlined_call_operand.vmem [shape: f32[1152,128], index: 5, kind: input, shape index: {}]
  %s6 = inlined_call_operand.vmem [shape: f32[1,128], index: 6, kind: input, shape index: {}]
  %s7 = inlined_call_operand.vmem [shape: f32[1152,128], index: 7, kind: input, shape index: {}]
  %s8 = inlined_call_operand.vmem [shape: f32[1,128], index: 8, kind: input, shape index: {}]
  %s9 = inlined_call_operand.vmem [shape: f32[128,128], index: 9, kind: input, shape index: {}]
  %s10 = inlined_call_operand.vmem [shape: f32[1,128], index: 10, kind: input, shape index: {}]
  %s11 = inlined_call_operand.vmem [shape: f32[2,256,128], index: 11, kind: output, shape index: {0}]
  %s12 = inlined_call_operand.vmem [shape: f32[2,256,128], index: 12, kind: output, shape index: {1}]
  %s13 = inlined_call_operand.vmem [shape: f32[2,64,128], index: 13, kind: output, shape index: {2}]
  %s14 = inlined_call_operand.vmem [shape: f32[2,64,128], index: 14, kind: output, shape index: {3}]
  %15 = xla_tuple %s11, %s12, %s13, %s14
  %s16 = sld [smem:[#allocation0]]
  $region101: #{srn_forward.1} parent=0
    _
  %s18 = ssub.s32 1, %s16
  %s19 = scalar_select 0, %s18, %s16
  loop: start=0, step=1, limit=4
  $region2: #{srn_forward.1} parent=0 // loop_pre_header
    _
  $region3: #{srn_forward.1} parent=0 // loop_header
    %s21 = sphi 0, %s25
    %p22 = scmp.ge.s32.totalorder %s21, 4
    %s31 = sphi 0, %s33
    %s34 = sphi 0, %s31
    %s35 = sphi 0, %s34
    %s51 = sphi 0, %s35
    %s55 = sphi 0, %s55
    %s57 = sphi 0, %s55
    %s58 = sphi 0, %s57
    %s72 = sphi 0, %s58
    %s76 = sphi 0, %s76
    %s78 = sphi 0, %s76
    %s79 = sphi 0, %s78
    %s93 = sphi 0, %s79
    %s97 = sphi 0, %s97
    %s99 = sphi 0, %s97
    %s100 = sphi 0, %s99
    %s114 = sphi 0, %s100
    %s118 = sphi 0, %s118
    %s120 = sphi 0, %s118
    %s121 = sphi 0, %s120
    %s135 = sphi 0, %s121
    %s139 = sphi 0, %s139
    %s141 = sphi 0, %s139
    %s142 = sphi 0, %s141
    %s156 = sphi 0, %s142
    %s160 = sphi 0, %s160
    %s162 = sphi 0, %s160
    %s163 = sphi 0, %s162
    %s177 = sphi 0, %s163
    %s181 = sphi 0, %s181
    %s183 = sphi 0, %s181
    %s184 = sphi 0, %s183
    %s198 = sphi 0, %s184
    %s202 = sphi 0, %s202
    %s204 = sphi 0, %s202
    %s205 = sphi 0, %s204
    %s219 = sphi 0, %s205
    %s223 = sphi 0, %s223
    %s225 = sphi 0, %s223
    %s226 = sphi 0, %s225
    %s240 = sphi 0, %s226
    %s244 = sphi 0, %s244
    %s246 = sphi 0, %s244
    %s247 = sphi 0, %s246
    %s261 = sphi 0, %s247
    %s267 = sphi 0, %s269
    %s270 = sphi 0, %s267
    %s271 = sphi 0, %s270
    %s287 = sphi 0, %s271
    %s293 = sphi 0, %s295
    %s296 = sphi 0, %s293
    %s297 = sphi 0, %s296
    %s313 = sphi 0, %s297
    %s319 = sphi 0, %s321
    %s322 = sphi 0, %s319
    %s323 = sphi 0, %s322
    %s339 = sphi 0, %s323
    %s345 = sphi 0, %s347
    %s348 = sphi 0, %s345
    %s349 = sphi 0, %s348
    %s365 = sphi 0, %s349
  $region4: #{srn_forward.1} parent=0 // loop_header_branch
    %24 = sbr.rel (%p22) target = $region8
  $region5: #{srn_forward.1} parent=0 // loop_body
    %s26 = ssub.s32 %s21, 1
    %s27 = ssub.s32 %s21, 2
    %s28 = sadd.s32 %s21, 1
    %s29 = ssub.s32 %s21, %s28
    %p30 = scmp.eq.s32.totalorder %s29, 0
    %s32 = sadd.s32 %s31, 1
    %s33 = scalar_select %p30, %s31, %s32
    %p36 = pneg %p30
    %p37 = scmp.eq.s32.totalorder %s21, 1
    %p38 = por %p36, %p37
    %p39 = scmp.ne.s32.totalorder %s31, %s34
    %p40 = scmp.eq.s32.totalorder %s21, 0
    %p41 = por %p39, %p40
    %p42 = scmp.ne.s32.totalorder %s31, %s34
    %p43 = scmp.eq.s32.totalorder %s26, 1
    %p44 = por %p42, %p43
    %p45 = scmp.ne.s32.totalorder %s34, %s35
    %p46 = scmp.eq.s32.totalorder %s26, 0
    %p47 = por %p45, %p46
    %p48 = scmp.ne.s32.totalorder %s34, %s35
    %p49 = scmp.eq.s32.totalorder %s27, 1
    %p50 = por %p48, %p49
    %p52 = scmp.ne.s32.totalorder %s35, %s51
    %p53 = scmp.eq.s32.totalorder %s27, 0
    %p54 = por %p52, %p53
    %s56 = sadd.s32 %s55, 1
    %p59 = scmp.eq.s32.totalorder %s21, 1
    %p60 = scmp.ne.s32.totalorder %s55, %s57
    %p61 = scmp.eq.s32.totalorder %s21, 0
    %p62 = por %p60, %p61
    %p63 = scmp.ne.s32.totalorder %s55, %s57
    %p64 = scmp.eq.s32.totalorder %s26, 1
    %p65 = por %p63, %p64
    %p66 = scmp.ne.s32.totalorder %s57, %s58
    %p67 = scmp.eq.s32.totalorder %s26, 0
    %p68 = por %p66, %p67
    %p69 = scmp.ne.s32.totalorder %s57, %s58
    %p70 = scmp.eq.s32.totalorder %s27, 1
    %p71 = por %p69, %p70
    %p73 = scmp.ne.s32.totalorder %s58, %s72
    %p74 = scmp.eq.s32.totalorder %s27, 0
    %p75 = por %p73, %p74
    %s77 = sadd.s32 %s76, 1
    %p80 = scmp.eq.s32.totalorder %s21, 1
    %p81 = scmp.ne.s32.totalorder %s76, %s78
    %p82 = scmp.eq.s32.totalorder %s21, 0
    %p83 = por %p81, %p82
    %p84 = scmp.ne.s32.totalorder %s76, %s78
    %p85 = scmp.eq.s32.totalorder %s26, 1
    %p86 = por %p84, %p85
    %p87 = scmp.ne.s32.totalorder %s78, %s79
    %p88 = scmp.eq.s32.totalorder %s26, 0
    %p89 = por %p87, %p88
    %p90 = scmp.ne.s32.totalorder %s78, %s79
    %p91 = scmp.eq.s32.totalorder %s27, 1
    %p92 = por %p90, %p91
    %p94 = scmp.ne.s32.totalorder %s79, %s93
    %p95 = scmp.eq.s32.totalorder %s27, 0
    %p96 = por %p94, %p95
    %s98 = sadd.s32 %s97, 1
    %p101 = scmp.eq.s32.totalorder %s21, 1
    %p102 = scmp.ne.s32.totalorder %s97, %s99
    %p103 = scmp.eq.s32.totalorder %s21, 0
    %p104 = por %p102, %p103
    %p105 = scmp.ne.s32.totalorder %s97, %s99
    %p106 = scmp.eq.s32.totalorder %s26, 1
    %p107 = por %p105, %p106
    %p108 = scmp.ne.s32.totalorder %s99, %s100
    %p109 = scmp.eq.s32.totalorder %s26, 0
    %p110 = por %p108, %p109
    %p111 = scmp.ne.s32.totalorder %s99, %s100
    %p112 = scmp.eq.s32.totalorder %s27, 1
    %p113 = por %p111, %p112
    %p115 = scmp.ne.s32.totalorder %s100, %s114
    %p116 = scmp.eq.s32.totalorder %s27, 0
    %p117 = por %p115, %p116
    %s119 = sadd.s32 %s118, 1
    %p122 = scmp.eq.s32.totalorder %s21, 1
    %p123 = scmp.ne.s32.totalorder %s118, %s120
    %p124 = scmp.eq.s32.totalorder %s21, 0
    %p125 = por %p123, %p124
    %p126 = scmp.ne.s32.totalorder %s118, %s120
    %p127 = scmp.eq.s32.totalorder %s26, 1
    %p128 = por %p126, %p127
    %p129 = scmp.ne.s32.totalorder %s120, %s121
    %p130 = scmp.eq.s32.totalorder %s26, 0
    %p131 = por %p129, %p130
    %p132 = scmp.ne.s32.totalorder %s120, %s121
    %p133 = scmp.eq.s32.totalorder %s27, 1
    %p134 = por %p132, %p133
    %p136 = scmp.ne.s32.totalorder %s121, %s135
    %p137 = scmp.eq.s32.totalorder %s27, 0
    %p138 = por %p136, %p137
    %s140 = sadd.s32 %s139, 1
    %p143 = scmp.eq.s32.totalorder %s21, 1
    %p144 = scmp.ne.s32.totalorder %s139, %s141
    %p145 = scmp.eq.s32.totalorder %s21, 0
    %p146 = por %p144, %p145
    %p147 = scmp.ne.s32.totalorder %s139, %s141
    %p148 = scmp.eq.s32.totalorder %s26, 1
    %p149 = por %p147, %p148
    %p150 = scmp.ne.s32.totalorder %s141, %s142
    %p151 = scmp.eq.s32.totalorder %s26, 0
    %p152 = por %p150, %p151
    %p153 = scmp.ne.s32.totalorder %s141, %s142
    %p154 = scmp.eq.s32.totalorder %s27, 1
    %p155 = por %p153, %p154
    %p157 = scmp.ne.s32.totalorder %s142, %s156
    %p158 = scmp.eq.s32.totalorder %s27, 0
    %p159 = por %p157, %p158
    %s161 = sadd.s32 %s160, 1
    %p164 = scmp.eq.s32.totalorder %s21, 1
    %p165 = scmp.ne.s32.totalorder %s160, %s162
    %p166 = scmp.eq.s32.totalorder %s21, 0
    %p167 = por %p165, %p166
    %p168 = scmp.ne.s32.totalorder %s160, %s162
    %p169 = scmp.eq.s32.totalorder %s26, 1
    %p170 = por %p168, %p169
    %p171 = scmp.ne.s32.totalorder %s162, %s163
    %p172 = scmp.eq.s32.totalorder %s26, 0
    %p173 = por %p171, %p172
    %p174 = scmp.ne.s32.totalorder %s162, %s163
    %p175 = scmp.eq.s32.totalorder %s27, 1
    %p176 = por %p174, %p175
    %p178 = scmp.ne.s32.totalorder %s163, %s177
    %p179 = scmp.eq.s32.totalorder %s27, 0
    %p180 = por %p178, %p179
    %s182 = sadd.s32 %s181, 1
    %p185 = scmp.eq.s32.totalorder %s21, 1
    %p186 = scmp.ne.s32.totalorder %s181, %s183
    %p187 = scmp.eq.s32.totalorder %s21, 0
    %p188 = por %p186, %p187
    %p189 = scmp.ne.s32.totalorder %s181, %s183
    %p190 = scmp.eq.s32.totalorder %s26, 1
    %p191 = por %p189, %p190
    %p192 = scmp.ne.s32.totalorder %s183, %s184
    %p193 = scmp.eq.s32.totalorder %s26, 0
    %p194 = por %p192, %p193
    %p195 = scmp.ne.s32.totalorder %s183, %s184
    %p196 = scmp.eq.s32.totalorder %s27, 1
    %p197 = por %p195, %p196
    %p199 = scmp.ne.s32.totalorder %s184, %s198
    %p200 = scmp.eq.s32.totalorder %s27, 0
    %p201 = por %p199, %p200
    %s203 = sadd.s32 %s202, 1
    %p206 = scmp.eq.s32.totalorder %s21, 1
    %p207 = scmp.ne.s32.totalorder %s202, %s204
    %p208 = scmp.eq.s32.totalorder %s21, 0
    %p209 = por %p207, %p208
    %p210 = scmp.ne.s32.totalorder %s202, %s204
    %p211 = scmp.eq.s32.totalorder %s26, 1
    %p212 = por %p210, %p211
    %p213 = scmp.ne.s32.totalorder %s204, %s205
    %p214 = scmp.eq.s32.totalorder %s26, 0
    %p215 = por %p213, %p214
    %p216 = scmp.ne.s32.totalorder %s204, %s205
    %p217 = scmp.eq.s32.totalorder %s27, 1
    %p218 = por %p216, %p217
    %p220 = scmp.ne.s32.totalorder %s205, %s219
    %p221 = scmp.eq.s32.totalorder %s27, 0
    %p222 = por %p220, %p221
    %s224 = sadd.s32 %s223, 1
    %p227 = scmp.eq.s32.totalorder %s21, 1
    %p228 = scmp.ne.s32.totalorder %s223, %s225
    %p229 = scmp.eq.s32.totalorder %s21, 0
    %p230 = por %p228, %p229
    %p231 = scmp.ne.s32.totalorder %s223, %s225
    %p232 = scmp.eq.s32.totalorder %s26, 1
    %p233 = por %p231, %p232
    %p234 = scmp.ne.s32.totalorder %s225, %s226
    %p235 = scmp.eq.s32.totalorder %s26, 0
    %p236 = por %p234, %p235
    %p237 = scmp.ne.s32.totalorder %s225, %s226
    %p238 = scmp.eq.s32.totalorder %s27, 1
    %p239 = por %p237, %p238
    %p241 = scmp.ne.s32.totalorder %s226, %s240
    %p242 = scmp.eq.s32.totalorder %s27, 0
    %p243 = por %p241, %p242
    %s245 = sadd.s32 %s244, 1
    %p248 = scmp.eq.s32.totalorder %s21, 1
    %p249 = scmp.ne.s32.totalorder %s244, %s246
    %p250 = scmp.eq.s32.totalorder %s21, 0
    %p251 = por %p249, %p250
    %p252 = scmp.ne.s32.totalorder %s244, %s246
    %p253 = scmp.eq.s32.totalorder %s26, 1
    %p254 = por %p252, %p253
    %p255 = scmp.ne.s32.totalorder %s246, %s247
    %p256 = scmp.eq.s32.totalorder %s26, 0
    %p257 = por %p255, %p256
    %p258 = scmp.ne.s32.totalorder %s246, %s247
    %p259 = scmp.eq.s32.totalorder %s27, 1
    %p260 = por %p258, %p259
    %p262 = scmp.ne.s32.totalorder %s247, %s261
    %p263 = scmp.eq.s32.totalorder %s27, 0
    %p264 = por %p262, %p263
    %s265 = ssub.s32 %s21, %s28
    %p266 = scmp.eq.s32.totalorder %s265, 0
    %s268 = sadd.s32 %s267, 1
    %s269 = scalar_select %p266, %s267, %s268
    %p272 = pneg %p266
    %p273 = scmp.eq.s32.totalorder %s21, 1
    %p274 = por %p272, %p273
    %p275 = scmp.ne.s32.totalorder %s267, %s270
    %p276 = scmp.eq.s32.totalorder %s21, 0
    %p277 = por %p275, %p276
    %p278 = scmp.ne.s32.totalorder %s267, %s270
    %p279 = scmp.eq.s32.totalorder %s26, 1
    %p280 = por %p278, %p279
    %p281 = scmp.ne.s32.totalorder %s270, %s271
    %p282 = scmp.eq.s32.totalorder %s26, 0
    %p283 = por %p281, %p282
    %p284 = scmp.ne.s32.totalorder %s270, %s271
    %p285 = scmp.eq.s32.totalorder %s27, 1
    %p286 = por %p284, %p285
    %p288 = scmp.ne.s32.totalorder %s271, %s287
    %p289 = scmp.eq.s32.totalorder %s27, 0
    %p290 = por %p288, %p289
    %s291 = ssub.s32 %s21, %s28
    %p292 = scmp.eq.s32.totalorder %s291, 0
    %s294 = sadd.s32 %s293, 1
    %s295 = scalar_select %p292, %s293, %s294
    %p298 = pneg %p292
    %p299 = scmp.eq.s32.totalorder %s21, 1
    %p300 = por %p298, %p299
    %p301 = scmp.ne.s32.totalorder %s293, %s296
    %p302 = scmp.eq.s32.totalorder %s21, 0
    %p303 = por %p301, %p302
    %p304 = scmp.ne.s32.totalorder %s293, %s296
    %p305 = scmp.eq.s32.totalorder %s26, 1
    %p306 = por %p304, %p305
    %p307 = scmp.ne.s32.totalorder %s296, %s297
    %p308 = scmp.eq.s32.totalorder %s26, 0
    %p309 = por %p307, %p308
    %p310 = scmp.ne.s32.totalorder %s296, %s297
    %p311 = scmp.eq.s32.totalorder %s27, 1
    %p312 = por %p310, %p311
    %p314 = scmp.ne.s32.totalorder %s297, %s313
    %p315 = scmp.eq.s32.totalorder %s27, 0
    %p316 = por %p314, %p315
    %s317 = ssub.s32 %s21, %s28
    %p318 = scmp.eq.s32.totalorder %s317, 0
    %s320 = sadd.s32 %s319, 1
    %s321 = scalar_select %p318, %s319, %s320
    %p324 = pneg %p318
    %p325 = scmp.eq.s32.totalorder %s21, 1
    %p326 = por %p324, %p325
    %p327 = scmp.ne.s32.totalorder %s319, %s322
    %p328 = scmp.eq.s32.totalorder %s21, 0
    %p329 = por %p327, %p328
    %p330 = scmp.ne.s32.totalorder %s319, %s322
    %p331 = scmp.eq.s32.totalorder %s26, 1
    %p332 = por %p330, %p331
    %p333 = scmp.ne.s32.totalorder %s322, %s323
    %p334 = scmp.eq.s32.totalorder %s26, 0
    %p335 = por %p333, %p334
    %p336 = scmp.ne.s32.totalorder %s322, %s323
    %p337 = scmp.eq.s32.totalorder %s27, 1
    %p338 = por %p336, %p337
    %p340 = scmp.ne.s32.totalorder %s323, %s339
    %p341 = scmp.eq.s32.totalorder %s27, 0
    %p342 = por %p340, %p341
    %s343 = ssub.s32 %s21, %s28
    %p344 = scmp.eq.s32.totalorder %s343, 0
    %s346 = sadd.s32 %s345, 1
    %s347 = scalar_select %p344, %s345, %s346
    %p350 = pneg %p344
    %p351 = scmp.eq.s32.totalorder %s21, 1
    %p352 = por %p350, %p351
    %p353 = scmp.ne.s32.totalorder %s345, %s348
    %p354 = scmp.eq.s32.totalorder %s21, 0
    %p355 = por %p353, %p354
    %p356 = scmp.ne.s32.totalorder %s345, %s348
    %p357 = scmp.eq.s32.totalorder %s26, 1
    %p358 = por %p356, %p357
    %p359 = scmp.ne.s32.totalorder %s348, %s349
    %p360 = scmp.eq.s32.totalorder %s26, 0
    %p361 = por %p359, %p360
    %p362 = scmp.ne.s32.totalorder %s348, %s349
    %p363 = scmp.eq.s32.totalorder %s27, 1
    %p364 = por %p362, %p363
    %p366 = scmp.ne.s32.totalorder %s349, %s365
    %p367 = scmp.eq.s32.totalorder %s27, 0
    %p368 = por %p366, %p367
    %p369 = scmp.le.s32.totalorder 1, %s21
    %p370 = scmp.lt.s32.totalorder %s21, 3
    %p371 = pnand %p369, %p370
    %p372 = pneg %p371
    // Predicated region
    $region9: #{srn_forward.1} parent=5 // pred_check
      _
    $region10: #{srn_forward.1} parent=5 // pred_check_branch
      %374 = sbr.rel (%p371) target = $region12
    $region11: #{srn_forward.1} parent=5 // pred_region
      %s375 = ssub.s32 %s21, 1
      // Predicated region
      $region13: #{srn_forward.1} parent=11 // pred_check
        %p376 = pneg %p68
      $region14: #{srn_forward.1} parent=11 // pred_check_branch
        %378 = sbr.rel (%p376) target = $region16
      $region15: #{srn_forward.1} parent=11 // pred_region
        _
      $region16: #{srn_forward.1} parent=11 // pred_fallthru
        _
      // Predicated region
      $region17: #{srn_forward.1} parent=11 // pred_check
        %p379 = pneg %p89
      $region18: #{srn_forward.1} parent=11 // pred_check_branch
        %381 = sbr.rel (%p379) target = $region20
      $region19: #{srn_forward.1} parent=11 // pred_region
        _
      $region20: #{srn_forward.1} parent=11 // pred_fallthru
        _
      // Predicated region
      $region21: #{srn_forward.1} parent=11 // pred_check
        %p382 = pneg %p110
      $region22: #{srn_forward.1} parent=11 // pred_check_branch
        %384 = sbr.rel (%p382) target = $region24
      $region23: #{srn_forward.1} parent=11 // pred_region
        _
      $region24: #{srn_forward.1} parent=11 // pred_fallthru
        _
      // Predicated region
      $region25: #{srn_forward.1} parent=11 // pred_check
        %p385 = pneg %p131
      $region26: #{srn_forward.1} parent=11 // pred_check_branch
        %387 = sbr.rel (%p385) target = $region28
      $region27: #{srn_forward.1} parent=11 // pred_region
        _
      $region28: #{srn_forward.1} parent=11 // pred_fallthru
        _
      // Predicated region
      $region29: #{srn_forward.1} parent=11 // pred_check
        %p388 = pneg %p152
      $region30: #{srn_forward.1} parent=11 // pred_check_branch
        %390 = sbr.rel (%p388) target = $region32
      $region31: #{srn_forward.1} parent=11 // pred_region
        _
      $region32: #{srn_forward.1} parent=11 // pred_fallthru
        _
      // Predicated region
      $region33: #{srn_forward.1} parent=11 // pred_check
        %p391 = pneg %p173
      $region34: #{srn_forward.1} parent=11 // pred_check_branch
        %393 = sbr.rel (%p391) target = $region36
      $region35: #{srn_forward.1} parent=11 // pred_region
        _
      $region36: #{srn_forward.1} parent=11 // pred_fallthru
        _
      // Predicated region
      $region37: #{srn_forward.1} parent=11 // pred_check
        %p394 = pneg %p194
      $region38: #{srn_forward.1} parent=11 // pred_check_branch
        %396 = sbr.rel (%p394) target = $region40
      $region39: #{srn_forward.1} parent=11 // pred_region
        _
      $region40: #{srn_forward.1} parent=11 // pred_fallthru
        _
      // Predicated region
      $region41: #{srn_forward.1} parent=11 // pred_check
        %p397 = pneg %p215
      $region42: #{srn_forward.1} parent=11 // pred_check_branch
        %399 = sbr.rel (%p397) target = $region44
      $region43: #{srn_forward.1} parent=11 // pred_region
        _
      $region44: #{srn_forward.1} parent=11 // pred_fallthru
        _
      // Predicated region
      $region45: #{srn_forward.1} parent=11 // pred_check
        %p400 = pneg %p236
      $region46: #{srn_forward.1} parent=11 // pred_check_branch
        %402 = sbr.rel (%p400) target = $region48
      $region47: #{srn_forward.1} parent=11 // pred_region
        _
      $region48: #{srn_forward.1} parent=11 // pred_fallthru
        _
      // Predicated region
      $region49: #{srn_forward.1} parent=11 // pred_check
        %p403 = pneg %p257
      $region50: #{srn_forward.1} parent=11 // pred_check_branch
        %405 = sbr.rel (%p403) target = $region52
      $region51: #{srn_forward.1} parent=11 // pred_region
        _
      $region52: #{srn_forward.1} parent=11 // pred_fallthru
        _
    $region12: #{srn_forward.1} parent=5 // pred_fallthru
      _
    %p406 = scmp.lt.s32.totalorder %s21, 2
    // Predicated region
    $region53: #{srn_forward.1} parent=5 // pred_check
      %p407 = pneg %p406
    $region54: #{srn_forward.1} parent=5 // pred_check_branch
      %409 = sbr.rel (%p407) target = $region56
    $region55: #{srn_forward.1} parent=5 // pred_region
      // Predicated region
      $region57: #{srn_forward.1} parent=55 // pred_check
        %p410 = pneg %p41
      $region58: #{srn_forward.1} parent=55 // pred_check_branch
        %412 = sbr.rel (%p410) target = $region60
      $region59: #{srn_forward.1} parent=55 // pred_region
        %p413 = scmp.lt.s32.totalorder %s21, 1
        %s414 = scalar_select %p413, %s21, 1
        %s415 = smul.addr %s414, 32
        %s416 = smul.addr %s415, 8
        %s417 = scalar_lea.vmem %s0, %s416
      $region60: #{srn_forward.1} parent=55 // pred_fallthru
        _
    $region56: #{srn_forward.1} parent=5 // pred_fallthru
      _
    %p418 = scmp.le.s32.totalorder 1, %s21
    %p419 = scmp.lt.s32.totalorder %s21, 3
    %p420 = pnand %p418, %p419
    %p421 = pneg %p420
    // Predicated region
    $region61: #{srn_forward.1} parent=5 // pred_check
      _
    $region62: #{srn_forward.1} parent=5 // pred_check_branch
      %423 = sbr.rel (%p420) target = $region64
    $region63: #{srn_forward.1} parent=5 // pred_region
      %s424 = ssub.s32 %s21, 1
      %p425 = scmp.lt.s32.totalorder %s26, 1
      %s426 = scalar_select %p425, %s26, 1
      %s427 = smul.addr %s426, 32
      %s428 = smul.addr %s427, 8
      %s429 = scalar_lea.vmem %s0, %s428
      %p430 = pneg %p47
      %p431 = pneg %p44
      %p432 = pneg %p68
      %p433 = pneg %p65
      %p434 = pneg %p89
      %p435 = pneg %p86
      %p436 = pneg %p110
      %p437 = pneg %p107
      %p438 = pneg %p131
      %p439 = pneg %p128
      %p440 = pneg %p152
      %p441 = pneg %p149
      %p442 = pneg %p173
      %p443 = pneg %p170
      %p444 = pneg %p194
      %p445 = pneg %p191
      %p446 = pneg %p215
      %p447 = pneg %p212
      %p448 = pneg %p236
      %p449 = pneg %p233
      %p450 = pneg %p257
      %p451 = pneg %p254
      %p452 = pneg %p283
      %p453 = pneg %p280
      %p454 = scmp.lt.s32.totalorder %s26, 1
      %s455 = scalar_select %p454, %s26, 1
      %s456 = smul.addr %s455, 32
      %s457 = smul.addr %s456, 8
      %s458 = scalar_lea.vmem %s11, %s457
      %p459 = pneg %p309
      %p460 = pneg %p306
      %p461 = scmp.lt.s32.totalorder %s26, 1
      %s462 = scalar_select %p461, %s26, 1
      %s463 = smul.addr %s462, 32
      %s464 = smul.addr %s463, 8
      %s465 = scalar_lea.vmem %s12, %s464
      %p466 = pneg %p335
      %p467 = pneg %p332
      %p468 = scmp.lt.s32.totalorder %s26, 1
      %s469 = scalar_select %p468, %s26, 1
      %s470 = smul.addr %s469, 8
      %s471 = smul.addr %s470, 8
      %s472 = scalar_lea.vmem %s13, %s471
      %p473 = pneg %p361
      %p474 = pneg %p358
      %p475 = scmp.lt.s32.totalorder %s26, 1
      %s476 = scalar_select %p475, %s26, 1
      %s477 = smul.addr %s476, 8
      %s478 = smul.addr %s477, 8
      %s479 = scalar_lea.vmem %s14, %s478
      %p480 = scmp.lt.s32.totalorder %s26, 1
      %s481 = scalar_select %p480, %s26, 1
      %s482 = smul.addr %s481, 32
      %s483 = smul.addr %s482, 8
      %s484 = scalar_lea.vmem %s0, %s483
      %p485 = scmp.lt.s32.totalorder %s26, 1
      %s486 = scalar_select %p485, %s26, 1
      %s487 = smul.addr %s486, 32
      %s488 = smul.addr %s487, 8
      %s489 = scalar_lea.vmem %s11, %s488
      %p490 = scmp.lt.s32.totalorder %s26, 1
      %s491 = scalar_select %p490, %s26, 1
      %s492 = smul.addr %s491, 32
      %s493 = smul.addr %s492, 8
      %s494 = scalar_lea.vmem %s12, %s493
      %p495 = scmp.lt.s32.totalorder %s26, 1
      %s496 = scalar_select %p495, %s26, 1
      %s497 = smul.addr %s496, 8
      %s498 = smul.addr %s497, 8
      %s499 = scalar_lea.vmem %s13, %s498
      %p500 = scmp.lt.s32.totalorder %s26, 1
      %s501 = scalar_select %p500, %s26, 1
      %s502 = smul.addr %s501, 8
      %s503 = smul.addr %s502, 8
      %s504 = scalar_lea.vmem %s14, %s503
      %505 = vst [vmem:[#allocation2] sm:$0xff] 0.0
      %506 = vst [vmem:[#allocation2 + $0x8] sm:$0xff] 0.0
      %507 = vst [vmem:[#allocation2 + $0x10] sm:$0x3] 0.0
      %s508 = scalar_lea.vmem [#allocation2], 408
      %509 = vst [vmem:[%s508] sm:$0xff] 0.0
      %510 = vst [vmem:[%s508 + $0x8] sm:$0xff] 0.0
      %511 = vst [vmem:[%s508 + $0x10] sm:$0x3] 0.0
      %s512 = scalar_lea.vmem [#allocation2], 24
      %513 = vst [vmem:[%s512] sm:$0x1] 0.0
      %514 = vst [vmem:[%s512 + $0x18] sm:$0x1] 0.0
      %515 = vst [vmem:[%s512 + $0x30] sm:$0x1] 0.0
      %516 = vst [vmem:[%s512 + $0x48] sm:$0x1] 0.0
      %517 = vst [vmem:[%s512 + $0x60] sm:$0x1] 0.0
      %518 = vst [vmem:[%s512 + $0x78] sm:$0x1] 0.0
      %519 = vst [vmem:[%s512 + $0x90] sm:$0x1] 0.0
      %520 = vst [vmem:[%s512 + $0xa8] sm:$0x1] 0.0
      %521 = vst [vmem:[%s512 + $0xc0] sm:$0x1] 0.0
      %522 = vst [vmem:[%s512 + $0xd8] sm:$0x1] 0.0
      %523 = vst [vmem:[%s512 + $0xf0] sm:$0x1] 0.0
      %524 = vst [vmem:[%s512 + $0x108] sm:$0x1] 0.0
      %525 = vst [vmem:[%s512 + $0x120] sm:$0x1] 0.0
      %526 = vst [vmem:[%s512 + $0x138] sm:$0x1] 0.0
      %527 = vst [vmem:[%s512 + $0x150] sm:$0x1] 0.0
      %528 = vst [vmem:[%s512 + $0x168] sm:$0x1] 0.0
      %529 = vst [vmem:[%s512 + $0x11] sm:$0x1] 0.0
      %530 = vst [vmem:[%s512 + $0x29] sm:$0x1] 0.0
      %531 = vst [vmem:[%s512 + $0x41] sm:$0x1] 0.0
      %532 = vst [vmem:[%s512 + $0x59] sm:$0x1] 0.0
      %533 = vst [vmem:[%s512 + $0x71] sm:$0x1] 0.0
      %534 = vst [vmem:[%s512 + $0x89] sm:$0x1] 0.0
      %535 = vst [vmem:[%s512 + $0xa1] sm:$0x1] 0.0
      %536 = vst [vmem:[%s512 + $0xb9] sm:$0x1] 0.0
      %537 = vst [vmem:[%s512 + $0xd1] sm:$0x1] 0.0
      %538 = vst [vmem:[%s512 + $0xe9] sm:$0x1] 0.0
      %539 = vst [vmem:[%s512 + $0x101] sm:$0x1] 0.0
      %540 = vst [vmem:[%s512 + $0x119] sm:$0x1] 0.0
      %541 = vst [vmem:[%s512 + $0x131] sm:$0x1] 0.0
      %542 = vst [vmem:[%s512 + $0x149] sm:$0x1] 0.0
      %543 = vst [vmem:[%s512 + $0x161] sm:$0x1] 0.0
      %544 = vst [vmem:[%s512 + $0x179] sm:$0x1] 0.0
      %545 = vst [vmem:[#allocation3] sm:$0xff] 0.0
      %546 = vst [vmem:[#allocation3 + $0x8] sm:$0xff] 0.0
      %547 = vst [vmem:[#allocation3 + $0x10] sm:$0x3] 0.0
      %s548 = scalar_lea.vmem [#allocation3], 408
      %549 = vst [vmem:[%s548] sm:$0xff] 0.0
      %550 = vst [vmem:[%s548 + $0x8] sm:$0xff] 0.0
      %551 = vst [vmem:[%s548 + $0x10] sm:$0x3] 0.0
      %s552 = scalar_lea.vmem [#allocation3], 24
      %553 = vst [vmem:[%s552] sm:$0x1] 0.0
      %554 = vst [vmem:[%s552 + $0x18] sm:$0x1] 0.0
      %555 = vst [vmem:[%s552 + $0x30] sm:$0x1] 0.0
      %556 = vst [vmem:[%s552 + $0x48] sm:$0x1] 0.0
      %557 = vst [vmem:[%s552 + $0x60] sm:$0x1] 0.0
      %558 = vst [vmem:[%s552 + $0x78] sm:$0x1] 0.0
      %559 = vst [vmem:[%s552 + $0x90] sm:$0x1] 0.0
      %560 = vst [vmem:[%s552 + $0xa8] sm:$0x1] 0.0
      %561 = vst [vmem:[%s552 + $0xc0] sm:$0x1] 0.0
      %562 = vst [vmem:[%s552 + $0xd8] sm:$0x1] 0.0
      %563 = vst [vmem:[%s552 + $0xf0] sm:$0x1] 0.0
      %564 = vst [vmem:[%s552 + $0x108] sm:$0x1] 0.0
      %565 = vst [vmem:[%s552 + $0x120] sm:$0x1] 0.0
      %566 = vst [vmem:[%s552 + $0x138] sm:$0x1] 0.0
      %567 = vst [vmem:[%s552 + $0x150] sm:$0x1] 0.0
      %568 = vst [vmem:[%s552 + $0x168] sm:$0x1] 0.0
      %569 = vst [vmem:[%s552 + $0x11] sm:$0x1] 0.0
      %570 = vst [vmem:[%s552 + $0x29] sm:$0x1] 0.0
      %571 = vst [vmem:[%s552 + $0x41] sm:$0x1] 0.0
      %572 = vst [vmem:[%s552 + $0x59] sm:$0x1] 0.0
      %573 = vst [vmem:[%s552 + $0x71] sm:$0x1] 0.0
      %574 = vst [vmem:[%s552 + $0x89] sm:$0x1] 0.0
      %575 = vst [vmem:[%s552 + $0xa1] sm:$0x1] 0.0
      %576 = vst [vmem:[%s552 + $0xb9] sm:$0x1] 0.0
      %577 = vst [vmem:[%s552 + $0xd1] sm:$0x1] 0.0
      %578 = vst [vmem:[%s552 + $0xe9] sm:$0x1] 0.0
      %579 = vst [vmem:[%s552 + $0x101] sm:$0x1] 0.0
      %580 = vst [vmem:[%s552 + $0x119] sm:$0x1] 0.0
      %581 = vst [vmem:[%s552 + $0x131] sm:$0x1] 0.0
      %582 = vst [vmem:[%s552 + $0x149] sm:$0x1] 0.0
      %583 = vst [vmem:[%s552 + $0x161] sm:$0x1] 0.0
      %584 = vst [vmem:[%s552 + $0x179] sm:$0x1] 0.0
      %585 = vst [vmem:[#allocation4] sm:$0xff] 0.0
      %586 = vst [vmem:[#allocation4 + $0x8] sm:$0x3] 0.0
      %s587 = scalar_lea.vmem [#allocation4], 144
      %588 = vst [vmem:[%s587] sm:$0xff] 0.0
      %589 = vst [vmem:[%s587 + $0x8] sm:$0x3] 0.0
      %s590 = scalar_lea.vmem [#allocation4], 16
      %591 = vst [vmem:[%s590] sm:$0x1] 0.0
      %592 = vst [vmem:[%s590 + $0x10] sm:$0x1] 0.0
      %593 = vst [vmem:[%s590 + $0x20] sm:$0x1] 0.0
      %594 = vst [vmem:[%s590 + $0x30] sm:$0x1] 0.0
      %595 = vst [vmem:[%s590 + $0x40] sm:$0x1] 0.0
      %596 = vst [vmem:[%s590 + $0x50] sm:$0x1] 0.0
      %597 = vst [vmem:[%s590 + $0x60] sm:$0x1] 0.0
      %598 = vst [vmem:[%s590 + $0x70] sm:$0x1] 0.0
      %599 = vst [vmem:[%s590 + $0x9] sm:$0x1] 0.0
      %600 = vst [vmem:[%s590 + $0x19] sm:$0x1] 0.0
      %601 = vst [vmem:[%s590 + $0x29] sm:$0x1] 0.0
      %602 = vst [vmem:[%s590 + $0x39] sm:$0x1] 0.0
      %603 = vst [vmem:[%s590 + $0x49] sm:$0x1] 0.0
      %604 = vst [vmem:[%s590 + $0x59] sm:$0x1] 0.0
      %605 = vst [vmem:[%s590 + $0x69] sm:$0x1] 0.0
      %606 = vst [vmem:[%s590 + $0x79] sm:$0x1] 0.0
      %607 = vst [vmem:[#allocation5] sm:$0xff] 0.0
      %608 = vst [vmem:[#allocation5 + $0x8] sm:$0x3] 0.0
      %s609 = scalar_lea.vmem [#allocation5], 144
      %610 = vst [vmem:[%s609] sm:$0xff] 0.0
      %611 = vst [vmem:[%s609 + $0x8] sm:$0x3] 0.0
      %s612 = scalar_lea.vmem [#allocation5], 16
      %613 = vst [vmem:[%s612] sm:$0x1] 0.0
      %614 = vst [vmem:[%s612 + $0x10] sm:$0x1] 0.0
      %615 = vst [vmem:[%s612 + $0x20] sm:$0x1] 0.0
      %616 = vst [vmem:[%s612 + $0x30] sm:$0x1] 0.0
      %617 = vst [vmem:[%s612 + $0x40] sm:$0x1] 0.0
      %618 = vst [vmem:[%s612 + $0x50] sm:$0x1] 0.0
      %619 = vst [vmem:[%s612 + $0x60] sm:$0x1] 0.0
      %620 = vst [vmem:[%s612 + $0x70] sm:$0x1] 0.0
      %621 = vst [vmem:[%s612 + $0x9] sm:$0x1] 0.0
      %622 = vst [vmem:[%s612 + $0x19] sm:$0x1] 0.0
      %623 = vst [vmem:[%s612 + $0x29] sm:$0x1] 0.0
      %624 = vst [vmem:[%s612 + $0x39] sm:$0x1] 0.0
      %625 = vst [vmem:[%s612 + $0x49] sm:$0x1] 0.0
      %626 = vst [vmem:[%s612 + $0x59] sm:$0x1] 0.0
      %627 = vst [vmem:[%s612 + $0x69] sm:$0x1] 0.0
      %628 = vst [vmem:[%s612 + $0x79] sm:$0x1] 0.0
      %v629 = vld [vmem:[%s484] sm:$0xff]
      %v630 = vld [vmem:[%s484 + $0x8] sm:$0xff]
      %v631 = vld [vmem:[%s484 + $0x10] sm:$0xff]
      %v632 = vld [vmem:[%s484 + $0x18] sm:$0xff]
      %v633 = vld [vmem:[%s484 + $0x20] sm:$0xff]
      %v634 = vld [vmem:[%s484 + $0x28] sm:$0xff]
      %v635 = vld [vmem:[%s484 + $0x30] sm:$0xff]
      %v636 = vld [vmem:[%s484 + $0x38] sm:$0xff]
      %v637 = vld [vmem:[%s484 + $0x40] sm:$0xff]
      %v638 = vld [vmem:[%s484 + $0x48] sm:$0xff]
      %v639 = vld [vmem:[%s484 + $0x50] sm:$0xff]
      %v640 = vld [vmem:[%s484 + $0x58] sm:$0xff]
      %v641 = vld [vmem:[%s484 + $0x60] sm:$0xff]
      %v642 = vld [vmem:[%s484 + $0x68] sm:$0xff]
      %v643 = vld [vmem:[%s484 + $0x70] sm:$0xff]
      %v644 = vld [vmem:[%s484 + $0x78] sm:$0xff]
      %v645 = vld [vmem:[%s484 + $0x80] sm:$0xff]
      %v646 = vld [vmem:[%s484 + $0x88] sm:$0xff]
      %v647 = vld [vmem:[%s484 + $0x90] sm:$0xff]
      %v648 = vld [vmem:[%s484 + $0x98] sm:$0xff]
      %v649 = vld [vmem:[%s484 + $0xa0] sm:$0xff]
      %v650 = vld [vmem:[%s484 + $0xa8] sm:$0xff]
      %v651 = vld [vmem:[%s484 + $0xb0] sm:$0xff]
      %v652 = vld [vmem:[%s484 + $0xb8] sm:$0xff]
      %v653 = vld [vmem:[%s484 + $0xc0] sm:$0xff]
      %v654 = vld [vmem:[%s484 + $0xc8] sm:$0xff]
      %v655 = vld [vmem:[%s484 + $0xd0] sm:$0xff]
      %v656 = vld [vmem:[%s484 + $0xd8] sm:$0xff]
      %v657 = vld [vmem:[%s484 + $0xe0] sm:$0xff]
      %v658 = vld [vmem:[%s484 + $0xe8] sm:$0xff]
      %v659 = vld [vmem:[%s484 + $0xf0] sm:$0xff]
      %v660 = vld [vmem:[%s484 + $0xf8] sm:$0xff]
      %v661 = vld [vmem:[%s1] sm:$0xff]
      %v662 = vld [vmem:[%s1 + $0x8] sm:$0xff]
      %v663 = vld [vmem:[%s1 + $0x10] sm:$0xff]
      %v664 = vld [vmem:[%s1 + $0x18] sm:$0xff]
      %v665 = vld [vmem:[%s1 + $0x20] sm:$0xff]
      %v666 = vld [vmem:[%s1 + $0x28] sm:$0xff]
      %v667 = vld [vmem:[%s1 + $0x30] sm:$0xff]
      %v668 = vld [vmem:[%s1 + $0x38] sm:$0xff]
      %v669 = vld [vmem:[%s1 + $0x40] sm:$0xff]
      %v670 = vld [vmem:[%s1 + $0x48] sm:$0xff]
      %v671 = vld [vmem:[%s1 + $0x50] sm:$0xff]
      %v672 = vld [vmem:[%s1 + $0x58] sm:$0xff]
      %v673 = vld [vmem:[%s1 + $0x60] sm:$0xff]
      %v674 = vld [vmem:[%s1 + $0x68] sm:$0xff]
      %v675 = vld [vmem:[%s1 + $0x70] sm:$0xff]
      %v676 = vld [vmem:[%s1 + $0x78] sm:$0xff]
      %v677 = vld [vmem:[%s2] sm:$0x1]
      %v679 = vlaneseq
      %v680 = vshrl.u32 %v679, 7
      %v681 = vsub.s32 0, %v680
      %v682 = vrot.slane %v677, %v681
      %684 = vmatprep.subr.mxu0 0.0
      %685 = vmatpush1.msra.mxu0 %v661
      %686 = vmatprep.subr.mxu0 0.0
      %687 = vmatpush1.msra.mxu0 %v662
      %688 = vmatprep.subr.mxu0 0.0
      %689 = vmatpush1.msra.mxu0 %v663
      %690 = vmatprep.subr.mxu0 0.0
      %691 = vmatpush1.msra.mxu0 %v664
      %692 = vmatprep.subr.mxu0 0.0
      %693 = vmatpush1.msra.mxu0 %v665
      %694 = vmatprep.subr.mxu0 0.0
      %695 = vmatpush1.msra.mxu0 %v666
      %696 = vmatprep.subr.mxu0 0.0
      %697 = vmatpush1.msra.mxu0 %v667
      %698 = vmatprep.subr.mxu0 0.0
      %699 = vmatpush1.msra.mxu0 %v668
      %700 = vmatprep.subr.mxu0 0.0
      %701 = vmatpush1.msra.mxu0 %v669
      %702 = vmatprep.subr.mxu0 0.0
      %703 = vmatpush1.msra.mxu0 %v670
      %704 = vmatprep.subr.mxu0 0.0
      %705 = vmatpush1.msra.mxu0 %v671
      %706 = vmatprep.subr.mxu0 0.0
      %707 = vmatpush1.msra.mxu0 %v672
      %708 = vmatprep.subr.mxu0 0.0
      %709 = vmatpush1.msra.mxu0 %v673
      %710 = vmatprep.subr.mxu0 0.0
      %711 = vmatpush1.msra.mxu0 %v674
      %712 = vmatprep.subr.mxu0 0.0
      %713 = vmatpush1.msra.mxu0 %v675
      %714 = vmatprep.subr.mxu0 0.0
      %715 = vmatpush1.msra.mxu0 %v676
      %716 = vmatprep.subr.mxu0 0.0
      %717 = vmatpush1.msra.mxu0 0.0
      %718 = vmatprep.subr.mxu0 0.0
      %719 = vmatpush1.msra.mxu0 0.0
      %720 = vmatprep.subr.mxu0 0.0
      %721 = vmatpush1.msra.mxu0 0.0
      %722 = vmatprep.subr.mxu0 0.0
      %723 = vmatpush1.msra.mxu0 0.0
      %724 = vmatprep.subr.mxu0 0.0
      %725 = vmatpush1.msra.mxu0 0.0
      %726 = vmatprep.subr.mxu0 0.0
      %727 = vmatpush1.msra.mxu0 0.0
      %728 = vmatprep.subr.mxu0 0.0
      %729 = vmatpush1.msra.mxu0 0.0
      %730 = vmatprep.subr.mxu0 0.0
      %731 = vmatpush1.msra.mxu0 0.0
      %732 = vmatprep.subr.mxu0 0.0
      %733 = vmatpush1.msra.mxu0 0.0
      %734 = vmatprep.subr.mxu0 0.0
      %735 = vmatpush1.msra.mxu0 0.0
      %736 = vmatprep.subr.mxu0 0.0
      %737 = vmatpush1.msra.mxu0 0.0
      %738 = vmatprep.subr.mxu0 0.0
      %739 = vmatpush1.msra.mxu0 0.0
      %740 = vmatprep.subr.mxu0 0.0
      %741 = vmatpush1.msra.mxu0 0.0
      %742 = vmatprep.subr.mxu0 0.0
      %743 = vmatpush1.msra.mxu0 0.0
      %744 = vmatprep.subr.mxu0 0.0
      %745 = vmatpush1.msra.mxu0 0.0
      %746 = vmatprep.subr.mxu0 0.0
      %747 = vmatpush1.msra.mxu0 0.0
      %748 = vmatprep.mubr.f32.mxu0 0.0
      %749 = vmatmul.mubr.f32.gmra.mrb[0].mxu0 %v629
      %v750 = vpop.f32.mrb[0].mxu0
      %v751 = vadd.f32 %v682, %v750
      %v752 = vpop.f32.mrb[0].mxu0
      %753 = vmatprep.mubr.f32.mxu0 0.0
      %754 = vmatmul.mubr.f32.gmra.mrb[0].mxu0 %v630
      %v755 = vpop.f32.mrb[0].mxu0
      %v756 = vadd.f32 %v682, %v755
      %v757 = vpop.f32.mrb[0].mxu0
      %758 = vmatprep.mubr.f32.mxu0 0.0
      %759 = vmatmul.mubr.f32.gmra.mrb[0].mxu0 %v631
      %v760 = vpop.f32.mrb[0].mxu0
      %v761 = vadd.f32 %v682, %v760
      %v762 = vpop.f32.mrb[0].mxu0
      %763 = vmatprep.mubr.f32.mxu0 0.0
      %764 = vmatmul.mubr.f32.gmra.mrb[0].mxu0 %v632
      %v765 = vpop.f32.mrb[0].mxu0
      %v766 = vadd.f32 %v682, %v765
      %v767 = vpop.f32.mrb[0].mxu0
      %768 = vmatprep.mubr.f32.mxu0 0.0
      %769 = vmatmul.mubr.f32.gmra.mrb[0].mxu0 %v633
      %v770 = vpop.f32.mrb[0].mxu0
      %v771 = vadd.f32 %v682, %v770
      %v772 = vpop.f32.mrb[0].mxu0
      %773 = vmatprep.mubr.f32.mxu0 0.0
      %774 = vmatmul.mubr.f32.gmra.mrb[0].mxu0 %v634
      %v775 = vpop.f32.mrb[0].mxu0
      %v776 = vadd.f32 %v682, %v775
      %v777 = vpop.f32.mrb[0].mxu0
      %778 = vmatprep.mubr.f32.mxu0 0.0
      %779 = vmatmul.mubr.f32.gmra.mrb[0].mxu0 %v635
      %v780 = vpop.f32.mrb[0].mxu0
      %v781 = vadd.f32 %v682, %v780
      %v782 = vpop.f32.mrb[0].mxu0
      %783 = vmatprep.mubr.f32.mxu0 0.0
      %784 = vmatmul.mubr.f32.gmra.mrb[0].mxu0 %v636
      %v785 = vpop.f32.mrb[0].mxu0
      %v786 = vadd.f32 %v682, %v785
      %v787 = vpop.f32.mrb[0].mxu0
      %788 = vmatprep.mubr.f32.mxu0 0.0
      %789 = vmatmul.mubr.f32.gmra.mrb[0].mxu0 %v637
      %v790 = vpop.f32.mrb[0].mxu0
      %v791 = vadd.f32 %v682, %v790
      %v792 = vpop.f32.mrb[0].mxu0
      %793 = vmatprep.mubr.f32.mxu0 0.0
      %794 = vmatmul.mubr.f32.gmra.mrb[0].mxu0 %v638
      %v795 = vpop.f32.mrb[0].mxu0
      %v796 = vadd.f32 %v682, %v795
      %v797 = vpop.f32.mrb[0].mxu0
      %798 = vmatprep.mubr.f32.mxu0 0.0
      %799 = vmatmul.mubr.f32.gmra.mrb[0].mxu0 %v639
      %v800 = vpop.f32.mrb[0].mxu0
      %v801 = vadd.f32 %v682, %v800
      %v802 = vpop.f32.mrb[0].mxu0
      %803 = vmatprep.mubr.f32.mxu0 0.0
      %804 = vmatmul.mubr.f32.gmra.mrb[0].mxu0 %v640
      %v805 = vpop.f32.mrb[0].mxu0
      %v806 = vadd.f32 %v682, %v805
      %v807 = vpop.f32.mrb[0].mxu0
      %808 = vmatprep.mubr.f32.mxu0 0.0
      %809 = vmatmul.mubr.f32.gmra.mrb[0].mxu0 %v641
      %v810 = vpop.f32.mrb[0].mxu0
      %v811 = vadd.f32 %v682, %v810
      %v812 = vpop.f32.mrb[0].mxu0
      %813 = vmatprep.mubr.f32.mxu0 0.0
      %814 = vmatmul.mubr.f32.gmra.mrb[0].mxu0 %v642
      %v815 = vpop.f32.mrb[0].mxu0
      %v816 = vadd.f32 %v682, %v815
      %v817 = vpop.f32.mrb[0].mxu0
      %818 = vmatprep.mubr.f32.mxu0 0.0
      %819 = vmatmul.mubr.f32.gmra.mrb[0].mxu0 %v643
      %v820 = vpop.f32.mrb[0].mxu0
      %v821 = vadd.f32 %v682, %v820
      %v822 = vpop.f32.mrb[0].mxu0
      %823 = vmatprep.mubr.f32.mxu0 0.0
      %824 = vmatmul.mubr.f32.gmra.mrb[0].mxu0 %v644
      %v825 = vpop.f32.mrb[0].mxu0
      %v826 = vadd.f32 %v682, %v825
      %v827 = vpop.f32.mrb[0].mxu0
      %828 = vmatprep.mubr.f32.mxu0 0.0
      %829 = vmatmul.mubr.f32.gmra.mrb[0].mxu0 %v645
      %v830 = vpop.f32.mrb[0].mxu0
      %v831 = vadd.f32 %v682, %v830
      %v832 = vpop.f32.mrb[0].mxu0
      %833 = vmatprep.mubr.f32.mxu0 0.0
      %834 = vmatmul.mubr.f32.gmra.mrb[0].mxu0 %v646
      %v835 = vpop.f32.mrb[0].mxu0
      %v836 = vadd.f32 %v682, %v835
      %v837 = vpop.f32.mrb[0].mxu0
      %838 = vmatprep.mubr.f32.mxu0 0.0
      %839 = vmatmul.mubr.f32.gmra.mrb[0].mxu0 %v647
      %v840 = vpop.f32.mrb[0].mxu0
      %v841 = vadd.f32 %v682, %v840
      %v842 = vpop.f32.mrb[0].mxu0
      %843 = vmatprep.mubr.f32.mxu0 0.0
      %844 = vmatmul.mubr.f32.gmra.mrb[0].mxu0 %v648
      %v845 = vpop.f32.mrb[0].mxu0
      %v846 = vadd.f32 %v682, %v845
      %v847 = vpop.f32.mrb[0].mxu0
      %848 = vmatprep.mubr.f32.mxu0 0.0
      %849 = vmatmul.mubr.f32.gmra.mrb[0].mxu0 %v649
      %v850 = vpop.f32.mrb[0].mxu0
      %v851 = vadd.f32 %v682, %v850
      %v852 = vpop.f32.mrb[0].mxu0
      %853 = vmatprep.mubr.f32.mxu0 0.0
      %854 = vmatmul.mubr.f32.gmra.mrb[0].mxu0 %v650
      %v855 = vpop.f32.mrb[0].mxu0
      %v856 = vadd.f32 %v682, %v855
      %v857 = vpop.f32.mrb[0].mxu0
      %858 = vmatprep.mubr.f32.mxu0 0.0
      %859 = vmatmul.mubr.f32.gmra.mrb[0].mxu0 %v651
      %v860 = vpop.f32.mrb[0].mxu0
      %v861 = vadd.f32 %v682, %v860
      %v862 = vpop.f32.mrb[0].mxu0
      %863 = vmatprep.mubr.f32.mxu0 0.0
      %864 = vmatmul.mubr.f32.gmra.mrb[0].mxu0 %v652
      %v865 = vpop.f32.mrb[0].mxu0
      %v866 = vadd.f32 %v682, %v865
      %v867 = vpop.f32.mrb[0].mxu0
      %868 = vmatprep.mubr.f32.mxu0 0.0
      %869 = vmatmul.mubr.f32.gmra.mrb[0].mxu0 %v653
      %v870 = vpop.f32.mrb[0].mxu0
      %v871 = vadd.f32 %v682, %v870
      %v872 = vpop.f32.mrb[0].mxu0
      %873 = vmatprep.mubr.f32.mxu0 0.0
      %874 = vmatmul.mubr.f32.gmra.mrb[0].mxu0 %v654
      %v875 = vpop.f32.mrb[0].mxu0
      %v876 = vadd.f32 %v682, %v875
      %v877 = vpop.f32.mrb[0].mxu0
      %878 = vmatprep.mubr.f32.mxu0 0.0
      %879 = vmatmul.mubr.f32.gmra.mrb[0].mxu0 %v655
      %v880 = vpop.f32.mrb[0].mxu0
      %v881 = vadd.f32 %v682, %v880
      %v882 = vpop.f32.mrb[0].mxu0
      %883 = vmatprep.mubr.f32.mxu0 0.0
      %884 = vmatmul.mubr.f32.gmra.mrb[0].mxu0 %v656
      %v885 = vpop.f32.mrb[0].mxu0
      %v886 = vadd.f32 %v682, %v885
      %v887 = vpop.f32.mrb[0].mxu0
      %888 = vmatprep.mubr.f32.mxu0 0.0
      %889 = vmatmul.mubr.f32.gmra.mrb[0].mxu0 %v657
      %v890 = vpop.f32.mrb[0].mxu0
      %v891 = vadd.f32 %v682, %v890
      %v892 = vpop.f32.mrb[0].mxu0
      %893 = vmatprep.mubr.f32.mxu0 0.0
      %894 = vmatmul.mubr.f32.gmra.mrb[0].mxu0 %v658
      %v895 = vpop.f32.mrb[0].mxu0
      %v896 = vadd.f32 %v682, %v895
      %v897 = vpop.f32.mrb[0].mxu0
      %898 = vmatprep.mubr.f32.mxu0 0.0
      %899 = vmatmul.mubr.f32.gmra.mrb[0].mxu0 %v659
      %v900 = vpop.f32.mrb[0].mxu0
      %v901 = vadd.f32 %v682, %v900
      %v902 = vpop.f32.mrb[0].mxu0
      %903 = vmatprep.mubr.f32.mxu0 0.0
      %904 = vmatmul.mubr.f32.gmra.mrb[0].mxu0 %v660
      %v905 = vpop.f32.mrb[0].mxu0
      %v906 = vadd.f32 %v682, %v905
      %v907 = vpop.f32.mrb[0].mxu0
      %908 = vdwg.mxu0
      %v909 = vmax.f32 %v751, 0.0
      %v910 = vmax.f32 %v756, 0.0
      %v911 = vmax.f32 %v761, 0.0
      %v912 = vmax.f32 %v766, 0.0
      %v913 = vmax.f32 %v771, 0.0
      %v914 = vmax.f32 %v776, 0.0
      %v915 = vmax.f32 %v781, 0.0
      %v916 = vmax.f32 %v786, 0.0
      %v917 = vmax.f32 %v791, 0.0
      %v918 = vmax.f32 %v796, 0.0
      %v919 = vmax.f32 %v801, 0.0
      %v920 = vmax.f32 %v806, 0.0
      %v921 = vmax.f32 %v811, 0.0
      %v922 = vmax.f32 %v816, 0.0
      %v923 = vmax.f32 %v821, 0.0
      %v924 = vmax.f32 %v826, 0.0
      %v925 = vmax.f32 %v831, 0.0
      %v926 = vmax.f32 %v836, 0.0
      %v927 = vmax.f32 %v841, 0.0
      %v928 = vmax.f32 %v846, 0.0
      %v929 = vmax.f32 %v851, 0.0
      %v930 = vmax.f32 %v856, 0.0
      %v931 = vmax.f32 %v861, 0.0
      %v932 = vmax.f32 %v866, 0.0
      %v933 = vmax.f32 %v871, 0.0
      %v934 = vmax.f32 %v876, 0.0
      %v935 = vmax.f32 %v881, 0.0
      %v936 = vmax.f32 %v886, 0.0
      %v937 = vmax.f32 %v891, 0.0
      %v938 = vmax.f32 %v896, 0.0
      %v939 = vmax.f32 %v901, 0.0
      %v940 = vmax.f32 %v906, 0.0
      %941 = vst [vmem:[%s512 + $0x1] sm:$0xff] %v909
      %942 = vst [vmem:[%s512 + $0x9] sm:$0xff] %v910
      %943 = vst [vmem:[%s512 + $0x19] sm:$0xff] %v911
      %944 = vst [vmem:[%s512 + $0x21] sm:$0xff] %v912
      %945 = vst [vmem:[%s512 + $0x31] sm:$0xff] %v913
      %946 = vst [vmem:[%s512 + $0x39] sm:$0xff] %v914
      %947 = vst [vmem:[%s512 + $0x49] sm:$0xff] %v915
      %948 = vst [vmem:[%s512 + $0x51] sm:$0xff] %v916
      %949 = vst [vmem:[%s512 + $0x61] sm:$0xff] %v917
      %950 = vst [vmem:[%s512 + $0x69] sm:$0xff] %v918
      %951 = vst [vmem:[%s512 + $0x79] sm:$0xff] %v919
      %952 = vst [vmem:[%s512 + $0x81] sm:$0xff] %v920
      %953 = vst [vmem:[%s512 + $0x91] sm:$0xff] %v921
      %954 = vst [vmem:[%s512 + $0x99] sm:$0xff] %v922
      %955 = vst [vmem:[%s512 + $0xa9] sm:$0xff] %v923
      %956 = vst [vmem:[%s512 + $0xb1] sm:$0xff] %v924
      %957 = vst [vmem:[%s512 + $0xc1] sm:$0xff] %v925
      %958 = vst [vmem:[%s512 + $0xc9] sm:$0xff] %v926
      %959 = vst [vmem:[%s512 + $0xd9] sm:$0xff] %v927
      %960 = vst [vmem:[%s512 + $0xe1] sm:$0xff] %v928
      %961 = vst [vmem:[%s512 + $0xf1] sm:$0xff] %v929
      %962 = vst [vmem:[%s512 + $0xf9] sm:$0xff] %v930
      %963 = vst [vmem:[%s512 + $0x109] sm:$0xff] %v931
      %964 = vst [vmem:[%s512 + $0x111] sm:$0xff] %v932
      %965 = vst [vmem:[%s512 + $0x121] sm:$0xff] %v933
      %966 = vst [vmem:[%s512 + $0x129] sm:$0xff] %v934
      %967 = vst [vmem:[%s512 + $0x139] sm:$0xff] %v935
      %968 = vst [vmem:[%s512 + $0x141] sm:$0xff] %v936
      %969 = vst [vmem:[%s512 + $0x151] sm:$0xff] %v937
      %970 = vst [vmem:[%s512 + $0x159] sm:$0xff] %v938
      %971 = vst [vmem:[%s512 + $0x169] sm:$0xff] %v939
      %972 = vst [vmem:[%s512 + $0x171] sm:$0xff] %v940
      %v973 = vld [vmem:[#allocation2] sm:$0xff]
      %v974 = vld [vmem:[#allocation2 + $0x8] sm:$0xff]
      %v975 = vld [vmem:[#allocation2 + $0x18] sm:$0xff]
      %v976 = vld [vmem:[#allocation2 + $0x20] sm:$0xff]
      %v977 = vld [vmem:[#allocation2 + $0x30] sm:$0xff]
      %v978 = vld [vmem:[#allocation2 + $0x38] sm:$0xff]
      %v979 = vld [vmem:[#allocation2 + $0x48] sm:$0xff]
      %v980 = vld [vmem:[#allocation2 + $0x50] sm:$0xff]
      %v981 = vld [vmem:[#allocation2 + $0x60] sm:$0xff]
      %v982 = vld [vmem:[#allocation2 + $0x68] sm:$0xff]
      %v983 = vld [vmem:[#allocation2 + $0x78] sm:$0xff]
      %v984 = vld [vmem:[#allocation2 + $0x80] sm:$0xff]
      %v985 = vld [vmem:[#allocation2 + $0x90] sm:$0xff]
      %v986 = vld [vmem:[#allocation2 + $0x98] sm:$0xff]
      %v987 = vld [vmem:[#allocation2 + $0xa8] sm:$0xff]
      %v988 = vld [vmem:[#allocation2 + $0xb0] sm:$0xff]
      %v989 = vld [vmem:[#allocation2 + $0xc0] sm:$0xff]
      %v990 = vld [vmem:[#allocation2 + $0xc8] sm:$0xff]
      %v991 = vld [vmem:[#allocation2 + $0xd8] sm:$0xff]
      %v992 = vld [vmem:[#allocation2 + $0xe0] sm:$0xff]
      %v993 = vld [vmem:[#allocation2 + $0xf0] sm:$0xff]
      %v994 = vld [vmem:[#allocation2 + $0xf8] sm:$0xff]
      %v995 = vld [vmem:[#allocation2 + $0x108] sm:$0xff]
      %v996 = vld [vmem:[#allocation2 + $0x110] sm:$0xff]
      %v997 = vld [vmem:[#allocation2 + $0x120] sm:$0xff]
      %v998 = vld [vmem:[#allocation2 + $0x128] sm:$0xff]
      %v999 = vld [vmem:[#allocation2 + $0x138] sm:$0xff]
      %v1000 = vld [vmem:[#allocation2 + $0x140] sm:$0xff]
      %v1001 = vld [vmem:[#allocation2 + $0x150] sm:$0xff]
      %v1002 = vld [vmem:[#allocation2 + $0x158] sm:$0xff]
      %v1003 = vld [vmem:[#allocation2 + $0x168] sm:$0xff]
      %v1004 = vld [vmem:[#allocation2 + $0x170] sm:$0xff]
      %1005 = vst [vmem:[#allocation6] sm:$0xff] %v973
      %1006 = vst [vmem:[#allocation6 + $0x48] sm:$0xff] %v974
      %1007 = vst [vmem:[#allocation6 + $0x90] sm:$0xff] %v975
      %1008 = vst [vmem:[#allocation6 + $0xd8] sm:$0xff] %v976
      %1009 = vst [vmem:[#allocation6 + $0x120] sm:$0xff] %v977
      %1010 = vst [vmem:[#allocation6 + $0x168] sm:$0xff] %v978
      %1011 = vst [vmem:[#allocation6 + $0x1b0] sm:$0xff] %v979
      %1012 = vst [vmem:[#allocation6 + $0x1f8] sm:$0xff] %v980
      %1013 = vst [vmem:[#allocation6 + $0x240] sm:$0xff] %v981
      %1014 = vst [vmem:[#allocation6 + $0x288] sm:$0xff] %v982
      %1015 = vst [vmem:[#allocation6 + $0x2d0] sm:$0xff] %v983
      %1016 = vst [vmem:[#allocation6 + $0x318] sm:$0xff] %v984
      %1017 = vst [vmem:[#allocation6 + $0x360] sm:$0xff] %v985
      %1018 = vst [vmem:[#allocation6 + $0x3a8] sm:$0xff] %v986
      %1019 = vst [vmem:[#allocation6 + $0x3f0] sm:$0xff] %v987
      %1020 = vst [vmem:[#allocation6 + $0x438] sm:$0xff] %v988
      %1021 = vst [vmem:[#allocation6 + $0x480] sm:$0xff] %v989
      %1022 = vst [vmem:[#allocation6 + $0x4c8] sm:$0xff] %v990
      %1023 = vst [vmem:[#allocation6 + $0x510] sm:$0xff] %v991
      %1024 = vst [vmem:[#allocation6 + $0x558] sm:$0xff] %v992
      %1025 = vst [vmem:[#allocation6 + $0x5a0] sm:$0xff] %v993
      %1026 = vst [vmem:[#allocation6 + $0x5e8] sm:$0xff] %v994
      %1027 = vst [vmem:[#allocation6 + $0x630] sm:$0xff] %v995
      %1028 = vst [vmem:[#allocation6 + $0x678] sm:$0xff] %v996
      %1029 = vst [vmem:[#allocation6 + $0x6c0] sm:$0xff] %v997
      %1030 = vst [vmem:[#allocation6 + $0x708] sm:$0xff] %v998
      %1031 = vst [vmem:[#allocation6 + $0x750] sm:$0xff] %v999
      %1032 = vst [vmem:[#allocation6 + $0x798] sm:$0xff] %v1000
      %1033 = vst [vmem:[#allocation6 + $0x7e0] sm:$0xff] %v1001
      %1034 = vst [vmem:[#allocation6 + $0x828] sm:$0xff] %v1002
      %1035 = vst [vmem:[#allocation6 + $0x870] sm:$0xff] %v1003
      %1036 = vst [vmem:[#allocation6 + $0x8b8] sm:$0xff] %v1004
      %v1037 = vld [vmem:[#allocation2 + $0x1] sm:$0xff]
      %v1038 = vld [vmem:[#allocation2 + $0x9] sm:$0xff]
      %v1039 = vld [vmem:[#allocation2 + $0x19] sm:$0xff]
      %v1040 = vld [vmem:[#allocation2 + $0x21] sm:$0xff]
      %v1041 = vld [vmem:[#allocation2 + $0x31] sm:$0xff]
      %v1042 = vld [vmem:[#allocation2 + $0x39] sm:$0xff]
      %v1043 = vld [vmem:[#allocation2 + $0x49] sm:$0xff]
      %v1044 = vld [vmem:[#allocation2 + $0x51] sm:$0xff]
      %v1045 = vld [vmem:[#allocation2 + $0x61] sm:$0xff]
      %v1046 = vld [vmem:[#allocation2 + $0x69] sm:$0xff]
      %v1047 = vld [vmem:[#allocation2 + $0x79] sm:$0xff]
      %v1048 = vld [vmem:[#allocation2 + $0x81] sm:$0xff]
      %v1049 = vld [vmem:[#allocation2 + $0x91] sm:$0xff]
      %v1050 = vld [vmem:[#allocation2 + $0x99] sm:$0xff]
      %v1051 = vld [vmem:[#allocation2 + $0xa9] sm:$0xff]
      %v1052 = vld [vmem:[#allocation2 + $0xb1] sm:$0xff]
      %v1053 = vld [vmem:[#allocation2 + $0xc1] sm:$0xff]
      %v1054 = vld [vmem:[#allocation2 + $0xc9] sm:$0xff]
      %v1055 = vld [vmem:[#allocation2 + $0xd9] sm:$0xff]
      %v1056 = vld [vmem:[#allocation2 + $0xe1] sm:$0xff]
      %v1057 = vld [vmem:[#allocation2 + $0xf1] sm:$0xff]
      %v1058 = vld [vmem:[#allocation2 + $0xf9] sm:$0xff]
      %v1059 = vld [vmem:[#allocation2 + $0x109] sm:$0xff]
      %v1060 = vld [vmem:[#allocation2 + $0x111] sm:$0xff]
      %v1061 = vld [vmem:[#allocation2 + $0x121] sm:$0xff]
      %v1062 = vld [vmem:[#allocation2 + $0x129] sm:$0xff]
      %v1063 = vld [vmem:[#allocation2 + $0x139] sm:$0xff]
      %v1064 = vld [vmem:[#allocation2 + $0x141] sm:$0xff]
      %v1065 = vld [vmem:[#allocation2 + $0x151] sm:$0xff]
      %v1066 = vld [vmem:[#allocation2 + $0x159] sm:$0xff]
      %v1067 = vld [vmem:[#allocation2 + $0x169] sm:$0xff]
      %v1068 = vld [vmem:[#allocation2 + $0x171] sm:$0xff]
      %1069 = vst [vmem:[#allocation6 + $0x8] sm:$0xff] %v1037
      %1070 = vst [vmem:[#allocation6 + $0x50] sm:$0xff] %v1038
      %1071 = vst [vmem:[#allocation6 + $0x98] sm:$0xff] %v1039
      %1072 = vst [vmem:[#allocation6 + $0xe0] sm:$0xff] %v1040
      %1073 = vst [vmem:[#allocation6 + $0x128] sm:$0xff] %v1041
      %1074 = vst [vmem:[#allocation6 + $0x170] sm:$0xff] %v1042
      %1075 = vst [vmem:[#allocation6 + $0x1b8] sm:$0xff] %v1043
      %1076 = vst [vmem:[#allocation6 + $0x200] sm:$0xff] %v1044
      %1077 = vst [vmem:[#allocation6 + $0x248] sm:$0xff] %v1045
      %1078 = vst [vmem:[#allocation6 + $0x290] sm:$0xff] %v1046
      %1079 = vst [vmem:[#allocation6 + $0x2d8] sm:$0xff] %v1047
      %1080 = vst [vmem:[#allocation6 + $0x320] sm:$0xff] %v1048
      %1081 = vst [vmem:[#allocation6 + $0x368] sm:$0xff] %v1049
      %1082 = vst [vmem:[#allocation6 + $0x3b0] sm:$0xff] %v1050
      %1083 = vst [vmem:[#allocation6 + $0x3f8] sm:$0xff] %v1051
      %1084 = vst [vmem:[#allocation6 + $0x440] sm:$0xff] %v1052
      %1085 = vst [vmem:[#allocation6 + $0x488] sm:$0xff] %v1053
      %1086 = vst [vmem:[#allocation6 + $0x4d0] sm:$0xff] %v1054
      %1087 = vst [vmem:[#allocation6 + $0x518] sm:$0xff] %v1055
      %1088 = vst [vmem:[#allocation6 + $0x560] sm:$0xff] %v1056
      %1089 = vst [vmem:[#allocation6 + $0x5a8] sm:$0xff] %v1057
      %1090 = vst [vmem:[#allocation6 + $0x5f0] sm:$0xff] %v1058
      %1091 = vst [vmem:[#allocation6 + $0x638] sm:$0xff] %v1059
      %1092 = vst [vmem:[#allocation6 + $0x680] sm:$0xff] %v1060
      %1093 = vst [vmem:[#allocation6 + $0x6c8] sm:$0xff] %v1061
      %1094 = vst [vmem:[#allocation6 + $0x710] sm:$0xff] %v1062
      %1095 = vst [vmem:[#allocation6 + $0x758] sm:$0xff] %v1063
      %1096 = vst [vmem:[#allocation6 + $0x7a0] sm:$0xff] %v1064
      %1097 = vst [vmem:[#allocation6 + $0x7e8] sm:$0xff] %v1065
      %1098 = vst [vmem:[#allocation6 + $0x830] sm:$0xff] %v1066
      %1099 = vst [vmem:[#allocation6 + $0x878] sm:$0xff] %v1067
      %1100 = vst [vmem:[#allocation6 + $0x8c0] sm:$0xff] %v1068
      %v1101 = vld [vmem:[#allocation2 + $0x2] sm:$0xff]
      %v1102 = vld [vmem:[#allocation2 + $0xa] sm:$0xff]
      %v1103 = vld [vmem:[#allocation2 + $0x1a] sm:$0xff]
      %v1104 = vld [vmem:[#allocation2 + $0x22] sm:$0xff]
      %v1105 = vld [vmem:[#allocation2 + $0x32] sm:$0xff]
      %v1106 = vld [vmem:[#allocation2 + $0x3a] sm:$0xff]
      %v1107 = vld [vmem:[#allocation2 + $0x4a] sm:$0xff]
      %v1108 = vld [vmem:[#allocation2 + $0x52] sm:$0xff]
      %v1109 = vld [vmem:[#allocation2 + $0x62] sm:$0xff]
      %v1110 = vld [vmem:[#allocation2 + $0x6a] sm:$0xff]
      %v1111 = vld [vmem:[#allocation2 + $0x7a] sm:$0xff]
      %v1112 = vld [vmem:[#allocation2 + $0x82] sm:$0xff]
      %v1113 = vld [vmem:[#allocation2 + $0x92] sm:$0xff]
      %v1114 = vld [vmem:[#allocation2 + $0x9a] sm:$0xff]
      %v1115 = vld [vmem:[#allocation2 + $0xaa] sm:$0xff]
      %v1116 = vld [vmem:[#allocation2 + $0xb2] sm:$0xff]
      %v1117 = vld [vmem:[#allocation2 + $0xc2] sm:$0xff]
      %v1118 = vld [vmem:[#allocation2 + $0xca] sm:$0xff]
      %v1119 = vld [vmem:[#allocation2 + $0xda] sm:$0xff]
      %v1120 = vld [vmem:[#allocation2 + $0xe2] sm:$0xff]
      %v1121 = vld [vmem:[#allocation2 + $0xf2] sm:$0xff]
      %v1122 = vld [vmem:[#allocation2 + $0xfa] sm:$0xff]
      %v1123 = vld [vmem:[#allocation2 + $0x10a] sm:$0xff]
      %v1124 = vld [vmem:[#allocation2 + $0x112] sm:$0xff]
      %v1125 = vld [vmem:[#allocation2 + $0x122] sm:$0xff]
      %v1126 = vld [vmem:[#allocation2 + $0x12a] sm:$0xff]
      %v1127 = vld [vmem:[#allocation2 + $0x13a] sm:$0xff]
      %v1128 = vld [vmem:[#allocation2 + $0x142] sm:$0xff]
      %v1129 = vld [vmem:[#allocation2 + $0x152] sm:$0xff]
      %v1130 = vld [vmem:[#allocation2 + $0x15a] sm:$0xff]
      %v1131 = vld [vmem:[#allocation2 + $0x16a] sm:$0xff]
      %v1132 = vld [vmem:[#allocation2 + $0x172] sm:$0xff]
      %1133 = vst [vmem:[#allocation6 + $0x10] sm:$0xff] %v1101
      %1134 = vst [vmem:[#allocation6 + $0x58] sm:$0xff] %v1102
      %1135 = vst [vmem:[#allocation6 + $0xa0] sm:$0xff] %v1103
      %1136 = vst [vmem:[#allocation6 + $0xe8] sm:$0xff] %v1104
      %1137 = vst [vmem:[#allocation6 + $0x130] sm:$0xff] %v1105
      %1138 = vst [vmem:[#allocation6 + $0x178] sm:$0xff] %v1106
      %1139 = vst [vmem:[#allocation6 + $0x1c0] sm:$0xff] %v1107
      %1140 = vst [vmem:[#allocation6 + $0x208] sm:$0xff] %v1108
      %1141 = vst [vmem:[#allocation6 + $0x250] sm:$0xff] %v1109
      %1142 = vst [vmem:[#allocation6 + $0x298] sm:$0xff] %v1110
      %1143 = vst [vmem:[#allocation6 + $0x2e0] sm:$0xff] %v1111
      %1144 = vst [vmem:[#allocation6 + $0x328] sm:$0xff] %v1112
      %1145 = vst [vmem:[#allocation6 + $0x370] sm:$0xff] %v1113
      %1146 = vst [vmem:[#allocation6 + $0x3b8] sm:$0xff] %v1114
      %1147 = vst [vmem:[#allocation6 + $0x400] sm:$0xff] %v1115
      %1148 = vst [vmem:[#allocation6 + $0x448] sm:$0xff] %v1116
      %1149 = vst [vmem:[#allocation6 + $0x490] sm:$0xff] %v1117
      %1150 = vst [vmem:[#allocation6 + $0x4d8] sm:$0xff] %v1118
      %1151 = vst [vmem:[#allocation6 + $0x520] sm:$0xff] %v1119
      %1152 = vst [vmem:[#allocation6 + $0x568] sm:$0xff] %v1120
      %1153 = vst [vmem:[#allocation6 + $0x5b0] sm:$0xff] %v1121
      %1154 = vst [vmem:[#allocation6 + $0x5f8] sm:$0xff] %v1122
      %1155 = vst [vmem:[#allocation6 + $0x640] sm:$0xff] %v1123
      %1156 = vst [vmem:[#allocation6 + $0x688] sm:$0xff] %v1124
      %1157 = vst [vmem:[#allocation6 + $0x6d0] sm:$0xff] %v1125
      %1158 = vst [vmem:[#allocation6 + $0x718] sm:$0xff] %v1126
      %1159 = vst [vmem:[#allocation6 + $0x760] sm:$0xff] %v1127
      %1160 = vst [vmem:[#allocation6 + $0x7a8] sm:$0xff] %v1128
      %1161 = vst [vmem:[#allocation6 + $0x7f0] sm:$0xff] %v1129
      %1162 = vst [vmem:[#allocation6 + $0x838] sm:$0xff] %v1130
      %1163 = vst [vmem:[#allocation6 + $0x880] sm:$0xff] %v1131
      %1164 = vst [vmem:[#allocation6 + $0x8c8] sm:$0xff] %v1132
      %v1165 = vld [vmem:[%s512] sm:$0xff]
      %v1166 = vld [vmem:[%s512 + $0x8] sm:$0xff]
      %v1167 = vld [vmem:[%s512 + $0x18] sm:$0xff]
      %v1168 = vld [vmem:[%s512 + $0x20] sm:$0xff]
      %v1169 = vld [vmem:[%s512 + $0x30] sm:$0xff]
      %v1170 = vld [vmem:[%s512 + $0x38] sm:$0xff]
      %v1171 = vld [vmem:[%s512 + $0x48] sm:$0xff]
      %v1172 = vld [vmem:[%s512 + $0x50] sm:$0xff]
      %v1173 = vld [vmem:[%s512 + $0x60] sm:$0xff]
      %v1174 = vld [vmem:[%s512 + $0x68] sm:$0xff]
      %v1175 = vld [vmem:[%s512 + $0x78] sm:$0xff]
      %v1176 = vld [vmem:[%s512 + $0x80] sm:$0xff]
      %v1177 = vld [vmem:[%s512 + $0x90] sm:$0xff]
      %v1178 = vld [vmem:[%s512 + $0x98] sm:$0xff]
      %v1179 = vld [vmem:[%s512 + $0xa8] sm:$0xff]
      %v1180 = vld [vmem:[%s512 + $0xb0] sm:$0xff]
      %v1181 = vld [vmem:[%s512 + $0xc0] sm:$0xff]
      %v1182 = vld [vmem:[%s512 + $0xc8] sm:$0xff]
      %v1183 = vld [vmem:[%s512 + $0xd8] sm:$0xff]
      %v1184 = vld [vmem:[%s512 + $0xe0] sm:$0xff]
      %v1185 = vld [vmem:[%s512 + $0xf0] sm:$0xff]
      %v1186 = vld [vmem:[%s512 + $0xf8] sm:$0xff]
      %v1187 = vld [vmem:[%s512 + $0x108] sm:$0xff]
      %v1188 = vld [vmem:[%s512 + $0x110] sm:$0xff]
      %v1189 = vld [vmem:[%s512 + $0x120] sm:$0xff]
      %v1190 = vld [vmem:[%s512 + $0x128] sm:$0xff]
      %v1191 = vld [vmem:[%s512 + $0x138] sm:$0xff]
      %v1192 = vld [vmem:[%s512 + $0x140] sm:$0xff]
      %v1193 = vld [vmem:[%s512 + $0x150] sm:$0xff]
      %v1194 = vld [vmem:[%s512 + $0x158] sm:$0xff]
      %v1195 = vld [vmem:[%s512 + $0x168] sm:$0xff]
      %v1196 = vld [vmem:[%s512 + $0x170] sm:$0xff]
      %1197 = vst [vmem:[#allocation6 + $0x18] sm:$0xff] %v1165
      %1198 = vst [vmem:[#allocation6 + $0x60] sm:$0xff] %v1166
      %1199 = vst [vmem:[#allocation6 + $0xa8] sm:$0xff] %v1167
      %1200 = vst [vmem:[#allocation6 + $0xf0] sm:$0xff] %v1168
      %1201 = vst [vmem:[#allocation6 + $0x138] sm:$0xff] %v1169
      %1202 = vst [vmem:[#allocation6 + $0x180] sm:$0xff] %v1170
      %1203 = vst [vmem:[#allocation6 + $0x1c8] sm:$0xff] %v1171
      %1204 = vst [vmem:[#allocation6 + $0x210] sm:$0xff] %v1172
      %1205 = vst [vmem:[#allocation6 + $0x258] sm:$0xff] %v1173
      %1206 = vst [vmem:[#allocation6 + $0x2a0] sm:$0xff] %v1174
      %1207 = vst [vmem:[#allocation6 + $0x2e8] sm:$0xff] %v1175
      %1208 = vst [vmem:[#allocation6 + $0x330] sm:$0xff] %v1176
      %1209 = vst [vmem:[#allocation6 + $0x378] sm:$0xff] %v1177
      %1210 = vst [vmem:[#allocation6 + $0x3c0] sm:$0xff] %v1178
      %1211 = vst [vmem:[#allocation6 + $0x408] sm:$0xff] %v1179
      %1212 = vst [vmem:[#allocation6 + $0x450] sm:$0xff] %v1180
      %1213 = vst [vmem:[#allocation6 + $0x498] sm:$0xff] %v1181
      %1214 = vst [vmem:[#allocation6 + $0x4e0] sm:$0xff] %v1182
      %1215 = vst [vmem:[#allocation6 + $0x528] sm:$0xff] %v1183
      %1216 = vst [vmem:[#allocation6 + $0x570] sm:$0xff] %v1184
      %1217 = vst [vmem:[#allocation6 + $0x5b8] sm:$0xff] %v1185
      %1218 = vst [vmem:[#allocation6 + $0x600] sm:$0xff] %v1186
      %1219 = vst [vmem:[#allocation6 + $0x648] sm:$0xff] %v1187
      %1220 = vst [vmem:[#allocation6 + $0x690] sm:$0xff] %v1188
      %1221 = vst [vmem:[#allocation6 + $0x6d8] sm:$0xff] %v1189
      %1222 = vst [vmem:[#allocation6 + $0x720] sm:$0xff] %v1190
      %1223 = vst [vmem:[#allocation6 + $0x768] sm:$0xff] %v1191
      %1224 = vst [vmem:[#allocation6 + $0x7b0] sm:$0xff] %v1192
      %1225 = vst [vmem:[#allocation6 + $0x7f8] sm:$0xff] %v1193
      %1226 = vst [vmem:[#allocation6 + $0x840] sm:$0xff] %v1194
      %1227 = vst [vmem:[#allocation6 + $0x888] sm:$0xff] %v1195
      %1228 = vst [vmem:[#allocation6 + $0x8d0] sm:$0xff] %v1196
      %v1229 = vld [vmem:[%s512 + $0x1] sm:$0xff]
      %v1230 = vld [vmem:[%s512 + $0x9] sm:$0xff]
      %v1231 = vld [vmem:[%s512 + $0x19] sm:$0xff]
      %v1232 = vld [vmem:[%s512 + $0x21] sm:$0xff]
      %v1233 = vld [vmem:[%s512 + $0x31] sm:$0xff]
      %v1234 = vld [vmem:[%s512 + $0x39] sm:$0xff]
      %v1235 = vld [vmem:[%s512 + $0x49] sm:$0xff]
      %v1236 = vld [vmem:[%s512 + $0x51] sm:$0xff]
      %v1237 = vld [vmem:[%s512 + $0x61] sm:$0xff]
      %v1238 = vld [vmem:[%s512 + $0x69] sm:$0xff]
      %v1239 = vld [vmem:[%s512 + $0x79] sm:$0xff]
      %v1240 = vld [vmem:[%s512 + $0x81] sm:$0xff]
      %v1241 = vld [vmem:[%s512 + $0x91] sm:$0xff]
      %v1242 = vld [vmem:[%s512 + $0x99] sm:$0xff]
      %v1243 = vld [vmem:[%s512 + $0xa9] sm:$0xff]
      %v1244 = vld [vmem:[%s512 + $0xb1] sm:$0xff]
      %v1245 = vld [vmem:[%s512 + $0xc1] sm:$0xff]
      %v1246 = vld [vmem:[%s512 + $0xc9] sm:$0xff]
      %v1247 = vld [vmem:[%s512 + $0xd9] sm:$0xff]
      %v1248 = vld [vmem:[%s512 + $0xe1] sm:$0xff]
      %v1249 = vld [vmem:[%s512 + $0xf1] sm:$0xff]
      %v1250 = vld [vmem:[%s512 + $0xf9] sm:$0xff]
      %v1251 = vld [vmem:[%s512 + $0x109] sm:$0xff]
      %v1252 = vld [vmem:[%s512 + $0x111] sm:$0xff]
      %v1253 = vld [vmem:[%s512 + $0x121] sm:$0xff]
      %v1254 = vld [vmem:[%s512 + $0x129] sm:$0xff]
      %v1255 = vld [vmem:[%s512 + $0x139] sm:$0xff]
      %v1256 = vld [vmem:[%s512 + $0x141] sm:$0xff]
      %v1257 = vld [vmem:[%s512 + $0x151] sm:$0xff]
      %v1258 = vld [vmem:[%s512 + $0x159] sm:$0xff]
      %v1259 = vld [vmem:[%s512 + $0x169] sm:$0xff]
      %v1260 = vld [vmem:[%s512 + $0x171] sm:$0xff]
      %1261 = vst [vmem:[#allocation6 + $0x20] sm:$0xff] %v1229
      %1262 = vst [vmem:[#allocation6 + $0x68] sm:$0xff] %v1230
      %1263 = vst [vmem:[#allocation6 + $0xb0] sm:$0xff] %v1231
      %1264 = vst [vmem:[#allocation6 + $0xf8] sm:$0xff] %v1232
      %1265 = vst [vmem:[#allocation6 + $0x140] sm:$0xff] %v1233
      %1266 = vst [vmem:[#allocation6 + $0x188] sm:$0xff] %v1234
      %1267 = vst [vmem:[#allocation6 + $0x1d0] sm:$0xff] %v1235
      %1268 = vst [vmem:[#allocation6 + $0x218] sm:$0xff] %v1236
      %1269 = vst [vmem:[#allocation6 + $0x260] sm:$0xff] %v1237
      %1270 = vst [vmem:[#allocation6 + $0x2a8] sm:$0xff] %v1238
      %1271 = vst [vmem:[#allocation6 + $0x2f0] sm:$0xff] %v1239
      %1272 = vst [vmem:[#allocation6 + $0x338] sm:$0xff] %v1240
      %1273 = vst [vmem:[#allocation6 + $0x380] sm:$0xff] %v1241
      %1274 = vst [vmem:[#allocation6 + $0x3c8] sm:$0xff] %v1242
      %1275 = vst [vmem:[#allocation6 + $0x410] sm:$0xff] %v1243
      %1276 = vst [vmem:[#allocation6 + $0x458] sm:$0xff] %v1244
      %1277 = vst [vmem:[#allocation6 + $0x4a0] sm:$0xff] %v1245
      %1278 = vst [vmem:[#allocation6 + $0x4e8] sm:$0xff] %v1246
      %1279 = vst [vmem:[#allocation6 + $0x530] sm:$0xff] %v1247
      %1280 = vst [vmem:[#allocation6 + $0x578] sm:$0xff] %v1248
      %1281 = vst [vmem:[#allocation6 + $0x5c0] sm:$0xff] %v1249
      %1282 = vst [vmem:[#allocation6 + $0x608] sm:$0xff] %v1250
      %1283 = vst [vmem:[#allocation6 + $0x650] sm:$0xff] %v1251
      %1284 = vst [vmem:[#allocation6 + $0x698] sm:$0xff] %v1252
      %1285 = vst [vmem:[#allocation6 + $0x6e0] sm:$0xff] %v1253
      %1286 = vst [vmem:[#allocation6 + $0x728] sm:$0xff] %v1254
      %1287 = vst [vmem:[#allocation6 + $0x770] sm:$0xff] %v1255
      %1288 = vst [vmem:[#allocation6 + $0x7b8] sm:$0xff] %v1256
      %1289 = vst [vmem:[#allocation6 + $0x800] sm:$0xff] %v1257
      %1290 = vst [vmem:[#allocation6 + $0x848] sm:$0xff] %v1258
      %1291 = vst [vmem:[#allocation6 + $0x890] sm:$0xff] %v1259
      %1292 = vst [vmem:[#allocation6 + $0x8d8] sm:$0xff] %v1260
      %v1293 = vld [vmem:[%s512 + $0x2] sm:$0xff]
      %v1294 = vld [vmem:[%s512 + $0xa] sm:$0xff]
      %v1295 = vld [vmem:[%s512 + $0x1a] sm:$0xff]
      %v1296 = vld [vmem:[%s512 + $0x22] sm:$0xff]
      %v1297 = vld [vmem:[%s512 + $0x32] sm:$0xff]
      %v1298 = vld [vmem:[%s512 + $0x3a] sm:$0xff]
      %v1299 = vld [vmem:[%s512 + $0x4a] sm:$0xff]
      %v1300 = vld [vmem:[%s512 + $0x52] sm:$0xff]
      %v1301 = vld [vmem:[%s512 + $0x62] sm:$0xff]
      %v1302 = vld [vmem:[%s512 + $0x6a] sm:$0xff]
      %v1303 = vld [vmem:[%s512 + $0x7a] sm:$0xff]
      %v1304 = vld [vmem:[%s512 + $0x82] sm:$0xff]
      %v1305 = vld [vmem:[%s512 + $0x92] sm:$0xff]
      %v1306 = vld [vmem:[%s512 + $0x9a] sm:$0xff]
      %v1307 = vld [vmem:[%s512 + $0xaa] sm:$0xff]
      %v1308 = vld [vmem:[%s512 + $0xb2] sm:$0xff]
      %v1309 = vld [vmem:[%s512 + $0xc2] sm:$0xff]
      %v1310 = vld [vmem:[%s512 + $0xca] sm:$0xff]
      %v1311 = vld [vmem:[%s512 + $0xda] sm:$0xff]
      %v1312 = vld [vmem:[%s512 + $0xe2] sm:$0xff]
      %v1313 = vld [vmem:[%s512 + $0xf2] sm:$0xff]
      %v1314 = vld [vmem:[%s512 + $0xfa] sm:$0xff]
      %v1315 = vld [vmem:[%s512 + $0x10a] sm:$0xff]
      %v1316 = vld [vmem:[%s512 + $0x112] sm:$0xff]
      %v1317 = vld [vmem:[%s512 + $0x122] sm:$0xff]
      %v1318 = vld [vmem:[%s512 + $0x12a] sm:$0xff]
      %v1319 = vld [vmem:[%s512 + $0x13a] sm:$0xff]
      %v1320 = vld [vmem:[%s512 + $0x142] sm:$0xff]
      %v1321 = vld [vmem:[%s512 + $0x152] sm:$0xff]
      %v1322 = vld [vmem:[%s512 + $0x15a] sm:$0xff]
      %v1323 = vld [vmem:[%s512 + $0x16a] sm:$0xff]
      %v1324 = vld [vmem:[%s512 + $0x172] sm:$0xff]
      %1325 = vst [vmem:[#allocation6 + $0x28] sm:$0xff] %v1293
      %1326 = vst [vmem:[#allocation6 + $0x70] sm:$0xff] %v1294
      %1327 = vst [vmem:[#allocation6 + $0xb8] sm:$0xff] %v1295
      %1328 = vst [vmem:[#allocation6 + $0x100] sm:$0xff] %v1296
      %1329 = vst [vmem:[#allocation6 + $0x148] sm:$0xff] %v1297
      %1330 = vst [vmem:[#allocation6 + $0x190] sm:$0xff] %v1298
      %1331 = vst [vmem:[#allocation6 + $0x1d8] sm:$0xff] %v1299
      %1332 = vst [vmem:[#allocation6 + $0x220] sm:$0xff] %v1300
      %1333 = vst [vmem:[#allocation6 + $0x268] sm:$0xff] %v1301
      %1334 = vst [vmem:[#allocation6 + $0x2b0] sm:$0xff] %v1302
      %1335 = vst [vmem:[#allocation6 + $0x2f8] sm:$0xff] %v1303
      %1336 = vst [vmem:[#allocation6 + $0x340] sm:$0xff] %v1304
      %1337 = vst [vmem:[#allocation6 + $0x388] sm:$0xff] %v1305
      %1338 = vst [vmem:[#allocation6 + $0x3d0] sm:$0xff] %v1306
      %1339 = vst [vmem:[#allocation6 + $0x418] sm:$0xff] %v1307
      %1340 = vst [vmem:[#allocation6 + $0x460] sm:$0xff] %v1308
      %1341 = vst [vmem:[#allocation6 + $0x4a8] sm:$0xff] %v1309
      %1342 = vst [vmem:[#allocation6 + $0x4f0] sm:$0xff] %v1310
      %1343 = vst [vmem:[#allocation6 + $0x538] sm:$0xff] %v1311
      %1344 = vst [vmem:[#allocation6 + $0x580] sm:$0xff] %v1312
      %1345 = vst [vmem:[#allocation6 + $0x5c8] sm:$0xff] %v1313
      %1346 = vst [vmem:[#allocation6 + $0x610] sm:$0xff] %v1314
      %1347 = vst [vmem:[#allocation6 + $0x658] sm:$0xff] %v1315
      %1348 = vst [vmem:[#allocation6 + $0x6a0] sm:$0xff] %v1316
      %1349 = vst [vmem:[#allocation6 + $0x6e8] sm:$0xff] %v1317
      %1350 = vst [vmem:[#allocation6 + $0x730] sm:$0xff] %v1318
      %1351 = vst [vmem:[#allocation6 + $0x778] sm:$0xff] %v1319
      %1352 = vst [vmem:[#allocation6 + $0x7c0] sm:$0xff] %v1320
      %1353 = vst [vmem:[#allocation6 + $0x808] sm:$0xff] %v1321
      %1354 = vst [vmem:[#allocation6 + $0x850] sm:$0xff] %v1322
      %1355 = vst [vmem:[#allocation6 + $0x898] sm:$0xff] %v1323
      %1356 = vst [vmem:[#allocation6 + $0x8e0] sm:$0xff] %v1324
      %s1357 = scalar_lea.vmem [#allocation2], 48
      %v1358 = vld [vmem:[%s1357] sm:$0xff]
      %v1359 = vld [vmem:[%s1357 + $0x8] sm:$0xff]
      %v1360 = vld [vmem:[%s1357 + $0x18] sm:$0xff]
      %v1361 = vld [vmem:[%s1357 + $0x20] sm:$0xff]
      %v1362 = vld [vmem:[%s1357 + $0x30] sm:$0xff]
      %v1363 = vld [vmem:[%s1357 + $0x38] sm:$0xff]
      %v1364 = vld [vmem:[%s1357 + $0x48] sm:$0xff]
      %v1365 = vld [vmem:[%s1357 + $0x50] sm:$0xff]
      %v1366 = vld [vmem:[%s1357 + $0x60] sm:$0xff]
      %v1367 = vld [vmem:[%s1357 + $0x68] sm:$0xff]
      %v1368 = vld [vmem:[%s1357 + $0x78] sm:$0xff]
      %v1369 = vld [vmem:[%s1357 + $0x80] sm:$0xff]
      %v1370 = vld [vmem:[%s1357 + $0x90] sm:$0xff]
      %v1371 = vld [vmem:[%s1357 + $0x98] sm:$0xff]
      %v1372 = vld [vmem:[%s1357 + $0xa8] sm:$0xff]
      %v1373 = vld [vmem:[%s1357 + $0xb0] sm:$0xff]
      %v1374 = vld [vmem:[%s1357 + $0xc0] sm:$0xff]
      %v1375 = vld [vmem:[%s1357 + $0xc8] sm:$0xff]
      %v1376 = vld [vmem:[%s1357 + $0xd8] sm:$0xff]
      %v1377 = vld [vmem:[%s1357 + $0xe0] sm:$0xff]
      %v1378 = vld [vmem:[%s1357 + $0xf0] sm:$0xff]
      %v1379 = vld [vmem:[%s1357 + $0xf8] sm:$0xff]
      %v1380 = vld [vmem:[%s1357 + $0x108] sm:$0xff]
      %v1381 = vld [vmem:[%s1357 + $0x110] sm:$0xff]
      %v1382 = vld [vmem:[%s1357 + $0x120] sm:$0xff]
      %v1383 = vld [vmem:[%s1357 + $0x128] sm:$0xff]
      %v1384 = vld [vmem:[%s1357 + $0x138] sm:$0xff]
      %v1385 = vld [vmem:[%s1357 + $0x140] sm:$0xff]
      %v1386 = vld [vmem:[%s1357 + $0x150] sm:$0xff]
      %v1387 = vld [vmem:[%s1357 + $0x158] sm:$0xff]
      %v1388 = vld [vmem:[%s1357 + $0x168] sm:$0xff]
      %v1389 = vld [vmem:[%s1357 + $0x170] sm:$0xff]
      %1390 = vst [vmem:[#allocation6 + $0x30] sm:$0xff] %v1358
      %1391 = vst [vmem:[#allocation6 + $0x78] sm:$0xff] %v1359
      %1392 = vst [vmem:[#allocation6 + $0xc0] sm:$0xff] %v1360
      %1393 = vst [vmem:[#allocation6 + $0x108] sm:$0xff] %v1361
      %1394 = vst [vmem:[#allocation6 + $0x150] sm:$0xff] %v1362
      %1395 = vst [vmem:[#allocation6 + $0x198] sm:$0xff] %v1363
      %1396 = vst [vmem:[#allocation6 + $0x1e0] sm:$0xff] %v1364
      %1397 = vst [vmem:[#allocation6 + $0x228] sm:$0xff] %v1365
      %1398 = vst [vmem:[#allocation6 + $0x270] sm:$0xff] %v1366
      %1399 = vst [vmem:[#allocation6 + $0x2b8] sm:$0xff] %v1367
      %1400 = vst [vmem:[#allocation6 + $0x300] sm:$0xff] %v1368
      %1401 = vst [vmem:[#allocation6 + $0x348] sm:$0xff] %v1369
      %1402 = vst [vmem:[#allocation6 + $0x390] sm:$0xff] %v1370
      %1403 = vst [vmem:[#allocation6 + $0x3d8] sm:$0xff] %v1371
      %1404 = vst [vmem:[#allocation6 + $0x420] sm:$0xff] %v1372
      %1405 = vst [vmem:[#allocation6 + $0x468] sm:$0xff] %v1373
      %1406 = vst [vmem:[#allocation6 + $0x4b0] sm:$0xff] %v1374
      %1407 = vst [vmem:[#allocation6 + $0x4f8] sm:$0xff] %v1375
      %1408 = vst [vmem:[#allocation6 + $0x540] sm:$0xff] %v1376
      %1409 = vst [vmem:[#allocation6 + $0x588] sm:$0xff] %v1377
      %1410 = vst [vmem:[#allocation6 + $0x5d0] sm:$0xff] %v1378
      %1411 = vst [vmem:[#allocation6 + $0x618] sm:$0xff] %v1379
      %1412 = vst [vmem:[#allocation6 + $0x660] sm:$0xff] %v1380
      %1413 = vst [vmem:[#allocation6 + $0x6a8] sm:$0xff] %v1381
      %1414 = vst [vmem:[#allocation6 + $0x6f0] sm:$0xff] %v1382
      %1415 = vst [vmem:[#allocation6 + $0x738] sm:$0xff] %v1383
      %1416 = vst [vmem:[#allocation6 + $0x780] sm:$0xff] %v1384
      %1417 = vst [vmem:[#allocation6 + $0x7c8] sm:$0xff] %v1385
      %1418 = vst [vmem:[#allocation6 + $0x810] sm:$0xff] %v1386
      %1419 = vst [vmem:[#allocation6 + $0x858] sm:$0xff] %v1387
      %1420 = vst [vmem:[#allocation6 + $0x8a0] sm:$0xff] %v1388
      %1421 = vst [vmem:[#allocation6 + $0x8e8] sm:$0xff] %v1389
      %v1422 = vld [vmem:[%s1357 + $0x1] sm:$0xff]
      %v1423 = vld [vmem:[%s1357 + $0x9] sm:$0xff]
      %v1424 = vld [vmem:[%s1357 + $0x19] sm:$0xff]
      %v1425 = vld [vmem:[%s1357 + $0x21] sm:$0xff]
      %v1426 = vld [vmem:[%s1357 + $0x31] sm:$0xff]
      %v1427 = vld [vmem:[%s1357 + $0x39] sm:$0xff]
      %v1428 = vld [vmem:[%s1357 + $0x49] sm:$0xff]
      %v1429 = vld [vmem:[%s1357 + $0x51] sm:$0xff]
      %v1430 = vld [vmem:[%s1357 + $0x61] sm:$0xff]
      %v1431 = vld [vmem:[%s1357 + $0x69] sm:$0xff]
      %v1432 = vld [vmem:[%s1357 + $0x79] sm:$0xff]
      %v1433 = vld [vmem:[%s1357 + $0x81] sm:$0xff]
      %v1434 = vld [vmem:[%s1357 + $0x91] sm:$0xff]
      %v1435 = vld [vmem:[%s1357 + $0x99] sm:$0xff]
      %v1436 = vld [vmem:[%s1357 + $0xa9] sm:$0xff]
      %v1437 = vld [vmem:[%s1357 + $0xb1] sm:$0xff]
      %v1438 = vld [vmem:[%s1357 + $0xc1] sm:$0xff]
      %v1439 = vld [vmem:[%s1357 + $0xc9] sm:$0xff]
      %v1440 = vld [vmem:[%s1357 + $0xd9] sm:$0xff]
      %v1441 = vld [vmem:[%s1357 + $0xe1] sm:$0xff]
      %v1442 = vld [vmem:[%s1357 + $0xf1] sm:$0xff]
      %v1443 = vld [vmem:[%s1357 + $0xf9] sm:$0xff]
      %v1444 = vld [vmem:[%s1357 + $0x109] sm:$0xff]
      %v1445 = vld [vmem:[%s1357 + $0x111] sm:$0xff]
      %v1446 = vld [vmem:[%s1357 + $0x121] sm:$0xff]
      %v1447 = vld [vmem:[%s1357 + $0x129] sm:$0xff]
      %v1448 = vld [vmem:[%s1357 + $0x139] sm:$0xff]
      %v1449 = vld [vmem:[%s1357 + $0x141] sm:$0xff]
      %v1450 = vld [vmem:[%s1357 + $0x151] sm:$0xff]
      %v1451 = vld [vmem:[%s1357 + $0x159] sm:$0xff]
      %v1452 = vld [vmem:[%s1357 + $0x169] sm:$0xff]
      %v1453 = vld [vmem:[%s1357 + $0x171] sm:$0xff]
      %1454 = vst [vmem:[#allocation6 + $0x38] sm:$0xff] %v1422
      %1455 = vst [vmem:[#allocation6 + $0x80] sm:$0xff] %v1423
      %1456 = vst [vmem:[#allocation6 + $0xc8] sm:$0xff] %v1424
      %1457 = vst [vmem:[#allocation6 + $0x110] sm:$0xff] %v1425
      %1458 = vst [vmem:[#allocation6 + $0x158] sm:$0xff] %v1426
      %1459 = vst [vmem:[#allocation6 + $0x1a0] sm:$0xff] %v1427
      %1460 = vst [vmem:[#allocation6 + $0x1e8] sm:$0xff] %v1428
      %1461 = vst [vmem:[#allocation6 + $0x230] sm:$0xff] %v1429
      %1462 = vst [vmem:[#allocation6 + $0x278] sm:$0xff] %v1430
      %1463 = vst [vmem:[#allocation6 + $0x2c0] sm:$0xff] %v1431
      %1464 = vst [vmem:[#allocation6 + $0x308] sm:$0xff] %v1432
      %1465 = vst [vmem:[#allocation6 + $0x350] sm:$0xff] %v1433
      %1466 = vst [vmem:[#allocation6 + $0x398] sm:$0xff] %v1434
      %1467 = vst [vmem:[#allocation6 + $0x3e0] sm:$0xff] %v1435
      %1468 = vst [vmem:[#allocation6 + $0x428] sm:$0xff] %v1436
      %1469 = vst [vmem:[#allocation6 + $0x470] sm:$0xff] %v1437
      %1470 = vst [vmem:[#allocation6 + $0x4b8] sm:$0xff] %v1438
      %1471 = vst [vmem:[#allocation6 + $0x500] sm:$0xff] %v1439
      %1472 = vst [vmem:[#allocation6 + $0x548] sm:$0xff] %v1440
      %1473 = vst [vmem:[#allocation6 + $0x590] sm:$0xff] %v1441
      %1474 = vst [vmem:[#allocation6 + $0x5d8] sm:$0xff] %v1442
      %1475 = vst [vmem:[#allocation6 + $0x620] sm:$0xff] %v1443
      %1476 = vst [vmem:[#allocation6 + $0x668] sm:$0xff] %v1444
      %1477 = vst [vmem:[#allocation6 + $0x6b0] sm:$0xff] %v1445
      %1478 = vst [vmem:[#allocation6 + $0x6f8] sm:$0xff] %v1446
      %1479 = vst [vmem:[#allocation6 + $0x740] sm:$0xff] %v1447
      %1480 = vst [vmem:[#allocation6 + $0x788] sm:$0xff] %v1448
      %1481 = vst [vmem:[#allocation6 + $0x7d0] sm:$0xff] %v1449
      %1482 = vst [vmem:[#allocation6 + $0x818] sm:$0xff] %v1450
      %1483 = vst [vmem:[#allocation6 + $0x860] sm:$0xff] %v1451
      %1484 = vst [vmem:[#allocation6 + $0x8a8] sm:$0xff] %v1452
      %1485 = vst [vmem:[#allocation6 + $0x8f0] sm:$0xff] %v1453
      %v1486 = vld [vmem:[%s1357 + $0x2] sm:$0xff]
      %v1487 = vld [vmem:[%s1357 + $0xa] sm:$0xff]
      %v1488 = vld [vmem:[%s1357 + $0x1a] sm:$0xff]
      %v1489 = vld [vmem:[%s1357 + $0x22] sm:$0xff]
      %v1490 = vld [vmem:[%s1357 + $0x32] sm:$0xff]
      %v1491 = vld [vmem:[%s1357 + $0x3a] sm:$0xff]
      %v1492 = vld [vmem:[%s1357 + $0x4a] sm:$0xff]
      %v1493 = vld [vmem:[%s1357 + $0x52] sm:$0xff]
      %v1494 = vld [vmem:[%s1357 + $0x62] sm:$0xff]
      %v1495 = vld [vmem:[%s1357 + $0x6a] sm:$0xff]
      %v1496 = vld [vmem:[%s1357 + $0x7a] sm:$0xff]
      %v1497 = vld [vmem:[%s1357 + $0x82] sm:$0xff]
      %v1498 = vld [vmem:[%s1357 + $0x92] sm:$0xff]
      %v1499 = vld [vmem:[%s1357 + $0x9a] sm:$0xff]
      %v1500 = vld [vmem:[%s1357 + $0xaa] sm:$0xff]
      %v1501 = vld [vmem:[%s1357 + $0xb2] sm:$0xff]
      %v1502 = vld [vmem:[%s1357 + $0xc2] sm:$0xff]
      %v1503 = vld [vmem:[%s1357 + $0xca] sm:$0xff]
      %v1504 = vld [vmem:[%s1357 + $0xda] sm:$0xff]
      %v1505 = vld [vmem:[%s1357 + $0xe2] sm:$0xff]
      %v1506 = vld [vmem:[%s1357 + $0xf2] sm:$0xff]
      %v1507 = vld [vmem:[%s1357 + $0xfa] sm:$0xff]
      %v1508 = vld [vmem:[%s1357 + $0x10a] sm:$0xff]
      %v1509 = vld [vmem:[%s1357 + $0x112] sm:$0xff]
      %v1510 = vld [vmem:[%s1357 + $0x122] sm:$0xff]
      %v1511 = vld [vmem:[%s1357 + $0x12a] sm:$0xff]
      %v1512 = vld [vmem:[%s1357 + $0x13a] sm:$0xff]
      %v1513 = vld [vmem:[%s1357 + $0x142] sm:$0xff]
      %v1514 = vld [vmem:[%s1357 + $0x152] sm:$0xff]
      %v1515 = vld [vmem:[%s1357 + $0x15a] sm:$0xff]
      %v1516 = vld [vmem:[%s1357 + $0x16a] sm:$0xff]
      %v1517 = vld [vmem:[%s1357 + $0x172] sm:$0xff]
      %1518 = vst [vmem:[#allocation6 + $0x40] sm:$0xff] %v1486
      %1519 = vst [vmem:[#allocation6 + $0x88] sm:$0xff] %v1487
      %1520 = vst [vmem:[#allocation6 + $0xd0] sm:$0xff] %v1488
      %1521 = vst [vmem:[#allocation6 + $0x118] sm:$0xff] %v1489
      %1522 = vst [vmem:[#allocation6 + $0x160] sm:$0xff] %v1490
      %1523 = vst [vmem:[#allocation6 + $0x1a8] sm:$0xff] %v1491
      %1524 = vst [vmem:[#allocation6 + $0x1f0] sm:$0xff] %v1492
      %1525 = vst [vmem:[#allocation6 + $0x238] sm:$0xff] %v1493
      %1526 = vst [vmem:[#allocation6 + $0x280] sm:$0xff] %v1494
      %1527 = vst [vmem:[#allocation6 + $0x2c8] sm:$0xff] %v1495
      %1528 = vst [vmem:[#allocation6 + $0x310] sm:$0xff] %v1496
      %1529 = vst [vmem:[#allocation6 + $0x358] sm:$0xff] %v1497
      %1530 = vst [vmem:[#allocation6 + $0x3a0] sm:$0xff] %v1498
      %1531 = vst [vmem:[#allocation6 + $0x3e8] sm:$0xff] %v1499
      %1532 = vst [vmem:[#allocation6 + $0x430] sm:$0xff] %v1500
      %1533 = vst [vmem:[#allocation6 + $0x478] sm:$0xff] %v1501
      %1534 = vst [vmem:[#allocation6 + $0x4c0] sm:$0xff] %v1502
      %1535 = vst [vmem:[#allocation6 + $0x508] sm:$0xff] %v1503
      %1536 = vst [vmem:[#allocation6 + $0x550] sm:$0xff] %v1504
      %1537 = vst [vmem:[#allocation6 + $0x598] sm:$0xff] %v1505
      %1538 = vst [vmem:[#allocation6 + $0x5e0] sm:$0xff] %v1506
      %1539 = vst [vmem:[#allocation6 + $0x628] sm:$0xff] %v1507
      %1540 = vst [vmem:[#allocation6 + $0x670] sm:$0xff] %v1508
      %1541 = vst [vmem:[#allocation6 + $0x6b8] sm:$0xff] %v1509
      %1542 = vst [vmem:[#allocation6 + $0x700] sm:$0xff] %v1510
      %1543 = vst [vmem:[#allocation6 + $0x748] sm:$0xff] %v1511
      %1544 = vst [vmem:[#allocation6 + $0x790] sm:$0xff] %v1512
      %1545 = vst [vmem:[#allocation6 + $0x7d8] sm:$0xff] %v1513
      %1546 = vst [vmem:[#allocation6 + $0x820] sm:$0xff] %v1514
      %1547 = vst [vmem:[#allocation6 + $0x868] sm:$0xff] %v1515
      %1548 = vst [vmem:[#allocation6 + $0x8b0] sm:$0xff] %v1516
      %1549 = vst [vmem:[#allocation6 + $0x8f8] sm:$0xff] %v1517
      %v1550 = vld [vmem:[#allocation6] sm:$0xff]
      %v1551 = vld [vmem:[#allocation6 + $0x8] sm:$0xff]
      %v1552 = vld [vmem:[#allocation6 + $0x10] sm:$0xff]
      %v1553 = vld [vmem:[#allocation6 + $0x18] sm:$0xff]
      %v1554 = vld [vmem:[#allocation6 + $0x20] sm:$0xff]
      %v1555 = vld [vmem:[#allocation6 + $0x28] sm:$0xff]
      %v1556 = vld [vmem:[#allocation6 + $0x30] sm:$0xff]
      %v1557 = vld [vmem:[#allocation6 + $0x38] sm:$0xff]
      %v1558 = vld [vmem:[#allocation6 + $0x40] sm:$0xff]
      %v1559 = vld [vmem:[#allocation6 + $0x48] sm:$0xff]
      %v1560 = vld [vmem:[#allocation6 + $0x50] sm:$0xff]
      %v1561 = vld [vmem:[#allocation6 + $0x58] sm:$0xff]
      %v1562 = vld [vmem:[#allocation6 + $0x60] sm:$0xff]
      %v1563 = vld [vmem:[#allocation6 + $0x68] sm:$0xff]
      %v1564 = vld [vmem:[#allocation6 + $0x70] sm:$0xff]
      %v1565 = vld [vmem:[#allocation6 + $0x78] sm:$0xff]
      %v1566 = vld [vmem:[#allocation6 + $0x80] sm:$0xff]
      %v1567 = vld [vmem:[#allocation6 + $0x88] sm:$0xff]
      %v1568 = vld [vmem:[#allocation6 + $0x90] sm:$0xff]
      %v1569 = vld [vmem:[#allocation6 + $0x98] sm:$0xff]
      %v1570 = vld [vmem:[#allocation6 + $0xa0] sm:$0xff]
      %v1571 = vld [vmem:[#allocation6 + $0xa8] sm:$0xff]
      %v1572 = vld [vmem:[#allocation6 + $0xb0] sm:$0xff]
      %v1573 = vld [vmem:[#allocation6 + $0xb8] sm:$0xff]
      %v1574 = vld [vmem:[#allocation6 + $0xc0] sm:$0xff]
      %v1575 = vld [vmem:[#allocation6 + $0xc8] sm:$0xff]
      %v1576 = vld [vmem:[#allocation6 + $0xd0] sm:$0xff]
      %v1577 = vld [vmem:[#allocation6 + $0xd8] sm:$0xff]
      %v1578 = vld [vmem:[#allocation6 + $0xe0] sm:$0xff]
      %v1579 = vld [vmem:[#allocation6 + $0xe8] sm:$0xff]
      %v1580 = vld [vmem:[#allocation6 + $0xf0] sm:$0xff]
      %v1581 = vld [vmem:[#allocation6 + $0xf8] sm:$0xff]
      %v1582 = vld [vmem:[#allocation6 + $0x100] sm:$0xff]
      %v1583 = vld [vmem:[#allocation6 + $0x108] sm:$0xff]
      %v1584 = vld [vmem:[#allocation6 + $0x110] sm:$0xff]
      %v1585 = vld [vmem:[#allocation6 + $0x118] sm:$0xff]
      %v1586 = vld [vmem:[#allocation6 + $0x120] sm:$0xff]
      %v1587 = vld [vmem:[#allocation6 + $0x128] sm:$0xff]
      %v1588 = vld [vmem:[#allocation6 + $0x130] sm:$0xff]
      %v1589 = vld [vmem:[#allocation6 + $0x138] sm:$0xff]
      %v1590 = vld [vmem:[#allocation6 + $0x140] sm:$0xff]
      %v1591 = vld [vmem:[#allocation6 + $0x148] sm:$0xff]
      %v1592 = vld [vmem:[#allocation6 + $0x150] sm:$0xff]
      %v1593 = vld [vmem:[#allocation6 + $0x158] sm:$0xff]
      %v1594 = vld [vmem:[#allocation6 + $0x160] sm:$0xff]
      %v1595 = vld [vmem:[#allocation6 + $0x168] sm:$0xff]
      %v1596 = vld [vmem:[#allocation6 + $0x170] sm:$0xff]
      %v1597 = vld [vmem:[#allocation6 + $0x178] sm:$0xff]
      %v1598 = vld [vmem:[#allocation6 + $0x180] sm:$0xff]
      %v1599 = vld [vmem:[#allocation6 + $0x188] sm:$0xff]
      %v1600 = vld [vmem:[#allocation6 + $0x190] sm:$0xff]
      %v1601 = vld [vmem:[#allocation6 + $0x198] sm:$0xff]
      %v1602 = vld [vmem:[#allocation6 + $0x1a0] sm:$0xff]
      %v1603 = vld [vmem:[#allocation6 + $0x1a8] sm:$0xff]
      %v1604 = vld [vmem:[#allocation6 + $0x1b0] sm:$0xff]
      %v1605 = vld [vmem:[#allocation6 + $0x1b8] sm:$0xff]
      %v1606 = vld [vmem:[#allocation6 + $0x1c0] sm:$0xff]
      %v1607 = vld [vmem:[#allocation6 + $0x1c8] sm:$0xff]
      %v1608 = vld [vmem:[#allocation6 + $0x1d0] sm:$0xff]
      %v1609 = vld [vmem:[#allocation6 + $0x1d8] sm:$0xff]
      %v1610 = vld [vmem:[#allocation6 + $0x1e0] sm:$0xff]
      %v1611 = vld [vmem:[#allocation6 + $0x1e8] sm:$0xff]
      %v1612 = vld [vmem:[#allocation6 + $0x1f0] sm:$0xff]
      %v1613 = vld [vmem:[#allocation6 + $0x1f8] sm:$0xff]
      %v1614 = vld [vmem:[#allocation6 + $0x200] sm:$0xff]
      %v1615 = vld [vmem:[#allocation6 + $0x208] sm:$0xff]
      %v1616 = vld [vmem:[#allocation6 + $0x210] sm:$0xff]
      %v1617 = vld [vmem:[#allocation6 + $0x218] sm:$0xff]
      %v1618 = vld [vmem:[#allocation6 + $0x220] sm:$0xff]
      %v1619 = vld [vmem:[#allocation6 + $0x228] sm:$0xff]
      %v1620 = vld [vmem:[#allocation6 + $0x230] sm:$0xff]
      %v1621 = vld [vmem:[#allocation6 + $0x238] sm:$0xff]
      %v1622 = vld [vmem:[#allocation6 + $0x240] sm:$0xff]
      %v1623 = vld [vmem:[#allocation6 + $0x248] sm:$0xff]
      %v1624 = vld [vmem:[#allocation6 + $0x250] sm:$0xff]
      %v1625 = vld [vmem:[#allocation6 + $0x258] sm:$0xff]
      %v1626 = vld [vmem:[#allocation6 + $0x260] sm:$0xff]
      %v1627 = vld [vmem:[#allocation6 + $0x268] sm:$0xff]
      %v1628 = vld [vmem:[#allocation6 + $0x270] sm:$0xff]
      %v1629 = vld [vmem:[#allocation6 + $0x278] sm:$0xff]
      %v1630 = vld [vmem:[#allocation6 + $0x280] sm:$0xff]
      %v1631 = vld [vmem:[#allocation6 + $0x288] sm:$0xff]
      %v1632 = vld [vmem:[#allocation6 + $0x290] sm:$0xff]
      %v1633 = vld [vmem:[#allocation6 + $0x298] sm:$0xff]
      %v1634 = vld [vmem:[#allocation6 + $0x2a0] sm:$0xff]
      %v1635 = vld [vmem:[#allocation6 + $0x2a8] sm:$0xff]
      %v1636 = vld [vmem:[#allocation6 + $0x2b0] sm:$0xff]
      %v1637 = vld [vmem:[#allocation6 + $0x2b8] sm:$0xff]
      %v1638 = vld [vmem:[#allocation6 + $0x2c0] sm:$0xff]
      %v1639 = vld [vmem:[#allocation6 + $0x2c8] sm:$0xff]
      %v1640 = vld [vmem:[#allocation6 + $0x2d0] sm:$0xff]
      %v1641 = vld [vmem:[#allocation6 + $0x2d8] sm:$0xff]
      %v1642 = vld [vmem:[#allocation6 + $0x2e0] sm:$0xff]
      %v1643 = vld [vmem:[#allocation6 + $0x2e8] sm:$0xff]
      %v1644 = vld [vmem:[#allocation6 + $0x2f0] sm:$0xff]
      %v1645 = vld [vmem:[#allocation6 + $0x2f8] sm:$0xff]
      %v1646 = vld [vmem:[#allocation6 + $0x300] sm:$0xff]
      %v1647 = vld [vmem:[#allocation6 + $0x308] sm:$0xff]
      %v1648 = vld [vmem:[#allocation6 + $0x310] sm:$0xff]
      %v1649 = vld [vmem:[#allocation6 + $0x318] sm:$0xff]
      %v1650 = vld [vmem:[#allocation6 + $0x320] sm:$0xff]
      %v1651 = vld [vmem:[#allocation6 + $0x328] sm:$0xff]
      %v1652 = vld [vmem:[#allocation6 + $0x330] sm:$0xff]
      %v1653 = vld [vmem:[#allocation6 + $0x338] sm:$0xff]
      %v1654 = vld [vmem:[#allocation6 + $0x340] sm:$0xff]
      %v1655 = vld [vmem:[#allocation6 + $0x348] sm:$0xff]
      %v1656 = vld [vmem:[#allocation6 + $0x350] sm:$0xff]
      %v1657 = vld [vmem:[#allocation6 + $0x358] sm:$0xff]
      %v1658 = vld [vmem:[#allocation6 + $0x360] sm:$0xff]
      %v1659 = vld [vmem:[#allocation6 + $0x368] sm:$0xff]
      %v1660 = vld [vmem:[#allocation6 + $0x370] sm:$0xff]
      %v1661 = vld [vmem:[#allocation6 + $0x378] sm:$0xff]
      %v1662 = vld [vmem:[#allocation6 + $0x380] sm:$0xff]
      %v1663 = vld [vmem:[#allocation6 + $0x388] sm:$0xff]
      %v1664 = vld [vmem:[#allocation6 + $0x390] sm:$0xff]
      %v1665 = vld [vmem:[#allocation6 + $0x398] sm:$0xff]
      %v1666 = vld [vmem:[#allocation6 + $0x3a0] sm:$0xff]
      %v1667 = vld [vmem:[#allocation6 + $0x3a8] sm:$0xff]
      %v1668 = vld [vmem:[#allocation6 + $0x3b0] sm:$0xff]
      %v1669 = vld [vmem:[#allocation6 + $0x3b8] sm:$0xff]
      %v1670 = vld [vmem:[#allocation6 + $0x3c0] sm:$0xff]
      %v1671 = vld [vmem:[#allocation6 + $0x3c8] sm:$0xff]
      %v1672 = vld [vmem:[#allocation6 + $0x3d0] sm:$0xff]
      %v1673 = vld [vmem:[#allocation6 + $0x3d8] sm:$0xff]
      %v1674 = vld [vmem:[#allocation6 + $0x3e0] sm:$0xff]
      %v1675 = vld [vmem:[#allocation6 + $0x3e8] sm:$0xff]
      %v1676 = vld [vmem:[#allocation6 + $0x3f0] sm:$0xff]
      %v1677 = vld [vmem:[#allocation6 + $0x3f8] sm:$0xff]
      %v1678 = vld [vmem:[#allocation6 + $0x400] sm:$0xff]
      %v1679 = vld [vmem:[#allocation6 + $0x408] sm:$0xff]
      %v1680 = vld [vmem:[#allocation6 + $0x410] sm:$0xff]
      %v1681 = vld [vmem:[#allocation6 + $0x418] sm:$0xff]
      %v1682 = vld [vmem:[#allocation6 + $0x420] sm:$0xff]
      %v1683 = vld [vmem:[#allocation6 + $0x428] sm:$0xff]
      %v1684 = vld [vmem:[#allocation6 + $0x430] sm:$0xff]
      %v1685 = vld [vmem:[#allocation6 + $0x438] sm:$0xff]
      %v1686 = vld [vmem:[#allocation6 + $0x440] sm:$0xff]
      %v1687 = vld [vmem:[#allocation6 + $0x448] sm:$0xff]
      %v1688 = vld [vmem:[#allocation6 + $0x450] sm:$0xff]
      %v1689 = vld [vmem:[#allocation6 + $0x458] sm:$0xff]
      %v1690 = vld [vmem:[#allocation6 + $0x460] sm:$0xff]
      %v1691 = vld [vmem:[#allocation6 + $0x468] sm:$0xff]
      %v1692 = vld [vmem:[#allocation6 + $0x470] sm:$0xff]
      %v1693 = vld [vmem:[#allocation6 + $0x478] sm:$0xff]
      %v1694 = vld [vmem:[#allocation6 + $0x480] sm:$0xff]
      %v1695 = vld [vmem:[#allocation6 + $0x488] sm:$0xff]
      %v1696 = vld [vmem:[#allocation6 + $0x490] sm:$0xff]
      %v1697 = vld [vmem:[#allocation6 + $0x498] sm:$0xff]
      %v1698 = vld [vmem:[#allocation6 + $0x4a0] sm:$0xff]
      %v1699 = vld [vmem:[#allocation6 + $0x4a8] sm:$0xff]
      %v1700 = vld [vmem:[#allocation6 + $0x4b0] sm:$0xff]
      %v1701 = vld [vmem:[#allocation6 + $0x4b8] sm:$0xff]
      %v1702 = vld [vmem:[#allocation6 + $0x4c0] sm:$0xff]
      %v1703 = vld [vmem:[#allocation6 + $0x4c8] sm:$0xff]
      %v1704 = vld [vmem:[#allocation6 + $0x4d0] sm:$0xff]
      %v1705 = vld [vmem:[#allocation6 + $0x4d8] sm:$0xff]
      %v1706 = vld [vmem:[#allocation6 + $0x4e0] sm:$0xff]
      %v1707 = vld [vmem:[#allocation6 + $0x4e8] sm:$0xff]
      %v1708 = vld [vmem:[#allocation6 + $0x4f0] sm:$0xff]
      %v1709 = vld [vmem:[#allocation6 + $0x4f8] sm:$0xff]
      %v1710 = vld [vmem:[#allocation6 + $0x500] sm:$0xff]
      %v1711 = vld [vmem:[#allocation6 + $0x508] sm:$0xff]
      %v1712 = vld [vmem:[#allocation6 + $0x510] sm:$0xff]
      %v1713 = vld [vmem:[#allocation6 + $0x518] sm:$0xff]
      %v1714 = vld [vmem:[#allocation6 + $0x520] sm:$0xff]
      %v1715 = vld [vmem:[#allocation6 + $0x528] sm:$0xff]
      %v1716 = vld [vmem:[#allocation6 + $0x530] sm:$0xff]
      %v1717 = vld [vmem:[#allocation6 + $0x538] sm:$0xff]
      %v1718 = vld [vmem:[#allocation6 + $0x540] sm:$0xff]
      %v1719 = vld [vmem:[#allocation6 + $0x548] sm:$0xff]
      %v1720 = vld [vmem:[#allocation6 + $0x550] sm:$0xff]
      %v1721 = vld [vmem:[#allocation6 + $0x558] sm:$0xff]
      %v1722 = vld [vmem:[#allocation6 + $0x560] sm:$0xff]
      %v1723 = vld [vmem:[#allocation6 + $0x568] sm:$0xff]
      %v1724 = vld [vmem:[#allocation6 + $0x570] sm:$0xff]
      %v1725 = vld [vmem:[#allocation6 + $0x578] sm:$0xff]
      %v1726 = vld [vmem:[#allocation6 + $0x580] sm:$0xff]
      %v1727 = vld [vmem:[#allocation6 + $0x588] sm:$0xff]
      %v1728 = vld [vmem:[#allocation6 + $0x590] sm:$0xff]
      %v1729 = vld [vmem:[#allocation6 + $0x598] sm:$0xff]
      %v1730 = vld [vmem:[#allocation6 + $0x5a0] sm:$0xff]
      %v1731 = vld [vmem:[#allocation6 + $0x5a8] sm:$0xff]
      %v1732 = vld [vmem:[#allocation6 + $0x5b0] sm:$0xff]
      %v1733 = vld [vmem:[#allocation6 + $0x5b8] sm:$0xff]
      %v1734 = vld [vmem:[#allocation6 + $0x5c0] sm:$0xff]
      %v1735 = vld [vmem:[#allocation6 + $0x5c8] sm:$0xff]
      %v1736 = vld [vmem:[#allocation6 + $0x5d0] sm:$0xff]
      %v1737 = vld [vmem:[#allocation6 + $0x5d8] sm:$0xff]
      %v1738 = vld [vmem:[#allocation6 + $0x5e0] sm:$0xff]
      %v1739 = vld [vmem:[#allocation6 + $0x5e8] sm:$0xff]
      %v1740 = vld [vmem:[#allocation6 + $0x5f0] sm:$0xff]
      %v1741 = vld [vmem:[#allocation6 + $0x5f8] sm:$0xff]
      %v1742 = vld [vmem:[#allocation6 + $0x600] sm:$0xff]
      %v1743 = vld [vmem:[#allocation6 + $0x608] sm:$0xff]
      %v1744 = vld [vmem:[#allocation6 + $0x610] sm:$0xff]
      %v1745 = vld [vmem:[#allocation6 + $0x618] sm:$0xff]
      %v1746 = vld [vmem:[#allocation6 + $0x620] sm:$0xff]
      %v1747 = vld [vmem:[#allocation6 + $0x628] sm:$0xff]
      %v1748 = vld [vmem:[#allocation6 + $0x630] sm:$0xff]
      %v1749 = vld [vmem:[#allocation6 + $0x638] sm:$0xff]
      %v1750 = vld [vmem:[#allocation6 + $0x640] sm:$0xff]
      %v1751 = vld [vmem:[#allocation6 + $0x648] sm:$0xff]
      %v1752 = vld [vmem:[#allocation6 + $0x650] sm:$0xff]
      %v1753 = vld [vmem:[#allocation6 + $0x658] sm:$0xff]
      %v1754 = vld [vmem:[#allocation6 + $0x660] sm:$0xff]
      %v1755 = vld [vmem:[#allocation6 + $0x668] sm:$0xff]
      %v1756 = vld [vmem:[#allocation6 + $0x670] sm:$0xff]
      %v1757 = vld [vmem:[#allocation6 + $0x678] sm:$0xff]
      %v1758 = vld [vmem:[#allocation6 + $0x680] sm:$0xff]
      %v1759 = vld [vmem:[#allocation6 + $0x688] sm:$0xff]
      %v1760 = vld [vmem:[#allocation6 + $0x690] sm:$0xff]
      %v1761 = vld [vmem:[#allocation6 + $0x698] sm:$0xff]
      %v1762 = vld [vmem:[#allocation6 + $0x6a0] sm:$0xff]
      %v1763 = vld [vmem:[#allocation6 + $0x6a8] sm:$0xff]
      %v1764 = vld [vmem:[#allocation6 + $0x6b0] sm:$0xff]
      %v1765 = vld [vmem:[#allocation6 + $0x6b8] sm:$0xff]
      %v1766 = vld [vmem:[#allocation6 + $0x6c0] sm:$0xff]
      %v1767 = vld [vmem:[#allocation6 + $0x6c8] sm:$0xff]
      %v1768 = vld [vmem:[#allocation6 + $0x6d0] sm:$0xff]
      %v1769 = vld [vmem:[#allocation6 + $0x6d8] sm:$0xff]
      %v1770 = vld [vmem:[#allocation6 + $0x6e0] sm:$0xff]
      %v1771 = vld [vmem:[#allocation6 + $0x6e8] sm:$0xff]
      %v1772 = vld [vmem:[#allocation6 + $0x6f0] sm:$0xff]
      %v1773 = vld [vmem:[#allocation6 + $0x6f8] sm:$0xff]
      %v1774 = vld [vmem:[#allocation6 + $0x700] sm:$0xff]
      %v1775 = vld [vmem:[#allocation6 + $0x708] sm:$0xff]
      %v1776 = vld [vmem:[#allocation6 + $0x710] sm:$0xff]
      %v1777 = vld [vmem:[#allocation6 + $0x718] sm:$0xff]
      %v1778 = vld [vmem:[#allocation6 + $0x720] sm:$0xff]
      %v1779 = vld [vmem:[#allocation6 + $0x728] sm:$0xff]
      %v1780 = vld [vmem:[#allocation6 + $0x730] sm:$0xff]
      %v1781 = vld [vmem:[#allocation6 + $0x738] sm:$0xff]
      %v1782 = vld [vmem:[#allocation6 + $0x740] sm:$0xff]
      %v1783 = vld [vmem:[#allocation6 + $0x748] sm:$0xff]
      %v1784 = vld [vmem:[#allocation6 + $0x750] sm:$0xff]
      %v1785 = vld [vmem:[#allocation6 + $0x758] sm:$0xff]
      %v1786 = vld [vmem:[#allocation6 + $0x760] sm:$0xff]
      %v1787 = vld [vmem:[#allocation6 + $0x768] sm:$0xff]
      %v1788 = vld [vmem:[#allocation6 + $0x770] sm:$0xff]
      %v1789 = vld [vmem:[#allocation6 + $0x778] sm:$0xff]
      %v1790 = vld [vmem:[#allocation6 + $0x780] sm:$0xff]
      %v1791 = vld [vmem:[#allocation6 + $0x788] sm:$0xff]
      %v1792 = vld [vmem:[#allocation6 + $0x790] sm:$0xff]
      %v1793 = vld [vmem:[#allocation6 + $0x798] sm:$0xff]
      %v1794 = vld [vmem:[#allocation6 + $0x7a0] sm:$0xff]
      %v1795 = vld [vmem:[#allocation6 + $0x7a8] sm:$0xff]
      %v1796 = vld [vmem:[#allocation6 + $0x7b0] sm:$0xff]
      %v1797 = vld [vmem:[#allocation6 + $0x7b8] sm:$0xff]
      %v1798 = vld [vmem:[#allocation6 + $0x7c0] sm:$0xff]
      %v1799 = vld [vmem:[#allocation6 + $0x7c8] sm:$0xff]
      %v1800 = vld [vmem:[#allocation6 + $0x7d0] sm:$0xff]
      %v1801 = vld [vmem:[#allocation6 + $0x7d8] sm:$0xff]
      %v1802 = vld [vmem:[#allocation6 + $0x7e0] sm:$0xff]
      %v1803 = vld [vmem:[#allocation6 + $0x7e8] sm:$0xff]
      %v1804 = vld [vmem:[#allocation6 + $0x7f0] sm:$0xff]
      %v1805 = vld [vmem:[#allocation6 + $0x7f8] sm:$0xff]
      %v1806 = vld [vmem:[#allocation6 + $0x800] sm:$0xff]
      %v1807 = vld [vmem:[#allocation6 + $0x808] sm:$0xff]
      %v1808 = vld [vmem:[#allocation6 + $0x810] sm:$0xff]
      %v1809 = vld [vmem:[#allocation6 + $0x818] sm:$0xff]
      %v1810 = vld [vmem:[#allocation6 + $0x820] sm:$0xff]
      %v1811 = vld [vmem:[#allocation6 + $0x828] sm:$0xff]
      %v1812 = vld [vmem:[#allocation6 + $0x830] sm:$0xff]
      %v1813 = vld [vmem:[#allocation6 + $0x838] sm:$0xff]
      %v1814 = vld [vmem:[#allocation6 + $0x840] sm:$0xff]
      %v1815 = vld [vmem:[#allocation6 + $0x848] sm:$0xff]
      %v1816 = vld [vmem:[#allocation6 + $0x850] sm:$0xff]
      %v1817 = vld [vmem:[#allocation6 + $0x858] sm:$0xff]
      %v1818 = vld [vmem:[#allocation6 + $0x860] sm:$0xff]
      %v1819 = vld [vmem:[#allocation6 + $0x868] sm:$0xff]
      %v1820 = vld [vmem:[#allocation6 + $0x870] sm:$0xff]
      %v1821 = vld [vmem:[#allocation6 + $0x878] sm:$0xff]
      %v1822 = vld [vmem:[#allocation6 + $0x880] sm:$0xff]
      %v1823 = vld [vmem:[#allocation6 + $0x888] sm:$0xff]
      %v1824 = vld [vmem:[#allocation6 + $0x890] sm:$0xff]
      %v1825 = vld [vmem:[#allocation6 + $0x898] sm:$0xff]
      %v1826 = vld [vmem:[#allocation6 + $0x8a0] sm:$0xff]
      %v1827 = vld [vmem:[#allocation6 + $0x8a8] sm:$0xff]
      %v1828 = vld [vmem:[#allocation6 + $0x8b0] sm:$0xff]
      %v1829 = vld [vmem:[#allocation6 + $0x8b8] sm:$0xff]
      %v1830 = vld [vmem:[#allocation6 + $0x8c0] sm:$0xff]
      %v1831 = vld [vmem:[#allocation6 + $0x8c8] sm:$0xff]
      %v1832 = vld [vmem:[#allocation6 + $0x8d0] sm:$0xff]
      %v1833 = vld [vmem:[#allocation6 + $0x8d8] sm:$0xff]
      %v1834 = vld [vmem:[#allocation6 + $0x8e0] sm:$0xff]
      %v1835 = vld [vmem:[#allocation6 + $0x8e8] sm:$0xff]
      %v1836 = vld [vmem:[#allocation6 + $0x8f0] sm:$0xff]
      %v1837 = vld [vmem:[#allocation6 + $0x8f8] sm:$0xff]
      %v1838 = vld [vmem:[%s3] sm:$0xff]
      %v1839 = vld [vmem:[%s3 + $0x8] sm:$0xff]
      %v1840 = vld [vmem:[%s3 + $0x10] sm:$0xff]
      %v1841 = vld [vmem:[%s3 + $0x18] sm:$0xff]
      %v1842 = vld [vmem:[%s3 + $0x20] sm:$0xff]
      %v1843 = vld [vmem:[%s3 + $0x28] sm:$0xff]
      %v1844 = vld [vmem:[%s3 + $0x30] sm:$0xff]
      %v1845 = vld [vmem:[%s3 + $0x38] sm:$0xff]
      %v1846 = vld [vmem:[%s3 + $0x40] sm:$0xff]
      %v1847 = vld [vmem:[%s3 + $0x48] sm:$0xff]
      %v1848 = vld [vmem:[%s3 + $0x50] sm:$0xff]
      %v1849 = vld [vmem:[%s3 + $0x58] sm:$0xff]
      %v1850 = vld [vmem:[%s3 + $0x60] sm:$0xff]
      %v1851 = vld [vmem:[%s3 + $0x68] sm:$0xff]
      %v1852 = vld [vmem:[%s3 + $0x70] sm:$0xff]
      %v1853 = vld [vmem:[%s3 + $0x78] sm:$0xff]
      %v1854 = vld [vmem:[%s3 + $0x80] sm:$0xff]
      %v1855 = vld [vmem:[%s3 + $0x88] sm:$0xff]
      %v1856 = vld [vmem:[%s3 + $0x90] sm:$0xff]
      %v1857 = vld [vmem:[%s3 + $0x98] sm:$0xff]
      %v1858 = vld [vmem:[%s3 + $0xa0] sm:$0xff]
      %v1859 = vld [vmem:[%s3 + $0xa8] sm:$0xff]
      %v1860 = vld [vmem:[%s3 + $0xb0] sm:$0xff]
      %v1861 = vld [vmem:[%s3 + $0xb8] sm:$0xff]
      %v1862 = vld [vmem:[%s3 + $0xc0] sm:$0xff]
      %v1863 = vld [vmem:[%s3 + $0xc8] sm:$0xff]
      %v1864 = vld [vmem:[%s3 + $0xd0] sm:$0xff]
      %v1865 = vld [vmem:[%s3 + $0xd8] sm:$0xff]
      %v1866 = vld [vmem:[%s3 + $0xe0] sm:$0xff]
      %v1867 = vld [vmem:[%s3 + $0xe8] sm:$0xff]
      %v1868 = vld [vmem:[%s3 + $0xf0] sm:$0xff]
      %v1869 = vld [vmem:[%s3 + $0xf8] sm:$0xff]
      %v1870 = vld [vmem:[%s3 + $0x100] sm:$0xff]
      %v1871 = vld [vmem:[%s3 + $0x108] sm:$0xff]
      %v1872 = vld [vmem:[%s3 + $0x110] sm:$0xff]
      %v1873 = vld [vmem:[%s3 + $0x118] sm:$0xff]
      %v1874 = vld [vmem:[%s3 + $0x120] sm:$0xff]
      %v1875 = vld [vmem:[%s3 + $0x128] sm:$0xff]
      %v1876 = vld [vmem:[%s3 + $0x130] sm:$0xff]
      %v1877 = vld [vmem:[%s3 + $0x138] sm:$0xff]
      %v1878 = vld [vmem:[%s3 + $0x140] sm:$0xff]
      %v1879 = vld [vmem:[%s3 + $0x148] sm:$0xff]
      %v1880 = vld [vmem:[%s3 + $0x150] sm:$0xff]
      %v1881 = vld [vmem:[%s3 + $0x158] sm:$0xff]
      %v1882 = vld [vmem:[%s3 + $0x160] sm:$0xff]
      %v1883 = vld [vmem:[%s3 + $0x168] sm:$0xff]
      %v1884 = vld [vmem:[%s3 + $0x170] sm:$0xff]
      %v1885 = vld [vmem:[%s3 + $0x178] sm:$0xff]
      %v1886 = vld [vmem:[%s3 + $0x180] sm:$0xff]
      %v1887 = vld [vmem:[%s3 + $0x188] sm:$0xff]
      %v1888 = vld [vmem:[%s3 + $0x190] sm:$0xff]
      %v1889 = vld [vmem:[%s3 + $0x198] sm:$0xff]
      %v1890 = vld [vmem:[%s3 + $0x1a0] sm:$0xff]
      %v1891 = vld [vmem:[%s3 + $0x1a8] sm:$0xff]
      %v1892 = vld [vmem:[%s3 + $0x1b0] sm:$0xff]
      %v1893 = vld [vmem:[%s3 + $0x1b8] sm:$0xff]
      %v1894 = vld [vmem:[%s3 + $0x1c0] sm:$0xff]
      %v1895 = vld [vmem:[%s3 + $0x1c8] sm:$0xff]
      %v1896 = vld [vmem:[%s3 + $0x1d0] sm:$0xff]
      %v1897 = vld [vmem:[%s3 + $0x1d8] sm:$0xff]
      %v1898 = vld [vmem:[%s3 + $0x1e0] sm:$0xff]
      %v1899 = vld [vmem:[%s3 + $0x1e8] sm:$0xff]
      %v1900 = vld [vmem:[%s3 + $0x1f0] sm:$0xff]
      %v1901 = vld [vmem:[%s3 + $0x1f8] sm:$0xff]
      %v1902 = vld [vmem:[%s3 + $0x200] sm:$0xff]
      %v1903 = vld [vmem:[%s3 + $0x208] sm:$0xff]
      %v1904 = vld [vmem:[%s3 + $0x210] sm:$0xff]
      %v1905 = vld [vmem:[%s3 + $0x218] sm:$0xff]
      %v1906 = vld [vmem:[%s3 + $0x220] sm:$0xff]
      %v1907 = vld [vmem:[%s3 + $0x228] sm:$0xff]
      %v1908 = vld [vmem:[%s3 + $0x230] sm:$0xff]
      %v1909 = vld [vmem:[%s3 + $0x238] sm:$0xff]
      %v1910 = vld [vmem:[%s3 + $0x240] sm:$0xff]
      %v1911 = vld [vmem:[%s3 + $0x248] sm:$0xff]
      %v1912 = vld [vmem:[%s3 + $0x250] sm:$0xff]
      %v1913 = vld [vmem:[%s3 + $0x258] sm:$0xff]
      %v1914 = vld [vmem:[%s3 + $0x260] sm:$0xff]
      %v1915 = vld [vmem:[%s3 + $0x268] sm:$0xff]
      %v1916 = vld [vmem:[%s3 + $0x270] sm:$0xff]
      %v1917 = vld [vmem:[%s3 + $0x278] sm:$0xff]
      %v1918 = vld [vmem:[%s3 + $0x280] sm:$0xff]
      %v1919 = vld [vmem:[%s3 + $0x288] sm:$0xff]
      %v1920 = vld [vmem:[%s3 + $0x290] sm:$0xff]
      %v1921 = vld [vmem:[%s3 + $0x298] sm:$0xff]
      %v1922 = vld [vmem:[%s3 + $0x2a0] sm:$0xff]
      %v1923 = vld [vmem:[%s3 + $0x2a8] sm:$0xff]
      %v1924 = vld [vmem:[%s3 + $0x2b0] sm:$0xff]
      %v1925 = vld [vmem:[%s3 + $0x2b8] sm:$0xff]
      %v1926 = vld [vmem:[%s3 + $0x2c0] sm:$0xff]
      %v1927 = vld [vmem:[%s3 + $0x2c8] sm:$0xff]
      %v1928 = vld [vmem:[%s3 + $0x2d0] sm:$0xff]
      %v1929 = vld [vmem:[%s3 + $0x2d8] sm:$0xff]
      %v1930 = vld [vmem:[%s3 + $0x2e0] sm:$0xff]
      %v1931 = vld [vmem:[%s3 + $0x2e8] sm:$0xff]
      %v1932 = vld [vmem:[%s3 + $0x2f0] sm:$0xff]
      %v1933 = vld [vmem:[%s3 + $0x2f8] sm:$0xff]
      %v1934 = vld [vmem:[%s3 + $0x300] sm:$0xff]
      %v1935 = vld [vmem:[%s3 + $0x308] sm:$0xff]
      %v1936 = vld [vmem:[%s3 + $0x310] sm:$0xff]
      %v1937 = vld [vmem:[%s3 + $0x318] sm:$0xff]
      %v1938 = vld [vmem:[%s3 + $0x320] sm:$0xff]
      %v1939 = vld [vmem:[%s3 + $0x328] sm:$0xff]
      %v1940 = vld [vmem:[%s3 + $0x330] sm:$0xff]
      %v1941 = vld [vmem:[%s3 + $0x338] sm:$0xff]
      %v1942 = vld [vmem:[%s3 + $0x340] sm:$0xff]
      %v1943 = vld [vmem:[%s3 + $0x348] sm:$0xff]
      %v1944 = vld [vmem:[%s3 + $0x350] sm:$0xff]
      %v1945 = vld [vmem:[%s3 + $0x358] sm:$0xff]
      %v1946 = vld [vmem:[%s3 + $0x360] sm:$0xff]
      %v1947 = vld [vmem:[%s3 + $0x368] sm:$0xff]
      %v1948 = vld [vmem:[%s3 + $0x370] sm:$0xff]
      %v1949 = vld [vmem:[%s3 + $0x378] sm:$0xff]
      %v1950 = vld [vmem:[%s3 + $0x380] sm:$0xff]
      %v1951 = vld [vmem:[%s3 + $0x388] sm:$0xff]
      %v1952 = vld [vmem:[%s3 + $0x390] sm:$0xff]
      %v1953 = vld [vmem:[%s3 + $0x398] sm:$0xff]
      %v1954 = vld [vmem:[%s3 + $0x3a0] sm:$0xff]
      %v1955 = vld [vmem:[%s3 + $0x3a8] sm:$0xff]
      %v1956 = vld [vmem:[%s3 + $0x3b0] sm:$0xff]
      %v1957 = vld [vmem:[%s3 + $0x3b8] sm:$0xff]
      %v1958 = vld [vmem:[%s3 + $0x3c0] sm:$0xff]
      %v1959 = vld [vmem:[%s3 + $0x3c8] sm:$0xff]
      %v1960 = vld [vmem:[%s3 + $0x3d0] sm:$0xff]
      %v1961 = vld [vmem:[%s3 + $0x3d8] sm:$0xff]
      %v1962 = vld [vmem:[%s3 + $0x3e0] sm:$0xff]
      %v1963 = vld [vmem:[%s3 + $0x3e8] sm:$0xff]
      %v1964 = vld [vmem:[%s3 + $0x3f0] sm:$0xff]
      %v1965 = vld [vmem:[%s3 + $0x3f8] sm:$0xff]
      %v1966 = vld [vmem:[%s3 + $0x400] sm:$0xff]
      %v1967 = vld [vmem:[%s3 + $0x408] sm:$0xff]
      %v1968 = vld [vmem:[%s3 + $0x410] sm:$0xff]
      %v1969 = vld [vmem:[%s3 + $0x418] sm:$0xff]
      %v1970 = vld [vmem:[%s3 + $0x420] sm:$0xff]
      %v1971 = vld [vmem:[%s3 + $0x428] sm:$0xff]
      %v1972 = vld [vmem:[%s3 + $0x430] sm:$0xff]
      %v1973 = vld [vmem:[%s3 + $0x438] sm:$0xff]
      %v1974 = vld [vmem:[%s3 + $0x440] sm:$0xff]
      %v1975 = vld [vmem:[%s3 + $0x448] sm:$0xff]
      %v1976 = vld [vmem:[%s3 + $0x450] sm:$0xff]
      %v1977 = vld [vmem:[%s3 + $0x458] sm:$0xff]
      %v1978 = vld [vmem:[%s3 + $0x460] sm:$0xff]
      %v1979 = vld [vmem:[%s3 + $0x468] sm:$0xff]
      %v1980 = vld [vmem:[%s3 + $0x470] sm:$0xff]
      %v1981 = vld [vmem:[%s3 + $0x478] sm:$0xff]
      %v1982 = vld [vmem:[%s4] sm:$0x1]
      %v1984 = vlaneseq
      %v1985 = vshrl.u32 %v1984, 7
      %v1986 = vsub.s32 0, %v1985
      %v1987 = vrot.slane %v1982, %v1986
      %1989 = vmatprep.subr.mxu0 0.0
      %1990 = vmatpush1.msra.mxu0 %v1838
      %1991 = vmatprep.subr.mxu0 0.0
      %1992 = vmatpush1.msra.mxu0 %v1839
      %1993 = vmatprep.subr.mxu0 0.0
      %1994 = vmatpush1.msra.mxu0 %v1840
      %1995 = vmatprep.subr.mxu0 0.0
      %1996 = vmatpush1.msra.mxu0 %v1841
      %1997 = vmatprep.subr.mxu0 0.0
      %1998 = vmatpush1.msra.mxu0 %v1842
      %1999 = vmatprep.subr.mxu0 0.0
      %2000 = vmatpush1.msra.mxu0 %v1843
      %2001 = vmatprep.subr.mxu0 0.0
      %2002 = vmatpush1.msra.mxu0 %v1844
      %2003 = vmatprep.subr.mxu0 0.0
      %2004 = vmatpush1.msra.mxu0 %v1845
      %2005 = vmatprep.subr.mxu0 0.0
      %2006 = vmatpush1.msra.mxu0 %v1846
      %2007 = vmatprep.subr.mxu0 0.0
      %2008 = vmatpush1.msra.mxu0 %v1847
      %2009 = vmatprep.subr.mxu0 0.0
      %2010 = vmatpush1.msra.mxu0 %v1848
      %2011 = vmatprep.subr.mxu0 0.0
      %2012 = vmatpush1.msra.mxu0 %v1849
      %2013 = vmatprep.subr.mxu0 0.0
      %2014 = vmatpush1.msra.mxu0 %v1850
      %2015 = vmatprep.subr.mxu0 0.0
      %2016 = vmatpush1.msra.mxu0 %v1851
      %2017 = vmatprep.subr.mxu0 0.0
      %2018 = vmatpush1.msra.mxu0 %v1852
      %2019 = vmatprep.subr.mxu0 0.0
      %2020 = vmatpush1.msra.mxu0 %v1853
      %2021 = vmatprep.subr.mxu0 0.0
      %2022 = vmatpush1.msra.mxu0 %v1854
      %2023 = vmatprep.subr.mxu0 0.0
      %2024 = vmatpush1.msra.mxu0 %v1855
      %2025 = vmatprep.subr.mxu0 0.0
      %2026 = vmatpush1.msra.mxu0 %v1856
      %2027 = vmatprep.subr.mxu0 0.0
      %2028 = vmatpush1.msra.mxu0 %v1857
      %2029 = vmatprep.subr.mxu0 0.0
      %2030 = vmatpush1.msra.mxu0 %v1858
      %2031 = vmatprep.subr.mxu0 0.0
      %2032 = vmatpush1.msra.mxu0 %v1859
      %2033 = vmatprep.subr.mxu0 0.0
      %2034 = vmatpush1.msra.mxu0 %v1860
      %2035 = vmatprep.subr.mxu0 0.0
      %2036 = vmatpush1.msra.mxu0 %v1861
      %2037 = vmatprep.subr.mxu0 0.0
      %2038 = vmatpush1.msra.mxu0 %v1862
      %2039 = vmatprep.subr.mxu0 0.0
      %2040 = vmatpush1.msra.mxu0 %v1863
      %2041 = vmatprep.subr.mxu0 0.0
      %2042 = vmatpush1.msra.mxu0 %v1864
      %2043 = vmatprep.subr.mxu0 0.0
      %2044 = vmatpush1.msra.mxu0 %v1865
      %2045 = vmatprep.subr.mxu0 0.0
      %2046 = vmatpush1.msra.mxu0 %v1866
      %2047 = vmatprep.subr.mxu0 0.0
      %2048 = vmatpush1.msra.mxu0 %v1867
      %2049 = vmatprep.subr.mxu0 0.0
      %2050 = vmatpush1.msra.mxu0 %v1868
      %2051 = vmatprep.subr.mxu0 0.0
      %2052 = vmatpush1.msra.mxu0 %v1869
      %2053 = vmatprep.mubr.f32.mxu0 %v1551
      %2054 = vmatmul.mubr.f32.gmra.mrb[0].mxu0 %v1550
      %v2055 = vpop.f32.mrb[0].mxu0
      %v2056 = vadd.f32 %v1987, %v2055
      %v2057 = vpop.f32.mrb[0].mxu0
      %2058 = vmatprep.mubr.f32.mxu0 %v1560
      %2059 = vmatmul.mubr.f32.gmra.mrb[0].mxu0 %v1559
      %v2060 = vpop.f32.mrb[0].mxu0
      %v2061 = vadd.f32 %v1987, %v2060
      %v2062 = vpop.f32.mrb[0].mxu0
      %2063 = vmatprep.mubr.f32.mxu0 %v1569
      %2064 = vmatmul.mubr.f32.gmra.mrb[0].mxu0 %v1568
      %v2065 = vpop.f32.mrb[0].mxu0
      %v2066 = vadd.f32 %v1987, %v2065
      %v2067 = vpop.f32.mrb[0].mxu0
      %2068 = vmatprep.mubr.f32.mxu0 %v1578
      %2069 = vmatmul.mubr.f32.gmra.mrb[0].mxu0 %v1577
      %v2070 = vpop.f32.mrb[0].mxu0
      %v2071 = vadd.f32 %v1987, %v2070
      %v2072 = vpop.f32.mrb[0].mxu0
      %2073 = vmatprep.mubr.f32.mxu0 %v1587
      %2074 = vmatmul.mubr.f32.gmra.mrb[0].mxu0 %v1586
      %v2075 = vpop.f32.mrb[0].mxu0
      %v2076 = vadd.f32 %v1987, %v2075
      %v2077 = vpop.f32.mrb[0].mxu0
      %2078 = vmatprep.mubr.f32.mxu0 %v1596
      %2079 = vmatmul.mubr.f32.gmra.mrb[0].mxu0 %v1595
      %v2080 = vpop.f32.mrb[0].mxu0
      %v2081 = vadd.f32 %v1987, %v2080
      %v2082 = vpop.f32.mrb[0].mxu0
      %2083 = vmatprep.mubr.f32.mxu0 %v1605
      %2084 = vmatmul.mubr.f32.gmra.mrb[0].mxu0 %v1604
      %v2085 = vpop.f32.mrb[0].mxu0
      %v2086 = vadd.f32 %v1987, %v2085
      %v2087 = vpop.f32.mrb[0].mxu0
      %2088 = vmatprep.mubr.f32.mxu0 %v1614
      %2089 = vmatmul.mubr.f32.gmra.mrb[0].mxu0 %v1613
      %v2090 = vpop.f32.mrb[0].mxu0
      %v2091 = vadd.f32 %v1987, %v2090
      %v2092 = vpop.f32.mrb[0].mxu0
      %2093 = vmatprep.mubr.f32.mxu0 %v1623
      %2094 = vmatmul.mubr.f32.gmra.mrb[0].mxu0 %v1622
      %v2095 = vpop.f32.mrb[0].mxu0
      %v2096 = vadd.f32 %v1987, %v2095
      %v2097 = vpop.f32.mrb[0].mxu0
      %2098 = vmatprep.mubr.f32.mxu0 %v1632
      %2099 = vmatmul.mubr.f32.gmra.mrb[0].mxu0 %v1631
      %v2100 = vpop.f32.mrb[0].mxu0
      %v2101 = vadd.f32 %v1987, %v2100
      %v2102 = vpop.f32.mrb[0].mxu0
      %2103 = vmatprep.mubr.f32.mxu0 %v1641
      %2104 = vmatmul.mubr.f32.gmra.mrb[0].mxu0 %v1640
      %v2105 = vpop.f32.mrb[0].mxu0
      %v2106 = vadd.f32 %v1987, %v2105
      %v2107 = vpop.f32.mrb[0].mxu0
      %2108 = vmatprep.mubr.f32.mxu0 %v1650
      %2109 = vmatmul.mubr.f32.gmra.mrb[0].mxu0 %v1649
      %v2110 = vpop.f32.mrb[0].mxu0
      %v2111 = vadd.f32 %v1987, %v2110
      %v2112 = vpop.f32.mrb[0].mxu0
      %2113 = vmatprep.mubr.f32.mxu0 %v1659
      %2114 = vmatmul.mubr.f32.gmra.mrb[0].mxu0 %v1658
      %v2115 = vpop.f32.mrb[0].mxu0
      %v2116 = vadd.f32 %v1987, %v2115
      %v2117 = vpop.f32.mrb[0].mxu0
      %2118 = vmatprep.mubr.f32.mxu0 %v1668
      %2119 = vmatmul.mubr.f32.gmra.mrb[0].mxu0 %v1667
      %v2120 = vpop.f32.mrb[0].mxu0
      %v2121 = vadd.f32 %v1987, %v2120
      %v2122 = vpop.f32.mrb[0].mxu0
      %2123 = vmatprep.mubr.f32.mxu0 %v1677
      %2124 = vmatmul.mubr.f32.gmra.mrb[0].mxu0 %v1676
      %v2125 = vpop.f32.mrb[0].mxu0
      %v2126 = vadd.f32 %v1987, %v2125
      %v2127 = vpop.f32.mrb[0].mxu0
      %2128 = vmatprep.mubr.f32.mxu0 %v1686
      %2129 = vmatmul.mubr.f32.gmra.mrb[0].mxu0 %v1685
      %v2130 = vpop.f32.mrb[0].mxu0
      %v2131 = vadd.f32 %v1987, %v2130
      %v2132 = vpop.f32.mrb[0].mxu0
      %2133 = vmatprep.mubr.f32.mxu0 %v1695
      %2134 = vmatmul.mubr.f32.gmra.mrb[0].mxu0 %v1694
      %v2135 = vpop.f32.mrb[0].mxu0
      %v2136 = vadd.f32 %v1987, %v2135
      %v2137 = vpop.f32.mrb[0].mxu0
      %2138 = vmatprep.mubr.f32.mxu0 %v1704
      %2139 = vmatmul.mubr.f32.gmra.mrb[0].mxu0 %v1703
      %v2140 = vpop.f32.mrb[0].mxu0
      %v2141 = vadd.f32 %v1987, %v2140
      %v2142 = vpop.f32.mrb[0].mxu0
      %2143 = vmatprep.mubr.f32.mxu0 %v1713
      %2144 = vmatmul.mubr.f32.gmra.mrb[0].mxu0 %v1712
      %v2145 = vpop.f32.mrb[0].mxu0
      %v2146 = vadd.f32 %v1987, %v2145
      %v2147 = vpop.f32.mrb[0].mxu0
      %2148 = vmatprep.mubr.f32.mxu0 %v1722
      %2149 = vmatmul.mubr.f32.gmra.mrb[0].mxu0 %v1721
      %v2150 = vpop.f32.mrb[0].mxu0
      %v2151 = vadd.f32 %v1987, %v2150
      %v2152 = vpop.f32.mrb[0].mxu0
      %2153 = vmatprep.mubr.f32.mxu0 %v1731
      %2154 = vmatmul.mubr.f32.gmra.mrb[0].mxu0 %v1730
      %v2155 = vpop.f32.mrb[0].mxu0
      %v2156 = vadd.f32 %v1987, %v2155
      %v2157 = vpop.f32.mrb[0].mxu0
      %2158 = vmatprep.mubr.f32.mxu0 %v1740
      %2159 = vmatmul.mubr.f32.gmra.mrb[0].mxu0 %v1739
      %v2160 = vpop.f32.mrb[0].mxu0
      %v2161 = vadd.f32 %v1987, %v2160
      %v2162 = vpop.f32.mrb[0].mxu0
      %2163 = vmatprep.mubr.f32.mxu0 %v1749
      %2164 = vmatmul.mubr.f32.gmra.mrb[0].mxu0 %v1748
      %v2165 = vpop.f32.mrb[0].mxu0
      %v2166 = vadd.f32 %v1987, %v2165
      %v2167 = vpop.f32.mrb[0].mxu0
      %2168 = vmatprep.mubr.f32.mxu0 %v1758
      %2169 = vmatmul.mubr.f32.gmra.mrb[0].mxu0 %v1757
      %v2170 = vpop.f32.mrb[0].mxu0
      %v2171 = vadd.f32 %v1987, %v2170
      %v2172 = vpop.f32.mrb[0].mxu0
      %2173 = vmatprep.mubr.f32.mxu0 %v1767
      %2174 = vmatmul.mubr.f32.gmra.mrb[0].mxu0 %v1766
      %v2175 = vpop.f32.mrb[0].mxu0
      %v2176 = vadd.f32 %v1987, %v2175
      %v2177 = vpop.f32.mrb[0].mxu0
      %2178 = vmatprep.mubr.f32.mxu0 %v1776
      %2179 = vmatmul.mubr.f32.gmra.mrb[0].mxu0 %v1775
      %v2180 = vpop.f32.mrb[0].mxu0
      %v2181 = vadd.f32 %v1987, %v2180
      %v2182 = vpop.f32.mrb[0].mxu0
      %2183 = vmatprep.mubr.f32.mxu0 %v1785
      %2184 = vmatmul.mubr.f32.gmra.mrb[0].mxu0 %v1784
      %v2185 = vpop.f32.mrb[0].mxu0
      %v2186 = vadd.f32 %v1987, %v2185
      %v2187 = vpop.f32.mrb[0].mxu0
      %2188 = vmatprep.mubr.f32.mxu0 %v1794
      %2189 = vmatmul.mubr.f32.gmra.mrb[0].mxu0 %v1793
      %v2190 = vpop.f32.mrb[0].mxu0
      %v2191 = vadd.f32 %v1987, %v2190
      %v2192 = vpop.f32.mrb[0].mxu0
      %2193 = vmatprep.mubr.f32.mxu0 %v1803
      %2194 = vmatmul.mubr.f32.gmra.mrb[0].mxu0 %v1802
      %v2195 = vpop.f32.mrb[0].mxu0
      %v2196 = vadd.f32 %v1987, %v2195
      %v2197 = vpop.f32.mrb[0].mxu0
      %2198 = vmatprep.mubr.f32.mxu0 %v1812
      %2199 = vmatmul.mubr.f32.gmra.mrb[0].mxu0 %v1811
      %v2200 = vpop.f32.mrb[0].mxu0
      %v2201 = vadd.f32 %v1987, %v2200
      %v2202 = vpop.f32.mrb[0].mxu0
      %2203 = vmatprep.mubr.f32.mxu0 %v1821
      %2204 = vmatmul.mubr.f32.gmra.mrb[0].mxu0 %v1820
      %v2205 = vpop.f32.mrb[0].mxu0
      %v2206 = vadd.f32 %v1987, %v2205
      %v2207 = vpop.f32.mrb[0].mxu0
      %2208 = vmatprep.mubr.f32.mxu0 %v1830
      %2209 = vmatmul.mubr.f32.gmra.mrb[0].mxu0 %v1829
      %v2210 = vpop.f32.mrb[0].mxu0
      %v2211 = vadd.f32 %v1987, %v2210
      %v2212 = vpop.f32.mrb[0].mxu0
      %2213 = vdwg.mxu0
      %2214 = vmatprep.subr.mxu0 0.0
      %2215 = vmatpush1.msra.mxu0 %v1870
      %2216 = vmatprep.subr.mxu0 0.0
      %2217 = vmatpush1.msra.mxu0 %v1871
      %2218 = vmatprep.subr.mxu0 0.0
      %2219 = vmatpush1.msra.mxu0 %v1872
      %2220 = vmatprep.subr.mxu0 0.0
      %2221 = vmatpush1.msra.mxu0 %v1873
      %2222 = vmatprep.subr.mxu0 0.0
      %2223 = vmatpush1.msra.mxu0 %v1874
      %2224 = vmatprep.subr.mxu0 0.0
      %2225 = vmatpush1.msra.mxu0 %v1875
      %2226 = vmatprep.subr.mxu0 0.0
      %2227 = vmatpush1.msra.mxu0 %v1876
      %2228 = vmatprep.subr.mxu0 0.0
      %2229 = vmatpush1.msra.mxu0 %v1877
      %2230 = vmatprep.subr.mxu0 0.0
      %2231 = vmatpush1.msra.mxu0 %v1878
      %2232 = vmatprep.subr.mxu0 0.0
      %2233 = vmatpush1.msra.mxu0 %v1879
      %2234 = vmatprep.subr.mxu0 0.0
      %2235 = vmatpush1.msra.mxu0 %v1880
      %2236 = vmatprep.subr.mxu0 0.0
      %2237 = vmatpush1.msra.mxu0 %v1881
      %2238 = vmatprep.subr.mxu0 0.0
      %2239 = vmatpush1.msra.mxu0 %v1882
      %2240 = vmatprep.subr.mxu0 0.0
      %2241 = vmatpush1.msra.mxu0 %v1883
      %2242 = vmatprep.subr.mxu0 0.0
      %2243 = vmatpush1.msra.mxu0 %v1884
      %2244 = vmatprep.subr.mxu0 0.0
      %2245 = vmatpush1.msra.mxu0 %v1885
      %2246 = vmatprep.subr.mxu0 0.0
      %2247 = vmatpush1.msra.mxu0 %v1886
      %2248 = vmatprep.subr.mxu0 0.0
      %2249 = vmatpush1.msra.mxu0 %v1887
      %2250 = vmatprep.subr.mxu0 0.0
      %2251 = vmatpush1.msra.mxu0 %v1888
      %2252 = vmatprep.subr.mxu0 0.0
      %2253 = vmatpush1.msra.mxu0 %v1889
      %2254 = vmatprep.subr.mxu0 0.0
      %2255 = vmatpush1.msra.mxu0 %v1890
      %2256 = vmatprep.subr.mxu0 0.0
      %2257 = vmatpush1.msra.mxu0 %v1891
      %2258 = vmatprep.subr.mxu0 0.0
      %2259 = vmatpush1.msra.mxu0 %v1892
      %2260 = vmatprep.subr.mxu0 0.0
      %2261 = vmatpush1.msra.mxu0 %v1893
      %2262 = vmatprep.subr.mxu0 0.0
      %2263 = vmatpush1.msra.mxu0 %v1894
      %2264 = vmatprep.subr.mxu0 0.0
      %2265 = vmatpush1.msra.mxu0 %v1895
      %2266 = vmatprep.subr.mxu0 0.0
      %2267 = vmatpush1.msra.mxu0 %v1896
      %2268 = vmatprep.subr.mxu0 0.0
      %2269 = vmatpush1.msra.mxu0 %v1897
      %2270 = vmatprep.subr.mxu0 0.0
      %2271 = vmatpush1.msra.mxu0 %v1898
      %2272 = vmatprep.subr.mxu0 0.0
      %2273 = vmatpush1.msra.mxu0 %v1899
      %2274 = vmatprep.subr.mxu0 0.0
      %2275 = vmatpush1.msra.mxu0 %v1900
      %2276 = vmatprep.subr.mxu0 0.0
      %2277 = vmatpush1.msra.mxu0 %v1901
      %2278 = vmatprep.mubr.f32.mxu0 %v1553
      %2279 = vmatmul.mubr.f32.gmra.mrb[0].mxu0 %v1552
      %v2280 = vpop.f32.mrb[0].mxu0
      %v2281 = vadd.f32 %v2056, %v2280
      %v2282 = vpop.f32.mrb[0].mxu0
      %2283 = vmatprep.mubr.f32.mxu0 %v1562
      %2284 = vmatmul.mubr.f32.gmra.mrb[0].mxu0 %v1561
      %v2285 = vpop.f32.mrb[0].mxu0
      %v2286 = vadd.f32 %v2061, %v2285
      %v2287 = vpop.f32.mrb[0].mxu0
      %2288 = vmatprep.mubr.f32.mxu0 %v1571
      %2289 = vmatmul.mubr.f32.gmra.mrb[0].mxu0 %v1570
      %v2290 = vpop.f32.mrb[0].mxu0
      %v2291 = vadd.f32 %v2066, %v2290
      %v2292 = vpop.f32.mrb[0].mxu0
      %2293 = vmatprep.mubr.f32.mxu0 %v1580
      %2294 = vmatmul.mubr.f32.gmra.mrb[0].mxu0 %v1579
      %v2295 = vpop.f32.mrb[0].mxu0
      %v2296 = vadd.f32 %v2071, %v2295
      %v2297 = vpop.f32.mrb[0].mxu0
      %2298 = vmatprep.mubr.f32.mxu0 %v1589
      %2299 = vmatmul.mubr.f32.gmra.mrb[0].mxu0 %v1588
      %v2300 = vpop.f32.mrb[0].mxu0
      %v2301 = vadd.f32 %v2076, %v2300
      %v2302 = vpop.f32.mrb[0].mxu0
      %2303 = vmatprep.mubr.f32.mxu0 %v1598
      %2304 = vmatmul.mubr.f32.gmra.mrb[0].mxu0 %v1597
      %v2305 = vpop.f32.mrb[0].mxu0
      %v2306 = vadd.f32 %v2081, %v2305
      %v2307 = vpop.f32.mrb[0].mxu0
      %2308 = vmatprep.mubr.f32.mxu0 %v1607
      %2309 = vmatmul.mubr.f32.gmra.mrb[0].mxu0 %v1606
      %v2310 = vpop.f32.mrb[0].mxu0
      %v2311 = vadd.f32 %v2086, %v2310
      %v2312 = vpop.f32.mrb[0].mxu0
      %2313 = vmatprep.mubr.f32.mxu0 %v1616
      %2314 = vmatmul.mubr.f32.gmra.mrb[0].mxu0 %v1615
      %v2315 = vpop.f32.mrb[0].mxu0
      %v2316 = vadd.f32 %v2091, %v2315
      %v2317 = vpop.f32.mrb[0].mxu0
      %2318 = vmatprep.mubr.f32.mxu0 %v1625
      %2319 = vmatmul.mubr.f32.gmra.mrb[0].mxu0 %v1624
      %v2320 = vpop.f32.mrb[0].mxu0
      %v2321 = vadd.f32 %v2096, %v2320
      %v2322 = vpop.f32.mrb[0].mxu0
      %2323 = vmatprep.mubr.f32.mxu0 %v1634
      %2324 = vmatmul.mubr.f32.gmra.mrb[0].mxu0 %v1633
      %v2325 = vpop.f32.mrb[0].mxu0
      %v2326 = vadd.f32 %v2101, %v2325
      %v2327 = vpop.f32.mrb[0].mxu0
      %2328 = vmatprep.mubr.f32.mxu0 %v1643
      %2329 = vmatmul.mubr.f32.gmra.mrb[0].mxu0 %v1642
      %v2330 = vpop.f32.mrb[0].mxu0
      %v2331 = vadd.f32 %v2106, %v2330
      %v2332 = vpop.f32.mrb[0].mxu0
      %2333 = vmatprep.mubr.f32.mxu0 %v1652
      %2334 = vmatmul.mubr.f32.gmra.mrb[0].mxu0 %v1651
      %v2335 = vpop.f32.mrb[0].mxu0
      %v2336 = vadd.f32 %v2111, %v2335
      %v2337 = vpop.f32.mrb[0].mxu0
      %2338 = vmatprep.mubr.f32.mxu0 %v1661
      %2339 = vmatmul.mubr.f32.gmra.mrb[0].mxu0 %v1660
      %v2340 = vpop.f32.mrb[0].mxu0
      %v2341 = vadd.f32 %v2116, %v2340
      %v2342 = vpop.f32.mrb[0].mxu0
      %2343 = vmatprep.mubr.f32.mxu0 %v1670
      %2344 = vmatmul.mubr.f32.gmra.mrb[0].mxu0 %v1669
      %v2345 = vpop.f32.mrb[0].mxu0
      %v2346 = vadd.f32 %v2121, %v2345
      %v2347 = vpop.f32.mrb[0].mxu0
      %2348 = vmatprep.mubr.f32.mxu0 %v1679
      %2349 = vmatmul.mubr.f32.gmra.mrb[0].mxu0 %v1678
      %v2350 = vpop.f32.mrb[0].mxu0
      %v2351 = vadd.f32 %v2126, %v2350
      %v2352 = vpop.f32.mrb[0].mxu0
      %2353 = vmatprep.mubr.f32.mxu0 %v1688
      %2354 = vmatmul.mubr.f32.gmra.mrb[0].mxu0 %v1687
      %v2355 = vpop.f32.mrb[0].mxu0
      %v2356 = vadd.f32 %v2131, %v2355
      %v2357 = vpop.f32.mrb[0].mxu0
      %2358 = vmatprep.mubr.f32.mxu0 %v1697
      %2359 = vmatmul.mubr.f32.gmra.mrb[0].mxu0 %v1696
      %v2360 = vpop.f32.mrb[0].mxu0
      %v2361 = vadd.f32 %v2136, %v2360
      %v2362 = vpop.f32.mrb[0].mxu0
      %2363 = vmatprep.mubr.f32.mxu0 %v1706
      %2364 = vmatmul.mubr.f32.gmra.mrb[0].mxu0 %v1705
      %v2365 = vpop.f32.mrb[0].mxu0
      %v2366 = vadd.f32 %v2141, %v2365
      %v2367 = vpop.f32.mrb[0].mxu0
      %2368 = vmatprep.mubr.f32.mxu0 %v1715
      %2369 = vmatmul.mubr.f32.gmra.mrb[0].mxu0 %v1714
      %v2370 = vpop.f32.mrb[0].mxu0
      %v2371 = vadd.f32 %v2146, %v2370
      %v2372 = vpop.f32.mrb[0].mxu0
      %2373 = vmatprep.mubr.f32.mxu0 %v1724
      %2374 = vmatmul.mubr.f32.gmra.mrb[0].mxu0 %v1723
      %v2375 = vpop.f32.mrb[0].mxu0
      %v2376 = vadd.f32 %v2151, %v2375
      %v2377 = vpop.f32.mrb[0].mxu0
      %2378 = vmatprep.mubr.f32.mxu0 %v1733
      %2379 = vmatmul.mubr.f32.gmra.mrb[0].mxu0 %v1732
      %v2380 = vpop.f32.mrb[0].mxu0
      %v2381 = vadd.f32 %v2156, %v2380
      %v2382 = vpop.f32.mrb[0].mxu0
      %2383 = vmatprep.mubr.f32.mxu0 %v1742
      %2384 = vmatmul.mubr.f32.gmra.mrb[0].mxu0 %v1741
      %v2385 = vpop.f32.mrb[0].mxu0
      %v2386 = vadd.f32 %v2161, %v2385
      %v2387 = vpop.f32.mrb[0].mxu0
      %2388 = vmatprep.mubr.f32.mxu0 %v1751
      %2389 = vmatmul.mubr.f32.gmra.mrb[0].mxu0 %v1750
      %v2390 = vpop.f32.mrb[0].mxu0
      %v2391 = vadd.f32 %v2166, %v2390
      %v2392 = vpop.f32.mrb[0].mxu0
      %2393 = vmatprep.mubr.f32.mxu0 %v1760
      %2394 = vmatmul.mubr.f32.gmra.mrb[0].mxu0 %v1759
      %v2395 = vpop.f32.mrb[0].mxu0
      %v2396 = vadd.f32 %v2171, %v2395
      %v2397 = vpop.f32.mrb[0].mxu0
      %2398 = vmatprep.mubr.f32.mxu0 %v1769
      %2399 = vmatmul.mubr.f32.gmra.mrb[0].mxu0 %v1768
      %v2400 = vpop.f32.mrb[0].mxu0
      %v2401 = vadd.f32 %v2176, %v2400
      %v2402 = vpop.f32.mrb[0].mxu0
      %2403 = vmatprep.mubr.f32.mxu0 %v1778
      %2404 = vmatmul.mubr.f32.gmra.mrb[0].mxu0 %v1777
      %v2405 = vpop.f32.mrb[0].mxu0
      %v2406 = vadd.f32 %v2181, %v2405
      %v2407 = vpop.f32.mrb[0].mxu0
      %2408 = vmatprep.mubr.f32.mxu0 %v1787
      %2409 = vmatmul.mubr.f32.gmra.mrb[0].mxu0 %v1786
      %v2410 = vpop.f32.mrb[0].mxu0
      %v2411 = vadd.f32 %v2186, %v2410
      %v2412 = vpop.f32.mrb[0].mxu0
      %2413 = vmatprep.mubr.f32.mxu0 %v1796
      %2414 = vmatmul.mubr.f32.gmra.mrb[0].mxu0 %v1795
      %v2415 = vpop.f32.mrb[0].mxu0
      %v2416 = vadd.f32 %v2191, %v2415
      %v2417 = vpop.f32.mrb[0].mxu0
      %2418 = vmatprep.mubr.f32.mxu0 %v1805
      %2419 = vmatmul.mubr.f32.gmra.mrb[0].mxu0 %v1804
      %v2420 = vpop.f32.mrb[0].mxu0
      %v2421 = vadd.f32 %v2196, %v2420
      %v2422 = vpop.f32.mrb[0].mxu0
      %2423 = vmatprep.mubr.f32.mxu0 %v1814
      %2424 = vmatmul.mubr.f32.gmra.mrb[0].mxu0 %v1813
      %v2425 = vpop.f32.mrb[0].mxu0
      %v2426 = vadd.f32 %v2201, %v2425
      %v2427 = vpop.f32.mrb[0].mxu0
      %2428 = vmatprep.mubr.f32.mxu0 %v1823
      %2429 = vmatmul.mubr.f32.gmra.mrb[0].mxu0 %v1822
      %v2430 = vpop.f32.mrb[0].mxu0
      %v2431 = vadd.f32 %v2206, %v2430
      %v2432 = vpop.f32.mrb[0].mxu0
      %2433 = vmatprep.mubr.f32.mxu0 %v1832
      %2434 = vmatmul.mubr.f32.gmra.mrb[0].mxu0 %v1831
      %v2435 = vpop.f32.mrb[0].mxu0
      %v2436 = vadd.f32 %v2211, %v2435
      %v2437 = vpop.f32.mrb[0].mxu0
      %2438 = vdwg.mxu0
      %2439 = vmatprep.subr.mxu0 0.0
      %2440 = vmatpush1.msra.mxu0 %v1902
      %2441 = vmatprep.subr.mxu0 0.0
      %2442 = vmatpush1.msra.mxu0 %v1903
      %2443 = vmatprep.subr.mxu0 0.0
      %2444 = vmatpush1.msra.mxu0 %v1904
      %2445 = vmatprep.subr.mxu0 0.0
      %2446 = vmatpush1.msra.mxu0 %v1905
      %2447 = vmatprep.subr.mxu0 0.0
      %2448 = vmatpush1.msra.mxu0 %v1906
      %2449 = vmatprep.subr.mxu0 0.0
      %2450 = vmatpush1.msra.mxu0 %v1907
      %2451 = vmatprep.subr.mxu0 0.0
      %2452 = vmatpush1.msra.mxu0 %v1908
      %2453 = vmatprep.subr.mxu0 0.0
      %2454 = vmatpush1.msra.mxu0 %v1909
      %2455 = vmatprep.subr.mxu0 0.0
      %2456 = vmatpush1.msra.mxu0 %v1910
      %2457 = vmatprep.subr.mxu0 0.0
      %2458 = vmatpush1.msra.mxu0 %v1911
      %2459 = vmatprep.subr.mxu0 0.0
      %2460 = vmatpush1.msra.mxu0 %v1912
      %2461 = vmatprep.subr.mxu0 0.0
      %2462 = vmatpush1.msra.mxu0 %v1913
      %2463 = vmatprep.subr.mxu0 0.0
      %2464 = vmatpush1.msra.mxu0 %v1914
      %2465 = vmatprep.subr.mxu0 0.0
      %2466 = vmatpush1.msra.mxu0 %v1915
      %2467 = vmatprep.subr.mxu0 0.0
      %2468 = vmatpush1.msra.mxu0 %v1916
      %2469 = vmatprep.subr.mxu0 0.0
      %2470 = vmatpush1.msra.mxu0 %v1917
      %2471 = vmatprep.subr.mxu0 0.0
      %2472 = vmatpush1.msra.mxu0 %v1918
      %2473 = vmatprep.subr.mxu0 0.0
      %2474 = vmatpush1.msra.mxu0 %v1919
      %2475 = vmatprep.subr.mxu0 0.0
      %2476 = vmatpush1.msra.mxu0 %v1920
      %2477 = vmatprep.subr.mxu0 0.0
      %2478 = vmatpush1.msra.mxu0 %v1921
      %2479 = vmatprep.subr.mxu0 0.0
      %2480 = vmatpush1.msra.mxu0 %v1922
      %2481 = vmatprep.subr.mxu0 0.0
      %2482 = vmatpush1.msra.mxu0 %v1923
      %2483 = vmatprep.subr.mxu0 0.0
      %2484 = vmatpush1.msra.mxu0 %v1924
      %2485 = vmatprep.subr.mxu0 0.0
      %2486 = vmatpush1.msra.mxu0 %v1925
      %2487 = vmatprep.subr.mxu0 0.0
      %2488 = vmatpush1.msra.mxu0 %v1926
      %2489 = vmatprep.subr.mxu0 0.0
      %2490 = vmatpush1.msra.mxu0 %v1927
      %2491 = vmatprep.subr.mxu0 0.0
      %2492 = vmatpush1.msra.mxu0 %v1928
      %2493 = vmatprep.subr.mxu0 0.0
      %2494 = vmatpush1.msra.mxu0 %v1929
      %2495 = vmatprep.subr.mxu0 0.0
      %2496 = vmatpush1.msra.mxu0 %v1930
      %2497 = vmatprep.subr.mxu0 0.0
      %2498 = vmatpush1.msra.mxu0 %v1931
      %2499 = vmatprep.subr.mxu0 0.0
      %2500 = vmatpush1.msra.mxu0 %v1932
      %2501 = vmatprep.subr.mxu0 0.0
      %2502 = vmatpush1.msra.mxu0 %v1933
      %2503 = vmatprep.mubr.f32.mxu0 %v1555
      %2504 = vmatmul.mubr.f32.gmra.mrb[0].mxu0 %v1554
      %v2505 = vpop.f32.mrb[0].mxu0
      %v2506 = vadd.f32 %v2281, %v2505
      %v2507 = vpop.f32.mrb[0].mxu0
      %2508 = vmatprep.mubr.f32.mxu0 %v1564
      %2509 = vmatmul.mubr.f32.gmra.mrb[0].mxu0 %v1563
      %v2510 = vpop.f32.mrb[0].mxu0
      %v2511 = vadd.f32 %v2286, %v2510
      %v2512 = vpop.f32.mrb[0].mxu0
      %2513 = vmatprep.mubr.f32.mxu0 %v1573
      %2514 = vmatmul.mubr.f32.gmra.mrb[0].mxu0 %v1572
      %v2515 = vpop.f32.mrb[0].mxu0
      %v2516 = vadd.f32 %v2291, %v2515
      %v2517 = vpop.f32.mrb[0].mxu0
      %2518 = vmatprep.mubr.f32.mxu0 %v1582
      %2519 = vmatmul.mubr.f32.gmra.mrb[0].mxu0 %v1581
      %v2520 = vpop.f32.mrb[0].mxu0
      %v2521 = vadd.f32 %v2296, %v2520
      %v2522 = vpop.f32.mrb[0].mxu0
      %2523 = vmatprep.mubr.f32.mxu0 %v1591
      %2524 = vmatmul.mubr.f32.gmra.mrb[0].mxu0 %v1590
      %v2525 = vpop.f32.mrb[0].mxu0
      %v2526 = vadd.f32 %v2301, %v2525
      %v2527 = vpop.f32.mrb[0].mxu0
      %2528 = vmatprep.mubr.f32.mxu0 %v1600
      %2529 = vmatmul.mubr.f32.gmra.mrb[0].mxu0 %v1599
      %v2530 = vpop.f32.mrb[0].mxu0
      %v2531 = vadd.f32 %v2306, %v2530
      %v2532 = vpop.f32.mrb[0].mxu0
      %2533 = vmatprep.mubr.f32.mxu0 %v1609
      %2534 = vmatmul.mubr.f32.gmra.mrb[0].mxu0 %v1608
      %v2535 = vpop.f32.mrb[0].mxu0
      %v2536 = vadd.f32 %v2311, %v2535
      %v2537 = vpop.f32.mrb[0].mxu0
      %2538 = vmatprep.mubr.f32.mxu0 %v1618
      %2539 = vmatmul.mubr.f32.gmra.mrb[0].mxu0 %v1617
      %v2540 = vpop.f32.mrb[0].mxu0
      %v2541 = vadd.f32 %v2316, %v2540
      %v2542 = vpop.f32.mrb[0].mxu0
      %2543 = vmatprep.mubr.f32.mxu0 %v1627
      %2544 = vmatmul.mubr.f32.gmra.mrb[0].mxu0 %v1626
      %v2545 = vpop.f32.mrb[0].mxu0
      %v2546 = vadd.f32 %v2321, %v2545
      %v2547 = vpop.f32.mrb[0].mxu0
      %2548 = vmatprep.mubr.f32.mxu0 %v1636
      %2549 = vmatmul.mubr.f32.gmra.mrb[0].mxu0 %v1635
      %v2550 = vpop.f32.mrb[0].mxu0
      %v2551 = vadd.f32 %v2326, %v2550
      %v2552 = vpop.f32.mrb[0].mxu0
      %2553 = vmatprep.mubr.f32.mxu0 %v1645
      %2554 = vmatmul.mubr.f32.gmra.mrb[0].mxu0 %v1644
      %v2555 = vpop.f32.mrb[0].mxu0
      %v2556 = vadd.f32 %v2331, %v2555
      %v2557 = vpop.f32.mrb[0].mxu0
      %2558 = vmatprep.mubr.f32.mxu0 %v1654
      %2559 = vmatmul.mubr.f32.gmra.mrb[0].mxu0 %v1653
      %v2560 = vpop.f32.mrb[0].mxu0
      %v2561 = vadd.f32 %v2336, %v2560
      %v2562 = vpop.f32.mrb[0].mxu0
      %2563 = vmatprep.mubr.f32.mxu0 %v1663
      %2564 = vmatmul.mubr.f32.gmra.mrb[0].mxu0 %v1662
      %v2565 = vpop.f32.mrb[0].mxu0
      %v2566 = vadd.f32 %v2341, %v2565
      %v2567 = vpop.f32.mrb[0].mxu0
      %2568 = vmatprep.mubr.f32.mxu0 %v1672
      %2569 = vmatmul.mubr.f32.gmra.mrb[0].mxu0 %v1671
      %v2570 = vpop.f32.mrb[0].mxu0
      %v2571 = vadd.f32 %v2346, %v2570
      %v2572 = vpop.f32.mrb[0].mxu0
      %2573 = vmatprep.mubr.f32.mxu0 %v1681
      %2574 = vmatmul.mubr.f32.gmra.mrb[0].mxu0 %v1680
      %v2575 = vpop.f32.mrb[0].mxu0
      %v2576 = vadd.f32 %v2351, %v2575
      %v2577 = vpop.f32.mrb[0].mxu0
      %2578 = vmatprep.mubr.f32.mxu0 %v1690
      %2579 = vmatmul.mubr.f32.gmra.mrb[0].mxu0 %v1689
      %v2580 = vpop.f32.mrb[0].mxu0
      %v2581 = vadd.f32 %v2356, %v2580
      %v2582 = vpop.f32.mrb[0].mxu0
      %2583 = vmatprep.mubr.f32.mxu0 %v1699
      %2584 = vmatmul.mubr.f32.gmra.mrb[0].mxu0 %v1698
      %v2585 = vpop.f32.mrb[0].mxu0
      %v2586 = vadd.f32 %v2361, %v2585
      %v2587 = vpop.f32.mrb[0].mxu0
      %2588 = vmatprep.mubr.f32.mxu0 %v1708
      %2589 = vmatmul.mubr.f32.gmra.mrb[0].mxu0 %v1707
      %v2590 = vpop.f32.mrb[0].mxu0
      %v2591 = vadd.f32 %v2366, %v2590
      %v2592 = vpop.f32.mrb[0].mxu0
      %2593 = vmatprep.mubr.f32.mxu0 %v1717
      %2594 = vmatmul.mubr.f32.gmra.mrb[0].mxu0 %v1716
      %v2595 = vpop.f32.mrb[0].mxu0
      %v2596 = vadd.f32 %v2371, %v2595
      %v2597 = vpop.f32.mrb[0].mxu0
      %2598 = vmatprep.mubr.f32.mxu0 %v1726
      %2599 = vmatmul.mubr.f32.gmra.mrb[0].mxu0 %v1725
      %v2600 = vpop.f32.mrb[0].mxu0
      %v2601 = vadd.f32 %v2376, %v2600
      %v2602 = vpop.f32.mrb[0].mxu0
      %2603 = vmatprep.mubr.f32.mxu0 %v1735
      %2604 = vmatmul.mubr.f32.gmra.mrb[0].mxu0 %v1734
      %v2605 = vpop.f32.mrb[0].mxu0
      %v2606 = vadd.f32 %v2381, %v2605
      %v2607 = vpop.f32.mrb[0].mxu0
      %2608 = vmatprep.mubr.f32.mxu0 %v1744
      %2609 = vmatmul.mubr.f32.gmra.mrb[0].mxu0 %v1743
      %v2610 = vpop.f32.mrb[0].mxu0
      %v2611 = vadd.f32 %v2386, %v2610
      %v2612 = vpop.f32.mrb[0].mxu0
      %2613 = vmatprep.mubr.f32.mxu0 %v1753
      %2614 = vmatmul.mubr.f32.gmra.mrb[0].mxu0 %v1752
      %v2615 = vpop.f32.mrb[0].mxu0
      %v2616 = vadd.f32 %v2391, %v2615
      %v2617 = vpop.f32.mrb[0].mxu0
      %2618 = vmatprep.mubr.f32.mxu0 %v1762
      %2619 = vmatmul.mubr.f32.gmra.mrb[0].mxu0 %v1761
      %v2620 = vpop.f32.mrb[0].mxu0
      %v2621 = vadd.f32 %v2396, %v2620
      %v2622 = vpop.f32.mrb[0].mxu0
      %2623 = vmatprep.mubr.f32.mxu0 %v1771
      %2624 = vmatmul.mubr.f32.gmra.mrb[0].mxu0 %v1770
      %v2625 = vpop.f32.mrb[0].mxu0
      %v2626 = vadd.f32 %v2401, %v2625
      %v2627 = vpop.f32.mrb[0].mxu0
      %2628 = vmatprep.mubr.f32.mxu0 %v1780
      %2629 = vmatmul.mubr.f32.gmra.mrb[0].mxu0 %v1779
      %v2630 = vpop.f32.mrb[0].mxu0
      %v2631 = vadd.f32 %v2406, %v2630
      %v2632 = vpop.f32.mrb[0].mxu0
      %2633 = vmatprep.mubr.f32.mxu0 %v1789
      %2634 = vmatmul.mubr.f32.gmra.mrb[0].mxu0 %v1788
      %v2635 = vpop.f32.mrb[0].mxu0
      %v2636 = vadd.f32 %v2411, %v2635
      %v2637 = vpop.f32.mrb[0].mxu0
      %2638 = vmatprep.mubr.f32.mxu0 %v1798
      %2639 = vmatmul.mubr.f32.gmra.mrb[0].mxu0 %v1797
      %v2640 = vpop.f32.mrb[0].mxu0
      %v2641 = vadd.f32 %v2416, %v2640
      %v2642 = vpop.f32.mrb[0].mxu0
      %2643 = vmatprep.mubr.f32.mxu0 %v1807
      %2644 = vmatmul.mubr.f32.gmra.mrb[0].mxu0 %v1806
      %v2645 = vpop.f32.mrb[0].mxu0
      %v2646 = vadd.f32 %v2421, %v2645
      %v2647 = vpop.f32.mrb[0].mxu0
      %2648 = vmatprep.mubr.f32.mxu0 %v1816
      %2649 = vmatmul.mubr.f32.gmra.mrb[0].mxu0 %v1815
      %v2650 = vpop.f32.mrb[0].mxu0
      %v2651 = vadd.f32 %v2426, %v2650
      %v2652 = vpop.f32.mrb[0].mxu0
      %2653 = vmatprep.mubr.f32.mxu0 %v1825
      %2654 = vmatmul.mubr.f32.gmra.mrb[0].mxu0 %v1824
      %v2655 = vpop.f32.mrb[0].mxu0
      %v2656 = vadd.f32 %v2431, %v2655
      %v2657 = vpop.f32.mrb[0].mxu0
      %2658 = vmatprep.mubr.f32.mxu0 %v1834
      %2659 = vmatmul.mubr.f32.gmra.mrb[0].mxu0 %v1833
      %v2660 = vpop.f32.mrb[0].mxu0
      %v2661 = vadd.f32 %v2436, %v2660
      %v2662 = vpop.f32.mrb[0].mxu0
      %2663 = vdwg.mxu0
      %2664 = vmatprep.subr.mxu0 0.0
      %2665 = vmatpush1.msra.mxu0 %v1934
      %2666 = vmatprep.subr.mxu0 0.0
      %2667 = vmatpush1.msra.mxu0 %v1935
      %2668 = vmatprep.subr.mxu0 0.0
      %2669 = vmatpush1.msra.mxu0 %v1936
      %2670 = vmatprep.subr.mxu0 0.0
      %2671 = vmatpush1.msra.mxu0 %v1937
      %2672 = vmatprep.subr.mxu0 0.0
      %2673 = vmatpush1.msra.mxu0 %v1938
      %2674 = vmatprep.subr.mxu0 0.0
      %2675 = vmatpush1.msra.mxu0 %v1939
      %2676 = vmatprep.subr.mxu0 0.0
      %2677 = vmatpush1.msra.mxu0 %v1940
      %2678 = vmatprep.subr.mxu0 0.0
      %2679 = vmatpush1.msra.mxu0 %v1941
      %2680 = vmatprep.subr.mxu0 0.0
      %2681 = vmatpush1.msra.mxu0 %v1942
      %2682 = vmatprep.subr.mxu0 0.0
      %2683 = vmatpush1.msra.mxu0 %v1943
      %2684 = vmatprep.subr.mxu0 0.0
      %2685 = vmatpush1.msra.mxu0 %v1944
      %2686 = vmatprep.subr.mxu0 0.0
      %2687 = vmatpush1.msra.mxu0 %v1945
      %2688 = vmatprep.subr.mxu0 0.0
      %2689 = vmatpush1.msra.mxu0 %v1946
      %2690 = vmatprep.subr.mxu0 0.0
      %2691 = vmatpush1.msra.mxu0 %v1947
      %2692 = vmatprep.subr.mxu0 0.0
      %2693 = vmatpush1.msra.mxu0 %v1948
      %2694 = vmatprep.subr.mxu0 0.0
      %2695 = vmatpush1.msra.mxu0 %v1949
      %2696 = vmatprep.subr.mxu0 0.0
      %2697 = vmatpush1.msra.mxu0 %v1950
      %2698 = vmatprep.subr.mxu0 0.0
      %2699 = vmatpush1.msra.mxu0 %v1951
      %2700 = vmatprep.subr.mxu0 0.0
      %2701 = vmatpush1.msra.mxu0 %v1952
      %2702 = vmatprep.subr.mxu0 0.0
      %2703 = vmatpush1.msra.mxu0 %v1953
      %2704 = vmatprep.subr.mxu0 0.0
      %2705 = vmatpush1.msra.mxu0 %v1954
      %2706 = vmatprep.subr.mxu0 0.0
      %2707 = vmatpush1.msra.mxu0 %v1955
      %2708 = vmatprep.subr.mxu0 0.0
      %2709 = vmatpush1.msra.mxu0 %v1956
      %2710 = vmatprep.subr.mxu0 0.0
      %2711 = vmatpush1.msra.mxu0 %v1957
      %2712 = vmatprep.subr.mxu0 0.0
      %2713 = vmatpush1.msra.mxu0 %v1958
      %2714 = vmatprep.subr.mxu0 0.0
      %2715 = vmatpush1.msra.mxu0 %v1959
      %2716 = vmatprep.subr.mxu0 0.0
      %2717 = vmatpush1.msra.mxu0 %v1960
      %2718 = vmatprep.subr.mxu0 0.0
      %2719 = vmatpush1.msra.mxu0 %v1961
      %2720 = vmatprep.subr.mxu0 0.0
      %2721 = vmatpush1.msra.mxu0 %v1962
      %2722 = vmatprep.subr.mxu0 0.0
      %2723 = vmatpush1.msra.mxu0 %v1963
      %2724 = vmatprep.subr.mxu0 0.0
      %2725 = vmatpush1.msra.mxu0 %v1964
      %2726 = vmatprep.subr.mxu0 0.0
      %2727 = vmatpush1.msra.mxu0 %v1965
      %2728 = vmatprep.mubr.f32.mxu0 %v1557
      %2729 = vmatmul.mubr.f32.gmra.mrb[0].mxu0 %v1556
      %v2730 = vpop.f32.mrb[0].mxu0
      %v2731 = vadd.f32 %v2506, %v2730
      %v2732 = vpop.f32.mrb[0].mxu0
      %2733 = vmatprep.mubr.f32.mxu0 %v1566
      %2734 = vmatmul.mubr.f32.gmra.mrb[0].mxu0 %v1565
      %v2735 = vpop.f32.mrb[0].mxu0
      %v2736 = vadd.f32 %v2511, %v2735
      %v2737 = vpop.f32.mrb[0].mxu0
      %2738 = vmatprep.mubr.f32.mxu0 %v1575
      %2739 = vmatmul.mubr.f32.gmra.mrb[0].mxu0 %v1574
      %v2740 = vpop.f32.mrb[0].mxu0
      %v2741 = vadd.f32 %v2516, %v2740
      %v2742 = vpop.f32.mrb[0].mxu0
      %2743 = vmatprep.mubr.f32.mxu0 %v1584
      %2744 = vmatmul.mubr.f32.gmra.mrb[0].mxu0 %v1583
      %v2745 = vpop.f32.mrb[0].mxu0
      %v2746 = vadd.f32 %v2521, %v2745
      %v2747 = vpop.f32.mrb[0].mxu0
      %2748 = vmatprep.mubr.f32.mxu0 %v1593
      %2749 = vmatmul.mubr.f32.gmra.mrb[0].mxu0 %v1592
      %v2750 = vpop.f32.mrb[0].mxu0
      %v2751 = vadd.f32 %v2526, %v2750
      %v2752 = vpop.f32.mrb[0].mxu0
      %2753 = vmatprep.mubr.f32.mxu0 %v1602
      %2754 = vmatmul.mubr.f32.gmra.mrb[0].mxu0 %v1601
      %v2755 = vpop.f32.mrb[0].mxu0
      %v2756 = vadd.f32 %v2531, %v2755
      %v2757 = vpop.f32.mrb[0].mxu0
      %2758 = vmatprep.mubr.f32.mxu0 %v1611
      %2759 = vmatmul.mubr.f32.gmra.mrb[0].mxu0 %v1610
      %v2760 = vpop.f32.mrb[0].mxu0
      %v2761 = vadd.f32 %v2536, %v2760
      %v2762 = vpop.f32.mrb[0].mxu0
      %2763 = vmatprep.mubr.f32.mxu0 %v1620
      %2764 = vmatmul.mubr.f32.gmra.mrb[0].mxu0 %v1619
      %v2765 = vpop.f32.mrb[0].mxu0
      %v2766 = vadd.f32 %v2541, %v2765
      %v2767 = vpop.f32.mrb[0].mxu0
      %2768 = vmatprep.mubr.f32.mxu0 %v1629
      %2769 = vmatmul.mubr.f32.gmra.mrb[0].mxu0 %v1628
      %v2770 = vpop.f32.mrb[0].mxu0
      %v2771 = vadd.f32 %v2546, %v2770
      %v2772 = vpop.f32.mrb[0].mxu0
      %2773 = vmatprep.mubr.f32.mxu0 %v1638
      %2774 = vmatmul.mubr.f32.gmra.mrb[0].mxu0 %v1637
      %v2775 = vpop.f32.mrb[0].mxu0
      %v2776 = vadd.f32 %v2551, %v2775
      %v2777 = vpop.f32.mrb[0].mxu0
      %2778 = vmatprep.mubr.f32.mxu0 %v1647
      %2779 = vmatmul.mubr.f32.gmra.mrb[0].mxu0 %v1646
      %v2780 = vpop.f32.mrb[0].mxu0
      %v2781 = vadd.f32 %v2556, %v2780
      %v2782 = vpop.f32.mrb[0].mxu0
      %2783 = vmatprep.mubr.f32.mxu0 %v1656
      %2784 = vmatmul.mubr.f32.gmra.mrb[0].mxu0 %v1655
      %v2785 = vpop.f32.mrb[0].mxu0
      %v2786 = vadd.f32 %v2561, %v2785
      %v2787 = vpop.f32.mrb[0].mxu0
      %2788 = vmatprep.mubr.f32.mxu0 %v1665
      %2789 = vmatmul.mubr.f32.gmra.mrb[0].mxu0 %v1664
      %v2790 = vpop.f32.mrb[0].mxu0
      %v2791 = vadd.f32 %v2566, %v2790
      %v2792 = vpop.f32.mrb[0].mxu0
      %2793 = vmatprep.mubr.f32.mxu0 %v1674
      %2794 = vmatmul.mubr.f32.gmra.mrb[0].mxu0 %v1673
      %v2795 = vpop.f32.mrb[0].mxu0
      %v2796 = vadd.f32 %v2571, %v2795
      %v2797 = vpop.f32.mrb[0].mxu0
      %2798 = vmatprep.mubr.f32.mxu0 %v1683
      %2799 = vmatmul.mubr.f32.gmra.mrb[0].mxu0 %v1682
      %v2800 = vpop.f32.mrb[0].mxu0
      %v2801 = vadd.f32 %v2576, %v2800
      %v2802 = vpop.f32.mrb[0].mxu0
      %2803 = vmatprep.mubr.f32.mxu0 %v1692
      %2804 = vmatmul.mubr.f32.gmra.mrb[0].mxu0 %v1691
      %v2805 = vpop.f32.mrb[0].mxu0
      %v2806 = vadd.f32 %v2581, %v2805
      %v2807 = vpop.f32.mrb[0].mxu0
      %2808 = vmatprep.mubr.f32.mxu0 %v1701
      %2809 = vmatmul.mubr.f32.gmra.mrb[0].mxu0 %v1700
      %v2810 = vpop.f32.mrb[0].mxu0
      %v2811 = vadd.f32 %v2586, %v2810
      %v2812 = vpop.f32.mrb[0].mxu0
      %2813 = vmatprep.mubr.f32.mxu0 %v1710
      %2814 = vmatmul.mubr.f32.gmra.mrb[0].mxu0 %v1709
      %v2815 = vpop.f32.mrb[0].mxu0
      %v2816 = vadd.f32 %v2591, %v2815
      %v2817 = vpop.f32.mrb[0].mxu0
      %2818 = vmatprep.mubr.f32.mxu0 %v1719
      %2819 = vmatmul.mubr.f32.gmra.mrb[0].mxu0 %v1718
      %v2820 = vpop.f32.mrb[0].mxu0
      %v2821 = vadd.f32 %v2596, %v2820
      %v2822 = vpop.f32.mrb[0].mxu0
      %2823 = vmatprep.mubr.f32.mxu0 %v1728
      %2824 = vmatmul.mubr.f32.gmra.mrb[0].mxu0 %v1727
      %v2825 = vpop.f32.mrb[0].mxu0
      %v2826 = vadd.f32 %v2601, %v2825
      %v2827 = vpop.f32.mrb[0].mxu0
      %2828 = vmatprep.mubr.f32.mxu0 %v1737
      %2829 = vmatmul.mubr.f32.gmra.mrb[0].mxu0 %v1736
      %v2830 = vpop.f32.mrb[0].mxu0
      %v2831 = vadd.f32 %v2606, %v2830
      %v2832 = vpop.f32.mrb[0].mxu0
      %2833 = vmatprep.mubr.f32.mxu0 %v1746
      %2834 = vmatmul.mubr.f32.gmra.mrb[0].mxu0 %v1745
      %v2835 = vpop.f32.mrb[0].mxu0
      %v2836 = vadd.f32 %v2611, %v2835
      %v2837 = vpop.f32.mrb[0].mxu0
      %2838 = vmatprep.mubr.f32.mxu0 %v1755
      %2839 = vmatmul.mubr.f32.gmra.mrb[0].mxu0 %v1754
      %v2840 = vpop.f32.mrb[0].mxu0
      %v2841 = vadd.f32 %v2616, %v2840
      %v2842 = vpop.f32.mrb[0].mxu0
      %2843 = vmatprep.mubr.f32.mxu0 %v1764
      %2844 = vmatmul.mubr.f32.gmra.mrb[0].mxu0 %v1763
      %v2845 = vpop.f32.mrb[0].mxu0
      %v2846 = vadd.f32 %v2621, %v2845
      %v2847 = vpop.f32.mrb[0].mxu0
      %2848 = vmatprep.mubr.f32.mxu0 %v1773
      %2849 = vmatmul.mubr.f32.gmra.mrb[0].mxu0 %v1772
      %v2850 = vpop.f32.mrb[0].mxu0
      %v2851 = vadd.f32 %v2626, %v2850
      %v2852 = vpop.f32.mrb[0].mxu0
      %2853 = vmatprep.mubr.f32.mxu0 %v1782
      %2854 = vmatmul.mubr.f32.gmra.mrb[0].mxu0 %v1781
      %v2855 = vpop.f32.mrb[0].mxu0
      %v2856 = vadd.f32 %v2631, %v2855
      %v2857 = vpop.f32.mrb[0].mxu0
      %2858 = vmatprep.mubr.f32.mxu0 %v1791
      %2859 = vmatmul.mubr.f32.gmra.mrb[0].mxu0 %v1790
      %v2860 = vpop.f32.mrb[0].mxu0
      %v2861 = vadd.f32 %v2636, %v2860
      %v2862 = vpop.f32.mrb[0].mxu0
      %2863 = vmatprep.mubr.f32.mxu0 %v1800
      %2864 = vmatmul.mubr.f32.gmra.mrb[0].mxu0 %v1799
      %v2865 = vpop.f32.mrb[0].mxu0
      %v2866 = vadd.f32 %v2641, %v2865
      %v2867 = vpop.f32.mrb[0].mxu0
      %2868 = vmatprep.mubr.f32.mxu0 %v1809
      %2869 = vmatmul.mubr.f32.gmra.mrb[0].mxu0 %v1808
      %v2870 = vpop.f32.mrb[0].mxu0
      %v2871 = vadd.f32 %v2646, %v2870
      %v2872 = vpop.f32.mrb[0].mxu0
      %2873 = vmatprep.mubr.f32.mxu0 %v1818
      %2874 = vmatmul.mubr.f32.gmra.mrb[0].mxu0 %v1817
      %v2875 = vpop.f32.mrb[0].mxu0
      %v2876 = vadd.f32 %v2651, %v2875
      %v2877 = vpop.f32.mrb[0].mxu0
      %2878 = vmatprep.mubr.f32.mxu0 %v1827
      %2879 = vmatmul.mubr.f32.gmra.mrb[0].mxu0 %v1826
      %v2880 = vpop.f32.mrb[0].mxu0
      %v2881 = vadd.f32 %v2656, %v2880
      %v2882 = vpop.f32.mrb[0].mxu0
      %2883 = vmatprep.mubr.f32.mxu0 %v1836
      %2884 = vmatmul.mubr.f32.gmra.mrb[0].mxu0 %v1835
      %v2885 = vpop.f32.mrb[0].mxu0
      %v2886 = vadd.f32 %v2661, %v2885
      %v2887 = vpop.f32.mrb[0].mxu0
      %2888 = vdwg.mxu0
      %2889 = vmatprep.subr.mxu0 0.0
      %2890 = vmatpush1.msra.mxu0 %v1966
      %2891 = vmatprep.subr.mxu0 0.0
      %2892 = vmatpush1.msra.mxu0 %v1967
      %2893 = vmatprep.subr.mxu0 0.0
      %2894 = vmatpush1.msra.mxu0 %v1968
      %2895 = vmatprep.subr.mxu0 0.0
      %2896 = vmatpush1.msra.mxu0 %v1969
      %2897 = vmatprep.subr.mxu0 0.0
      %2898 = vmatpush1.msra.mxu0 %v1970
      %2899 = vmatprep.subr.mxu0 0.0
      %2900 = vmatpush1.msra.mxu0 %v1971
      %2901 = vmatprep.subr.mxu0 0.0
      %2902 = vmatpush1.msra.mxu0 %v1972
      %2903 = vmatprep.subr.mxu0 0.0
      %2904 = vmatpush1.msra.mxu0 %v1973
      %2905 = vmatprep.subr.mxu0 0.0
      %2906 = vmatpush1.msra.mxu0 %v1974
      %2907 = vmatprep.subr.mxu0 0.0
      %2908 = vmatpush1.msra.mxu0 %v1975
      %2909 = vmatprep.subr.mxu0 0.0
      %2910 = vmatpush1.msra.mxu0 %v1976
      %2911 = vmatprep.subr.mxu0 0.0
      %2912 = vmatpush1.msra.mxu0 %v1977
      %2913 = vmatprep.subr.mxu0 0.0
      %2914 = vmatpush1.msra.mxu0 %v1978
      %2915 = vmatprep.subr.mxu0 0.0
      %2916 = vmatpush1.msra.mxu0 %v1979
      %2917 = vmatprep.subr.mxu0 0.0
      %2918 = vmatpush1.msra.mxu0 %v1980
      %2919 = vmatprep.subr.mxu0 0.0
      %2920 = vmatpush1.msra.mxu0 %v1981
      %2921 = vmatprep.subr.mxu0 0.0
      %2922 = vmatpush1.msra.mxu0 0.0
      %2923 = vmatprep.subr.mxu0 0.0
      %2924 = vmatpush1.msra.mxu0 0.0
      %2925 = vmatprep.subr.mxu0 0.0
      %2926 = vmatpush1.msra.mxu0 0.0
      %2927 = vmatprep.subr.mxu0 0.0
      %2928 = vmatpush1.msra.mxu0 0.0
      %2929 = vmatprep.subr.mxu0 0.0
      %2930 = vmatpush1.msra.mxu0 0.0
      %2931 = vmatprep.subr.mxu0 0.0
      %2932 = vmatpush1.msra.mxu0 0.0
      %2933 = vmatprep.subr.mxu0 0.0
      %2934 = vmatpush1.msra.mxu0 0.0
      %2935 = vmatprep.subr.mxu0 0.0
      %2936 = vmatpush1.msra.mxu0 0.0
      %2937 = vmatprep.subr.mxu0 0.0
      %2938 = vmatpush1.msra.mxu0 0.0
      %2939 = vmatprep.subr.mxu0 0.0
      %2940 = vmatpush1.msra.mxu0 0.0
      %2941 = vmatprep.subr.mxu0 0.0
      %2942 = vmatpush1.msra.mxu0 0.0
      %2943 = vmatprep.subr.mxu0 0.0
      %2944 = vmatpush1.msra.mxu0 0.0
      %2945 = vmatprep.subr.mxu0 0.0
      %2946 = vmatpush1.msra.mxu0 0.0
      %2947 = vmatprep.subr.mxu0 0.0
      %2948 = vmatpush1.msra.mxu0 0.0
      %2949 = vmatprep.subr.mxu0 0.0
      %2950 = vmatpush1.msra.mxu0 0.0
      %2951 = vmatprep.subr.mxu0 0.0
      %2952 = vmatpush1.msra.mxu0 0.0
      %2953 = vmatprep.mubr.f32.mxu0 0.0
      %2954 = vmatmul.mubr.f32.gmra.mrb[0].mxu0 %v1558
      %v2955 = vpop.f32.mrb[0].mxu0
      %v2956 = vadd.f32 %v2731, %v2955
      %v2957 = vpop.f32.mrb[0].mxu0
      %2958 = vmatprep.mubr.f32.mxu0 0.0
      %2959 = vmatmul.mubr.f32.gmra.mrb[0].mxu0 %v1567
      %v2960 = vpop.f32.mrb[0].mxu0
      %v2961 = vadd.f32 %v2736, %v2960
      %v2962 = vpop.f32.mrb[0].mxu0
      %2963 = vmatprep.mubr.f32.mxu0 0.0
      %2964 = vmatmul.mubr.f32.gmra.mrb[0].mxu0 %v1576
      %v2965 = vpop.f32.mrb[0].mxu0
      %v2966 = vadd.f32 %v2741, %v2965
      %v2967 = vpop.f32.mrb[0].mxu0
      %2968 = vmatprep.mubr.f32.mxu0 0.0
      %2969 = vmatmul.mubr.f32.gmra.mrb[0].mxu0 %v1585
      %v2970 = vpop.f32.mrb[0].mxu0
      %v2971 = vadd.f32 %v2746, %v2970
      %v2972 = vpop.f32.mrb[0].mxu0
      %2973 = vmatprep.mubr.f32.mxu0 0.0
      %2974 = vmatmul.mubr.f32.gmra.mrb[0].mxu0 %v1594
      %v2975 = vpop.f32.mrb[0].mxu0
      %v2976 = vadd.f32 %v2751, %v2975
      %v2977 = vpop.f32.mrb[0].mxu0
      %2978 = vmatprep.mubr.f32.mxu0 0.0
      %2979 = vmatmul.mubr.f32.gmra.mrb[0].mxu0 %v1603
      %v2980 = vpop.f32.mrb[0].mxu0
      %v2981 = vadd.f32 %v2756, %v2980
      %v2982 = vpop.f32.mrb[0].mxu0
      %2983 = vmatprep.mubr.f32.mxu0 0.0
      %2984 = vmatmul.mubr.f32.gmra.mrb[0].mxu0 %v1612
      %v2985 = vpop.f32.mrb[0].mxu0
      %v2986 = vadd.f32 %v2761, %v2985
      %v2987 = vpop.f32.mrb[0].mxu0
      %2988 = vmatprep.mubr.f32.mxu0 0.0
      %2989 = vmatmul.mubr.f32.gmra.mrb[0].mxu0 %v1621
      %v2990 = vpop.f32.mrb[0].mxu0
      %v2991 = vadd.f32 %v2766, %v2990
      %v2992 = vpop.f32.mrb[0].mxu0
      %2993 = vmatprep.mubr.f32.mxu0 0.0
      %2994 = vmatmul.mubr.f32.gmra.mrb[0].mxu0 %v1630
      %v2995 = vpop.f32.mrb[0].mxu0
      %v2996 = vadd.f32 %v2771, %v2995
      %v2997 = vpop.f32.mrb[0].mxu0
      %2998 = vmatprep.mubr.f32.mxu0 0.0
      %2999 = vmatmul.mubr.f32.gmra.mrb[0].mxu0 %v1639
      %v3000 = vpop.f32.mrb[0].mxu0
      %v3001 = vadd.f32 %v2776, %v3000
      %v3002 = vpop.f32.mrb[0].mxu0
      %3003 = vmatprep.mubr.f32.mxu0 0.0
      %3004 = vmatmul.mubr.f32.gmra.mrb[0].mxu0 %v1648
      %v3005 = vpop.f32.mrb[0].mxu0
      %v3006 = vadd.f32 %v2781, %v3005
      %v3007 = vpop.f32.mrb[0].mxu0
      %3008 = vmatprep.mubr.f32.mxu0 0.0
      %3009 = vmatmul.mubr.f32.gmra.mrb[0].mxu0 %v1657
      %v3010 = vpop.f32.mrb[0].mxu0
      %v3011 = vadd.f32 %v2786, %v3010
      %v3012 = vpop.f32.mrb[0].mxu0
      %3013 = vmatprep.mubr.f32.mxu0 0.0
      %3014 = vmatmul.mubr.f32.gmra.mrb[0].mxu0 %v1666
      %v3015 = vpop.f32.mrb[0].mxu0
      %v3016 = vadd.f32 %v2791, %v3015
      %v3017 = vpop.f32.mrb[0].mxu0
      %3018 = vmatprep.mubr.f32.mxu0 0.0
      %3019 = vmatmul.mubr.f32.gmra.mrb[0].mxu0 %v1675
      %v3020 = vpop.f32.mrb[0].mxu0
      %v3021 = vadd.f32 %v2796, %v3020
      %v3022 = vpop.f32.mrb[0].mxu0
      %3023 = vmatprep.mubr.f32.mxu0 0.0
      %3024 = vmatmul.mubr.f32.gmra.mrb[0].mxu0 %v1684
      %v3025 = vpop.f32.mrb[0].mxu0
      %v3026 = vadd.f32 %v2801, %v3025
      %v3027 = vpop.f32.mrb[0].mxu0
      %3028 = vmatprep.mubr.f32.mxu0 0.0
      %3029 = vmatmul.mubr.f32.gmra.mrb[0].mxu0 %v1693
      %v3030 = vpop.f32.mrb[0].mxu0
      %v3031 = vadd.f32 %v2806, %v3030
      %v3032 = vpop.f32.mrb[0].mxu0
      %3033 = vmatprep.mubr.f32.mxu0 0.0
      %3034 = vmatmul.mubr.f32.gmra.mrb[0].mxu0 %v1702
      %v3035 = vpop.f32.mrb[0].mxu0
      %v3036 = vadd.f32 %v2811, %v3035
      %v3037 = vpop.f32.mrb[0].mxu0
      %3038 = vmatprep.mubr.f32.mxu0 0.0
      %3039 = vmatmul.mubr.f32.gmra.mrb[0].mxu0 %v1711
      %v3040 = vpop.f32.mrb[0].mxu0
      %v3041 = vadd.f32 %v2816, %v3040
      %v3042 = vpop.f32.mrb[0].mxu0
      %3043 = vmatprep.mubr.f32.mxu0 0.0
      %3044 = vmatmul.mubr.f32.gmra.mrb[0].mxu0 %v1720
      %v3045 = vpop.f32.mrb[0].mxu0
      %v3046 = vadd.f32 %v2821, %v3045
      %v3047 = vpop.f32.mrb[0].mxu0
      %3048 = vmatprep.mubr.f32.mxu0 0.0
      %3049 = vmatmul.mubr.f32.gmra.mrb[0].mxu0 %v1729
      %v3050 = vpop.f32.mrb[0].mxu0
      %v3051 = vadd.f32 %v2826, %v3050
      %v3052 = vpop.f32.mrb[0].mxu0
      %3053 = vmatprep.mubr.f32.mxu0 0.0
      %3054 = vmatmul.mubr.f32.gmra.mrb[0].mxu0 %v1738
      %v3055 = vpop.f32.mrb[0].mxu0
      %v3056 = vadd.f32 %v2831, %v3055
      %v3057 = vpop.f32.mrb[0].mxu0
      %3058 = vmatprep.mubr.f32.mxu0 0.0
      %3059 = vmatmul.mubr.f32.gmra.mrb[0].mxu0 %v1747
      %v3060 = vpop.f32.mrb[0].mxu0
      %v3061 = vadd.f32 %v2836, %v3060
      %v3062 = vpop.f32.mrb[0].mxu0
      %3063 = vmatprep.mubr.f32.mxu0 0.0
      %3064 = vmatmul.mubr.f32.gmra.mrb[0].mxu0 %v1756
      %v3065 = vpop.f32.mrb[0].mxu0
      %v3066 = vadd.f32 %v2841, %v3065
      %v3067 = vpop.f32.mrb[0].mxu0
      %3068 = vmatprep.mubr.f32.mxu0 0.0
      %3069 = vmatmul.mubr.f32.gmra.mrb[0].mxu0 %v1765
      %v3070 = vpop.f32.mrb[0].mxu0
      %v3071 = vadd.f32 %v2846, %v3070
      %v3072 = vpop.f32.mrb[0].mxu0
      %3073 = vmatprep.mubr.f32.mxu0 0.0
      %3074 = vmatmul.mubr.f32.gmra.mrb[0].mxu0 %v1774
      %v3075 = vpop.f32.mrb[0].mxu0
      %v3076 = vadd.f32 %v2851, %v3075
      %v3077 = vpop.f32.mrb[0].mxu0
      %3078 = vmatprep.mubr.f32.mxu0 0.0
      %3079 = vmatmul.mubr.f32.gmra.mrb[0].mxu0 %v1783
      %v3080 = vpop.f32.mrb[0].mxu0
      %v3081 = vadd.f32 %v2856, %v3080
      %v3082 = vpop.f32.mrb[0].mxu0
      %3083 = vmatprep.mubr.f32.mxu0 0.0
      %3084 = vmatmul.mubr.f32.gmra.mrb[0].mxu0 %v1792
      %v3085 = vpop.f32.mrb[0].mxu0
      %v3086 = vadd.f32 %v2861, %v3085
      %v3087 = vpop.f32.mrb[0].mxu0
      %3088 = vmatprep.mubr.f32.mxu0 0.0
      %3089 = vmatmul.mubr.f32.gmra.mrb[0].mxu0 %v1801
      %v3090 = vpop.f32.mrb[0].mxu0
      %v3091 = vadd.f32 %v2866, %v3090
      %v3092 = vpop.f32.mrb[0].mxu0
      %3093 = vmatprep.mubr.f32.mxu0 0.0
      %3094 = vmatmul.mubr.f32.gmra.mrb[0].mxu0 %v1810
      %v3095 = vpop.f32.mrb[0].mxu0
      %v3096 = vadd.f32 %v2871, %v3095
      %v3097 = vpop.f32.mrb[0].mxu0
      %3098 = vmatprep.mubr.f32.mxu0 0.0
      %3099 = vmatmul.mubr.f32.gmra.mrb[0].mxu0 %v1819
      %v3100 = vpop.f32.mrb[0].mxu0
      %v3101 = vadd.f32 %v2876, %v3100
      %v3102 = vpop.f32.mrb[0].mxu0
      %3103 = vmatprep.mubr.f32.mxu0 0.0
      %3104 = vmatmul.mubr.f32.gmra.mrb[0].mxu0 %v1828
      %v3105 = vpop.f32.mrb[0].mxu0
      %v3106 = vadd.f32 %v2881, %v3105
      %v3107 = vpop.f32.mrb[0].mxu0
      %3108 = vmatprep.mubr.f32.mxu0 0.0
      %3109 = vmatmul.mubr.f32.gmra.mrb[0].mxu0 %v1837
      %v3110 = vpop.f32.mrb[0].mxu0
      %v3111 = vadd.f32 %v2886, %v3110
      %v3112 = vpop.f32.mrb[0].mxu0
      %3113 = vdwg.mxu0
      %v3114 = vmax.f32 %v2956, 0.0
      %v3115 = vmax.f32 %v2961, 0.0
      %v3116 = vmax.f32 %v2966, 0.0
      %v3117 = vmax.f32 %v2971, 0.0
      %v3118 = vmax.f32 %v2976, 0.0
      %v3119 = vmax.f32 %v2981, 0.0
      %v3120 = vmax.f32 %v2986, 0.0
      %v3121 = vmax.f32 %v2991, 0.0
      %v3122 = vmax.f32 %v2996, 0.0
      %v3123 = vmax.f32 %v3001, 0.0
      %v3124 = vmax.f32 %v3006, 0.0
      %v3125 = vmax.f32 %v3011, 0.0
      %v3126 = vmax.f32 %v3016, 0.0
      %v3127 = vmax.f32 %v3021, 0.0
      %v3128 = vmax.f32 %v3026, 0.0
      %v3129 = vmax.f32 %v3031, 0.0
      %v3130 = vmax.f32 %v3036, 0.0
      %v3131 = vmax.f32 %v3041, 0.0
      %v3132 = vmax.f32 %v3046, 0.0
      %v3133 = vmax.f32 %v3051, 0.0
      %v3134 = vmax.f32 %v3056, 0.0
      %v3135 = vmax.f32 %v3061, 0.0
      %v3136 = vmax.f32 %v3066, 0.0
      %v3137 = vmax.f32 %v3071, 0.0
      %v3138 = vmax.f32 %v3076, 0.0
      %v3139 = vmax.f32 %v3081, 0.0
      %v3140 = vmax.f32 %v3086, 0.0
      %v3141 = vmax.f32 %v3091, 0.0
      %v3142 = vmax.f32 %v3096, 0.0
      %v3143 = vmax.f32 %v3101, 0.0
      %v3144 = vmax.f32 %v3106, 0.0
      %v3145 = vmax.f32 %v3111, 0.0
      %v3146 = vld [vmem:[%s9] sm:$0xff]
      %v3147 = vld [vmem:[%s9 + $0x8] sm:$0xff]
      %v3148 = vld [vmem:[%s9 + $0x10] sm:$0xff]
      %v3149 = vld [vmem:[%s9 + $0x18] sm:$0xff]
      %v3150 = vld [vmem:[%s9 + $0x20] sm:$0xff]
      %v3151 = vld [vmem:[%s9 + $0x28] sm:$0xff]
      %v3152 = vld [vmem:[%s9 + $0x30] sm:$0xff]
      %v3153 = vld [vmem:[%s9 + $0x38] sm:$0xff]
      %v3154 = vld [vmem:[%s9 + $0x40] sm:$0xff]
      %v3155 = vld [vmem:[%s9 + $0x48] sm:$0xff]
      %v3156 = vld [vmem:[%s9 + $0x50] sm:$0xff]
      %v3157 = vld [vmem:[%s9 + $0x58] sm:$0xff]
      %v3158 = vld [vmem:[%s9 + $0x60] sm:$0xff]
      %v3159 = vld [vmem:[%s9 + $0x68] sm:$0xff]
      %v3160 = vld [vmem:[%s9 + $0x70] sm:$0xff]
      %v3161 = vld [vmem:[%s9 + $0x78] sm:$0xff]
      %v3162 = vld [vmem:[%s10] sm:$0x1]
      %v3164 = vlaneseq
      %v3165 = vshrl.u32 %v3164, 7
      %v3166 = vsub.s32 0, %v3165
      %v3167 = vrot.slane %v3162, %v3166
      %3169 = vmatprep.subr.mxu0 0.0
      %3170 = vmatpush1.msra.mxu0 %v3146
      %3171 = vmatprep.subr.mxu0 0.0
      %3172 = vmatpush1.msra.mxu0 %v3147
      %3173 = vmatprep.subr.mxu0 0.0
      %3174 = vmatpush1.msra.mxu0 %v3148
      %3175 = vmatprep.subr.mxu0 0.0
      %3176 = vmatpush1.msra.mxu0 %v3149
      %3177 = vmatprep.subr.mxu0 0.0
      %3178 = vmatpush1.msra.mxu0 %v3150
      %3179 = vmatprep.subr.mxu0 0.0
      %3180 = vmatpush1.msra.mxu0 %v3151
      %3181 = vmatprep.subr.mxu0 0.0
      %3182 = vmatpush1.msra.mxu0 %v3152
      %3183 = vmatprep.subr.mxu0 0.0
      %3184 = vmatpush1.msra.mxu0 %v3153
      %3185 = vmatprep.subr.mxu0 0.0
      %3186 = vmatpush1.msra.mxu0 %v3154
      %3187 = vmatprep.subr.mxu0 0.0
      %3188 = vmatpush1.msra.mxu0 %v3155
      %3189 = vmatprep.subr.mxu0 0.0
      %3190 = vmatpush1.msra.mxu0 %v3156
      %3191 = vmatprep.subr.mxu0 0.0
      %3192 = vmatpush1.msra.mxu0 %v3157
      %3193 = vmatprep.subr.mxu0 0.0
      %3194 = vmatpush1.msra.mxu0 %v3158
      %3195 = vmatprep.subr.mxu0 0.0
      %3196 = vmatpush1.msra.mxu0 %v3159
      %3197 = vmatprep.subr.mxu0 0.0
      %3198 = vmatpush1.msra.mxu0 %v3160
      %3199 = vmatprep.subr.mxu0 0.0
      %3200 = vmatpush1.msra.mxu0 %v3161
      %3201 = vmatprep.subr.mxu0 0.0
      %3202 = vmatpush1.msra.mxu0 0.0
      %3203 = vmatprep.subr.mxu0 0.0
      %3204 = vmatpush1.msra.mxu0 0.0
      %3205 = vmatprep.subr.mxu0 0.0
      %3206 = vmatpush1.msra.mxu0 0.0
      %3207 = vmatprep.subr.mxu0 0.0
      %3208 = vmatpush1.msra.mxu0 0.0
      %3209 = vmatprep.subr.mxu0 0.0
      %3210 = vmatpush1.msra.mxu0 0.0
      %3211 = vmatprep.subr.mxu0 0.0
      %3212 = vmatpush1.msra.mxu0 0.0
      %3213 = vmatprep.subr.mxu0 0.0
      %3214 = vmatpush1.msra.mxu0 0.0
      %3215 = vmatprep.subr.mxu0 0.0
      %3216 = vmatpush1.msra.mxu0 0.0
      %3217 = vmatprep.subr.mxu0 0.0
      %3218 = vmatpush1.msra.mxu0 0.0
      %3219 = vmatprep.subr.mxu0 0.0
      %3220 = vmatpush1.msra.mxu0 0.0
      %3221 = vmatprep.subr.mxu0 0.0
      %3222 = vmatpush1.msra.mxu0 0.0
      %3223 = vmatprep.subr.mxu0 0.0
      %3224 = vmatpush1.msra.mxu0 0.0
      %3225 = vmatprep.subr.mxu0 0.0
      %3226 = vmatpush1.msra.mxu0 0.0
      %3227 = vmatprep.subr.mxu0 0.0
      %3228 = vmatpush1.msra.mxu0 0.0
      %3229 = vmatprep.subr.mxu0 0.0
      %3230 = vmatpush1.msra.mxu0 0.0
      %3231 = vmatprep.subr.mxu0 0.0
      %3232 = vmatpush1.msra.mxu0 0.0
      %3233 = vmatprep.mubr.f32.mxu0 0.0
      %3234 = vmatmul.mubr.f32.gmra.mrb[0].mxu0 %v3114
      %v3235 = vpop.f32.mrb[0].mxu0
      %v3236 = vadd.f32 %v3167, %v3235
      %v3237 = vpop.f32.mrb[0].mxu0
      %3238 = vmatprep.mubr.f32.mxu0 0.0
      %3239 = vmatmul.mubr.f32.gmra.mrb[0].mxu0 %v3115
      %v3240 = vpop.f32.mrb[0].mxu0
      %v3241 = vadd.f32 %v3167, %v3240
      %v3242 = vpop.f32.mrb[0].mxu0
      %3243 = vmatprep.mubr.f32.mxu0 0.0
      %3244 = vmatmul.mubr.f32.gmra.mrb[0].mxu0 %v3116
      %v3245 = vpop.f32.mrb[0].mxu0
      %v3246 = vadd.f32 %v3167, %v3245
      %v3247 = vpop.f32.mrb[0].mxu0
      %3248 = vmatprep.mubr.f32.mxu0 0.0
      %3249 = vmatmul.mubr.f32.gmra.mrb[0].mxu0 %v3117
      %v3250 = vpop.f32.mrb[0].mxu0
      %v3251 = vadd.f32 %v3167, %v3250
      %v3252 = vpop.f32.mrb[0].mxu0
      %3253 = vmatprep.mubr.f32.mxu0 0.0
      %3254 = vmatmul.mubr.f32.gmra.mrb[0].mxu0 %v3118
      %v3255 = vpop.f32.mrb[0].mxu0
      %v3256 = vadd.f32 %v3167, %v3255
      %v3257 = vpop.f32.mrb[0].mxu0
      %3258 = vmatprep.mubr.f32.mxu0 0.0
      %3259 = vmatmul.mubr.f32.gmra.mrb[0].mxu0 %v3119
      %v3260 = vpop.f32.mrb[0].mxu0
      %v3261 = vadd.f32 %v3167, %v3260
      %v3262 = vpop.f32.mrb[0].mxu0
      %3263 = vmatprep.mubr.f32.mxu0 0.0
      %3264 = vmatmul.mubr.f32.gmra.mrb[0].mxu0 %v3120
      %v3265 = vpop.f32.mrb[0].mxu0
      %v3266 = vadd.f32 %v3167, %v3265
      %v3267 = vpop.f32.mrb[0].mxu0
      %3268 = vmatprep.mubr.f32.mxu0 0.0
      %3269 = vmatmul.mubr.f32.gmra.mrb[0].mxu0 %v3121
      %v3270 = vpop.f32.mrb[0].mxu0
      %v3271 = vadd.f32 %v3167, %v3270
      %v3272 = vpop.f32.mrb[0].mxu0
      %3273 = vmatprep.mubr.f32.mxu0 0.0
      %3274 = vmatmul.mubr.f32.gmra.mrb[0].mxu0 %v3122
      %v3275 = vpop.f32.mrb[0].mxu0
      %v3276 = vadd.f32 %v3167, %v3275
      %v3277 = vpop.f32.mrb[0].mxu0
      %3278 = vmatprep.mubr.f32.mxu0 0.0
      %3279 = vmatmul.mubr.f32.gmra.mrb[0].mxu0 %v3123
      %v3280 = vpop.f32.mrb[0].mxu0
      %v3281 = vadd.f32 %v3167, %v3280
      %v3282 = vpop.f32.mrb[0].mxu0
      %3283 = vmatprep.mubr.f32.mxu0 0.0
      %3284 = vmatmul.mubr.f32.gmra.mrb[0].mxu0 %v3124
      %v3285 = vpop.f32.mrb[0].mxu0
      %v3286 = vadd.f32 %v3167, %v3285
      %v3287 = vpop.f32.mrb[0].mxu0
      %3288 = vmatprep.mubr.f32.mxu0 0.0
      %3289 = vmatmul.mubr.f32.gmra.mrb[0].mxu0 %v3125
      %v3290 = vpop.f32.mrb[0].mxu0
      %v3291 = vadd.f32 %v3167, %v3290
      %v3292 = vpop.f32.mrb[0].mxu0
      %3293 = vmatprep.mubr.f32.mxu0 0.0
      %3294 = vmatmul.mubr.f32.gmra.mrb[0].mxu0 %v3126
      %v3295 = vpop.f32.mrb[0].mxu0
      %v3296 = vadd.f32 %v3167, %v3295
      %v3297 = vpop.f32.mrb[0].mxu0
      %3298 = vmatprep.mubr.f32.mxu0 0.0
      %3299 = vmatmul.mubr.f32.gmra.mrb[0].mxu0 %v3127
      %v3300 = vpop.f32.mrb[0].mxu0
      %v3301 = vadd.f32 %v3167, %v3300
      %v3302 = vpop.f32.mrb[0].mxu0
      %3303 = vmatprep.mubr.f32.mxu0 0.0
      %3304 = vmatmul.mubr.f32.gmra.mrb[0].mxu0 %v3128
      %v3305 = vpop.f32.mrb[0].mxu0
      %v3306 = vadd.f32 %v3167, %v3305
      %v3307 = vpop.f32.mrb[0].mxu0
      %3308 = vmatprep.mubr.f32.mxu0 0.0
      %3309 = vmatmul.mubr.f32.gmra.mrb[0].mxu0 %v3129
      %v3310 = vpop.f32.mrb[0].mxu0
      %v3311 = vadd.f32 %v3167, %v3310
      %v3312 = vpop.f32.mrb[0].mxu0
      %3313 = vmatprep.mubr.f32.mxu0 0.0
      %3314 = vmatmul.mubr.f32.gmra.mrb[0].mxu0 %v3130
      %v3315 = vpop.f32.mrb[0].mxu0
      %v3316 = vadd.f32 %v3167, %v3315
      %v3317 = vpop.f32.mrb[0].mxu0
      %3318 = vmatprep.mubr.f32.mxu0 0.0
      %3319 = vmatmul.mubr.f32.gmra.mrb[0].mxu0 %v3131
      %v3320 = vpop.f32.mrb[0].mxu0
      %v3321 = vadd.f32 %v3167, %v3320
      %v3322 = vpop.f32.mrb[0].mxu0
      %3323 = vmatprep.mubr.f32.mxu0 0.0
      %3324 = vmatmul.mubr.f32.gmra.mrb[0].mxu0 %v3132
      %v3325 = vpop.f32.mrb[0].mxu0
      %v3326 = vadd.f32 %v3167, %v3325
      %v3327 = vpop.f32.mrb[0].mxu0
      %3328 = vmatprep.mubr.f32.mxu0 0.0
      %3329 = vmatmul.mubr.f32.gmra.mrb[0].mxu0 %v3133
      %v3330 = vpop.f32.mrb[0].mxu0
      %v3331 = vadd.f32 %v3167, %v3330
      %v3332 = vpop.f32.mrb[0].mxu0
      %3333 = vmatprep.mubr.f32.mxu0 0.0
      %3334 = vmatmul.mubr.f32.gmra.mrb[0].mxu0 %v3134
      %v3335 = vpop.f32.mrb[0].mxu0
      %v3336 = vadd.f32 %v3167, %v3335
      %v3337 = vpop.f32.mrb[0].mxu0
      %3338 = vmatprep.mubr.f32.mxu0 0.0
      %3339 = vmatmul.mubr.f32.gmra.mrb[0].mxu0 %v3135
      %v3340 = vpop.f32.mrb[0].mxu0
      %v3341 = vadd.f32 %v3167, %v3340
      %v3342 = vpop.f32.mrb[0].mxu0
      %3343 = vmatprep.mubr.f32.mxu0 0.0
      %3344 = vmatmul.mubr.f32.gmra.mrb[0].mxu0 %v3136
      %v3345 = vpop.f32.mrb[0].mxu0
      %v3346 = vadd.f32 %v3167, %v3345
      %v3347 = vpop.f32.mrb[0].mxu0
      %3348 = vmatprep.mubr.f32.mxu0 0.0
      %3349 = vmatmul.mubr.f32.gmra.mrb[0].mxu0 %v3137
      %v3350 = vpop.f32.mrb[0].mxu0
      %v3351 = vadd.f32 %v3167, %v3350
      %v3352 = vpop.f32.mrb[0].mxu0
      %3353 = vmatprep.mubr.f32.mxu0 0.0
      %3354 = vmatmul.mubr.f32.gmra.mrb[0].mxu0 %v3138
      %v3355 = vpop.f32.mrb[0].mxu0
      %v3356 = vadd.f32 %v3167, %v3355
      %v3357 = vpop.f32.mrb[0].mxu0
      %3358 = vmatprep.mubr.f32.mxu0 0.0
      %3359 = vmatmul.mubr.f32.gmra.mrb[0].mxu0 %v3139
      %v3360 = vpop.f32.mrb[0].mxu0
      %v3361 = vadd.f32 %v3167, %v3360
      %v3362 = vpop.f32.mrb[0].mxu0
      %3363 = vmatprep.mubr.f32.mxu0 0.0
      %3364 = vmatmul.mubr.f32.gmra.mrb[0].mxu0 %v3140
      %v3365 = vpop.f32.mrb[0].mxu0
      %v3366 = vadd.f32 %v3167, %v3365
      %v3367 = vpop.f32.mrb[0].mxu0
      %3368 = vmatprep.mubr.f32.mxu0 0.0
      %3369 = vmatmul.mubr.f32.gmra.mrb[0].mxu0 %v3141
      %v3370 = vpop.f32.mrb[0].mxu0
      %v3371 = vadd.f32 %v3167, %v3370
      %v3372 = vpop.f32.mrb[0].mxu0
      %3373 = vmatprep.mubr.f32.mxu0 0.0
      %3374 = vmatmul.mubr.f32.gmra.mrb[0].mxu0 %v3142
      %v3375 = vpop.f32.mrb[0].mxu0
      %v3376 = vadd.f32 %v3167, %v3375
      %v3377 = vpop.f32.mrb[0].mxu0
      %3378 = vmatprep.mubr.f32.mxu0 0.0
      %3379 = vmatmul.mubr.f32.gmra.mrb[0].mxu0 %v3143
      %v3380 = vpop.f32.mrb[0].mxu0
      %v3381 = vadd.f32 %v3167, %v3380
      %v3382 = vpop.f32.mrb[0].mxu0
      %3383 = vmatprep.mubr.f32.mxu0 0.0
      %3384 = vmatmul.mubr.f32.gmra.mrb[0].mxu0 %v3144
      %v3385 = vpop.f32.mrb[0].mxu0
      %v3386 = vadd.f32 %v3167, %v3385
      %v3387 = vpop.f32.mrb[0].mxu0
      %3388 = vmatprep.mubr.f32.mxu0 0.0
      %3389 = vmatmul.mubr.f32.gmra.mrb[0].mxu0 %v3145
      %v3390 = vpop.f32.mrb[0].mxu0
      %v3391 = vadd.f32 %v3167, %v3390
      %v3392 = vpop.f32.mrb[0].mxu0
      %3393 = vdwg.mxu0
      %v3394 = vlaneseq
      %v3395 = vand.u32 %v3394, 127
      %vm3396 = vcmp.lt.s32.totalorder %v3395, 3
      %v3397 = vsub.f32 0.0, %v3236
      %v3398 = vsub.f32 0.0, %v3241
      %v3399 = vsub.f32 0.0, %v3246
      %v3400 = vsub.f32 0.0, %v3251
      %v3401 = vsub.f32 0.0, %v3256
      %v3402 = vsub.f32 0.0, %v3261
      %v3403 = vsub.f32 0.0, %v3266
      %v3404 = vsub.f32 0.0, %v3271
      %v3405 = vsub.f32 0.0, %v3276
      %v3406 = vsub.f32 0.0, %v3281
      %v3407 = vsub.f32 0.0, %v3286
      %v3408 = vsub.f32 0.0, %v3291
      %v3409 = vsub.f32 0.0, %v3296
      %v3410 = vsub.f32 0.0, %v3301
      %v3411 = vsub.f32 0.0, %v3306
      %v3412 = vsub.f32 0.0, %v3311
      %v3413 = vsub.f32 0.0, %v3316
      %v3414 = vsub.f32 0.0, %v3321
      %v3415 = vsub.f32 0.0, %v3326
      %v3416 = vsub.f32 0.0, %v3331
      %v3417 = vsub.f32 0.0, %v3336
      %v3418 = vsub.f32 0.0, %v3341
      %v3419 = vsub.f32 0.0, %v3346
      %v3420 = vsub.f32 0.0, %v3351
      %v3421 = vsub.f32 0.0, %v3356
      %v3422 = vsub.f32 0.0, %v3361
      %v3423 = vsub.f32 0.0, %v3366
      %v3424 = vsub.f32 0.0, %v3371
      %v3425 = vsub.f32 0.0, %v3376
      %v3426 = vsub.f32 0.0, %v3381
      %v3427 = vsub.f32 0.0, %v3386
      %v3428 = vsub.f32 0.0, %v3391
      %v3429 = vmul.f32 %v3397, 1.442695
      %v3430 = vpow.pop %v3429
      %v3431 = vmul.f32 %v3398, 1.442695
      %v3432 = vpow.pop %v3431
      %v3433 = vmul.f32 %v3399, 1.442695
      %v3434 = vpow.pop %v3433
      %v3435 = vmul.f32 %v3400, 1.442695
      %v3436 = vpow.pop %v3435
      %v3437 = vmul.f32 %v3401, 1.442695
      %v3438 = vpow.pop %v3437
      %v3439 = vmul.f32 %v3402, 1.442695
      %v3440 = vpow.pop %v3439
      %v3441 = vmul.f32 %v3403, 1.442695
      %v3442 = vpow.pop %v3441
      %v3443 = vmul.f32 %v3404, 1.442695
      %v3444 = vpow.pop %v3443
      %v3445 = vmul.f32 %v3405, 1.442695
      %v3446 = vpow.pop %v3445
      %v3447 = vmul.f32 %v3406, 1.442695
      %v3448 = vpow.pop %v3447
      %v3449 = vmul.f32 %v3407, 1.442695
      %v3450 = vpow.pop %v3449
      %v3451 = vmul.f32 %v3408, 1.442695
      %v3452 = vpow.pop %v3451
      %v3453 = vmul.f32 %v3409, 1.442695
      %v3454 = vpow.pop %v3453
      %v3455 = vmul.f32 %v3410, 1.442695
      %v3456 = vpow.pop %v3455
      %v3457 = vmul.f32 %v3411, 1.442695
      %v3458 = vpow.pop %v3457
      %v3459 = vmul.f32 %v3412, 1.442695
      %v3460 = vpow.pop %v3459
      %v3461 = vmul.f32 %v3413, 1.442695
      %v3462 = vpow.pop %v3461
      %v3463 = vmul.f32 %v3414, 1.442695
      %v3464 = vpow.pop %v3463
      %v3465 = vmul.f32 %v3415, 1.442695
      %v3466 = vpow.pop %v3465
      %v3467 = vmul.f32 %v3416, 1.442695
      %v3468 = vpow.pop %v3467
      %v3469 = vmul.f32 %v3417, 1.442695
      %v3470 = vpow.pop %v3469
      %v3471 = vmul.f32 %v3418, 1.442695
      %v3472 = vpow.pop %v3471
      %v3473 = vmul.f32 %v3419, 1.442695
      %v3474 = vpow.pop %v3473
      %v3475 = vmul.f32 %v3420, 1.442695
      %v3476 = vpow.pop %v3475
      %v3477 = vmul.f32 %v3421, 1.442695
      %v3478 = vpow.pop %v3477
      %v3479 = vmul.f32 %v3422, 1.442695
      %v3480 = vpow.pop %v3479
      %v3481 = vmul.f32 %v3423, 1.442695
      %v3482 = vpow.pop %v3481
      %v3483 = vmul.f32 %v3424, 1.442695
      %v3484 = vpow.pop %v3483
      %v3485 = vmul.f32 %v3425, 1.442695
      %v3486 = vpow.pop %v3485
      %v3487 = vmul.f32 %v3426, 1.442695
      %v3488 = vpow.pop %v3487
      %v3489 = vmul.f32 %v3427, 1.442695
      %v3490 = vpow.pop %v3489
      %v3491 = vmul.f32 %v3428, 1.442695
      %v3492 = vpow.pop %v3491
      %v3493 = vadd.f32 %v3430, 1.0
      %v3494 = vadd.f32 %v3432, 1.0
      %v3495 = vadd.f32 %v3434, 1.0
      %v3496 = vadd.f32 %v3436, 1.0
      %v3497 = vadd.f32 %v3438, 1.0
      %v3498 = vadd.f32 %v3440, 1.0
      %v3499 = vadd.f32 %v3442, 1.0
      %v3500 = vadd.f32 %v3444, 1.0
      %v3501 = vadd.f32 %v3446, 1.0
      %v3502 = vadd.f32 %v3448, 1.0
      %v3503 = vadd.f32 %v3450, 1.0
      %v3504 = vadd.f32 %v3452, 1.0
      %v3505 = vadd.f32 %v3454, 1.0
      %v3506 = vadd.f32 %v3456, 1.0
      %v3507 = vadd.f32 %v3458, 1.0
      %v3508 = vadd.f32 %v3460, 1.0
      %v3509 = vadd.f32 %v3462, 1.0
      %v3510 = vadd.f32 %v3464, 1.0
      %v3511 = vadd.f32 %v3466, 1.0
      %v3512 = vadd.f32 %v3468, 1.0
      %v3513 = vadd.f32 %v3470, 1.0
      %v3514 = vadd.f32 %v3472, 1.0
      %v3515 = vadd.f32 %v3474, 1.0
      %v3516 = vadd.f32 %v3476, 1.0
      %v3517 = vadd.f32 %v3478, 1.0
      %v3518 = vadd.f32 %v3480, 1.0
      %v3519 = vadd.f32 %v3482, 1.0
      %v3520 = vadd.f32 %v3484, 1.0
      %v3521 = vadd.f32 %v3486, 1.0
      %v3522 = vadd.f32 %v3488, 1.0
      %v3523 = vadd.f32 %v3490, 1.0
      %v3524 = vadd.f32 %v3492, 1.0
      %v3525 = vrcp.pop %v3493
      %v3526 = vmul.f32 1.0, %v3525
      %v3527 = vrcp.pop %v3494
      %v3528 = vmul.f32 1.0, %v3527
      %v3529 = vrcp.pop %v3495
      %v3530 = vmul.f32 1.0, %v3529
      %v3531 = vrcp.pop %v3496
      %v3532 = vmul.f32 1.0, %v3531
      %v3533 = vrcp.pop %v3497
      %v3534 = vmul.f32 1.0, %v3533
      %v3535 = vrcp.pop %v3498
      %v3536 = vmul.f32 1.0, %v3535
      %v3537 = vrcp.pop %v3499
      %v3538 = vmul.f32 1.0, %v3537
      %v3539 = vrcp.pop %v3500
      %v3540 = vmul.f32 1.0, %v3539
      %v3541 = vrcp.pop %v3501
      %v3542 = vmul.f32 1.0, %v3541
      %v3543 = vrcp.pop %v3502
      %v3544 = vmul.f32 1.0, %v3543
      %v3545 = vrcp.pop %v3503
      %v3546 = vmul.f32 1.0, %v3545
      %v3547 = vrcp.pop %v3504
      %v3548 = vmul.f32 1.0, %v3547
      %v3549 = vrcp.pop %v3505
      %v3550 = vmul.f32 1.0, %v3549
      %v3551 = vrcp.pop %v3506
      %v3552 = vmul.f32 1.0, %v3551
      %v3553 = vrcp.pop %v3507
      %v3554 = vmul.f32 1.0, %v3553
      %v3555 = vrcp.pop %v3508
      %v3556 = vmul.f32 1.0, %v3555
      %v3557 = vrcp.pop %v3509
      %v3558 = vmul.f32 1.0, %v3557
      %v3559 = vrcp.pop %v3510
      %v3560 = vmul.f32 1.0, %v3559
      %v3561 = vrcp.pop %v3511
      %v3562 = vmul.f32 1.0, %v3561
      %v3563 = vrcp.pop %v3512
      %v3564 = vmul.f32 1.0, %v3563
      %v3565 = vrcp.pop %v3513
      %v3566 = vmul.f32 1.0, %v3565
      %v3567 = vrcp.pop %v3514
      %v3568 = vmul.f32 1.0, %v3567
      %v3569 = vrcp.pop %v3515
      %v3570 = vmul.f32 1.0, %v3569
      %v3571 = vrcp.pop %v3516
      %v3572 = vmul.f32 1.0, %v3571
      %v3573 = vrcp.pop %v3517
      %v3574 = vmul.f32 1.0, %v3573
      %v3575 = vrcp.pop %v3518
      %v3576 = vmul.f32 1.0, %v3575
      %v3577 = vrcp.pop %v3519
      %v3578 = vmul.f32 1.0, %v3577
      %v3579 = vrcp.pop %v3520
      %v3580 = vmul.f32 1.0, %v3579
      %v3581 = vrcp.pop %v3521
      %v3582 = vmul.f32 1.0, %v3581
      %v3583 = vrcp.pop %v3522
      %v3584 = vmul.f32 1.0, %v3583
      %v3585 = vrcp.pop %v3523
      %v3586 = vmul.f32 1.0, %v3585
      %v3587 = vrcp.pop %v3524
      %v3588 = vmul.f32 1.0, %v3587
      %v3589 = vsel %vm3396, %v3526, %v3236
      %v3590 = vsel %vm3396, %v3528, %v3241
      %v3591 = vsel %vm3396, %v3530, %v3246
      %v3592 = vsel %vm3396, %v3532, %v3251
      %v3593 = vsel %vm3396, %v3534, %v3256
      %v3594 = vsel %vm3396, %v3536, %v3261
      %v3595 = vsel %vm3396, %v3538, %v3266
      %v3596 = vsel %vm3396, %v3540, %v3271
      %v3597 = vsel %vm3396, %v3542, %v3276
      %v3598 = vsel %vm3396, %v3544, %v3281
      %v3599 = vsel %vm3396, %v3546, %v3286
      %v3600 = vsel %vm3396, %v3548, %v3291
      %v3601 = vsel %vm3396, %v3550, %v3296
      %v3602 = vsel %vm3396, %v3552, %v3301
      %v3603 = vsel %vm3396, %v3554, %v3306
      %v3604 = vsel %vm3396, %v3556, %v3311
      %v3605 = vsel %vm3396, %v3558, %v3316
      %v3606 = vsel %vm3396, %v3560, %v3321
      %v3607 = vsel %vm3396, %v3562, %v3326
      %v3608 = vsel %vm3396, %v3564, %v3331
      %v3609 = vsel %vm3396, %v3566, %v3336
      %v3610 = vsel %vm3396, %v3568, %v3341
      %v3611 = vsel %vm3396, %v3570, %v3346
      %v3612 = vsel %vm3396, %v3572, %v3351
      %v3613 = vsel %vm3396, %v3574, %v3356
      %v3614 = vsel %vm3396, %v3576, %v3361
      %v3615 = vsel %vm3396, %v3578, %v3366
      %v3616 = vsel %vm3396, %v3580, %v3371
      %v3617 = vsel %vm3396, %v3582, %v3376
      %v3618 = vsel %vm3396, %v3584, %v3381
      %v3619 = vsel %vm3396, %v3586, %v3386
      %v3620 = vsel %vm3396, %v3588, %v3391
      %3621 = vst [vmem:[%s489] sm:$0xff] %v3589
      %3622 = vst [vmem:[%s489 + $0x8] sm:$0xff] %v3590
      %3623 = vst [vmem:[%s489 + $0x10] sm:$0xff] %v3591
      %3624 = vst [vmem:[%s489 + $0x18] sm:$0xff] %v3592
      %3625 = vst [vmem:[%s489 + $0x20] sm:$0xff] %v3593
      %3626 = vst [vmem:[%s489 + $0x28] sm:$0xff] %v3594
      %3627 = vst [vmem:[%s489 + $0x30] sm:$0xff] %v3595
      %3628 = vst [vmem:[%s489 + $0x38] sm:$0xff] %v3596
      %3629 = vst [vmem:[%s489 + $0x40] sm:$0xff] %v3597
      %3630 = vst [vmem:[%s489 + $0x48] sm:$0xff] %v3598
      %3631 = vst [vmem:[%s489 + $0x50] sm:$0xff] %v3599
      %3632 = vst [vmem:[%s489 + $0x58] sm:$0xff] %v3600
      %3633 = vst [vmem:[%s489 + $0x60] sm:$0xff] %v3601
      %3634 = vst [vmem:[%s489 + $0x68] sm:$0xff] %v3602
      %3635 = vst [vmem:[%s489 + $0x70] sm:$0xff] %v3603
      %3636 = vst [vmem:[%s489 + $0x78] sm:$0xff] %v3604
      %3637 = vst [vmem:[%s489 + $0x80] sm:$0xff] %v3605
      %3638 = vst [vmem:[%s489 + $0x88] sm:$0xff] %v3606
      %3639 = vst [vmem:[%s489 + $0x90] sm:$0xff] %v3607
      %3640 = vst [vmem:[%s489 + $0x98] sm:$0xff] %v3608
      %3641 = vst [vmem:[%s489 + $0xa0] sm:$0xff] %v3609
      %3642 = vst [vmem:[%s489 + $0xa8] sm:$0xff] %v3610
      %3643 = vst [vmem:[%s489 + $0xb0] sm:$0xff] %v3611
      %3644 = vst [vmem:[%s489 + $0xb8] sm:$0xff] %v3612
      %3645 = vst [vmem:[%s489 + $0xc0] sm:$0xff] %v3613
      %3646 = vst [vmem:[%s489 + $0xc8] sm:$0xff] %v3614
      %3647 = vst [vmem:[%s489 + $0xd0] sm:$0xff] %v3615
      %3648 = vst [vmem:[%s489 + $0xd8] sm:$0xff] %v3616
      %3649 = vst [vmem:[%s489 + $0xe0] sm:$0xff] %v3617
      %3650 = vst [vmem:[%s489 + $0xe8] sm:$0xff] %v3618
      %3651 = vst [vmem:[%s489 + $0xf0] sm:$0xff] %v3619
      %3652 = vst [vmem:[%s489 + $0xf8] sm:$0xff] %v3620
      %3653 = vst [vmem:[%s552 + $0x1] sm:$0xff] %v3114
      %3654 = vst [vmem:[%s552 + $0x9] sm:$0xff] %v3115
      %3655 = vst [vmem:[%s552 + $0x19] sm:$0xff] %v3116
      %3656 = vst [vmem:[%s552 + $0x21] sm:$0xff] %v3117
      %3657 = vst [vmem:[%s552 + $0x31] sm:$0xff] %v3118
      %3658 = vst [vmem:[%s552 + $0x39] sm:$0xff] %v3119
      %3659 = vst [vmem:[%s552 + $0x49] sm:$0xff] %v3120
      %3660 = vst [vmem:[%s552 + $0x51] sm:$0xff] %v3121
      %3661 = vst [vmem:[%s552 + $0x61] sm:$0xff] %v3122
      %3662 = vst [vmem:[%s552 + $0x69] sm:$0xff] %v3123
      %3663 = vst [vmem:[%s552 + $0x79] sm:$0xff] %v3124
      %3664 = vst [vmem:[%s552 + $0x81] sm:$0xff] %v3125
      %3665 = vst [vmem:[%s552 + $0x91] sm:$0xff] %v3126
      %3666 = vst [vmem:[%s552 + $0x99] sm:$0xff] %v3127
      %3667 = vst [vmem:[%s552 + $0xa9] sm:$0xff] %v3128
      %3668 = vst [vmem:[%s552 + $0xb1] sm:$0xff] %v3129
      %3669 = vst [vmem:[%s552 + $0xc1] sm:$0xff] %v3130
      %3670 = vst [vmem:[%s552 + $0xc9] sm:$0xff] %v3131
      %3671 = vst [vmem:[%s552 + $0xd9] sm:$0xff] %v3132
      %3672 = vst [vmem:[%s552 + $0xe1] sm:$0xff] %v3133
      %3673 = vst [vmem:[%s552 + $0xf1] sm:$0xff] %v3134
      %3674 = vst [vmem:[%s552 + $0xf9] sm:$0xff] %v3135
      %3675 = vst [vmem:[%s552 + $0x109] sm:$0xff] %v3136
      %3676 = vst [vmem:[%s552 + $0x111] sm:$0xff] %v3137
      %3677 = vst [vmem:[%s552 + $0x121] sm:$0xff] %v3138
      %3678 = vst [vmem:[%s552 + $0x129] sm:$0xff] %v3139
      %3679 = vst [vmem:[%s552 + $0x139] sm:$0xff] %v3140
      %3680 = vst [vmem:[%s552 + $0x141] sm:$0xff] %v3141
      %3681 = vst [vmem:[%s552 + $0x151] sm:$0xff] %v3142
      %3682 = vst [vmem:[%s552 + $0x159] sm:$0xff] %v3143
      %3683 = vst [vmem:[%s552 + $0x169] sm:$0xff] %v3144
      %3684 = vst [vmem:[%s552 + $0x171] sm:$0xff] %v3145
      %v3685 = vld [vmem:[#allocation3] sm:$0xff]
      %v3686 = vld [vmem:[#allocation3 + $0x8] sm:$0xff]
      %v3687 = vld [vmem:[#allocation3 + $0x18] sm:$0xff]
      %v3688 = vld [vmem:[#allocation3 + $0x20] sm:$0xff]
      %v3689 = vld [vmem:[#allocation3 + $0x30] sm:$0xff]
      %v3690 = vld [vmem:[#allocation3 + $0x38] sm:$0xff]
      %v3691 = vld [vmem:[#allocation3 + $0x48] sm:$0xff]
      %v3692 = vld [vmem:[#allocation3 + $0x50] sm:$0xff]
      %v3693 = vld [vmem:[#allocation3 + $0x60] sm:$0xff]
      %v3694 = vld [vmem:[#allocation3 + $0x68] sm:$0xff]
      %v3695 = vld [vmem:[#allocation3 + $0x78] sm:$0xff]
      %v3696 = vld [vmem:[#allocation3 + $0x80] sm:$0xff]
      %v3697 = vld [vmem:[#allocation3 + $0x90] sm:$0xff]
      %v3698 = vld [vmem:[#allocation3 + $0x98] sm:$0xff]
      %v3699 = vld [vmem:[#allocation3 + $0xa8] sm:$0xff]
      %v3700 = vld [vmem:[#allocation3 + $0xb0] sm:$0xff]
      %v3701 = vld [vmem:[#allocation3 + $0xc0] sm:$0xff]
      %v3702 = vld [vmem:[#allocation3 + $0xc8] sm:$0xff]
      %v3703 = vld [vmem:[#allocation3 + $0xd8] sm:$0xff]
      %v3704 = vld [vmem:[#allocation3 + $0xe0] sm:$0xff]
      %v3705 = vld [vmem:[#allocation3 + $0xf0] sm:$0xff]
      %v3706 = vld [vmem:[#allocation3 + $0xf8] sm:$0xff]
      %v3707 = vld [vmem:[#allocation3 + $0x108] sm:$0xff]
      %v3708 = vld [vmem:[#allocation3 + $0x110] sm:$0xff]
      %v3709 = vld [vmem:[#allocation3 + $0x120] sm:$0xff]
      %v3710 = vld [vmem:[#allocation3 + $0x128] sm:$0xff]
      %v3711 = vld [vmem:[#allocation3 + $0x138] sm:$0xff]
      %v3712 = vld [vmem:[#allocation3 + $0x140] sm:$0xff]
      %v3713 = vld [vmem:[#allocation3 + $0x150] sm:$0xff]
      %v3714 = vld [vmem:[#allocation3 + $0x158] sm:$0xff]
      %v3715 = vld [vmem:[#allocation3 + $0x168] sm:$0xff]
      %v3716 = vld [vmem:[#allocation3 + $0x170] sm:$0xff]
      %3717 = vst [vmem:[#allocation6] sm:$0xff] %v3685
      %3718 = vst [vmem:[#allocation6 + $0x48] sm:$0xff] %v3686
      %3719 = vst [vmem:[#allocation6 + $0x90] sm:$0xff] %v3687
      %3720 = vst [vmem:[#allocation6 + $0xd8] sm:$0xff] %v3688
      %3721 = vst [vmem:[#allocation6 + $0x120] sm:$0xff] %v3689
      %3722 = vst [vmem:[#allocation6 + $0x168] sm:$0xff] %v3690
      %3723 = vst [vmem:[#allocation6 + $0x1b0] sm:$0xff] %v3691
      %3724 = vst [vmem:[#allocation6 + $0x1f8] sm:$0xff] %v3692
      %3725 = vst [vmem:[#allocation6 + $0x240] sm:$0xff] %v3693
      %3726 = vst [vmem:[#allocation6 + $0x288] sm:$0xff] %v3694
      %3727 = vst [vmem:[#allocation6 + $0x2d0] sm:$0xff] %v3695
      %3728 = vst [vmem:[#allocation6 + $0x318] sm:$0xff] %v3696
      %3729 = vst [vmem:[#allocation6 + $0x360] sm:$0xff] %v3697
      %3730 = vst [vmem:[#allocation6 + $0x3a8] sm:$0xff] %v3698
      %3731 = vst [vmem:[#allocation6 + $0x3f0] sm:$0xff] %v3699
      %3732 = vst [vmem:[#allocation6 + $0x438] sm:$0xff] %v3700
      %3733 = vst [vmem:[#allocation6 + $0x480] sm:$0xff] %v3701
      %3734 = vst [vmem:[#allocation6 + $0x4c8] sm:$0xff] %v3702
      %3735 = vst [vmem:[#allocation6 + $0x510] sm:$0xff] %v3703
      %3736 = vst [vmem:[#allocation6 + $0x558] sm:$0xff] %v3704
      %3737 = vst [vmem:[#allocation6 + $0x5a0] sm:$0xff] %v3705
      %3738 = vst [vmem:[#allocation6 + $0x5e8] sm:$0xff] %v3706
      %3739 = vst [vmem:[#allocation6 + $0x630] sm:$0xff] %v3707
      %3740 = vst [vmem:[#allocation6 + $0x678] sm:$0xff] %v3708
      %3741 = vst [vmem:[#allocation6 + $0x6c0] sm:$0xff] %v3709
      %3742 = vst [vmem:[#allocation6 + $0x708] sm:$0xff] %v3710
      %3743 = vst [vmem:[#allocation6 + $0x750] sm:$0xff] %v3711
      %3744 = vst [vmem:[#allocation6 + $0x798] sm:$0xff] %v3712
      %3745 = vst [vmem:[#allocation6 + $0x7e0] sm:$0xff] %v3713
      %3746 = vst [vmem:[#allocation6 + $0x828] sm:$0xff] %v3714
      %3747 = vst [vmem:[#allocation6 + $0x870] sm:$0xff] %v3715
      %3748 = vst [vmem:[#allocation6 + $0x8b8] sm:$0xff] %v3716
      %v3749 = vld [vmem:[#allocation3 + $0x1] sm:$0xff]
      %v3750 = vld [vmem:[#allocation3 + $0x9] sm:$0xff]
      %v3751 = vld [vmem:[#allocation3 + $0x19] sm:$0xff]
      %v3752 = vld [vmem:[#allocation3 + $0x21] sm:$0xff]
      %v3753 = vld [vmem:[#allocation3 + $0x31] sm:$0xff]
      %v3754 = vld [vmem:[#allocation3 + $0x39] sm:$0xff]
      %v3755 = vld [vmem:[#allocation3 + $0x49] sm:$0xff]
      %v3756 = vld [vmem:[#allocation3 + $0x51] sm:$0xff]
      %v3757 = vld [vmem:[#allocation3 + $0x61] sm:$0xff]
      %v3758 = vld [vmem:[#allocation3 + $0x69] sm:$0xff]
      %v3759 = vld [vmem:[#allocation3 + $0x79] sm:$0xff]
      %v3760 = vld [vmem:[#allocation3 + $0x81] sm:$0xff]
      %v3761 = vld [vmem:[#allocation3 + $0x91] sm:$0xff]
      %v3762 = vld [vmem:[#allocation3 + $0x99] sm:$0xff]
      %v3763 = vld [vmem:[#allocation3 + $0xa9] sm:$0xff]
      %v3764 = vld [vmem:[#allocation3 + $0xb1] sm:$0xff]
      %v3765 = vld [vmem:[#allocation3 + $0xc1] sm:$0xff]
      %v3766 = vld [vmem:[#allocation3 + $0xc9] sm:$0xff]
      %v3767 = vld [vmem:[#allocation3 + $0xd9] sm:$0xff]
      %v3768 = vld [vmem:[#allocation3 + $0xe1] sm:$0xff]
      %v3769 = vld [vmem:[#allocation3 + $0xf1] sm:$0xff]
      %v3770 = vld [vmem:[#allocation3 + $0xf9] sm:$0xff]
      %v3771 = vld [vmem:[#allocation3 + $0x109] sm:$0xff]
      %v3772 = vld [vmem:[#allocation3 + $0x111] sm:$0xff]
      %v3773 = vld [vmem:[#allocation3 + $0x121] sm:$0xff]
      %v3774 = vld [vmem:[#allocation3 + $0x129] sm:$0xff]
      %v3775 = vld [vmem:[#allocation3 + $0x139] sm:$0xff]
      %v3776 = vld [vmem:[#allocation3 + $0x141] sm:$0xff]
      %v3777 = vld [vmem:[#allocation3 + $0x151] sm:$0xff]
      %v3778 = vld [vmem:[#allocation3 + $0x159] sm:$0xff]
      %v3779 = vld [vmem:[#allocation3 + $0x169] sm:$0xff]
      %v3780 = vld [vmem:[#allocation3 + $0x171] sm:$0xff]
      %3781 = vst [vmem:[#allocation6 + $0x8] sm:$0xff] %v3749
      %3782 = vst [vmem:[#allocation6 + $0x50] sm:$0xff] %v3750
      %3783 = vst [vmem:[#allocation6 + $0x98] sm:$0xff] %v3751
      %3784 = vst [vmem:[#allocation6 + $0xe0] sm:$0xff] %v3752
      %3785 = vst [vmem:[#allocation6 + $0x128] sm:$0xff] %v3753
      %3786 = vst [vmem:[#allocation6 + $0x170] sm:$0xff] %v3754
      %3787 = vst [vmem:[#allocation6 + $0x1b8] sm:$0xff] %v3755
      %3788 = vst [vmem:[#allocation6 + $0x200] sm:$0xff] %v3756
      %3789 = vst [vmem:[#allocation6 + $0x248] sm:$0xff] %v3757
      %3790 = vst [vmem:[#allocation6 + $0x290] sm:$0xff] %v3758
      %3791 = vst [vmem:[#allocation6 + $0x2d8] sm:$0xff] %v3759
      %3792 = vst [vmem:[#allocation6 + $0x320] sm:$0xff] %v3760
      %3793 = vst [vmem:[#allocation6 + $0x368] sm:$0xff] %v3761
      %3794 = vst [vmem:[#allocation6 + $0x3b0] sm:$0xff] %v3762
      %3795 = vst [vmem:[#allocation6 + $0x3f8] sm:$0xff] %v3763
      %3796 = vst [vmem:[#allocation6 + $0x440] sm:$0xff] %v3764
      %3797 = vst [vmem:[#allocation6 + $0x488] sm:$0xff] %v3765
      %3798 = vst [vmem:[#allocation6 + $0x4d0] sm:$0xff] %v3766
      %3799 = vst [vmem:[#allocation6 + $0x518] sm:$0xff] %v3767
      %3800 = vst [vmem:[#allocation6 + $0x560] sm:$0xff] %v3768
      %3801 = vst [vmem:[#allocation6 + $0x5a8] sm:$0xff] %v3769
      %3802 = vst [vmem:[#allocation6 + $0x5f0] sm:$0xff] %v3770
      %3803 = vst [vmem:[#allocation6 + $0x638] sm:$0xff] %v3771
      %3804 = vst [vmem:[#allocation6 + $0x680] sm:$0xff] %v3772
      %3805 = vst [vmem:[#allocation6 + $0x6c8] sm:$0xff] %v3773
      %3806 = vst [vmem:[#allocation6 + $0x710] sm:$0xff] %v3774
      %3807 = vst [vmem:[#allocation6 + $0x758] sm:$0xff] %v3775
      %3808 = vst [vmem:[#allocation6 + $0x7a0] sm:$0xff] %v3776
      %3809 = vst [vmem:[#allocation6 + $0x7e8] sm:$0xff] %v3777
      %3810 = vst [vmem:[#allocation6 + $0x830] sm:$0xff] %v3778
      %3811 = vst [vmem:[#allocation6 + $0x878] sm:$0xff] %v3779
      %3812 = vst [vmem:[#allocation6 + $0x8c0] sm:$0xff] %v3780
      %v3813 = vld [vmem:[#allocation3 + $0x2] sm:$0xff]
      %v3814 = vld [vmem:[#allocation3 + $0xa] sm:$0xff]
      %v3815 = vld [vmem:[#allocation3 + $0x1a] sm:$0xff]
      %v3816 = vld [vmem:[#allocation3 + $0x22] sm:$0xff]
      %v3817 = vld [vmem:[#allocation3 + $0x32] sm:$0xff]
      %v3818 = vld [vmem:[#allocation3 + $0x3a] sm:$0xff]
      %v3819 = vld [vmem:[#allocation3 + $0x4a] sm:$0xff]
      %v3820 = vld [vmem:[#allocation3 + $0x52] sm:$0xff]
      %v3821 = vld [vmem:[#allocation3 + $0x62] sm:$0xff]
      %v3822 = vld [vmem:[#allocation3 + $0x6a] sm:$0xff]
      %v3823 = vld [vmem:[#allocation3 + $0x7a] sm:$0xff]
      %v3824 = vld [vmem:[#allocation3 + $0x82] sm:$0xff]
      %v3825 = vld [vmem:[#allocation3 + $0x92] sm:$0xff]
      %v3826 = vld [vmem:[#allocation3 + $0x9a] sm:$0xff]
      %v3827 = vld [vmem:[#allocation3 + $0xaa] sm:$0xff]
      %v3828 = vld [vmem:[#allocation3 + $0xb2] sm:$0xff]
      %v3829 = vld [vmem:[#allocation3 + $0xc2] sm:$0xff]
      %v3830 = vld [vmem:[#allocation3 + $0xca] sm:$0xff]
      %v3831 = vld [vmem:[#allocation3 + $0xda] sm:$0xff]
      %v3832 = vld [vmem:[#allocation3 + $0xe2] sm:$0xff]
      %v3833 = vld [vmem:[#allocation3 + $0xf2] sm:$0xff]
      %v3834 = vld [vmem:[#allocation3 + $0xfa] sm:$0xff]
      %v3835 = vld [vmem:[#allocation3 + $0x10a] sm:$0xff]
      %v3836 = vld [vmem:[#allocation3 + $0x112] sm:$0xff]
      %v3837 = vld [vmem:[#allocation3 + $0x122] sm:$0xff]
      %v3838 = vld [vmem:[#allocation3 + $0x12a] sm:$0xff]
      %v3839 = vld [vmem:[#allocation3 + $0x13a] sm:$0xff]
      %v3840 = vld [vmem:[#allocation3 + $0x142] sm:$0xff]
      %v3841 = vld [vmem:[#allocation3 + $0x152] sm:$0xff]
      %v3842 = vld [vmem:[#allocation3 + $0x15a] sm:$0xff]
      %v3843 = vld [vmem:[#allocation3 + $0x16a] sm:$0xff]
      %v3844 = vld [vmem:[#allocation3 + $0x172] sm:$0xff]
      %3845 = vst [vmem:[#allocation6 + $0x10] sm:$0xff] %v3813
      %3846 = vst [vmem:[#allocation6 + $0x58] sm:$0xff] %v3814
      %3847 = vst [vmem:[#allocation6 + $0xa0] sm:$0xff] %v3815
      %3848 = vst [vmem:[#allocation6 + $0xe8] sm:$0xff] %v3816
      %3849 = vst [vmem:[#allocation6 + $0x130] sm:$0xff] %v3817
      %3850 = vst [vmem:[#allocation6 + $0x178] sm:$0xff] %v3818
      %3851 = vst [vmem:[#allocation6 + $0x1c0] sm:$0xff] %v3819
      %3852 = vst [vmem:[#allocation6 + $0x208] sm:$0xff] %v3820
      %3853 = vst [vmem:[#allocation6 + $0x250] sm:$0xff] %v3821
      %3854 = vst [vmem:[#allocation6 + $0x298] sm:$0xff] %v3822
      %3855 = vst [vmem:[#allocation6 + $0x2e0] sm:$0xff] %v3823
      %3856 = vst [vmem:[#allocation6 + $0x328] sm:$0xff] %v3824
      %3857 = vst [vmem:[#allocation6 + $0x370] sm:$0xff] %v3825
      %3858 = vst [vmem:[#allocation6 + $0x3b8] sm:$0xff] %v3826
      %3859 = vst [vmem:[#allocation6 + $0x400] sm:$0xff] %v3827
      %3860 = vst [vmem:[#allocation6 + $0x448] sm:$0xff] %v3828
      %3861 = vst [vmem:[#allocation6 + $0x490] sm:$0xff] %v3829
      %3862 = vst [vmem:[#allocation6 + $0x4d8] sm:$0xff] %v3830
      %3863 = vst [vmem:[#allocation6 + $0x520] sm:$0xff] %v3831
      %3864 = vst [vmem:[#allocation6 + $0x568] sm:$0xff] %v3832
      %3865 = vst [vmem:[#allocation6 + $0x5b0] sm:$0xff] %v3833
      %3866 = vst [vmem:[#allocation6 + $0x5f8] sm:$0xff] %v3834
      %3867 = vst [vmem:[#allocation6 + $0x640] sm:$0xff] %v3835
      %3868 = vst [vmem:[#allocation6 + $0x688] sm:$0xff] %v3836
      %3869 = vst [vmem:[#allocation6 + $0x6d0] sm:$0xff] %v3837
      %3870 = vst [vmem:[#allocation6 + $0x718] sm:$0xff] %v3838
      %3871 = vst [vmem:[#allocation6 + $0x760] sm:$0xff] %v3839
      %3872 = vst [vmem:[#allocation6 + $0x7a8] sm:$0xff] %v3840
      %3873 = vst [vmem:[#allocation6 + $0x7f0] sm:$0xff] %v3841
      %3874 = vst [vmem:[#allocation6 + $0x838] sm:$0xff] %v3842
      %3875 = vst [vmem:[#allocation6 + $0x880] sm:$0xff] %v3843
      %3876 = vst [vmem:[#allocation6 + $0x8c8] sm:$0xff] %v3844
      %v3877 = vld [vmem:[%s552] sm:$0xff]
      %v3878 = vld [vmem:[%s552 + $0x8] sm:$0xff]
      %v3879 = vld [vmem:[%s552 + $0x18] sm:$0xff]
      %v3880 = vld [vmem:[%s552 + $0x20] sm:$0xff]
      %v3881 = vld [vmem:[%s552 + $0x30] sm:$0xff]
      %v3882 = vld [vmem:[%s552 + $0x38] sm:$0xff]
      %v3883 = vld [vmem:[%s552 + $0x48] sm:$0xff]
      %v3884 = vld [vmem:[%s552 + $0x50] sm:$0xff]
      %v3885 = vld [vmem:[%s552 + $0x60] sm:$0xff]
      %v3886 = vld [vmem:[%s552 + $0x68] sm:$0xff]
      %v3887 = vld [vmem:[%s552 + $0x78] sm:$0xff]
      %v3888 = vld [vmem:[%s552 + $0x80] sm:$0xff]
      %v3889 = vld [vmem:[%s552 + $0x90] sm:$0xff]
      %v3890 = vld [vmem:[%s552 + $0x98] sm:$0xff]
      %v3891 = vld [vmem:[%s552 + $0xa8] sm:$0xff]
      %v3892 = vld [vmem:[%s552 + $0xb0] sm:$0xff]
      %v3893 = vld [vmem:[%s552 + $0xc0] sm:$0xff]
      %v3894 = vld [vmem:[%s552 + $0xc8] sm:$0xff]
      %v3895 = vld [vmem:[%s552 + $0xd8] sm:$0xff]
      %v3896 = vld [vmem:[%s552 + $0xe0] sm:$0xff]
      %v3897 = vld [vmem:[%s552 + $0xf0] sm:$0xff]
      %v3898 = vld [vmem:[%s552 + $0xf8] sm:$0xff]
      %v3899 = vld [vmem:[%s552 + $0x108] sm:$0xff]
      %v3900 = vld [vmem:[%s552 + $0x110] sm:$0xff]
      %v3901 = vld [vmem:[%s552 + $0x120] sm:$0xff]
      %v3902 = vld [vmem:[%s552 + $0x128] sm:$0xff]
      %v3903 = vld [vmem:[%s552 + $0x138] sm:$0xff]
      %v3904 = vld [vmem:[%s552 + $0x140] sm:$0xff]
      %v3905 = vld [vmem:[%s552 + $0x150] sm:$0xff]
      %v3906 = vld [vmem:[%s552 + $0x158] sm:$0xff]
      %v3907 = vld [vmem:[%s552 + $0x168] sm:$0xff]
      %v3908 = vld [vmem:[%s552 + $0x170] sm:$0xff]
      %3909 = vst [vmem:[#allocation6 + $0x18] sm:$0xff] %v3877
      %3910 = vst [vmem:[#allocation6 + $0x60] sm:$0xff] %v3878
      %3911 = vst [vmem:[#allocation6 + $0xa8] sm:$0xff] %v3879
      %3912 = vst [vmem:[#allocation6 + $0xf0] sm:$0xff] %v3880
      %3913 = vst [vmem:[#allocation6 + $0x138] sm:$0xff] %v3881
      %3914 = vst [vmem:[#allocation6 + $0x180] sm:$0xff] %v3882
      %3915 = vst [vmem:[#allocation6 + $0x1c8] sm:$0xff] %v3883
      %3916 = vst [vmem:[#allocation6 + $0x210] sm:$0xff] %v3884
      %3917 = vst [vmem:[#allocation6 + $0x258] sm:$0xff] %v3885
      %3918 = vst [vmem:[#allocation6 + $0x2a0] sm:$0xff] %v3886
      %3919 = vst [vmem:[#allocation6 + $0x2e8] sm:$0xff] %v3887
      %3920 = vst [vmem:[#allocation6 + $0x330] sm:$0xff] %v3888
      %3921 = vst [vmem:[#allocation6 + $0x378] sm:$0xff] %v3889
      %3922 = vst [vmem:[#allocation6 + $0x3c0] sm:$0xff] %v3890
      %3923 = vst [vmem:[#allocation6 + $0x408] sm:$0xff] %v3891
      %3924 = vst [vmem:[#allocation6 + $0x450] sm:$0xff] %v3892
      %3925 = vst [vmem:[#allocation6 + $0x498] sm:$0xff] %v3893
      %3926 = vst [vmem:[#allocation6 + $0x4e0] sm:$0xff] %v3894
      %3927 = vst [vmem:[#allocation6 + $0x528] sm:$0xff] %v3895
      %3928 = vst [vmem:[#allocation6 + $0x570] sm:$0xff] %v3896
      %3929 = vst [vmem:[#allocation6 + $0x5b8] sm:$0xff] %v3897
      %3930 = vst [vmem:[#allocation6 + $0x600] sm:$0xff] %v3898
      %3931 = vst [vmem:[#allocation6 + $0x648] sm:$0xff] %v3899
      %3932 = vst [vmem:[#allocation6 + $0x690] sm:$0xff] %v3900
      %3933 = vst [vmem:[#allocation6 + $0x6d8] sm:$0xff] %v3901
      %3934 = vst [vmem:[#allocation6 + $0x720] sm:$0xff] %v3902
      %3935 = vst [vmem:[#allocation6 + $0x768] sm:$0xff] %v3903
      %3936 = vst [vmem:[#allocation6 + $0x7b0] sm:$0xff] %v3904
      %3937 = vst [vmem:[#allocation6 + $0x7f8] sm:$0xff] %v3905
      %3938 = vst [vmem:[#allocation6 + $0x840] sm:$0xff] %v3906
      %3939 = vst [vmem:[#allocation6 + $0x888] sm:$0xff] %v3907
      %3940 = vst [vmem:[#allocation6 + $0x8d0] sm:$0xff] %v3908
      %v3941 = vld [vmem:[%s552 + $0x1] sm:$0xff]
      %v3942 = vld [vmem:[%s552 + $0x9] sm:$0xff]
      %v3943 = vld [vmem:[%s552 + $0x19] sm:$0xff]
      %v3944 = vld [vmem:[%s552 + $0x21] sm:$0xff]
      %v3945 = vld [vmem:[%s552 + $0x31] sm:$0xff]
      %v3946 = vld [vmem:[%s552 + $0x39] sm:$0xff]
      %v3947 = vld [vmem:[%s552 + $0x49] sm:$0xff]
      %v3948 = vld [vmem:[%s552 + $0x51] sm:$0xff]
      %v3949 = vld [vmem:[%s552 + $0x61] sm:$0xff]
      %v3950 = vld [vmem:[%s552 + $0x69] sm:$0xff]
      %v3951 = vld [vmem:[%s552 + $0x79] sm:$0xff]
      %v3952 = vld [vmem:[%s552 + $0x81] sm:$0xff]
      %v3953 = vld [vmem:[%s552 + $0x91] sm:$0xff]
      %v3954 = vld [vmem:[%s552 + $0x99] sm:$0xff]
      %v3955 = vld [vmem:[%s552 + $0xa9] sm:$0xff]
      %v3956 = vld [vmem:[%s552 + $0xb1] sm:$0xff]
      %v3957 = vld [vmem:[%s552 + $0xc1] sm:$0xff]
      %v3958 = vld [vmem:[%s552 + $0xc9] sm:$0xff]
      %v3959 = vld [vmem:[%s552 + $0xd9] sm:$0xff]
      %v3960 = vld [vmem:[%s552 + $0xe1] sm:$0xff]
      %v3961 = vld [vmem:[%s552 + $0xf1] sm:$0xff]
      %v3962 = vld [vmem:[%s552 + $0xf9] sm:$0xff]
      %v3963 = vld [vmem:[%s552 + $0x109] sm:$0xff]
      %v3964 = vld [vmem:[%s552 + $0x111] sm:$0xff]
      %v3965 = vld [vmem:[%s552 + $0x121] sm:$0xff]
      %v3966 = vld [vmem:[%s552 + $0x129] sm:$0xff]
      %v3967 = vld [vmem:[%s552 + $0x139] sm:$0xff]
      %v3968 = vld [vmem:[%s552 + $0x141] sm:$0xff]
      %v3969 = vld [vmem:[%s552 + $0x151] sm:$0xff]
      %v3970 = vld [vmem:[%s552 + $0x159] sm:$0xff]
      %v3971 = vld [vmem:[%s552 + $0x169] sm:$0xff]
      %v3972 = vld [vmem:[%s552 + $0x171] sm:$0xff]
      %3973 = vst [vmem:[#allocation6 + $0x20] sm:$0xff] %v3941
      %3974 = vst [vmem:[#allocation6 + $0x68] sm:$0xff] %v3942
      %3975 = vst [vmem:[#allocation6 + $0xb0] sm:$0xff] %v3943
      %3976 = vst [vmem:[#allocation6 + $0xf8] sm:$0xff] %v3944
      %3977 = vst [vmem:[#allocation6 + $0x140] sm:$0xff] %v3945
      %3978 = vst [vmem:[#allocation6 + $0x188] sm:$0xff] %v3946
      %3979 = vst [vmem:[#allocation6 + $0x1d0] sm:$0xff] %v3947
      %3980 = vst [vmem:[#allocation6 + $0x218] sm:$0xff] %v3948
      %3981 = vst [vmem:[#allocation6 + $0x260] sm:$0xff] %v3949
      %3982 = vst [vmem:[#allocation6 + $0x2a8] sm:$0xff] %v3950
      %3983 = vst [vmem:[#allocation6 + $0x2f0] sm:$0xff] %v3951
      %3984 = vst [vmem:[#allocation6 + $0x338] sm:$0xff] %v3952
      %3985 = vst [vmem:[#allocation6 + $0x380] sm:$0xff] %v3953
      %3986 = vst [vmem:[#allocation6 + $0x3c8] sm:$0xff] %v3954
      %3987 = vst [vmem:[#allocation6 + $0x410] sm:$0xff] %v3955
      %3988 = vst [vmem:[#allocation6 + $0x458] sm:$0xff] %v3956
      %3989 = vst [vmem:[#allocation6 + $0x4a0] sm:$0xff] %v3957
      %3990 = vst [vmem:[#allocation6 + $0x4e8] sm:$0xff] %v3958
      %3991 = vst [vmem:[#allocation6 + $0x530] sm:$0xff] %v3959
      %3992 = vst [vmem:[#allocation6 + $0x578] sm:$0xff] %v3960
      %3993 = vst [vmem:[#allocation6 + $0x5c0] sm:$0xff] %v3961
      %3994 = vst [vmem:[#allocation6 + $0x608] sm:$0xff] %v3962
      %3995 = vst [vmem:[#allocation6 + $0x650] sm:$0xff] %v3963
      %3996 = vst [vmem:[#allocation6 + $0x698] sm:$0xff] %v3964
      %3997 = vst [vmem:[#allocation6 + $0x6e0] sm:$0xff] %v3965
      %3998 = vst [vmem:[#allocation6 + $0x728] sm:$0xff] %v3966
      %3999 = vst [vmem:[#allocation6 + $0x770] sm:$0xff] %v3967
      %4000 = vst [vmem:[#allocation6 + $0x7b8] sm:$0xff] %v3968
      %4001 = vst [vmem:[#allocation6 + $0x800] sm:$0xff] %v3969
      %4002 = vst [vmem:[#allocation6 + $0x848] sm:$0xff] %v3970
      %4003 = vst [vmem:[#allocation6 + $0x890] sm:$0xff] %v3971
      %4004 = vst [vmem:[#allocation6 + $0x8d8] sm:$0xff] %v3972
      %v4005 = vld [vmem:[%s552 + $0x2] sm:$0xff]
      %v4006 = vld [vmem:[%s552 + $0xa] sm:$0xff]
      %v4007 = vld [vmem:[%s552 + $0x1a] sm:$0xff]
      %v4008 = vld [vmem:[%s552 + $0x22] sm:$0xff]
      %v4009 = vld [vmem:[%s552 + $0x32] sm:$0xff]
      %v4010 = vld [vmem:[%s552 + $0x3a] sm:$0xff]
      %v4011 = vld [vmem:[%s552 + $0x4a] sm:$0xff]
      %v4012 = vld [vmem:[%s552 + $0x52] sm:$0xff]
      %v4013 = vld [vmem:[%s552 + $0x62] sm:$0xff]
      %v4014 = vld [vmem:[%s552 + $0x6a] sm:$0xff]
      %v4015 = vld [vmem:[%s552 + $0x7a] sm:$0xff]
      %v4016 = vld [vmem:[%s552 + $0x82] sm:$0xff]
      %v4017 = vld [vmem:[%s552 + $0x92] sm:$0xff]
      %v4018 = vld [vmem:[%s552 + $0x9a] sm:$0xff]
      %v4019 = vld [vmem:[%s552 + $0xaa] sm:$0xff]
      %v4020 = vld [vmem:[%s552 + $0xb2] sm:$0xff]
      %v4021 = vld [vmem:[%s552 + $0xc2] sm:$0xff]
      %v4022 = vld [vmem:[%s552 + $0xca] sm:$0xff]
      %v4023 = vld [vmem:[%s552 + $0xda] sm:$0xff]
      %v4024 = vld [vmem:[%s552 + $0xe2] sm:$0xff]
      %v4025 = vld [vmem:[%s552 + $0xf2] sm:$0xff]
      %v4026 = vld [vmem:[%s552 + $0xfa] sm:$0xff]
      %v4027 = vld [vmem:[%s552 + $0x10a] sm:$0xff]
      %v4028 = vld [vmem:[%s552 + $0x112] sm:$0xff]
      %v4029 = vld [vmem:[%s552 + $0x122] sm:$0xff]
      %v4030 = vld [vmem:[%s552 + $0x12a] sm:$0xff]
      %v4031 = vld [vmem:[%s552 + $0x13a] sm:$0xff]
      %v4032 = vld [vmem:[%s552 + $0x142] sm:$0xff]
      %v4033 = vld [vmem:[%s552 + $0x152] sm:$0xff]
      %v4034 = vld [vmem:[%s552 + $0x15a] sm:$0xff]
      %v4035 = vld [vmem:[%s552 + $0x16a] sm:$0xff]
      %v4036 = vld [vmem:[%s552 + $0x172] sm:$0xff]
      %4037 = vst [vmem:[#allocation6 + $0x28] sm:$0xff] %v4005
      %4038 = vst [vmem:[#allocation6 + $0x70] sm:$0xff] %v4006
      %4039 = vst [vmem:[#allocation6 + $0xb8] sm:$0xff] %v4007
      %4040 = vst [vmem:[#allocation6 + $0x100] sm:$0xff] %v4008
      %4041 = vst [vmem:[#allocation6 + $0x148] sm:$0xff] %v4009
      %4042 = vst [vmem:[#allocation6 + $0x190] sm:$0xff] %v4010
      %4043 = vst [vmem:[#allocation6 + $0x1d8] sm:$0xff] %v4011
      %4044 = vst [vmem:[#allocation6 + $0x220] sm:$0xff] %v4012
      %4045 = vst [vmem:[#allocation6 + $0x268] sm:$0xff] %v4013
      %4046 = vst [vmem:[#allocation6 + $0x2b0] sm:$0xff] %v4014
      %4047 = vst [vmem:[#allocation6 + $0x2f8] sm:$0xff] %v4015
      %4048 = vst [vmem:[#allocation6 + $0x340] sm:$0xff] %v4016
      %4049 = vst [vmem:[#allocation6 + $0x388] sm:$0xff] %v4017
      %4050 = vst [vmem:[#allocation6 + $0x3d0] sm:$0xff] %v4018
      %4051 = vst [vmem:[#allocation6 + $0x418] sm:$0xff] %v4019
      %4052 = vst [vmem:[#allocation6 + $0x460] sm:$0xff] %v4020
      %4053 = vst [vmem:[#allocation6 + $0x4a8] sm:$0xff] %v4021
      %4054 = vst [vmem:[#allocation6 + $0x4f0] sm:$0xff] %v4022
      %4055 = vst [vmem:[#allocation6 + $0x538] sm:$0xff] %v4023
      %4056 = vst [vmem:[#allocation6 + $0x580] sm:$0xff] %v4024
      %4057 = vst [vmem:[#allocation6 + $0x5c8] sm:$0xff] %v4025
      %4058 = vst [vmem:[#allocation6 + $0x610] sm:$0xff] %v4026
      %4059 = vst [vmem:[#allocation6 + $0x658] sm:$0xff] %v4027
      %4060 = vst [vmem:[#allocation6 + $0x6a0] sm:$0xff] %v4028
      %4061 = vst [vmem:[#allocation6 + $0x6e8] sm:$0xff] %v4029
      %4062 = vst [vmem:[#allocation6 + $0x730] sm:$0xff] %v4030
      %4063 = vst [vmem:[#allocation6 + $0x778] sm:$0xff] %v4031
      %4064 = vst [vmem:[#allocation6 + $0x7c0] sm:$0xff] %v4032
      %4065 = vst [vmem:[#allocation6 + $0x808] sm:$0xff] %v4033
      %4066 = vst [vmem:[#allocation6 + $0x850] sm:$0xff] %v4034
      %4067 = vst [vmem:[#allocation6 + $0x898] sm:$0xff] %v4035
      %4068 = vst [vmem:[#allocation6 + $0x8e0] sm:$0xff] %v4036
      %s4069 = scalar_lea.vmem [#allocation3], 48
      %v4070 = vld [vmem:[%s4069] sm:$0xff]
      %v4071 = vld [vmem:[%s4069 + $0x8] sm:$0xff]
      %v4072 = vld [vmem:[%s4069 + $0x18] sm:$0xff]
      %v4073 = vld [vmem:[%s4069 + $0x20] sm:$0xff]
      %v4074 = vld [vmem:[%s4069 + $0x30] sm:$0xff]
      %v4075 = vld [vmem:[%s4069 + $0x38] sm:$0xff]
      %v4076 = vld [vmem:[%s4069 + $0x48] sm:$0xff]
      %v4077 = vld [vmem:[%s4069 + $0x50] sm:$0xff]
      %v4078 = vld [vmem:[%s4069 + $0x60] sm:$0xff]
      %v4079 = vld [vmem:[%s4069 + $0x68] sm:$0xff]
      %v4080 = vld [vmem:[%s4069 + $0x78] sm:$0xff]
      %v4081 = vld [vmem:[%s4069 + $0x80] sm:$0xff]
      %v4082 = vld [vmem:[%s4069 + $0x90] sm:$0xff]
      %v4083 = vld [vmem:[%s4069 + $0x98] sm:$0xff]
      %v4084 = vld [vmem:[%s4069 + $0xa8] sm:$0xff]
      %v4085 = vld [vmem:[%s4069 + $0xb0] sm:$0xff]
      %v4086 = vld [vmem:[%s4069 + $0xc0] sm:$0xff]
      %v4087 = vld [vmem:[%s4069 + $0xc8] sm:$0xff]
      %v4088 = vld [vmem:[%s4069 + $0xd8] sm:$0xff]
      %v4089 = vld [vmem:[%s4069 + $0xe0] sm:$0xff]
      %v4090 = vld [vmem:[%s4069 + $0xf0] sm:$0xff]
      %v4091 = vld [vmem:[%s4069 + $0xf8] sm:$0xff]
      %v4092 = vld [vmem:[%s4069 + $0x108] sm:$0xff]
      %v4093 = vld [vmem:[%s4069 + $0x110] sm:$0xff]
      %v4094 = vld [vmem:[%s4069 + $0x120] sm:$0xff]
      %v4095 = vld [vmem:[%s4069 + $0x128] sm:$0xff]
      %v4096 = vld [vmem:[%s4069 + $0x138] sm:$0xff]
      %v4097 = vld [vmem:[%s4069 + $0x140] sm:$0xff]
      %v4098 = vld [vmem:[%s4069 + $0x150] sm:$0xff]
      %v4099 = vld [vmem:[%s4069 + $0x158] sm:$0xff]
      %v4100 = vld [vmem:[%s4069 + $0x168] sm:$0xff]
      %v4101 = vld [vmem:[%s4069 + $0x170] sm:$0xff]
      %4102 = vst [vmem:[#allocation6 + $0x30] sm:$0xff] %v4070
      %4103 = vst [vmem:[#allocation6 + $0x78] sm:$0xff] %v4071
      %4104 = vst [vmem:[#allocation6 + $0xc0] sm:$0xff] %v4072
      %4105 = vst [vmem:[#allocation6 + $0x108] sm:$0xff] %v4073
      %4106 = vst [vmem:[#allocation6 + $0x150] sm:$0xff] %v4074
      %4107 = vst [vmem:[#allocation6 + $0x198] sm:$0xff] %v4075
      %4108 = vst [vmem:[#allocation6 + $0x1e0] sm:$0xff] %v4076
      %4109 = vst [vmem:[#allocation6 + $0x228] sm:$0xff] %v4077
      %4110 = vst [vmem:[#allocation6 + $0x270] sm:$0xff] %v4078
      %4111 = vst [vmem:[#allocation6 + $0x2b8] sm:$0xff] %v4079
      %4112 = vst [vmem:[#allocation6 + $0x300] sm:$0xff] %v4080
      %4113 = vst [vmem:[#allocation6 + $0x348] sm:$0xff] %v4081
      %4114 = vst [vmem:[#allocation6 + $0x390] sm:$0xff] %v4082
      %4115 = vst [vmem:[#allocation6 + $0x3d8] sm:$0xff] %v4083
      %4116 = vst [vmem:[#allocation6 + $0x420] sm:$0xff] %v4084
      %4117 = vst [vmem:[#allocation6 + $0x468] sm:$0xff] %v4085
      %4118 = vst [vmem:[#allocation6 + $0x4b0] sm:$0xff] %v4086
      %4119 = vst [vmem:[#allocation6 + $0x4f8] sm:$0xff] %v4087
      %4120 = vst [vmem:[#allocation6 + $0x540] sm:$0xff] %v4088
      %4121 = vst [vmem:[#allocation6 + $0x588] sm:$0xff] %v4089
      %4122 = vst [vmem:[#allocation6 + $0x5d0] sm:$0xff] %v4090
      %4123 = vst [vmem:[#allocation6 + $0x618] sm:$0xff] %v4091
      %4124 = vst [vmem:[#allocation6 + $0x660] sm:$0xff] %v4092
      %4125 = vst [vmem:[#allocation6 + $0x6a8] sm:$0xff] %v4093
      %4126 = vst [vmem:[#allocation6 + $0x6f0] sm:$0xff] %v4094
      %4127 = vst [vmem:[#allocation6 + $0x738] sm:$0xff] %v4095
      %4128 = vst [vmem:[#allocation6 + $0x780] sm:$0xff] %v4096
      %4129 = vst [vmem:[#allocation6 + $0x7c8] sm:$0xff] %v4097
      %4130 = vst [vmem:[#allocation6 + $0x810] sm:$0xff] %v4098
      %4131 = vst [vmem:[#allocation6 + $0x858] sm:$0xff] %v4099
      %4132 = vst [vmem:[#allocation6 + $0x8a0] sm:$0xff] %v4100
      %4133 = vst [vmem:[#allocation6 + $0x8e8] sm:$0xff] %v4101
      %v4134 = vld [vmem:[%s4069 + $0x1] sm:$0xff]
      %v4135 = vld [vmem:[%s4069 + $0x9] sm:$0xff]
      %v4136 = vld [vmem:[%s4069 + $0x19] sm:$0xff]
      %v4137 = vld [vmem:[%s4069 + $0x21] sm:$0xff]
      %v4138 = vld [vmem:[%s4069 + $0x31] sm:$0xff]
      %v4139 = vld [vmem:[%s4069 + $0x39] sm:$0xff]
      %v4140 = vld [vmem:[%s4069 + $0x49] sm:$0xff]
      %v4141 = vld [vmem:[%s4069 + $0x51] sm:$0xff]
      %v4142 = vld [vmem:[%s4069 + $0x61] sm:$0xff]
      %v4143 = vld [vmem:[%s4069 + $0x69] sm:$0xff]
      %v4144 = vld [vmem:[%s4069 + $0x79] sm:$0xff]
      %v4145 = vld [vmem:[%s4069 + $0x81] sm:$0xff]
      %v4146 = vld [vmem:[%s4069 + $0x91] sm:$0xff]
      %v4147 = vld [vmem:[%s4069 + $0x99] sm:$0xff]
      %v4148 = vld [vmem:[%s4069 + $0xa9] sm:$0xff]
      %v4149 = vld [vmem:[%s4069 + $0xb1] sm:$0xff]
      %v4150 = vld [vmem:[%s4069 + $0xc1] sm:$0xff]
      %v4151 = vld [vmem:[%s4069 + $0xc9] sm:$0xff]
      %v4152 = vld [vmem:[%s4069 + $0xd9] sm:$0xff]
      %v4153 = vld [vmem:[%s4069 + $0xe1] sm:$0xff]
      %v4154 = vld [vmem:[%s4069 + $0xf1] sm:$0xff]
      %v4155 = vld [vmem:[%s4069 + $0xf9] sm:$0xff]
      %v4156 = vld [vmem:[%s4069 + $0x109] sm:$0xff]
      %v4157 = vld [vmem:[%s4069 + $0x111] sm:$0xff]
      %v4158 = vld [vmem:[%s4069 + $0x121] sm:$0xff]
      %v4159 = vld [vmem:[%s4069 + $0x129] sm:$0xff]
      %v4160 = vld [vmem:[%s4069 + $0x139] sm:$0xff]
      %v4161 = vld [vmem:[%s4069 + $0x141] sm:$0xff]
      %v4162 = vld [vmem:[%s4069 + $0x151] sm:$0xff]
      %v4163 = vld [vmem:[%s4069 + $0x159] sm:$0xff]
      %v4164 = vld [vmem:[%s4069 + $0x169] sm:$0xff]
      %v4165 = vld [vmem:[%s4069 + $0x171] sm:$0xff]
      %4166 = vst [vmem:[#allocation6 + $0x38] sm:$0xff] %v4134
      %4167 = vst [vmem:[#allocation6 + $0x80] sm:$0xff] %v4135
      %4168 = vst [vmem:[#allocation6 + $0xc8] sm:$0xff] %v4136
      %4169 = vst [vmem:[#allocation6 + $0x110] sm:$0xff] %v4137
      %4170 = vst [vmem:[#allocation6 + $0x158] sm:$0xff] %v4138
      %4171 = vst [vmem:[#allocation6 + $0x1a0] sm:$0xff] %v4139
      %4172 = vst [vmem:[#allocation6 + $0x1e8] sm:$0xff] %v4140
      %4173 = vst [vmem:[#allocation6 + $0x230] sm:$0xff] %v4141
      %4174 = vst [vmem:[#allocation6 + $0x278] sm:$0xff] %v4142
      %4175 = vst [vmem:[#allocation6 + $0x2c0] sm:$0xff] %v4143
      %4176 = vst [vmem:[#allocation6 + $0x308] sm:$0xff] %v4144
      %4177 = vst [vmem:[#allocation6 + $0x350] sm:$0xff] %v4145
      %4178 = vst [vmem:[#allocation6 + $0x398] sm:$0xff] %v4146
      %4179 = vst [vmem:[#allocation6 + $0x3e0] sm:$0xff] %v4147
      %4180 = vst [vmem:[#allocation6 + $0x428] sm:$0xff] %v4148
      %4181 = vst [vmem:[#allocation6 + $0x470] sm:$0xff] %v4149
      %4182 = vst [vmem:[#allocation6 + $0x4b8] sm:$0xff] %v4150
      %4183 = vst [vmem:[#allocation6 + $0x500] sm:$0xff] %v4151
      %4184 = vst [vmem:[#allocation6 + $0x548] sm:$0xff] %v4152
      %4185 = vst [vmem:[#allocation6 + $0x590] sm:$0xff] %v4153
      %4186 = vst [vmem:[#allocation6 + $0x5d8] sm:$0xff] %v4154
      %4187 = vst [vmem:[#allocation6 + $0x620] sm:$0xff] %v4155
      %4188 = vst [vmem:[#allocation6 + $0x668] sm:$0xff] %v4156
      %4189 = vst [vmem:[#allocation6 + $0x6b0] sm:$0xff] %v4157
      %4190 = vst [vmem:[#allocation6 + $0x6f8] sm:$0xff] %v4158
      %4191 = vst [vmem:[#allocation6 + $0x740] sm:$0xff] %v4159
      %4192 = vst [vmem:[#allocation6 + $0x788] sm:$0xff] %v4160
      %4193 = vst [vmem:[#allocation6 + $0x7d0] sm:$0xff] %v4161
      %4194 = vst [vmem:[#allocation6 + $0x818] sm:$0xff] %v4162
      %4195 = vst [vmem:[#allocation6 + $0x860] sm:$0xff] %v4163
      %4196 = vst [vmem:[#allocation6 + $0x8a8] sm:$0xff] %v4164
      %4197 = vst [vmem:[#allocation6 + $0x8f0] sm:$0xff] %v4165
      %v4198 = vld [vmem:[%s4069 + $0x2] sm:$0xff]
      %v4199 = vld [vmem:[%s4069 + $0xa] sm:$0xff]
      %v4200 = vld [vmem:[%s4069 + $0x1a] sm:$0xff]
      %v4201 = vld [vmem:[%s4069 + $0x22] sm:$0xff]
      %v4202 = vld [vmem:[%s4069 + $0x32] sm:$0xff]
      %v4203 = vld [vmem:[%s4069 + $0x3a] sm:$0xff]
      %v4204 = vld [vmem:[%s4069 + $0x4a] sm:$0xff]
      %v4205 = vld [vmem:[%s4069 + $0x52] sm:$0xff]
      %v4206 = vld [vmem:[%s4069 + $0x62] sm:$0xff]
      %v4207 = vld [vmem:[%s4069 + $0x6a] sm:$0xff]
      %v4208 = vld [vmem:[%s4069 + $0x7a] sm:$0xff]
      %v4209 = vld [vmem:[%s4069 + $0x82] sm:$0xff]
      %v4210 = vld [vmem:[%s4069 + $0x92] sm:$0xff]
      %v4211 = vld [vmem:[%s4069 + $0x9a] sm:$0xff]
      %v4212 = vld [vmem:[%s4069 + $0xaa] sm:$0xff]
      %v4213 = vld [vmem:[%s4069 + $0xb2] sm:$0xff]
      %v4214 = vld [vmem:[%s4069 + $0xc2] sm:$0xff]
      %v4215 = vld [vmem:[%s4069 + $0xca] sm:$0xff]
      %v4216 = vld [vmem:[%s4069 + $0xda] sm:$0xff]
      %v4217 = vld [vmem:[%s4069 + $0xe2] sm:$0xff]
      %v4218 = vld [vmem:[%s4069 + $0xf2] sm:$0xff]
      %v4219 = vld [vmem:[%s4069 + $0xfa] sm:$0xff]
      %v4220 = vld [vmem:[%s4069 + $0x10a] sm:$0xff]
      %v4221 = vld [vmem:[%s4069 + $0x112] sm:$0xff]
      %v4222 = vld [vmem:[%s4069 + $0x122] sm:$0xff]
      %v4223 = vld [vmem:[%s4069 + $0x12a] sm:$0xff]
      %v4224 = vld [vmem:[%s4069 + $0x13a] sm:$0xff]
      %v4225 = vld [vmem:[%s4069 + $0x142] sm:$0xff]
      %v4226 = vld [vmem:[%s4069 + $0x152] sm:$0xff]
      %v4227 = vld [vmem:[%s4069 + $0x15a] sm:$0xff]
      %v4228 = vld [vmem:[%s4069 + $0x16a] sm:$0xff]
      %v4229 = vld [vmem:[%s4069 + $0x172] sm:$0xff]
      %4230 = vst [vmem:[#allocation6 + $0x40] sm:$0xff] %v4198
      %4231 = vst [vmem:[#allocation6 + $0x88] sm:$0xff] %v4199
      %4232 = vst [vmem:[#allocation6 + $0xd0] sm:$0xff] %v4200
      %4233 = vst [vmem:[#allocation6 + $0x118] sm:$0xff] %v4201
      %4234 = vst [vmem:[#allocation6 + $0x160] sm:$0xff] %v4202
      %4235 = vst [vmem:[#allocation6 + $0x1a8] sm:$0xff] %v4203
      %4236 = vst [vmem:[#allocation6 + $0x1f0] sm:$0xff] %v4204
      %4237 = vst [vmem:[#allocation6 + $0x238] sm:$0xff] %v4205
      %4238 = vst [vmem:[#allocation6 + $0x280] sm:$0xff] %v4206
      %4239 = vst [vmem:[#allocation6 + $0x2c8] sm:$0xff] %v4207
      %4240 = vst [vmem:[#allocation6 + $0x310] sm:$0xff] %v4208
      %4241 = vst [vmem:[#allocation6 + $0x358] sm:$0xff] %v4209
      %4242 = vst [vmem:[#allocation6 + $0x3a0] sm:$0xff] %v4210
      %4243 = vst [vmem:[#allocation6 + $0x3e8] sm:$0xff] %v4211
      %4244 = vst [vmem:[#allocation6 + $0x430] sm:$0xff] %v4212
      %4245 = vst [vmem:[#allocation6 + $0x478] sm:$0xff] %v4213
      %4246 = vst [vmem:[#allocation6 + $0x4c0] sm:$0xff] %v4214
      %4247 = vst [vmem:[#allocation6 + $0x508] sm:$0xff] %v4215
      %4248 = vst [vmem:[#allocation6 + $0x550] sm:$0xff] %v4216
      %4249 = vst [vmem:[#allocation6 + $0x598] sm:$0xff] %v4217
      %4250 = vst [vmem:[#allocation6 + $0x5e0] sm:$0xff] %v4218
      %4251 = vst [vmem:[#allocation6 + $0x628] sm:$0xff] %v4219
      %4252 = vst [vmem:[#allocation6 + $0x670] sm:$0xff] %v4220
      %4253 = vst [vmem:[#allocation6 + $0x6b8] sm:$0xff] %v4221
      %4254 = vst [vmem:[#allocation6 + $0x700] sm:$0xff] %v4222
      %4255 = vst [vmem:[#allocation6 + $0x748] sm:$0xff] %v4223
      %4256 = vst [vmem:[#allocation6 + $0x790] sm:$0xff] %v4224
      %4257 = vst [vmem:[#allocation6 + $0x7d8] sm:$0xff] %v4225
      %4258 = vst [vmem:[#allocation6 + $0x820] sm:$0xff] %v4226
      %4259 = vst [vmem:[#allocation6 + $0x868] sm:$0xff] %v4227
      %4260 = vst [vmem:[#allocation6 + $0x8b0] sm:$0xff] %v4228
      %4261 = vst [vmem:[#allocation6 + $0x8f8] sm:$0xff] %v4229
      %v4262 = vld [vmem:[#allocation6] sm:$0xff]
      %v4263 = vld [vmem:[#allocation6 + $0x8] sm:$0xff]
      %v4264 = vld [vmem:[#allocation6 + $0x10] sm:$0xff]
      %v4265 = vld [vmem:[#allocation6 + $0x18] sm:$0xff]
      %v4266 = vld [vmem:[#allocation6 + $0x20] sm:$0xff]
      %v4267 = vld [vmem:[#allocation6 + $0x28] sm:$0xff]
      %v4268 = vld [vmem:[#allocation6 + $0x30] sm:$0xff]
      %v4269 = vld [vmem:[#allocation6 + $0x38] sm:$0xff]
      %v4270 = vld [vmem:[#allocation6 + $0x40] sm:$0xff]
      %v4271 = vld [vmem:[#allocation6 + $0x48] sm:$0xff]
      %v4272 = vld [vmem:[#allocation6 + $0x50] sm:$0xff]
      %v4273 = vld [vmem:[#allocation6 + $0x58] sm:$0xff]
      %v4274 = vld [vmem:[#allocation6 + $0x60] sm:$0xff]
      %v4275 = vld [vmem:[#allocation6 + $0x68] sm:$0xff]
      %v4276 = vld [vmem:[#allocation6 + $0x70] sm:$0xff]
      %v4277 = vld [vmem:[#allocation6 + $0x78] sm:$0xff]
      %v4278 = vld [vmem:[#allocation6 + $0x80] sm:$0xff]
      %v4279 = vld [vmem:[#allocation6 + $0x88] sm:$0xff]
      %v4280 = vld [vmem:[#allocation6 + $0x90] sm:$0xff]
      %v4281 = vld [vmem:[#allocation6 + $0x98] sm:$0xff]
      %v4282 = vld [vmem:[#allocation6 + $0xa0] sm:$0xff]
      %v4283 = vld [vmem:[#allocation6 + $0xa8] sm:$0xff]
      %v4284 = vld [vmem:[#allocation6 + $0xb0] sm:$0xff]
      %v4285 = vld [vmem:[#allocation6 + $0xb8] sm:$0xff]
      %v4286 = vld [vmem:[#allocation6 + $0xc0] sm:$0xff]
      %v4287 = vld [vmem:[#allocation6 + $0xc8] sm:$0xff]
      %v4288 = vld [vmem:[#allocation6 + $0xd0] sm:$0xff]
      %v4289 = vld [vmem:[#allocation6 + $0xd8] sm:$0xff]
      %v4290 = vld [vmem:[#allocation6 + $0xe0] sm:$0xff]
      %v4291 = vld [vmem:[#allocation6 + $0xe8] sm:$0xff]
      %v4292 = vld [vmem:[#allocation6 + $0xf0] sm:$0xff]
      %v4293 = vld [vmem:[#allocation6 + $0xf8] sm:$0xff]
      %v4294 = vld [vmem:[#allocation6 + $0x100] sm:$0xff]
      %v4295 = vld [vmem:[#allocation6 + $0x108] sm:$0xff]
      %v4296 = vld [vmem:[#allocation6 + $0x110] sm:$0xff]
      %v4297 = vld [vmem:[#allocation6 + $0x118] sm:$0xff]
      %v4298 = vld [vmem:[#allocation6 + $0x120] sm:$0xff]
      %v4299 = vld [vmem:[#allocation6 + $0x128] sm:$0xff]
      %v4300 = vld [vmem:[#allocation6 + $0x130] sm:$0xff]
      %v4301 = vld [vmem:[#allocation6 + $0x138] sm:$0xff]
      %v4302 = vld [vmem:[#allocation6 + $0x140] sm:$0xff]
      %v4303 = vld [vmem:[#allocation6 + $0x148] sm:$0xff]
      %v4304 = vld [vmem:[#allocation6 + $0x150] sm:$0xff]
      %v4305 = vld [vmem:[#allocation6 + $0x158] sm:$0xff]
      %v4306 = vld [vmem:[#allocation6 + $0x160] sm:$0xff]
      %v4307 = vld [vmem:[#allocation6 + $0x168] sm:$0xff]
      %v4308 = vld [vmem:[#allocation6 + $0x170] sm:$0xff]
      %v4309 = vld [vmem:[#allocation6 + $0x178] sm:$0xff]
      %v4310 = vld [vmem:[#allocation6 + $0x180] sm:$0xff]
      %v4311 = vld [vmem:[#allocation6 + $0x188] sm:$0xff]
      %v4312 = vld [vmem:[#allocation6 + $0x190] sm:$0xff]
      %v4313 = vld [vmem:[#allocation6 + $0x198] sm:$0xff]
      %v4314 = vld [vmem:[#allocation6 + $0x1a0] sm:$0xff]
      %v4315 = vld [vmem:[#allocation6 + $0x1a8] sm:$0xff]
      %v4316 = vld [vmem:[#allocation6 + $0x1b0] sm:$0xff]
      %v4317 = vld [vmem:[#allocation6 + $0x1b8] sm:$0xff]
      %v4318 = vld [vmem:[#allocation6 + $0x1c0] sm:$0xff]
      %v4319 = vld [vmem:[#allocation6 + $0x1c8] sm:$0xff]
      %v4320 = vld [vmem:[#allocation6 + $0x1d0] sm:$0xff]
      %v4321 = vld [vmem:[#allocation6 + $0x1d8] sm:$0xff]
      %v4322 = vld [vmem:[#allocation6 + $0x1e0] sm:$0xff]
      %v4323 = vld [vmem:[#allocation6 + $0x1e8] sm:$0xff]
      %v4324 = vld [vmem:[#allocation6 + $0x1f0] sm:$0xff]
      %v4325 = vld [vmem:[#allocation6 + $0x1f8] sm:$0xff]
      %v4326 = vld [vmem:[#allocation6 + $0x200] sm:$0xff]
      %v4327 = vld [vmem:[#allocation6 + $0x208] sm:$0xff]
      %v4328 = vld [vmem:[#allocation6 + $0x210] sm:$0xff]
      %v4329 = vld [vmem:[#allocation6 + $0x218] sm:$0xff]
      %v4330 = vld [vmem:[#allocation6 + $0x220] sm:$0xff]
      %v4331 = vld [vmem:[#allocation6 + $0x228] sm:$0xff]
      %v4332 = vld [vmem:[#allocation6 + $0x230] sm:$0xff]
      %v4333 = vld [vmem:[#allocation6 + $0x238] sm:$0xff]
      %v4334 = vld [vmem:[#allocation6 + $0x240] sm:$0xff]
      %v4335 = vld [vmem:[#allocation6 + $0x248] sm:$0xff]
      %v4336 = vld [vmem:[#allocation6 + $0x250] sm:$0xff]
      %v4337 = vld [vmem:[#allocation6 + $0x258] sm:$0xff]
      %v4338 = vld [vmem:[#allocation6 + $0x260] sm:$0xff]
      %v4339 = vld [vmem:[#allocation6 + $0x268] sm:$0xff]
      %v4340 = vld [vmem:[#allocation6 + $0x270] sm:$0xff]
      %v4341 = vld [vmem:[#allocation6 + $0x278] sm:$0xff]
      %v4342 = vld [vmem:[#allocation6 + $0x280] sm:$0xff]
      %v4343 = vld [vmem:[#allocation6 + $0x288] sm:$0xff]
      %v4344 = vld [vmem:[#allocation6 + $0x290] sm:$0xff]
      %v4345 = vld [vmem:[#allocation6 + $0x298] sm:$0xff]
      %v4346 = vld [vmem:[#allocation6 + $0x2a0] sm:$0xff]
      %v4347 = vld [vmem:[#allocation6 + $0x2a8] sm:$0xff]
      %v4348 = vld [vmem:[#allocation6 + $0x2b0] sm:$0xff]
      %v4349 = vld [vmem:[#allocation6 + $0x2b8] sm:$0xff]
      %v4350 = vld [vmem:[#allocation6 + $0x2c0] sm:$0xff]
      %v4351 = vld [vmem:[#allocation6 + $0x2c8] sm:$0xff]
      %v4352 = vld [vmem:[#allocation6 + $0x2d0] sm:$0xff]
      %v4353 = vld [vmem:[#allocation6 + $0x2d8] sm:$0xff]
      %v4354 = vld [vmem:[#allocation6 + $0x2e0] sm:$0xff]
      %v4355 = vld [vmem:[#allocation6 + $0x2e8] sm:$0xff]
      %v4356 = vld [vmem:[#allocation6 + $0x2f0] sm:$0xff]
      %v4357 = vld [vmem:[#allocation6 + $0x2f8] sm:$0xff]
      %v4358 = vld [vmem:[#allocation6 + $0x300] sm:$0xff]
      %v4359 = vld [vmem:[#allocation6 + $0x308] sm:$0xff]
      %v4360 = vld [vmem:[#allocation6 + $0x310] sm:$0xff]
      %v4361 = vld [vmem:[#allocation6 + $0x318] sm:$0xff]
      %v4362 = vld [vmem:[#allocation6 + $0x320] sm:$0xff]
      %v4363 = vld [vmem:[#allocation6 + $0x328] sm:$0xff]
      %v4364 = vld [vmem:[#allocation6 + $0x330] sm:$0xff]
      %v4365 = vld [vmem:[#allocation6 + $0x338] sm:$0xff]
      %v4366 = vld [vmem:[#allocation6 + $0x340] sm:$0xff]
      %v4367 = vld [vmem:[#allocation6 + $0x348] sm:$0xff]
      %v4368 = vld [vmem:[#allocation6 + $0x350] sm:$0xff]
      %v4369 = vld [vmem:[#allocation6 + $0x358] sm:$0xff]
      %v4370 = vld [vmem:[#allocation6 + $0x360] sm:$0xff]
      %v4371 = vld [vmem:[#allocation6 + $0x368] sm:$0xff]
      %v4372 = vld [vmem:[#allocation6 + $0x370] sm:$0xff]
      %v4373 = vld [vmem:[#allocation6 + $0x378] sm:$0xff]
      %v4374 = vld [vmem:[#allocation6 + $0x380] sm:$0xff]
      %v4375 = vld [vmem:[#allocation6 + $0x388] sm:$0xff]
      %v4376 = vld [vmem:[#allocation6 + $0x390] sm:$0xff]
      %v4377 = vld [vmem:[#allocation6 + $0x398] sm:$0xff]
      %v4378 = vld [vmem:[#allocation6 + $0x3a0] sm:$0xff]
      %v4379 = vld [vmem:[#allocation6 + $0x3a8] sm:$0xff]
      %v4380 = vld [vmem:[#allocation6 + $0x3b0] sm:$0xff]
      %v4381 = vld [vmem:[#allocation6 + $0x3b8] sm:$0xff]
      %v4382 = vld [vmem:[#allocation6 + $0x3c0] sm:$0xff]
      %v4383 = vld [vmem:[#allocation6 + $0x3c8] sm:$0xff]
      %v4384 = vld [vmem:[#allocation6 + $0x3d0] sm:$0xff]
      %v4385 = vld [vmem:[#allocation6 + $0x3d8] sm:$0xff]
      %v4386 = vld [vmem:[#allocation6 + $0x3e0] sm:$0xff]
      %v4387 = vld [vmem:[#allocation6 + $0x3e8] sm:$0xff]
      %v4388 = vld [vmem:[#allocation6 + $0x3f0] sm:$0xff]
      %v4389 = vld [vmem:[#allocation6 + $0x3f8] sm:$0xff]
      %v4390 = vld [vmem:[#allocation6 + $0x400] sm:$0xff]
      %v4391 = vld [vmem:[#allocation6 + $0x408] sm:$0xff]
      %v4392 = vld [vmem:[#allocation6 + $0x410] sm:$0xff]
      %v4393 = vld [vmem:[#allocation6 + $0x418] sm:$0xff]
      %v4394 = vld [vmem:[#allocation6 + $0x420] sm:$0xff]
      %v4395 = vld [vmem:[#allocation6 + $0x428] sm:$0xff]
      %v4396 = vld [vmem:[#allocation6 + $0x430] sm:$0xff]
      %v4397 = vld [vmem:[#allocation6 + $0x438] sm:$0xff]
      %v4398 = vld [vmem:[#allocation6 + $0x440] sm:$0xff]
      %v4399 = vld [vmem:[#allocation6 + $0x448] sm:$0xff]
      %v4400 = vld [vmem:[#allocation6 + $0x450] sm:$0xff]
      %v4401 = vld [vmem:[#allocation6 + $0x458] sm:$0xff]
      %v4402 = vld [vmem:[#allocation6 + $0x460] sm:$0xff]
      %v4403 = vld [vmem:[#allocation6 + $0x468] sm:$0xff]
      %v4404 = vld [vmem:[#allocation6 + $0x470] sm:$0xff]
      %v4405 = vld [vmem:[#allocation6 + $0x478] sm:$0xff]
      %v4406 = vld [vmem:[#allocation6 + $0x480] sm:$0xff]
      %v4407 = vld [vmem:[#allocation6 + $0x488] sm:$0xff]
      %v4408 = vld [vmem:[#allocation6 + $0x490] sm:$0xff]
      %v4409 = vld [vmem:[#allocation6 + $0x498] sm:$0xff]
      %v4410 = vld [vmem:[#allocation6 + $0x4a0] sm:$0xff]
      %v4411 = vld [vmem:[#allocation6 + $0x4a8] sm:$0xff]
      %v4412 = vld [vmem:[#allocation6 + $0x4b0] sm:$0xff]
      %v4413 = vld [vmem:[#allocation6 + $0x4b8] sm:$0xff]
      %v4414 = vld [vmem:[#allocation6 + $0x4c0] sm:$0xff]
      %v4415 = vld [vmem:[#allocation6 + $0x4c8] sm:$0xff]
      %v4416 = vld [vmem:[#allocation6 + $0x4d0] sm:$0xff]
      %v4417 = vld [vmem:[#allocation6 + $0x4d8] sm:$0xff]
      %v4418 = vld [vmem:[#allocation6 + $0x4e0] sm:$0xff]
      %v4419 = vld [vmem:[#allocation6 + $0x4e8] sm:$0xff]
      %v4420 = vld [vmem:[#allocation6 + $0x4f0] sm:$0xff]
      %v4421 = vld [vmem:[#allocation6 + $0x4f8] sm:$0xff]
      %v4422 = vld [vmem:[#allocation6 + $0x500] sm:$0xff]
      %v4423 = vld [vmem:[#allocation6 + $0x508] sm:$0xff]
      %v4424 = vld [vmem:[#allocation6 + $0x510] sm:$0xff]
      %v4425 = vld [vmem:[#allocation6 + $0x518] sm:$0xff]
      %v4426 = vld [vmem:[#allocation6 + $0x520] sm:$0xff]
      %v4427 = vld [vmem:[#allocation6 + $0x528] sm:$0xff]
      %v4428 = vld [vmem:[#allocation6 + $0x530] sm:$0xff]
      %v4429 = vld [vmem:[#allocation6 + $0x538] sm:$0xff]
      %v4430 = vld [vmem:[#allocation6 + $0x540] sm:$0xff]
      %v4431 = vld [vmem:[#allocation6 + $0x548] sm:$0xff]
      %v4432 = vld [vmem:[#allocation6 + $0x550] sm:$0xff]
      %v4433 = vld [vmem:[#allocation6 + $0x558] sm:$0xff]
      %v4434 = vld [vmem:[#allocation6 + $0x560] sm:$0xff]
      %v4435 = vld [vmem:[#allocation6 + $0x568] sm:$0xff]
      %v4436 = vld [vmem:[#allocation6 + $0x570] sm:$0xff]
      %v4437 = vld [vmem:[#allocation6 + $0x578] sm:$0xff]
      %v4438 = vld [vmem:[#allocation6 + $0x580] sm:$0xff]
      %v4439 = vld [vmem:[#allocation6 + $0x588] sm:$0xff]
      %v4440 = vld [vmem:[#allocation6 + $0x590] sm:$0xff]
      %v4441 = vld [vmem:[#allocation6 + $0x598] sm:$0xff]
      %v4442 = vld [vmem:[#allocation6 + $0x5a0] sm:$0xff]
      %v4443 = vld [vmem:[#allocation6 + $0x5a8] sm:$0xff]
      %v4444 = vld [vmem:[#allocation6 + $0x5b0] sm:$0xff]
      %v4445 = vld [vmem:[#allocation6 + $0x5b8] sm:$0xff]
      %v4446 = vld [vmem:[#allocation6 + $0x5c0] sm:$0xff]
      %v4447 = vld [vmem:[#allocation6 + $0x5c8] sm:$0xff]
      %v4448 = vld [vmem:[#allocation6 + $0x5d0] sm:$0xff]
      %v4449 = vld [vmem:[#allocation6 + $0x5d8] sm:$0xff]
      %v4450 = vld [vmem:[#allocation6 + $0x5e0] sm:$0xff]
      %v4451 = vld [vmem:[#allocation6 + $0x5e8] sm:$0xff]
      %v4452 = vld [vmem:[#allocation6 + $0x5f0] sm:$0xff]
      %v4453 = vld [vmem:[#allocation6 + $0x5f8] sm:$0xff]
      %v4454 = vld [vmem:[#allocation6 + $0x600] sm:$0xff]
      %v4455 = vld [vmem:[#allocation6 + $0x608] sm:$0xff]
      %v4456 = vld [vmem:[#allocation6 + $0x610] sm:$0xff]
      %v4457 = vld [vmem:[#allocation6 + $0x618] sm:$0xff]
      %v4458 = vld [vmem:[#allocation6 + $0x620] sm:$0xff]
      %v4459 = vld [vmem:[#allocation6 + $0x628] sm:$0xff]
      %v4460 = vld [vmem:[#allocation6 + $0x630] sm:$0xff]
      %v4461 = vld [vmem:[#allocation6 + $0x638] sm:$0xff]
      %v4462 = vld [vmem:[#allocation6 + $0x640] sm:$0xff]
      %v4463 = vld [vmem:[#allocation6 + $0x648] sm:$0xff]
      %v4464 = vld [vmem:[#allocation6 + $0x650] sm:$0xff]
      %v4465 = vld [vmem:[#allocation6 + $0x658] sm:$0xff]
      %v4466 = vld [vmem:[#allocation6 + $0x660] sm:$0xff]
      %v4467 = vld [vmem:[#allocation6 + $0x668] sm:$0xff]
      %v4468 = vld [vmem:[#allocation6 + $0x670] sm:$0xff]
      %v4469 = vld [vmem:[#allocation6 + $0x678] sm:$0xff]
      %v4470 = vld [vmem:[#allocation6 + $0x680] sm:$0xff]
      %v4471 = vld [vmem:[#allocation6 + $0x688] sm:$0xff]
      %v4472 = vld [vmem:[#allocation6 + $0x690] sm:$0xff]
      %v4473 = vld [vmem:[#allocation6 + $0x698] sm:$0xff]
      %v4474 = vld [vmem:[#allocation6 + $0x6a0] sm:$0xff]
      %v4475 = vld [vmem:[#allocation6 + $0x6a8] sm:$0xff]
      %v4476 = vld [vmem:[#allocation6 + $0x6b0] sm:$0xff]
      %v4477 = vld [vmem:[#allocation6 + $0x6b8] sm:$0xff]
      %v4478 = vld [vmem:[#allocation6 + $0x6c0] sm:$0xff]
      %v4479 = vld [vmem:[#allocation6 + $0x6c8] sm:$0xff]
      %v4480 = vld [vmem:[#allocation6 + $0x6d0] sm:$0xff]
      %v4481 = vld [vmem:[#allocation6 + $0x6d8] sm:$0xff]
      %v4482 = vld [vmem:[#allocation6 + $0x6e0] sm:$0xff]
      %v4483 = vld [vmem:[#allocation6 + $0x6e8] sm:$0xff]
      %v4484 = vld [vmem:[#allocation6 + $0x6f0] sm:$0xff]
      %v4485 = vld [vmem:[#allocation6 + $0x6f8] sm:$0xff]
      %v4486 = vld [vmem:[#allocation6 + $0x700] sm:$0xff]
      %v4487 = vld [vmem:[#allocation6 + $0x708] sm:$0xff]
      %v4488 = vld [vmem:[#allocation6 + $0x710] sm:$0xff]
      %v4489 = vld [vmem:[#allocation6 + $0x718] sm:$0xff]
      %v4490 = vld [vmem:[#allocation6 + $0x720] sm:$0xff]
      %v4491 = vld [vmem:[#allocation6 + $0x728] sm:$0xff]
      %v4492 = vld [vmem:[#allocation6 + $0x730] sm:$0xff]
      %v4493 = vld [vmem:[#allocation6 + $0x738] sm:$0xff]
      %v4494 = vld [vmem:[#allocation6 + $0x740] sm:$0xff]
      %v4495 = vld [vmem:[#allocation6 + $0x748] sm:$0xff]
      %v4496 = vld [vmem:[#allocation6 + $0x750] sm:$0xff]
      %v4497 = vld [vmem:[#allocation6 + $0x758] sm:$0xff]
      %v4498 = vld [vmem:[#allocation6 + $0x760] sm:$0xff]
      %v4499 = vld [vmem:[#allocation6 + $0x768] sm:$0xff]
      %v4500 = vld [vmem:[#allocation6 + $0x770] sm:$0xff]
      %v4501 = vld [vmem:[#allocation6 + $0x778] sm:$0xff]
      %v4502 = vld [vmem:[#allocation6 + $0x780] sm:$0xff]
      %v4503 = vld [vmem:[#allocation6 + $0x788] sm:$0xff]
      %v4504 = vld [vmem:[#allocation6 + $0x790] sm:$0xff]
      %v4505 = vld [vmem:[#allocation6 + $0x798] sm:$0xff]
      %v4506 = vld [vmem:[#allocation6 + $0x7a0] sm:$0xff]
      %v4507 = vld [vmem:[#allocation6 + $0x7a8] sm:$0xff]
      %v4508 = vld [vmem:[#allocation6 + $0x7b0] sm:$0xff]
      %v4509 = vld [vmem:[#allocation6 + $0x7b8] sm:$0xff]
      %v4510 = vld [vmem:[#allocation6 + $0x7c0] sm:$0xff]
      %v4511 = vld [vmem:[#allocation6 + $0x7c8] sm:$0xff]
      %v4512 = vld [vmem:[#allocation6 + $0x7d0] sm:$0xff]
      %v4513 = vld [vmem:[#allocation6 + $0x7d8] sm:$0xff]
      %v4514 = vld [vmem:[#allocation6 + $0x7e0] sm:$0xff]
      %v4515 = vld [vmem:[#allocation6 + $0x7e8] sm:$0xff]
      %v4516 = vld [vmem:[#allocation6 + $0x7f0] sm:$0xff]
      %v4517 = vld [vmem:[#allocation6 + $0x7f8] sm:$0xff]
      %v4518 = vld [vmem:[#allocation6 + $0x800] sm:$0xff]
      %v4519 = vld [vmem:[#allocation6 + $0x808] sm:$0xff]
      %v4520 = vld [vmem:[#allocation6 + $0x810] sm:$0xff]
      %v4521 = vld [vmem:[#allocation6 + $0x818] sm:$0xff]
      %v4522 = vld [vmem:[#allocation6 + $0x820] sm:$0xff]
      %v4523 = vld [vmem:[#allocation6 + $0x828] sm:$0xff]
      %v4524 = vld [vmem:[#allocation6 + $0x830] sm:$0xff]
      %v4525 = vld [vmem:[#allocation6 + $0x838] sm:$0xff]
      %v4526 = vld [vmem:[#allocation6 + $0x840] sm:$0xff]
      %v4527 = vld [vmem:[#allocation6 + $0x848] sm:$0xff]
      %v4528 = vld [vmem:[#allocation6 + $0x850] sm:$0xff]
      %v4529 = vld [vmem:[#allocation6 + $0x858] sm:$0xff]
      %v4530 = vld [vmem:[#allocation6 + $0x860] sm:$0xff]
      %v4531 = vld [vmem:[#allocation6 + $0x868] sm:$0xff]
      %v4532 = vld [vmem:[#allocation6 + $0x870] sm:$0xff]
      %v4533 = vld [vmem:[#allocation6 + $0x878] sm:$0xff]
      %v4534 = vld [vmem:[#allocation6 + $0x880] sm:$0xff]
      %v4535 = vld [vmem:[#allocation6 + $0x888] sm:$0xff]
      %v4536 = vld [vmem:[#allocation6 + $0x890] sm:$0xff]
      %v4537 = vld [vmem:[#allocation6 + $0x898] sm:$0xff]
      %v4538 = vld [vmem:[#allocation6 + $0x8a0] sm:$0xff]
      %v4539 = vld [vmem:[#allocation6 + $0x8a8] sm:$0xff]
      %v4540 = vld [vmem:[#allocation6 + $0x8b0] sm:$0xff]
      %v4541 = vld [vmem:[#allocation6 + $0x8b8] sm:$0xff]
      %v4542 = vld [vmem:[#allocation6 + $0x8c0] sm:$0xff]
      %v4543 = vld [vmem:[#allocation6 + $0x8c8] sm:$0xff]
      %v4544 = vld [vmem:[#allocation6 + $0x8d0] sm:$0xff]
      %v4545 = vld [vmem:[#allocation6 + $0x8d8] sm:$0xff]
      %v4546 = vld [vmem:[#allocation6 + $0x8e0] sm:$0xff]
      %v4547 = vld [vmem:[#allocation6 + $0x8e8] sm:$0xff]
      %v4548 = vld [vmem:[#allocation6 + $0x8f0] sm:$0xff]
      %v4549 = vld [vmem:[#allocation6 + $0x8f8] sm:$0xff]
      %v4550 = vld [vmem:[%s7] sm:$0xff]
      %v4551 = vld [vmem:[%s7 + $0x8] sm:$0xff]
      %v4552 = vld [vmem:[%s7 + $0x10] sm:$0xff]
      %v4553 = vld [vmem:[%s7 + $0x18] sm:$0xff]
      %v4554 = vld [vmem:[%s7 + $0x20] sm:$0xff]
      %v4555 = vld [vmem:[%s7 + $0x28] sm:$0xff]
      %v4556 = vld [vmem:[%s7 + $0x30] sm:$0xff]
      %v4557 = vld [vmem:[%s7 + $0x38] sm:$0xff]
      %v4558 = vld [vmem:[%s7 + $0x40] sm:$0xff]
      %v4559 = vld [vmem:[%s7 + $0x48] sm:$0xff]
      %v4560 = vld [vmem:[%s7 + $0x50] sm:$0xff]
      %v4561 = vld [vmem:[%s7 + $0x58] sm:$0xff]
      %v4562 = vld [vmem:[%s7 + $0x60] sm:$0xff]
      %v4563 = vld [vmem:[%s7 + $0x68] sm:$0xff]
      %v4564 = vld [vmem:[%s7 + $0x70] sm:$0xff]
      %v4565 = vld [vmem:[%s7 + $0x78] sm:$0xff]
      %v4566 = vld [vmem:[%s7 + $0x80] sm:$0xff]
      %v4567 = vld [vmem:[%s7 + $0x88] sm:$0xff]
      %v4568 = vld [vmem:[%s7 + $0x90] sm:$0xff]
      %v4569 = vld [vmem:[%s7 + $0x98] sm:$0xff]
      %v4570 = vld [vmem:[%s7 + $0xa0] sm:$0xff]
      %v4571 = vld [vmem:[%s7 + $0xa8] sm:$0xff]
      %v4572 = vld [vmem:[%s7 + $0xb0] sm:$0xff]
      %v4573 = vld [vmem:[%s7 + $0xb8] sm:$0xff]
      %v4574 = vld [vmem:[%s7 + $0xc0] sm:$0xff]
      %v4575 = vld [vmem:[%s7 + $0xc8] sm:$0xff]
      %v4576 = vld [vmem:[%s7 + $0xd0] sm:$0xff]
      %v4577 = vld [vmem:[%s7 + $0xd8] sm:$0xff]
      %v4578 = vld [vmem:[%s7 + $0xe0] sm:$0xff]
      %v4579 = vld [vmem:[%s7 + $0xe8] sm:$0xff]
      %v4580 = vld [vmem:[%s7 + $0xf0] sm:$0xff]
      %v4581 = vld [vmem:[%s7 + $0xf8] sm:$0xff]
      %v4582 = vld [vmem:[%s7 + $0x100] sm:$0xff]
      %v4583 = vld [vmem:[%s7 + $0x108] sm:$0xff]
      %v4584 = vld [vmem:[%s7 + $0x110] sm:$0xff]
      %v4585 = vld [vmem:[%s7 + $0x118] sm:$0xff]
      %v4586 = vld [vmem:[%s7 + $0x120] sm:$0xff]
      %v4587 = vld [vmem:[%s7 + $0x128] sm:$0xff]
      %v4588 = vld [vmem:[%s7 + $0x130] sm:$0xff]
      %v4589 = vld [vmem:[%s7 + $0x138] sm:$0xff]
      %v4590 = vld [vmem:[%s7 + $0x140] sm:$0xff]
      %v4591 = vld [vmem:[%s7 + $0x148] sm:$0xff]
      %v4592 = vld [vmem:[%s7 + $0x150] sm:$0xff]
      %v4593 = vld [vmem:[%s7 + $0x158] sm:$0xff]
      %v4594 = vld [vmem:[%s7 + $0x160] sm:$0xff]
      %v4595 = vld [vmem:[%s7 + $0x168] sm:$0xff]
      %v4596 = vld [vmem:[%s7 + $0x170] sm:$0xff]
      %v4597 = vld [vmem:[%s7 + $0x178] sm:$0xff]
      %v4598 = vld [vmem:[%s7 + $0x180] sm:$0xff]
      %v4599 = vld [vmem:[%s7 + $0x188] sm:$0xff]
      %v4600 = vld [vmem:[%s7 + $0x190] sm:$0xff]
      %v4601 = vld [vmem:[%s7 + $0x198] sm:$0xff]
      %v4602 = vld [vmem:[%s7 + $0x1a0] sm:$0xff]
      %v4603 = vld [vmem:[%s7 + $0x1a8] sm:$0xff]
      %v4604 = vld [vmem:[%s7 + $0x1b0] sm:$0xff]
      %v4605 = vld [vmem:[%s7 + $0x1b8] sm:$0xff]
      %v4606 = vld [vmem:[%s7 + $0x1c0] sm:$0xff]
      %v4607 = vld [vmem:[%s7 + $0x1c8] sm:$0xff]
      %v4608 = vld [vmem:[%s7 + $0x1d0] sm:$0xff]
      %v4609 = vld [vmem:[%s7 + $0x1d8] sm:$0xff]
      %v4610 = vld [vmem:[%s7 + $0x1e0] sm:$0xff]
      %v4611 = vld [vmem:[%s7 + $0x1e8] sm:$0xff]
      %v4612 = vld [vmem:[%s7 + $0x1f0] sm:$0xff]
      %v4613 = vld [vmem:[%s7 + $0x1f8] sm:$0xff]
      %v4614 = vld [vmem:[%s7 + $0x200] sm:$0xff]
      %v4615 = vld [vmem:[%s7 + $0x208] sm:$0xff]
      %v4616 = vld [vmem:[%s7 + $0x210] sm:$0xff]
      %v4617 = vld [vmem:[%s7 + $0x218] sm:$0xff]
      %v4618 = vld [vmem:[%s7 + $0x220] sm:$0xff]
      %v4619 = vld [vmem:[%s7 + $0x228] sm:$0xff]
      %v4620 = vld [vmem:[%s7 + $0x230] sm:$0xff]
      %v4621 = vld [vmem:[%s7 + $0x238] sm:$0xff]
      %v4622 = vld [vmem:[%s7 + $0x240] sm:$0xff]
      %v4623 = vld [vmem:[%s7 + $0x248] sm:$0xff]
      %v4624 = vld [vmem:[%s7 + $0x250] sm:$0xff]
      %v4625 = vld [vmem:[%s7 + $0x258] sm:$0xff]
      %v4626 = vld [vmem:[%s7 + $0x260] sm:$0xff]
      %v4627 = vld [vmem:[%s7 + $0x268] sm:$0xff]
      %v4628 = vld [vmem:[%s7 + $0x270] sm:$0xff]
      %v4629 = vld [vmem:[%s7 + $0x278] sm:$0xff]
      %v4630 = vld [vmem:[%s7 + $0x280] sm:$0xff]
      %v4631 = vld [vmem:[%s7 + $0x288] sm:$0xff]
      %v4632 = vld [vmem:[%s7 + $0x290] sm:$0xff]
      %v4633 = vld [vmem:[%s7 + $0x298] sm:$0xff]
      %v4634 = vld [vmem:[%s7 + $0x2a0] sm:$0xff]
      %v4635 = vld [vmem:[%s7 + $0x2a8] sm:$0xff]
      %v4636 = vld [vmem:[%s7 + $0x2b0] sm:$0xff]
      %v4637 = vld [vmem:[%s7 + $0x2b8] sm:$0xff]
      %v4638 = vld [vmem:[%s7 + $0x2c0] sm:$0xff]
      %v4639 = vld [vmem:[%s7 + $0x2c8] sm:$0xff]
      %v4640 = vld [vmem:[%s7 + $0x2d0] sm:$0xff]
      %v4641 = vld [vmem:[%s7 + $0x2d8] sm:$0xff]
      %v4642 = vld [vmem:[%s7 + $0x2e0] sm:$0xff]
      %v4643 = vld [vmem:[%s7 + $0x2e8] sm:$0xff]
      %v4644 = vld [vmem:[%s7 + $0x2f0] sm:$0xff]
      %v4645 = vld [vmem:[%s7 + $0x2f8] sm:$0xff]
      %v4646 = vld [vmem:[%s7 + $0x300] sm:$0xff]
      %v4647 = vld [vmem:[%s7 + $0x308] sm:$0xff]
      %v4648 = vld [vmem:[%s7 + $0x310] sm:$0xff]
      %v4649 = vld [vmem:[%s7 + $0x318] sm:$0xff]
      %v4650 = vld [vmem:[%s7 + $0x320] sm:$0xff]
      %v4651 = vld [vmem:[%s7 + $0x328] sm:$0xff]
      %v4652 = vld [vmem:[%s7 + $0x330] sm:$0xff]
      %v4653 = vld [vmem:[%s7 + $0x338] sm:$0xff]
      %v4654 = vld [vmem:[%s7 + $0x340] sm:$0xff]
      %v4655 = vld [vmem:[%s7 + $0x348] sm:$0xff]
      %v4656 = vld [vmem:[%s7 + $0x350] sm:$0xff]
      %v4657 = vld [vmem:[%s7 + $0x358] sm:$0xff]
      %v4658 = vld [vmem:[%s7 + $0x360] sm:$0xff]
      %v4659 = vld [vmem:[%s7 + $0x368] sm:$0xff]
      %v4660 = vld [vmem:[%s7 + $0x370] sm:$0xff]
      %v4661 = vld [vmem:[%s7 + $0x378] sm:$0xff]
      %v4662 = vld [vmem:[%s7 + $0x380] sm:$0xff]
      %v4663 = vld [vmem:[%s7 + $0x388] sm:$0xff]
      %v4664 = vld [vmem:[%s7 + $0x390] sm:$0xff]
      %v4665 = vld [vmem:[%s7 + $0x398] sm:$0xff]
      %v4666 = vld [vmem:[%s7 + $0x3a0] sm:$0xff]
      %v4667 = vld [vmem:[%s7 + $0x3a8] sm:$0xff]
      %v4668 = vld [vmem:[%s7 + $0x3b0] sm:$0xff]
      %v4669 = vld [vmem:[%s7 + $0x3b8] sm:$0xff]
      %v4670 = vld [vmem:[%s7 + $0x3c0] sm:$0xff]
      %v4671 = vld [vmem:[%s7 + $0x3c8] sm:$0xff]
      %v4672 = vld [vmem:[%s7 + $0x3d0] sm:$0xff]
      %v4673 = vld [vmem:[%s7 + $0x3d8] sm:$0xff]
      %v4674 = vld [vmem:[%s7 + $0x3e0] sm:$0xff]
      %v4675 = vld [vmem:[%s7 + $0x3e8] sm:$0xff]
      %v4676 = vld [vmem:[%s7 + $0x3f0] sm:$0xff]
      %v4677 = vld [vmem:[%s7 + $0x3f8] sm:$0xff]
      %v4678 = vld [vmem:[%s7 + $0x400] sm:$0xff]
      %v4679 = vld [vmem:[%s7 + $0x408] sm:$0xff]
      %v4680 = vld [vmem:[%s7 + $0x410] sm:$0xff]
      %v4681 = vld [vmem:[%s7 + $0x418] sm:$0xff]
      %v4682 = vld [vmem:[%s7 + $0x420] sm:$0xff]
      %v4683 = vld [vmem:[%s7 + $0x428] sm:$0xff]
      %v4684 = vld [vmem:[%s7 + $0x430] sm:$0xff]
      %v4685 = vld [vmem:[%s7 + $0x438] sm:$0xff]
      %v4686 = vld [vmem:[%s7 + $0x440] sm:$0xff]
      %v4687 = vld [vmem:[%s7 + $0x448] sm:$0xff]
      %v4688 = vld [vmem:[%s7 + $0x450] sm:$0xff]
      %v4689 = vld [vmem:[%s7 + $0x458] sm:$0xff]
      %v4690 = vld [vmem:[%s7 + $0x460] sm:$0xff]
      %v4691 = vld [vmem:[%s7 + $0x468] sm:$0xff]
      %v4692 = vld [vmem:[%s7 + $0x470] sm:$0xff]
      %v4693 = vld [vmem:[%s7 + $0x478] sm:$0xff]
      %v4694 = vld [vmem:[%s8] sm:$0x1]
      %v4696 = vlaneseq
      %v4697 = vshrl.u32 %v4696, 7
      %v4698 = vsub.s32 0, %v4697
      %v4699 = vrot.slane %v4694, %v4698
      %4701 = vmatprep.subr.mxu0 0.0
      %4702 = vmatpush1.msra.mxu0 %v4550
      %4703 = vmatprep.subr.mxu0 0.0
      %4704 = vmatpush1.msra.mxu0 %v4551
      %4705 = vmatprep.subr.mxu0 0.0
      %4706 = vmatpush1.msra.mxu0 %v4552
      %4707 = vmatprep.subr.mxu0 0.0
      %4708 = vmatpush1.msra.mxu0 %v4553
      %4709 = vmatprep.subr.mxu0 0.0
      %4710 = vmatpush1.msra.mxu0 %v4554
      %4711 = vmatprep.subr.mxu0 0.0
      %4712 = vmatpush1.msra.mxu0 %v4555
      %4713 = vmatprep.subr.mxu0 0.0
      %4714 = vmatpush1.msra.mxu0 %v4556
      %4715 = vmatprep.subr.mxu0 0.0
      %4716 = vmatpush1.msra.mxu0 %v4557
      %4717 = vmatprep.subr.mxu0 0.0
      %4718 = vmatpush1.msra.mxu0 %v4558
      %4719 = vmatprep.subr.mxu0 0.0
      %4720 = vmatpush1.msra.mxu0 %v4559
      %4721 = vmatprep.subr.mxu0 0.0
      %4722 = vmatpush1.msra.mxu0 %v4560
      %4723 = vmatprep.subr.mxu0 0.0
      %4724 = vmatpush1.msra.mxu0 %v4561
      %4725 = vmatprep.subr.mxu0 0.0
      %4726 = vmatpush1.msra.mxu0 %v4562
      %4727 = vmatprep.subr.mxu0 0.0
      %4728 = vmatpush1.msra.mxu0 %v4563
      %4729 = vmatprep.subr.mxu0 0.0
      %4730 = vmatpush1.msra.mxu0 %v4564
      %4731 = vmatprep.subr.mxu0 0.0
      %4732 = vmatpush1.msra.mxu0 %v4565
      %4733 = vmatprep.subr.mxu0 0.0
      %4734 = vmatpush1.msra.mxu0 %v4566
      %4735 = vmatprep.subr.mxu0 0.0
      %4736 = vmatpush1.msra.mxu0 %v4567
      %4737 = vmatprep.subr.mxu0 0.0
      %4738 = vmatpush1.msra.mxu0 %v4568
      %4739 = vmatprep.subr.mxu0 0.0
      %4740 = vmatpush1.msra.mxu0 %v4569
      %4741 = vmatprep.subr.mxu0 0.0
      %4742 = vmatpush1.msra.mxu0 %v4570
      %4743 = vmatprep.subr.mxu0 0.0
      %4744 = vmatpush1.msra.mxu0 %v4571
      %4745 = vmatprep.subr.mxu0 0.0
      %4746 = vmatpush1.msra.mxu0 %v4572
      %4747 = vmatprep.subr.mxu0 0.0
      %4748 = vmatpush1.msra.mxu0 %v4573
      %4749 = vmatprep.subr.mxu0 0.0
      %4750 = vmatpush1.msra.mxu0 %v4574
      %4751 = vmatprep.subr.mxu0 0.0
      %4752 = vmatpush1.msra.mxu0 %v4575
      %4753 = vmatprep.subr.mxu0 0.0
      %4754 = vmatpush1.msra.mxu0 %v4576
      %4755 = vmatprep.subr.mxu0 0.0
      %4756 = vmatpush1.msra.mxu0 %v4577
      %4757 = vmatprep.subr.mxu0 0.0
      %4758 = vmatpush1.msra.mxu0 %v4578
      %4759 = vmatprep.subr.mxu0 0.0
      %4760 = vmatpush1.msra.mxu0 %v4579
      %4761 = vmatprep.subr.mxu0 0.0
      %4762 = vmatpush1.msra.mxu0 %v4580
      %4763 = vmatprep.subr.mxu0 0.0
      %4764 = vmatpush1.msra.mxu0 %v4581
      %4765 = vmatprep.mubr.f32.mxu0 %v4263
      %4766 = vmatmul.mubr.f32.gmra.mrb[0].mxu0 %v4262
      %v4767 = vpop.f32.mrb[0].mxu0
      %v4768 = vadd.f32 %v4699, %v4767
      %v4769 = vpop.f32.mrb[0].mxu0
      %4770 = vmatprep.mubr.f32.mxu0 %v4272
      %4771 = vmatmul.mubr.f32.gmra.mrb[0].mxu0 %v4271
      %v4772 = vpop.f32.mrb[0].mxu0
      %v4773 = vadd.f32 %v4699, %v4772
      %v4774 = vpop.f32.mrb[0].mxu0
      %4775 = vmatprep.mubr.f32.mxu0 %v4281
      %4776 = vmatmul.mubr.f32.gmra.mrb[0].mxu0 %v4280
      %v4777 = vpop.f32.mrb[0].mxu0
      %v4778 = vadd.f32 %v4699, %v4777
      %v4779 = vpop.f32.mrb[0].mxu0
      %4780 = vmatprep.mubr.f32.mxu0 %v4290
      %4781 = vmatmul.mubr.f32.gmra.mrb[0].mxu0 %v4289
      %v4782 = vpop.f32.mrb[0].mxu0
      %v4783 = vadd.f32 %v4699, %v4782
      %v4784 = vpop.f32.mrb[0].mxu0
      %4785 = vmatprep.mubr.f32.mxu0 %v4299
      %4786 = vmatmul.mubr.f32.gmra.mrb[0].mxu0 %v4298
      %v4787 = vpop.f32.mrb[0].mxu0
      %v4788 = vadd.f32 %v4699, %v4787
      %v4789 = vpop.f32.mrb[0].mxu0
      %4790 = vmatprep.mubr.f32.mxu0 %v4308
      %4791 = vmatmul.mubr.f32.gmra.mrb[0].mxu0 %v4307
      %v4792 = vpop.f32.mrb[0].mxu0
      %v4793 = vadd.f32 %v4699, %v4792
      %v4794 = vpop.f32.mrb[0].mxu0
      %4795 = vmatprep.mubr.f32.mxu0 %v4317
      %4796 = vmatmul.mubr.f32.gmra.mrb[0].mxu0 %v4316
      %v4797 = vpop.f32.mrb[0].mxu0
      %v4798 = vadd.f32 %v4699, %v4797
      %v4799 = vpop.f32.mrb[0].mxu0
      %4800 = vmatprep.mubr.f32.mxu0 %v4326
      %4801 = vmatmul.mubr.f32.gmra.mrb[0].mxu0 %v4325
      %v4802 = vpop.f32.mrb[0].mxu0
      %v4803 = vadd.f32 %v4699, %v4802
      %v4804 = vpop.f32.mrb[0].mxu0
      %4805 = vmatprep.mubr.f32.mxu0 %v4335
      %4806 = vmatmul.mubr.f32.gmra.mrb[0].mxu0 %v4334
      %v4807 = vpop.f32.mrb[0].mxu0
      %v4808 = vadd.f32 %v4699, %v4807
      %v4809 = vpop.f32.mrb[0].mxu0
      %4810 = vmatprep.mubr.f32.mxu0 %v4344
      %4811 = vmatmul.mubr.f32.gmra.mrb[0].mxu0 %v4343
      %v4812 = vpop.f32.mrb[0].mxu0
      %v4813 = vadd.f32 %v4699, %v4812
      %v4814 = vpop.f32.mrb[0].mxu0
      %4815 = vmatprep.mubr.f32.mxu0 %v4353
      %4816 = vmatmul.mubr.f32.gmra.mrb[0].mxu0 %v4352
      %v4817 = vpop.f32.mrb[0].mxu0
      %v4818 = vadd.f32 %v4699, %v4817
      %v4819 = vpop.f32.mrb[0].mxu0
      %4820 = vmatprep.mubr.f32.mxu0 %v4362
      %4821 = vmatmul.mubr.f32.gmra.mrb[0].mxu0 %v4361
      %v4822 = vpop.f32.mrb[0].mxu0
      %v4823 = vadd.f32 %v4699, %v4822
      %v4824 = vpop.f32.mrb[0].mxu0
      %4825 = vmatprep.mubr.f32.mxu0 %v4371
      %4826 = vmatmul.mubr.f32.gmra.mrb[0].mxu0 %v4370
      %v4827 = vpop.f32.mrb[0].mxu0
      %v4828 = vadd.f32 %v4699, %v4827
      %v4829 = vpop.f32.mrb[0].mxu0
      %4830 = vmatprep.mubr.f32.mxu0 %v4380
      %4831 = vmatmul.mubr.f32.gmra.mrb[0].mxu0 %v4379
      %v4832 = vpop.f32.mrb[0].mxu0
      %v4833 = vadd.f32 %v4699, %v4832
      %v4834 = vpop.f32.mrb[0].mxu0
      %4835 = vmatprep.mubr.f32.mxu0 %v4389
      %4836 = vmatmul.mubr.f32.gmra.mrb[0].mxu0 %v4388
      %v4837 = vpop.f32.mrb[0].mxu0
      %v4838 = vadd.f32 %v4699, %v4837
      %v4839 = vpop.f32.mrb[0].mxu0
      %4840 = vmatprep.mubr.f32.mxu0 %v4398
      %4841 = vmatmul.mubr.f32.gmra.mrb[0].mxu0 %v4397
      %v4842 = vpop.f32.mrb[0].mxu0
      %v4843 = vadd.f32 %v4699, %v4842
      %v4844 = vpop.f32.mrb[0].mxu0
      %4845 = vmatprep.mubr.f32.mxu0 %v4407
      %4846 = vmatmul.mubr.f32.gmra.mrb[0].mxu0 %v4406
      %v4847 = vpop.f32.mrb[0].mxu0
      %v4848 = vadd.f32 %v4699, %v4847
      %v4849 = vpop.f32.mrb[0].mxu0
      %4850 = vmatprep.mubr.f32.mxu0 %v4416
      %4851 = vmatmul.mubr.f32.gmra.mrb[0].mxu0 %v4415
      %v4852 = vpop.f32.mrb[0].mxu0
      %v4853 = vadd.f32 %v4699, %v4852
      %v4854 = vpop.f32.mrb[0].mxu0
      %4855 = vmatprep.mubr.f32.mxu0 %v4425
      %4856 = vmatmul.mubr.f32.gmra.mrb[0].mxu0 %v4424
      %v4857 = vpop.f32.mrb[0].mxu0
      %v4858 = vadd.f32 %v4699, %v4857
      %v4859 = vpop.f32.mrb[0].mxu0
      %4860 = vmatprep.mubr.f32.mxu0 %v4434
      %4861 = vmatmul.mubr.f32.gmra.mrb[0].mxu0 %v4433
      %v4862 = vpop.f32.mrb[0].mxu0
      %v4863 = vadd.f32 %v4699, %v4862
      %v4864 = vpop.f32.mrb[0].mxu0
      %4865 = vmatprep.mubr.f32.mxu0 %v4443
      %4866 = vmatmul.mubr.f32.gmra.mrb[0].mxu0 %v4442
      %v4867 = vpop.f32.mrb[0].mxu0
      %v4868 = vadd.f32 %v4699, %v4867
      %v4869 = vpop.f32.mrb[0].mxu0
      %4870 = vmatprep.mubr.f32.mxu0 %v4452
      %4871 = vmatmul.mubr.f32.gmra.mrb[0].mxu0 %v4451
      %v4872 = vpop.f32.mrb[0].mxu0
      %v4873 = vadd.f32 %v4699, %v4872
      %v4874 = vpop.f32.mrb[0].mxu0
      %4875 = vmatprep.mubr.f32.mxu0 %v4461
      %4876 = vmatmul.mubr.f32.gmra.mrb[0].mxu0 %v4460
      %v4877 = vpop.f32.mrb[0].mxu0
      %v4878 = vadd.f32 %v4699, %v4877
      %v4879 = vpop.f32.mrb[0].mxu0
      %4880 = vmatprep.mubr.f32.mxu0 %v4470
      %4881 = vmatmul.mubr.f32.gmra.mrb[0].mxu0 %v4469
      %v4882 = vpop.f32.mrb[0].mxu0
      %v4883 = vadd.f32 %v4699, %v4882
      %v4884 = vpop.f32.mrb[0].mxu0
      %4885 = vmatprep.mubr.f32.mxu0 %v4479
      %4886 = vmatmul.mubr.f32.gmra.mrb[0].mxu0 %v4478
      %v4887 = vpop.f32.mrb[0].mxu0
      %v4888 = vadd.f32 %v4699, %v4887
      %v4889 = vpop.f32.mrb[0].mxu0
      %4890 = vmatprep.mubr.f32.mxu0 %v4488
      %4891 = vmatmul.mubr.f32.gmra.mrb[0].mxu0 %v4487
      %v4892 = vpop.f32.mrb[0].mxu0
      %v4893 = vadd.f32 %v4699, %v4892
      %v4894 = vpop.f32.mrb[0].mxu0
      %4895 = vmatprep.mubr.f32.mxu0 %v4497
      %4896 = vmatmul.mubr.f32.gmra.mrb[0].mxu0 %v4496
      %v4897 = vpop.f32.mrb[0].mxu0
      %v4898 = vadd.f32 %v4699, %v4897
      %v4899 = vpop.f32.mrb[0].mxu0
      %4900 = vmatprep.mubr.f32.mxu0 %v4506
      %4901 = vmatmul.mubr.f32.gmra.mrb[0].mxu0 %v4505
      %v4902 = vpop.f32.mrb[0].mxu0
      %v4903 = vadd.f32 %v4699, %v4902
      %v4904 = vpop.f32.mrb[0].mxu0
      %4905 = vmatprep.mubr.f32.mxu0 %v4515
      %4906 = vmatmul.mubr.f32.gmra.mrb[0].mxu0 %v4514
      %v4907 = vpop.f32.mrb[0].mxu0
      %v4908 = vadd.f32 %v4699, %v4907
      %v4909 = vpop.f32.mrb[0].mxu0
      %4910 = vmatprep.mubr.f32.mxu0 %v4524
      %4911 = vmatmul.mubr.f32.gmra.mrb[0].mxu0 %v4523
      %v4912 = vpop.f32.mrb[0].mxu0
      %v4913 = vadd.f32 %v4699, %v4912
      %v4914 = vpop.f32.mrb[0].mxu0
      %4915 = vmatprep.mubr.f32.mxu0 %v4533
      %4916 = vmatmul.mubr.f32.gmra.mrb[0].mxu0 %v4532
      %v4917 = vpop.f32.mrb[0].mxu0
      %v4918 = vadd.f32 %v4699, %v4917
      %v4919 = vpop.f32.mrb[0].mxu0
      %4920 = vmatprep.mubr.f32.mxu0 %v4542
      %4921 = vmatmul.mubr.f32.gmra.mrb[0].mxu0 %v4541
      %v4922 = vpop.f32.mrb[0].mxu0
      %v4923 = vadd.f32 %v4699, %v4922
      %v4924 = vpop.f32.mrb[0].mxu0
      %4925 = vdwg.mxu0
      %4926 = vmatprep.subr.mxu0 0.0
      %4927 = vmatpush1.msra.mxu0 %v4582
      %4928 = vmatprep.subr.mxu0 0.0
      %4929 = vmatpush1.msra.mxu0 %v4583
      %4930 = vmatprep.subr.mxu0 0.0
      %4931 = vmatpush1.msra.mxu0 %v4584
      %4932 = vmatprep.subr.mxu0 0.0
      %4933 = vmatpush1.msra.mxu0 %v4585
      %4934 = vmatprep.subr.mxu0 0.0
      %4935 = vmatpush1.msra.mxu0 %v4586
      %4936 = vmatprep.subr.mxu0 0.0
      %4937 = vmatpush1.msra.mxu0 %v4587
      %4938 = vmatprep.subr.mxu0 0.0
      %4939 = vmatpush1.msra.mxu0 %v4588
      %4940 = vmatprep.subr.mxu0 0.0
      %4941 = vmatpush1.msra.mxu0 %v4589
      %4942 = vmatprep.subr.mxu0 0.0
      %4943 = vmatpush1.msra.mxu0 %v4590
      %4944 = vmatprep.subr.mxu0 0.0
      %4945 = vmatpush1.msra.mxu0 %v4591
      %4946 = vmatprep.subr.mxu0 0.0
      %4947 = vmatpush1.msra.mxu0 %v4592
      %4948 = vmatprep.subr.mxu0 0.0
      %4949 = vmatpush1.msra.mxu0 %v4593
      %4950 = vmatprep.subr.mxu0 0.0
      %4951 = vmatpush1.msra.mxu0 %v4594
      %4952 = vmatprep.subr.mxu0 0.0
      %4953 = vmatpush1.msra.mxu0 %v4595
      %4954 = vmatprep.subr.mxu0 0.0
      %4955 = vmatpush1.msra.mxu0 %v4596
      %4956 = vmatprep.subr.mxu0 0.0
      %4957 = vmatpush1.msra.mxu0 %v4597
      %4958 = vmatprep.subr.mxu0 0.0
      %4959 = vmatpush1.msra.mxu0 %v4598
      %4960 = vmatprep.subr.mxu0 0.0
      %4961 = vmatpush1.msra.mxu0 %v4599
      %4962 = vmatprep.subr.mxu0 0.0
      %4963 = vmatpush1.msra.mxu0 %v4600
      %4964 = vmatprep.subr.mxu0 0.0
      %4965 = vmatpush1.msra.mxu0 %v4601
      %4966 = vmatprep.subr.mxu0 0.0
      %4967 = vmatpush1.msra.mxu0 %v4602
      %4968 = vmatprep.subr.mxu0 0.0
      %4969 = vmatpush1.msra.mxu0 %v4603
      %4970 = vmatprep.subr.mxu0 0.0
      %4971 = vmatpush1.msra.mxu0 %v4604
      %4972 = vmatprep.subr.mxu0 0.0
      %4973 = vmatpush1.msra.mxu0 %v4605
      %4974 = vmatprep.subr.mxu0 0.0
      %4975 = vmatpush1.msra.mxu0 %v4606
      %4976 = vmatprep.subr.mxu0 0.0
      %4977 = vmatpush1.msra.mxu0 %v4607
      %4978 = vmatprep.subr.mxu0 0.0
      %4979 = vmatpush1.msra.mxu0 %v4608
      %4980 = vmatprep.subr.mxu0 0.0
      %4981 = vmatpush1.msra.mxu0 %v4609
      %4982 = vmatprep.subr.mxu0 0.0
      %4983 = vmatpush1.msra.mxu0 %v4610
      %4984 = vmatprep.subr.mxu0 0.0
      %4985 = vmatpush1.msra.mxu0 %v4611
      %4986 = vmatprep.subr.mxu0 0.0
      %4987 = vmatpush1.msra.mxu0 %v4612
      %4988 = vmatprep.subr.mxu0 0.0
      %4989 = vmatpush1.msra.mxu0 %v4613
      %4990 = vmatprep.mubr.f32.mxu0 %v4265
      %4991 = vmatmul.mubr.f32.gmra.mrb[0].mxu0 %v4264
      %v4992 = vpop.f32.mrb[0].mxu0
      %v4993 = vadd.f32 %v4768, %v4992
      %v4994 = vpop.f32.mrb[0].mxu0
      %4995 = vmatprep.mubr.f32.mxu0 %v4274
      %4996 = vmatmul.mubr.f32.gmra.mrb[0].mxu0 %v4273
      %v4997 = vpop.f32.mrb[0].mxu0
      %v4998 = vadd.f32 %v4773, %v4997
      %v4999 = vpop.f32.mrb[0].mxu0
      %5000 = vmatprep.mubr.f32.mxu0 %v4283
      %5001 = vmatmul.mubr.f32.gmra.mrb[0].mxu0 %v4282
      %v5002 = vpop.f32.mrb[0].mxu0
      %v5003 = vadd.f32 %v4778, %v5002
      %v5004 = vpop.f32.mrb[0].mxu0
      %5005 = vmatprep.mubr.f32.mxu0 %v4292
      %5006 = vmatmul.mubr.f32.gmra.mrb[0].mxu0 %v4291
      %v5007 = vpop.f32.mrb[0].mxu0
      %v5008 = vadd.f32 %v4783, %v5007
      %v5009 = vpop.f32.mrb[0].mxu0
      %5010 = vmatprep.mubr.f32.mxu0 %v4301
      %5011 = vmatmul.mubr.f32.gmra.mrb[0].mxu0 %v4300
      %v5012 = vpop.f32.mrb[0].mxu0
      %v5013 = vadd.f32 %v4788, %v5012
      %v5014 = vpop.f32.mrb[0].mxu0
      %5015 = vmatprep.mubr.f32.mxu0 %v4310
      %5016 = vmatmul.mubr.f32.gmra.mrb[0].mxu0 %v4309
      %v5017 = vpop.f32.mrb[0].mxu0
      %v5018 = vadd.f32 %v4793, %v5017
      %v5019 = vpop.f32.mrb[0].mxu0
      %5020 = vmatprep.mubr.f32.mxu0 %v4319
      %5021 = vmatmul.mubr.f32.gmra.mrb[0].mxu0 %v4318
      %v5022 = vpop.f32.mrb[0].mxu0
      %v5023 = vadd.f32 %v4798, %v5022
      %v5024 = vpop.f32.mrb[0].mxu0
      %5025 = vmatprep.mubr.f32.mxu0 %v4328
      %5026 = vmatmul.mubr.f32.gmra.mrb[0].mxu0 %v4327
      %v5027 = vpop.f32.mrb[0].mxu0
      %v5028 = vadd.f32 %v4803, %v5027
      %v5029 = vpop.f32.mrb[0].mxu0
      %5030 = vmatprep.mubr.f32.mxu0 %v4337
      %5031 = vmatmul.mubr.f32.gmra.mrb[0].mxu0 %v4336
      %v5032 = vpop.f32.mrb[0].mxu0
      %v5033 = vadd.f32 %v4808, %v5032
      %v5034 = vpop.f32.mrb[0].mxu0
      %5035 = vmatprep.mubr.f32.mxu0 %v4346
      %5036 = vmatmul.mubr.f32.gmra.mrb[0].mxu0 %v4345
      %v5037 = vpop.f32.mrb[0].mxu0
      %v5038 = vadd.f32 %v4813, %v5037
      %v5039 = vpop.f32.mrb[0].mxu0
      %5040 = vmatprep.mubr.f32.mxu0 %v4355
      %5041 = vmatmul.mubr.f32.gmra.mrb[0].mxu0 %v4354
      %v5042 = vpop.f32.mrb[0].mxu0
      %v5043 = vadd.f32 %v4818, %v5042
      %v5044 = vpop.f32.mrb[0].mxu0
      %5045 = vmatprep.mubr.f32.mxu0 %v4364
      %5046 = vmatmul.mubr.f32.gmra.mrb[0].mxu0 %v4363
      %v5047 = vpop.f32.mrb[0].mxu0
      %v5048 = vadd.f32 %v4823, %v5047
      %v5049 = vpop.f32.mrb[0].mxu0
      %5050 = vmatprep.mubr.f32.mxu0 %v4373
      %5051 = vmatmul.mubr.f32.gmra.mrb[0].mxu0 %v4372
      %v5052 = vpop.f32.mrb[0].mxu0
      %v5053 = vadd.f32 %v4828, %v5052
      %v5054 = vpop.f32.mrb[0].mxu0
      %5055 = vmatprep.mubr.f32.mxu0 %v4382
      %5056 = vmatmul.mubr.f32.gmra.mrb[0].mxu0 %v4381
      %v5057 = vpop.f32.mrb[0].mxu0
      %v5058 = vadd.f32 %v4833, %v5057
      %v5059 = vpop.f32.mrb[0].mxu0
      %5060 = vmatprep.mubr.f32.mxu0 %v4391
      %5061 = vmatmul.mubr.f32.gmra.mrb[0].mxu0 %v4390
      %v5062 = vpop.f32.mrb[0].mxu0
      %v5063 = vadd.f32 %v4838, %v5062
      %v5064 = vpop.f32.mrb[0].mxu0
      %5065 = vmatprep.mubr.f32.mxu0 %v4400
      %5066 = vmatmul.mubr.f32.gmra.mrb[0].mxu0 %v4399
      %v5067 = vpop.f32.mrb[0].mxu0
      %v5068 = vadd.f32 %v4843, %v5067
      %v5069 = vpop.f32.mrb[0].mxu0
      %5070 = vmatprep.mubr.f32.mxu0 %v4409
      %5071 = vmatmul.mubr.f32.gmra.mrb[0].mxu0 %v4408
      %v5072 = vpop.f32.mrb[0].mxu0
      %v5073 = vadd.f32 %v4848, %v5072
      %v5074 = vpop.f32.mrb[0].mxu0
      %5075 = vmatprep.mubr.f32.mxu0 %v4418
      %5076 = vmatmul.mubr.f32.gmra.mrb[0].mxu0 %v4417
      %v5077 = vpop.f32.mrb[0].mxu0
      %v5078 = vadd.f32 %v4853, %v5077
      %v5079 = vpop.f32.mrb[0].mxu0
      %5080 = vmatprep.mubr.f32.mxu0 %v4427
      %5081 = vmatmul.mubr.f32.gmra.mrb[0].mxu0 %v4426
      %v5082 = vpop.f32.mrb[0].mxu0
      %v5083 = vadd.f32 %v4858, %v5082
      %v5084 = vpop.f32.mrb[0].mxu0
      %5085 = vmatprep.mubr.f32.mxu0 %v4436
      %5086 = vmatmul.mubr.f32.gmra.mrb[0].mxu0 %v4435
      %v5087 = vpop.f32.mrb[0].mxu0
      %v5088 = vadd.f32 %v4863, %v5087
      %v5089 = vpop.f32.mrb[0].mxu0
      %5090 = vmatprep.mubr.f32.mxu0 %v4445
      %5091 = vmatmul.mubr.f32.gmra.mrb[0].mxu0 %v4444
      %v5092 = vpop.f32.mrb[0].mxu0
      %v5093 = vadd.f32 %v4868, %v5092
      %v5094 = vpop.f32.mrb[0].mxu0
      %5095 = vmatprep.mubr.f32.mxu0 %v4454
      %5096 = vmatmul.mubr.f32.gmra.mrb[0].mxu0 %v4453
      %v5097 = vpop.f32.mrb[0].mxu0
      %v5098 = vadd.f32 %v4873, %v5097
      %v5099 = vpop.f32.mrb[0].mxu0
      %5100 = vmatprep.mubr.f32.mxu0 %v4463
      %5101 = vmatmul.mubr.f32.gmra.mrb[0].mxu0 %v4462
      %v5102 = vpop.f32.mrb[0].mxu0
      %v5103 = vadd.f32 %v4878, %v5102
      %v5104 = vpop.f32.mrb[0].mxu0
      %5105 = vmatprep.mubr.f32.mxu0 %v4472
      %5106 = vmatmul.mubr.f32.gmra.mrb[0].mxu0 %v4471
      %v5107 = vpop.f32.mrb[0].mxu0
      %v5108 = vadd.f32 %v4883, %v5107
      %v5109 = vpop.f32.mrb[0].mxu0
      %5110 = vmatprep.mubr.f32.mxu0 %v4481
      %5111 = vmatmul.mubr.f32.gmra.mrb[0].mxu0 %v4480
      %v5112 = vpop.f32.mrb[0].mxu0
      %v5113 = vadd.f32 %v4888, %v5112
      %v5114 = vpop.f32.mrb[0].mxu0
      %5115 = vmatprep.mubr.f32.mxu0 %v4490
      %5116 = vmatmul.mubr.f32.gmra.mrb[0].mxu0 %v4489
      %v5117 = vpop.f32.mrb[0].mxu0
      %v5118 = vadd.f32 %v4893, %v5117
      %v5119 = vpop.f32.mrb[0].mxu0
      %5120 = vmatprep.mubr.f32.mxu0 %v4499
      %5121 = vmatmul.mubr.f32.gmra.mrb[0].mxu0 %v4498
      %v5122 = vpop.f32.mrb[0].mxu0
      %v5123 = vadd.f32 %v4898, %v5122
      %v5124 = vpop.f32.mrb[0].mxu0
      %5125 = vmatprep.mubr.f32.mxu0 %v4508
      %5126 = vmatmul.mubr.f32.gmra.mrb[0].mxu0 %v4507
      %v5127 = vpop.f32.mrb[0].mxu0
      %v5128 = vadd.f32 %v4903, %v5127
      %v5129 = vpop.f32.mrb[0].mxu0
      %5130 = vmatprep.mubr.f32.mxu0 %v4517
      %5131 = vmatmul.mubr.f32.gmra.mrb[0].mxu0 %v4516
      %v5132 = vpop.f32.mrb[0].mxu0
      %v5133 = vadd.f32 %v4908, %v5132
      %v5134 = vpop.f32.mrb[0].mxu0
      %5135 = vmatprep.mubr.f32.mxu0 %v4526
      %5136 = vmatmul.mubr.f32.gmra.mrb[0].mxu0 %v4525
      %v5137 = vpop.f32.mrb[0].mxu0
      %v5138 = vadd.f32 %v4913, %v5137
      %v5139 = vpop.f32.mrb[0].mxu0
      %5140 = vmatprep.mubr.f32.mxu0 %v4535
      %5141 = vmatmul.mubr.f32.gmra.mrb[0].mxu0 %v4534
      %v5142 = vpop.f32.mrb[0].mxu0
      %v5143 = vadd.f32 %v4918, %v5142
      %v5144 = vpop.f32.mrb[0].mxu0
      %5145 = vmatprep.mubr.f32.mxu0 %v4544
      %5146 = vmatmul.mubr.f32.gmra.mrb[0].mxu0 %v4543
      %v5147 = vpop.f32.mrb[0].mxu0
      %v5148 = vadd.f32 %v4923, %v5147
      %v5149 = vpop.f32.mrb[0].mxu0
      %5150 = vdwg.mxu0
      %5151 = vmatprep.subr.mxu0 0.0
      %5152 = vmatpush1.msra.mxu0 %v4614
      %5153 = vmatprep.subr.mxu0 0.0
      %5154 = vmatpush1.msra.mxu0 %v4615
      %5155 = vmatprep.subr.mxu0 0.0
      %5156 = vmatpush1.msra.mxu0 %v4616
      %5157 = vmatprep.subr.mxu0 0.0
      %5158 = vmatpush1.msra.mxu0 %v4617
      %5159 = vmatprep.subr.mxu0 0.0
      %5160 = vmatpush1.msra.mxu0 %v4618
      %5161 = vmatprep.subr.mxu0 0.0
      %5162 = vmatpush1.msra.mxu0 %v4619
      %5163 = vmatprep.subr.mxu0 0.0
      %5164 = vmatpush1.msra.mxu0 %v4620
      %5165 = vmatprep.subr.mxu0 0.0
      %5166 = vmatpush1.msra.mxu0 %v4621
      %5167 = vmatprep.subr.mxu0 0.0
      %5168 = vmatpush1.msra.mxu0 %v4622
      %5169 = vmatprep.subr.mxu0 0.0
      %5170 = vmatpush1.msra.mxu0 %v4623
      %5171 = vmatprep.subr.mxu0 0.0
      %5172 = vmatpush1.msra.mxu0 %v4624
      %5173 = vmatprep.subr.mxu0 0.0
      %5174 = vmatpush1.msra.mxu0 %v4625
      %5175 = vmatprep.subr.mxu0 0.0
      %5176 = vmatpush1.msra.mxu0 %v4626
      %5177 = vmatprep.subr.mxu0 0.0
      %5178 = vmatpush1.msra.mxu0 %v4627
      %5179 = vmatprep.subr.mxu0 0.0
      %5180 = vmatpush1.msra.mxu0 %v4628
      %5181 = vmatprep.subr.mxu0 0.0
      %5182 = vmatpush1.msra.mxu0 %v4629
      %5183 = vmatprep.subr.mxu0 0.0
      %5184 = vmatpush1.msra.mxu0 %v4630
      %5185 = vmatprep.subr.mxu0 0.0
      %5186 = vmatpush1.msra.mxu0 %v4631
      %5187 = vmatprep.subr.mxu0 0.0
      %5188 = vmatpush1.msra.mxu0 %v4632
      %5189 = vmatprep.subr.mxu0 0.0
      %5190 = vmatpush1.msra.mxu0 %v4633
      %5191 = vmatprep.subr.mxu0 0.0
      %5192 = vmatpush1.msra.mxu0 %v4634
      %5193 = vmatprep.subr.mxu0 0.0
      %5194 = vmatpush1.msra.mxu0 %v4635
      %5195 = vmatprep.subr.mxu0 0.0
      %5196 = vmatpush1.msra.mxu0 %v4636
      %5197 = vmatprep.subr.mxu0 0.0
      %5198 = vmatpush1.msra.mxu0 %v4637
      %5199 = vmatprep.subr.mxu0 0.0
      %5200 = vmatpush1.msra.mxu0 %v4638
      %5201 = vmatprep.subr.mxu0 0.0
      %5202 = vmatpush1.msra.mxu0 %v4639
      %5203 = vmatprep.subr.mxu0 0.0
      %5204 = vmatpush1.msra.mxu0 %v4640
      %5205 = vmatprep.subr.mxu0 0.0
      %5206 = vmatpush1.msra.mxu0 %v4641
      %5207 = vmatprep.subr.mxu0 0.0
      %5208 = vmatpush1.msra.mxu0 %v4642
      %5209 = vmatprep.subr.mxu0 0.0
      %5210 = vmatpush1.msra.mxu0 %v4643
      %5211 = vmatprep.subr.mxu0 0.0
      %5212 = vmatpush1.msra.mxu0 %v4644
      %5213 = vmatprep.subr.mxu0 0.0
      %5214 = vmatpush1.msra.mxu0 %v4645
      %5215 = vmatprep.mubr.f32.mxu0 %v4267
      %5216 = vmatmul.mubr.f32.gmra.mrb[0].mxu0 %v4266
      %v5217 = vpop.f32.mrb[0].mxu0
      %v5218 = vadd.f32 %v4993, %v5217
      %v5219 = vpop.f32.mrb[0].mxu0
      %5220 = vmatprep.mubr.f32.mxu0 %v4276
      %5221 = vmatmul.mubr.f32.gmra.mrb[0].mxu0 %v4275
      %v5222 = vpop.f32.mrb[0].mxu0
      %v5223 = vadd.f32 %v4998, %v5222
      %v5224 = vpop.f32.mrb[0].mxu0
      %5225 = vmatprep.mubr.f32.mxu0 %v4285
      %5226 = vmatmul.mubr.f32.gmra.mrb[0].mxu0 %v4284
      %v5227 = vpop.f32.mrb[0].mxu0
      %v5228 = vadd.f32 %v5003, %v5227
      %v5229 = vpop.f32.mrb[0].mxu0
      %5230 = vmatprep.mubr.f32.mxu0 %v4294
      %5231 = vmatmul.mubr.f32.gmra.mrb[0].mxu0 %v4293
      %v5232 = vpop.f32.mrb[0].mxu0
      %v5233 = vadd.f32 %v5008, %v5232
      %v5234 = vpop.f32.mrb[0].mxu0
      %5235 = vmatprep.mubr.f32.mxu0 %v4303
      %5236 = vmatmul.mubr.f32.gmra.mrb[0].mxu0 %v4302
      %v5237 = vpop.f32.mrb[0].mxu0
      %v5238 = vadd.f32 %v5013, %v5237
      %v5239 = vpop.f32.mrb[0].mxu0
      %5240 = vmatprep.mubr.f32.mxu0 %v4312
      %5241 = vmatmul.mubr.f32.gmra.mrb[0].mxu0 %v4311
      %v5242 = vpop.f32.mrb[0].mxu0
      %v5243 = vadd.f32 %v5018, %v5242
      %v5244 = vpop.f32.mrb[0].mxu0
      %5245 = vmatprep.mubr.f32.mxu0 %v4321
      %5246 = vmatmul.mubr.f32.gmra.mrb[0].mxu0 %v4320
      %v5247 = vpop.f32.mrb[0].mxu0
      %v5248 = vadd.f32 %v5023, %v5247
      %v5249 = vpop.f32.mrb[0].mxu0
      %5250 = vmatprep.mubr.f32.mxu0 %v4330
      %5251 = vmatmul.mubr.f32.gmra.mrb[0].mxu0 %v4329
      %v5252 = vpop.f32.mrb[0].mxu0
      %v5253 = vadd.f32 %v5028, %v5252
      %v5254 = vpop.f32.mrb[0].mxu0
      %5255 = vmatprep.mubr.f32.mxu0 %v4339
      %5256 = vmatmul.mubr.f32.gmra.mrb[0].mxu0 %v4338
      %v5257 = vpop.f32.mrb[0].mxu0
      %v5258 = vadd.f32 %v5033, %v5257
      %v5259 = vpop.f32.mrb[0].mxu0
      %5260 = vmatprep.mubr.f32.mxu0 %v4348
      %5261 = vmatmul.mubr.f32.gmra.mrb[0].mxu0 %v4347
      %v5262 = vpop.f32.mrb[0].mxu0
      %v5263 = vadd.f32 %v5038, %v5262
      %v5264 = vpop.f32.mrb[0].mxu0
      %5265 = vmatprep.mubr.f32.mxu0 %v4357
      %5266 = vmatmul.mubr.f32.gmra.mrb[0].mxu0 %v4356
      %v5267 = vpop.f32.mrb[0].mxu0
      %v5268 = vadd.f32 %v5043, %v5267
      %v5269 = vpop.f32.mrb[0].mxu0
      %5270 = vmatprep.mubr.f32.mxu0 %v4366
      %5271 = vmatmul.mubr.f32.gmra.mrb[0].mxu0 %v4365
      %v5272 = vpop.f32.mrb[0].mxu0
      %v5273 = vadd.f32 %v5048, %v5272
      %v5274 = vpop.f32.mrb[0].mxu0
      %5275 = vmatprep.mubr.f32.mxu0 %v4375
      %5276 = vmatmul.mubr.f32.gmra.mrb[0].mxu0 %v4374
      %v5277 = vpop.f32.mrb[0].mxu0
      %v5278 = vadd.f32 %v5053, %v5277
      %v5279 = vpop.f32.mrb[0].mxu0
      %5280 = vmatprep.mubr.f32.mxu0 %v4384
      %5281 = vmatmul.mubr.f32.gmra.mrb[0].mxu0 %v4383
      %v5282 = vpop.f32.mrb[0].mxu0
      %v5283 = vadd.f32 %v5058, %v5282
      %v5284 = vpop.f32.mrb[0].mxu0
      %5285 = vmatprep.mubr.f32.mxu0 %v4393
      %5286 = vmatmul.mubr.f32.gmra.mrb[0].mxu0 %v4392
      %v5287 = vpop.f32.mrb[0].mxu0
      %v5288 = vadd.f32 %v5063, %v5287
      %v5289 = vpop.f32.mrb[0].mxu0
      %5290 = vmatprep.mubr.f32.mxu0 %v4402
      %5291 = vmatmul.mubr.f32.gmra.mrb[0].mxu0 %v4401
      %v5292 = vpop.f32.mrb[0].mxu0
      %v5293 = vadd.f32 %v5068, %v5292
      %v5294 = vpop.f32.mrb[0].mxu0
      %5295 = vmatprep.mubr.f32.mxu0 %v4411
      %5296 = vmatmul.mubr.f32.gmra.mrb[0].mxu0 %v4410
      %v5297 = vpop.f32.mrb[0].mxu0
      %v5298 = vadd.f32 %v5073, %v5297
      %v5299 = vpop.f32.mrb[0].mxu0
      %5300 = vmatprep.mubr.f32.mxu0 %v4420
      %5301 = vmatmul.mubr.f32.gmra.mrb[0].mxu0 %v4419
      %v5302 = vpop.f32.mrb[0].mxu0
      %v5303 = vadd.f32 %v5078, %v5302
      %v5304 = vpop.f32.mrb[0].mxu0
      %5305 = vmatprep.mubr.f32.mxu0 %v4429
      %5306 = vmatmul.mubr.f32.gmra.mrb[0].mxu0 %v4428
      %v5307 = vpop.f32.mrb[0].mxu0
      %v5308 = vadd.f32 %v5083, %v5307
      %v5309 = vpop.f32.mrb[0].mxu0
      %5310 = vmatprep.mubr.f32.mxu0 %v4438
      %5311 = vmatmul.mubr.f32.gmra.mrb[0].mxu0 %v4437
      %v5312 = vpop.f32.mrb[0].mxu0
      %v5313 = vadd.f32 %v5088, %v5312
      %v5314 = vpop.f32.mrb[0].mxu0
      %5315 = vmatprep.mubr.f32.mxu0 %v4447
      %5316 = vmatmul.mubr.f32.gmra.mrb[0].mxu0 %v4446
      %v5317 = vpop.f32.mrb[0].mxu0
      %v5318 = vadd.f32 %v5093, %v5317
      %v5319 = vpop.f32.mrb[0].mxu0
      %5320 = vmatprep.mubr.f32.mxu0 %v4456
      %5321 = vmatmul.mubr.f32.gmra.mrb[0].mxu0 %v4455
      %v5322 = vpop.f32.mrb[0].mxu0
      %v5323 = vadd.f32 %v5098, %v5322
      %v5324 = vpop.f32.mrb[0].mxu0
      %5325 = vmatprep.mubr.f32.mxu0 %v4465
      %5326 = vmatmul.mubr.f32.gmra.mrb[0].mxu0 %v4464
      %v5327 = vpop.f32.mrb[0].mxu0
      %v5328 = vadd.f32 %v5103, %v5327
      %v5329 = vpop.f32.mrb[0].mxu0
      %5330 = vmatprep.mubr.f32.mxu0 %v4474
      %5331 = vmatmul.mubr.f32.gmra.mrb[0].mxu0 %v4473
      %v5332 = vpop.f32.mrb[0].mxu0
      %v5333 = vadd.f32 %v5108, %v5332
      %v5334 = vpop.f32.mrb[0].mxu0
      %5335 = vmatprep.mubr.f32.mxu0 %v4483
      %5336 = vmatmul.mubr.f32.gmra.mrb[0].mxu0 %v4482
      %v5337 = vpop.f32.mrb[0].mxu0
      %v5338 = vadd.f32 %v5113, %v5337
      %v5339 = vpop.f32.mrb[0].mxu0
      %5340 = vmatprep.mubr.f32.mxu0 %v4492
      %5341 = vmatmul.mubr.f32.gmra.mrb[0].mxu0 %v4491
      %v5342 = vpop.f32.mrb[0].mxu0
      %v5343 = vadd.f32 %v5118, %v5342
      %v5344 = vpop.f32.mrb[0].mxu0
      %5345 = vmatprep.mubr.f32.mxu0 %v4501
      %5346 = vmatmul.mubr.f32.gmra.mrb[0].mxu0 %v4500
      %v5347 = vpop.f32.mrb[0].mxu0
      %v5348 = vadd.f32 %v5123, %v5347
      %v5349 = vpop.f32.mrb[0].mxu0
      %5350 = vmatprep.mubr.f32.mxu0 %v4510
      %5351 = vmatmul.mubr.f32.gmra.mrb[0].mxu0 %v4509
      %v5352 = vpop.f32.mrb[0].mxu0
      %v5353 = vadd.f32 %v5128, %v5352
      %v5354 = vpop.f32.mrb[0].mxu0
      %5355 = vmatprep.mubr.f32.mxu0 %v4519
      %5356 = vmatmul.mubr.f32.gmra.mrb[0].mxu0 %v4518
      %v5357 = vpop.f32.mrb[0].mxu0
      %v5358 = vadd.f32 %v5133, %v5357
      %v5359 = vpop.f32.mrb[0].mxu0
      %5360 = vmatprep.mubr.f32.mxu0 %v4528
      %5361 = vmatmul.mubr.f32.gmra.mrb[0].mxu0 %v4527
      %v5362 = vpop.f32.mrb[0].mxu0
      %v5363 = vadd.f32 %v5138, %v5362
      %v5364 = vpop.f32.mrb[0].mxu0
      %5365 = vmatprep.mubr.f32.mxu0 %v4537
      %5366 = vmatmul.mubr.f32.gmra.mrb[0].mxu0 %v4536
      %v5367 = vpop.f32.mrb[0].mxu0
      %v5368 = vadd.f32 %v5143, %v5367
      %v5369 = vpop.f32.mrb[0].mxu0
      %5370 = vmatprep.mubr.f32.mxu0 %v4546
      %5371 = vmatmul.mubr.f32.gmra.mrb[0].mxu0 %v4545
      %v5372 = vpop.f32.mrb[0].mxu0
      %v5373 = vadd.f32 %v5148, %v5372
      %v5374 = vpop.f32.mrb[0].mxu0
      %5375 = vdwg.mxu0
      %5376 = vmatprep.subr.mxu0 0.0
      %5377 = vmatpush1.msra.mxu0 %v4646
      %5378 = vmatprep.subr.mxu0 0.0
      %5379 = vmatpush1.msra.mxu0 %v4647
      %5380 = vmatprep.subr.mxu0 0.0
      %5381 = vmatpush1.msra.mxu0 %v4648
      %5382 = vmatprep.subr.mxu0 0.0
      %5383 = vmatpush1.msra.mxu0 %v4649
      %5384 = vmatprep.subr.mxu0 0.0
      %5385 = vmatpush1.msra.mxu0 %v4650
      %5386 = vmatprep.subr.mxu0 0.0
      %5387 = vmatpush1.msra.mxu0 %v4651
      %5388 = vmatprep.subr.mxu0 0.0
      %5389 = vmatpush1.msra.mxu0 %v4652
      %5390 = vmatprep.subr.mxu0 0.0
      %5391 = vmatpush1.msra.mxu0 %v4653
      %5392 = vmatprep.subr.mxu0 0.0
      %5393 = vmatpush1.msra.mxu0 %v4654
      %5394 = vmatprep.subr.mxu0 0.0
      %5395 = vmatpush1.msra.mxu0 %v4655
      %5396 = vmatprep.subr.mxu0 0.0
      %5397 = vmatpush1.msra.mxu0 %v4656
      %5398 = vmatprep.subr.mxu0 0.0
      %5399 = vmatpush1.msra.mxu0 %v4657
      %5400 = vmatprep.subr.mxu0 0.0
      %5401 = vmatpush1.msra.mxu0 %v4658
      %5402 = vmatprep.subr.mxu0 0.0
      %5403 = vmatpush1.msra.mxu0 %v4659
      %5404 = vmatprep.subr.mxu0 0.0
      %5405 = vmatpush1.msra.mxu0 %v4660
      %5406 = vmatprep.subr.mxu0 0.0
      %5407 = vmatpush1.msra.mxu0 %v4661
      %5408 = vmatprep.subr.mxu0 0.0
      %5409 = vmatpush1.msra.mxu0 %v4662
      %5410 = vmatprep.subr.mxu0 0.0
      %5411 = vmatpush1.msra.mxu0 %v4663
      %5412 = vmatprep.subr.mxu0 0.0
      %5413 = vmatpush1.msra.mxu0 %v4664
      %5414 = vmatprep.subr.mxu0 0.0
      %5415 = vmatpush1.msra.mxu0 %v4665
      %5416 = vmatprep.subr.mxu0 0.0
      %5417 = vmatpush1.msra.mxu0 %v4666
      %5418 = vmatprep.subr.mxu0 0.0
      %5419 = vmatpush1.msra.mxu0 %v4667
      %5420 = vmatprep.subr.mxu0 0.0
      %5421 = vmatpush1.msra.mxu0 %v4668
      %5422 = vmatprep.subr.mxu0 0.0
      %5423 = vmatpush1.msra.mxu0 %v4669
      %5424 = vmatprep.subr.mxu0 0.0
      %5425 = vmatpush1.msra.mxu0 %v4670
      %5426 = vmatprep.subr.mxu0 0.0
      %5427 = vmatpush1.msra.mxu0 %v4671
      %5428 = vmatprep.subr.mxu0 0.0
      %5429 = vmatpush1.msra.mxu0 %v4672
      %5430 = vmatprep.subr.mxu0 0.0
      %5431 = vmatpush1.msra.mxu0 %v4673
      %5432 = vmatprep.subr.mxu0 0.0
      %5433 = vmatpush1.msra.mxu0 %v4674
      %5434 = vmatprep.subr.mxu0 0.0
      %5435 = vmatpush1.msra.mxu0 %v4675
      %5436 = vmatprep.subr.mxu0 0.0
      %5437 = vmatpush1.msra.mxu0 %v4676
      %5438 = vmatprep.subr.mxu0 0.0
      %5439 = vmatpush1.msra.mxu0 %v4677
      %5440 = vmatprep.mubr.f32.mxu0 %v4269
      %5441 = vmatmul.mubr.f32.gmra.mrb[0].mxu0 %v4268
      %v5442 = vpop.f32.mrb[0].mxu0
      %v5443 = vadd.f32 %v5218, %v5442
      %v5444 = vpop.f32.mrb[0].mxu0
      %5445 = vmatprep.mubr.f32.mxu0 %v4278
      %5446 = vmatmul.mubr.f32.gmra.mrb[0].mxu0 %v4277
      %v5447 = vpop.f32.mrb[0].mxu0
      %v5448 = vadd.f32 %v5223, %v5447
      %v5449 = vpop.f32.mrb[0].mxu0
      %5450 = vmatprep.mubr.f32.mxu0 %v4287
      %5451 = vmatmul.mubr.f32.gmra.mrb[0].mxu0 %v4286
      %v5452 = vpop.f32.mrb[0].mxu0
      %v5453 = vadd.f32 %v5228, %v5452
      %v5454 = vpop.f32.mrb[0].mxu0
      %5455 = vmatprep.mubr.f32.mxu0 %v4296
      %5456 = vmatmul.mubr.f32.gmra.mrb[0].mxu0 %v4295
      %v5457 = vpop.f32.mrb[0].mxu0
      %v5458 = vadd.f32 %v5233, %v5457
      %v5459 = vpop.f32.mrb[0].mxu0
      %5460 = vmatprep.mubr.f32.mxu0 %v4305
      %5461 = vmatmul.mubr.f32.gmra.mrb[0].mxu0 %v4304
      %v5462 = vpop.f32.mrb[0].mxu0
      %v5463 = vadd.f32 %v5238, %v5462
      %v5464 = vpop.f32.mrb[0].mxu0
      %5465 = vmatprep.mubr.f32.mxu0 %v4314
      %5466 = vmatmul.mubr.f32.gmra.mrb[0].mxu0 %v4313
      %v5467 = vpop.f32.mrb[0].mxu0
      %v5468 = vadd.f32 %v5243, %v5467
      %v5469 = vpop.f32.mrb[0].mxu0
      %5470 = vmatprep.mubr.f32.mxu0 %v4323
      %5471 = vmatmul.mubr.f32.gmra.mrb[0].mxu0 %v4322
      %v5472 = vpop.f32.mrb[0].mxu0
      %v5473 = vadd.f32 %v5248, %v5472
      %v5474 = vpop.f32.mrb[0].mxu0
      %5475 = vmatprep.mubr.f32.mxu0 %v4332
      %5476 = vmatmul.mubr.f32.gmra.mrb[0].mxu0 %v4331
      %v5477 = vpop.f32.mrb[0].mxu0
      %v5478 = vadd.f32 %v5253, %v5477
      %v5479 = vpop.f32.mrb[0].mxu0
      %5480 = vmatprep.mubr.f32.mxu0 %v4341
      %5481 = vmatmul.mubr.f32.gmra.mrb[0].mxu0 %v4340
      %v5482 = vpop.f32.mrb[0].mxu0
      %v5483 = vadd.f32 %v5258, %v5482
      %v5484 = vpop.f32.mrb[0].mxu0
      %5485 = vmatprep.mubr.f32.mxu0 %v4350
      %5486 = vmatmul.mubr.f32.gmra.mrb[0].mxu0 %v4349
      %v5487 = vpop.f32.mrb[0].mxu0
      %v5488 = vadd.f32 %v5263, %v5487
      %v5489 = vpop.f32.mrb[0].mxu0
      %5490 = vmatprep.mubr.f32.mxu0 %v4359
      %5491 = vmatmul.mubr.f32.gmra.mrb[0].mxu0 %v4358
      %v5492 = vpop.f32.mrb[0].mxu0
      %v5493 = vadd.f32 %v5268, %v5492
      %v5494 = vpop.f32.mrb[0].mxu0
      %5495 = vmatprep.mubr.f32.mxu0 %v4368
      %5496 = vmatmul.mubr.f32.gmra.mrb[0].mxu0 %v4367
      %v5497 = vpop.f32.mrb[0].mxu0
      %v5498 = vadd.f32 %v5273, %v5497
      %v5499 = vpop.f32.mrb[0].mxu0
      %5500 = vmatprep.mubr.f32.mxu0 %v4377
      %5501 = vmatmul.mubr.f32.gmra.mrb[0].mxu0 %v4376
      %v5502 = vpop.f32.mrb[0].mxu0
      %v5503 = vadd.f32 %v5278, %v5502
      %v5504 = vpop.f32.mrb[0].mxu0
      %5505 = vmatprep.mubr.f32.mxu0 %v4386
      %5506 = vmatmul.mubr.f32.gmra.mrb[0].mxu0 %v4385
      %v5507 = vpop.f32.mrb[0].mxu0
      %v5508 = vadd.f32 %v5283, %v5507
      %v5509 = vpop.f32.mrb[0].mxu0
      %5510 = vmatprep.mubr.f32.mxu0 %v4395
      %5511 = vmatmul.mubr.f32.gmra.mrb[0].mxu0 %v4394
      %v5512 = vpop.f32.mrb[0].mxu0
      %v5513 = vadd.f32 %v5288, %v5512
      %v5514 = vpop.f32.mrb[0].mxu0
      %5515 = vmatprep.mubr.f32.mxu0 %v4404
      %5516 = vmatmul.mubr.f32.gmra.mrb[0].mxu0 %v4403
      %v5517 = vpop.f32.mrb[0].mxu0
      %v5518 = vadd.f32 %v5293, %v5517
      %v5519 = vpop.f32.mrb[0].mxu0
      %5520 = vmatprep.mubr.f32.mxu0 %v4413
      %5521 = vmatmul.mubr.f32.gmra.mrb[0].mxu0 %v4412
      %v5522 = vpop.f32.mrb[0].mxu0
      %v5523 = vadd.f32 %v5298, %v5522
      %v5524 = vpop.f32.mrb[0].mxu0
      %5525 = vmatprep.mubr.f32.mxu0 %v4422
      %5526 = vmatmul.mubr.f32.gmra.mrb[0].mxu0 %v4421
      %v5527 = vpop.f32.mrb[0].mxu0
      %v5528 = vadd.f32 %v5303, %v5527
      %v5529 = vpop.f32.mrb[0].mxu0
      %5530 = vmatprep.mubr.f32.mxu0 %v4431
      %5531 = vmatmul.mubr.f32.gmra.mrb[0].mxu0 %v4430
      %v5532 = vpop.f32.mrb[0].mxu0
      %v5533 = vadd.f32 %v5308, %v5532
      %v5534 = vpop.f32.mrb[0].mxu0
      %5535 = vmatprep.mubr.f32.mxu0 %v4440
      %5536 = vmatmul.mubr.f32.gmra.mrb[0].mxu0 %v4439
      %v5537 = vpop.f32.mrb[0].mxu0
      %v5538 = vadd.f32 %v5313, %v5537
      %v5539 = vpop.f32.mrb[0].mxu0
      %5540 = vmatprep.mubr.f32.mxu0 %v4449
      %5541 = vmatmul.mubr.f32.gmra.mrb[0].mxu0 %v4448
      %v5542 = vpop.f32.mrb[0].mxu0
      %v5543 = vadd.f32 %v5318, %v5542
      %v5544 = vpop.f32.mrb[0].mxu0
      %5545 = vmatprep.mubr.f32.mxu0 %v4458
      %5546 = vmatmul.mubr.f32.gmra.mrb[0].mxu0 %v4457
      %v5547 = vpop.f32.mrb[0].mxu0
      %v5548 = vadd.f32 %v5323, %v5547
      %v5549 = vpop.f32.mrb[0].mxu0
      %5550 = vmatprep.mubr.f32.mxu0 %v4467
      %5551 = vmatmul.mubr.f32.gmra.mrb[0].mxu0 %v4466
      %v5552 = vpop.f32.mrb[0].mxu0
      %v5553 = vadd.f32 %v5328, %v5552
      %v5554 = vpop.f32.mrb[0].mxu0
      %5555 = vmatprep.mubr.f32.mxu0 %v4476
      %5556 = vmatmul.mubr.f32.gmra.mrb[0].mxu0 %v4475
      %v5557 = vpop.f32.mrb[0].mxu0
      %v5558 = vadd.f32 %v5333, %v5557
      %v5559 = vpop.f32.mrb[0].mxu0
      %5560 = vmatprep.mubr.f32.mxu0 %v4485
      %5561 = vmatmul.mubr.f32.gmra.mrb[0].mxu0 %v4484
      %v5562 = vpop.f32.mrb[0].mxu0
      %v5563 = vadd.f32 %v5338, %v5562
      %v5564 = vpop.f32.mrb[0].mxu0
      %5565 = vmatprep.mubr.f32.mxu0 %v4494
      %5566 = vmatmul.mubr.f32.gmra.mrb[0].mxu0 %v4493
      %v5567 = vpop.f32.mrb[0].mxu0
      %v5568 = vadd.f32 %v5343, %v5567
      %v5569 = vpop.f32.mrb[0].mxu0
      %5570 = vmatprep.mubr.f32.mxu0 %v4503
      %5571 = vmatmul.mubr.f32.gmra.mrb[0].mxu0 %v4502
      %v5572 = vpop.f32.mrb[0].mxu0
      %v5573 = vadd.f32 %v5348, %v5572
      %v5574 = vpop.f32.mrb[0].mxu0
      %5575 = vmatprep.mubr.f32.mxu0 %v4512
      %5576 = vmatmul.mubr.f32.gmra.mrb[0].mxu0 %v4511
      %v5577 = vpop.f32.mrb[0].mxu0
      %v5578 = vadd.f32 %v5353, %v5577
      %v5579 = vpop.f32.mrb[0].mxu0
      %5580 = vmatprep.mubr.f32.mxu0 %v4521
      %5581 = vmatmul.mubr.f32.gmra.mrb[0].mxu0 %v4520
      %v5582 = vpop.f32.mrb[0].mxu0
      %v5583 = vadd.f32 %v5358, %v5582
      %v5584 = vpop.f32.mrb[0].mxu0
      %5585 = vmatprep.mubr.f32.mxu0 %v4530
      %5586 = vmatmul.mubr.f32.gmra.mrb[0].mxu0 %v4529
      %v5587 = vpop.f32.mrb[0].mxu0
      %v5588 = vadd.f32 %v5363, %v5587
      %v5589 = vpop.f32.mrb[0].mxu0
      %5590 = vmatprep.mubr.f32.mxu0 %v4539
      %5591 = vmatmul.mubr.f32.gmra.mrb[0].mxu0 %v4538
      %v5592 = vpop.f32.mrb[0].mxu0
      %v5593 = vadd.f32 %v5368, %v5592
      %v5594 = vpop.f32.mrb[0].mxu0
      %5595 = vmatprep.mubr.f32.mxu0 %v4548
      %5596 = vmatmul.mubr.f32.gmra.mrb[0].mxu0 %v4547
      %v5597 = vpop.f32.mrb[0].mxu0
      %v5598 = vadd.f32 %v5373, %v5597
      %v5599 = vpop.f32.mrb[0].mxu0
      %5600 = vdwg.mxu0
      %5601 = vmatprep.subr.mxu0 0.0
      %5602 = vmatpush1.msra.mxu0 %v4678
      %5603 = vmatprep.subr.mxu0 0.0
      %5604 = vmatpush1.msra.mxu0 %v4679
      %5605 = vmatprep.subr.mxu0 0.0
      %5606 = vmatpush1.msra.mxu0 %v4680
      %5607 = vmatprep.subr.mxu0 0.0
      %5608 = vmatpush1.msra.mxu0 %v4681
      %5609 = vmatprep.subr.mxu0 0.0
      %5610 = vmatpush1.msra.mxu0 %v4682
      %5611 = vmatprep.subr.mxu0 0.0
      %5612 = vmatpush1.msra.mxu0 %v4683
      %5613 = vmatprep.subr.mxu0 0.0
      %5614 = vmatpush1.msra.mxu0 %v4684
      %5615 = vmatprep.subr.mxu0 0.0
      %5616 = vmatpush1.msra.mxu0 %v4685
      %5617 = vmatprep.subr.mxu0 0.0
      %5618 = vmatpush1.msra.mxu0 %v4686
      %5619 = vmatprep.subr.mxu0 0.0
      %5620 = vmatpush1.msra.mxu0 %v4687
      %5621 = vmatprep.subr.mxu0 0.0
      %5622 = vmatpush1.msra.mxu0 %v4688
      %5623 = vmatprep.subr.mxu0 0.0
      %5624 = vmatpush1.msra.mxu0 %v4689
      %5625 = vmatprep.subr.mxu0 0.0
      %5626 = vmatpush1.msra.mxu0 %v4690
      %5627 = vmatprep.subr.mxu0 0.0
      %5628 = vmatpush1.msra.mxu0 %v4691
      %5629 = vmatprep.subr.mxu0 0.0
      %5630 = vmatpush1.msra.mxu0 %v4692
      %5631 = vmatprep.subr.mxu0 0.0
      %5632 = vmatpush1.msra.mxu0 %v4693
      %5633 = vmatprep.subr.mxu0 0.0
      %5634 = vmatpush1.msra.mxu0 0.0
      %5635 = vmatprep.subr.mxu0 0.0
      %5636 = vmatpush1.msra.mxu0 0.0
      %5637 = vmatprep.subr.mxu0 0.0
      %5638 = vmatpush1.msra.mxu0 0.0
      %5639 = vmatprep.subr.mxu0 0.0
      %5640 = vmatpush1.msra.mxu0 0.0
      %5641 = vmatprep.subr.mxu0 0.0
      %5642 = vmatpush1.msra.mxu0 0.0
      %5643 = vmatprep.subr.mxu0 0.0
      %5644 = vmatpush1.msra.mxu0 0.0
      %5645 = vmatprep.subr.mxu0 0.0
      %5646 = vmatpush1.msra.mxu0 0.0
      %5647 = vmatprep.subr.mxu0 0.0
      %5648 = vmatpush1.msra.mxu0 0.0
      %5649 = vmatprep.subr.mxu0 0.0
      %5650 = vmatpush1.msra.mxu0 0.0
      %5651 = vmatprep.subr.mxu0 0.0
      %5652 = vmatpush1.msra.mxu0 0.0
      %5653 = vmatprep.subr.mxu0 0.0
      %5654 = vmatpush1.msra.mxu0 0.0
      %5655 = vmatprep.subr.mxu0 0.0
      %5656 = vmatpush1.msra.mxu0 0.0
      %5657 = vmatprep.subr.mxu0 0.0
      %5658 = vmatpush1.msra.mxu0 0.0
      %5659 = vmatprep.subr.mxu0 0.0
      %5660 = vmatpush1.msra.mxu0 0.0
      %5661 = vmatprep.subr.mxu0 0.0
      %5662 = vmatpush1.msra.mxu0 0.0
      %5663 = vmatprep.subr.mxu0 0.0
      %5664 = vmatpush1.msra.mxu0 0.0
      %5665 = vmatprep.mubr.f32.mxu0 0.0
      %5666 = vmatmul.mubr.f32.gmra.mrb[0].mxu0 %v4270
      %v5667 = vpop.f32.mrb[0].mxu0
      %v5668 = vadd.f32 %v5443, %v5667
      %v5669 = vpop.f32.mrb[0].mxu0
      %5670 = vmatprep.mubr.f32.mxu0 0.0
      %5671 = vmatmul.mubr.f32.gmra.mrb[0].mxu0 %v4279
      %v5672 = vpop.f32.mrb[0].mxu0
      %v5673 = vadd.f32 %v5448, %v5672
      %v5674 = vpop.f32.mrb[0].mxu0
      %5675 = vmatprep.mubr.f32.mxu0 0.0
      %5676 = vmatmul.mubr.f32.gmra.mrb[0].mxu0 %v4288
      %v5677 = vpop.f32.mrb[0].mxu0
      %v5678 = vadd.f32 %v5453, %v5677
      %v5679 = vpop.f32.mrb[0].mxu0
      %5680 = vmatprep.mubr.f32.mxu0 0.0
      %5681 = vmatmul.mubr.f32.gmra.mrb[0].mxu0 %v4297
      %v5682 = vpop.f32.mrb[0].mxu0
      %v5683 = vadd.f32 %v5458, %v5682
      %v5684 = vpop.f32.mrb[0].mxu0
      %5685 = vmatprep.mubr.f32.mxu0 0.0
      %5686 = vmatmul.mubr.f32.gmra.mrb[0].mxu0 %v4306
      %v5687 = vpop.f32.mrb[0].mxu0
      %v5688 = vadd.f32 %v5463, %v5687
      %v5689 = vpop.f32.mrb[0].mxu0
      %5690 = vmatprep.mubr.f32.mxu0 0.0
      %5691 = vmatmul.mubr.f32.gmra.mrb[0].mxu0 %v4315
      %v5692 = vpop.f32.mrb[0].mxu0
      %v5693 = vadd.f32 %v5468, %v5692
      %v5694 = vpop.f32.mrb[0].mxu0
      %5695 = vmatprep.mubr.f32.mxu0 0.0
      %5696 = vmatmul.mubr.f32.gmra.mrb[0].mxu0 %v4324
      %v5697 = vpop.f32.mrb[0].mxu0
      %v5698 = vadd.f32 %v5473, %v5697
      %v5699 = vpop.f32.mrb[0].mxu0
      %5700 = vmatprep.mubr.f32.mxu0 0.0
      %5701 = vmatmul.mubr.f32.gmra.mrb[0].mxu0 %v4333
      %v5702 = vpop.f32.mrb[0].mxu0
      %v5703 = vadd.f32 %v5478, %v5702
      %v5704 = vpop.f32.mrb[0].mxu0
      %5705 = vmatprep.mubr.f32.mxu0 0.0
      %5706 = vmatmul.mubr.f32.gmra.mrb[0].mxu0 %v4342
      %v5707 = vpop.f32.mrb[0].mxu0
      %v5708 = vadd.f32 %v5483, %v5707
      %v5709 = vpop.f32.mrb[0].mxu0
      %5710 = vmatprep.mubr.f32.mxu0 0.0
      %5711 = vmatmul.mubr.f32.gmra.mrb[0].mxu0 %v4351
      %v5712 = vpop.f32.mrb[0].mxu0
      %v5713 = vadd.f32 %v5488, %v5712
      %v5714 = vpop.f32.mrb[0].mxu0
      %5715 = vmatprep.mubr.f32.mxu0 0.0
      %5716 = vmatmul.mubr.f32.gmra.mrb[0].mxu0 %v4360
      %v5717 = vpop.f32.mrb[0].mxu0
      %v5718 = vadd.f32 %v5493, %v5717
      %v5719 = vpop.f32.mrb[0].mxu0
      %5720 = vmatprep.mubr.f32.mxu0 0.0
      %5721 = vmatmul.mubr.f32.gmra.mrb[0].mxu0 %v4369
      %v5722 = vpop.f32.mrb[0].mxu0
      %v5723 = vadd.f32 %v5498, %v5722
      %v5724 = vpop.f32.mrb[0].mxu0
      %5725 = vmatprep.mubr.f32.mxu0 0.0
      %5726 = vmatmul.mubr.f32.gmra.mrb[0].mxu0 %v4378
      %v5727 = vpop.f32.mrb[0].mxu0
      %v5728 = vadd.f32 %v5503, %v5727
      %v5729 = vpop.f32.mrb[0].mxu0
      %5730 = vmatprep.mubr.f32.mxu0 0.0
      %5731 = vmatmul.mubr.f32.gmra.mrb[0].mxu0 %v4387
      %v5732 = vpop.f32.mrb[0].mxu0
      %v5733 = vadd.f32 %v5508, %v5732
      %v5734 = vpop.f32.mrb[0].mxu0
      %5735 = vmatprep.mubr.f32.mxu0 0.0
      %5736 = vmatmul.mubr.f32.gmra.mrb[0].mxu0 %v4396
      %v5737 = vpop.f32.mrb[0].mxu0
      %v5738 = vadd.f32 %v5513, %v5737
      %v5739 = vpop.f32.mrb[0].mxu0
      %5740 = vmatprep.mubr.f32.mxu0 0.0
      %5741 = vmatmul.mubr.f32.gmra.mrb[0].mxu0 %v4405
      %v5742 = vpop.f32.mrb[0].mxu0
      %v5743 = vadd.f32 %v5518, %v5742
      %v5744 = vpop.f32.mrb[0].mxu0
      %5745 = vmatprep.mubr.f32.mxu0 0.0
      %5746 = vmatmul.mubr.f32.gmra.mrb[0].mxu0 %v4414
      %v5747 = vpop.f32.mrb[0].mxu0
      %v5748 = vadd.f32 %v5523, %v5747
      %v5749 = vpop.f32.mrb[0].mxu0
      %5750 = vmatprep.mubr.f32.mxu0 0.0
      %5751 = vmatmul.mubr.f32.gmra.mrb[0].mxu0 %v4423
      %v5752 = vpop.f32.mrb[0].mxu0
      %v5753 = vadd.f32 %v5528, %v5752
      %v5754 = vpop.f32.mrb[0].mxu0
      %5755 = vmatprep.mubr.f32.mxu0 0.0
      %5756 = vmatmul.mubr.f32.gmra.mrb[0].mxu0 %v4432
      %v5757 = vpop.f32.mrb[0].mxu0
      %v5758 = vadd.f32 %v5533, %v5757
      %v5759 = vpop.f32.mrb[0].mxu0
      %5760 = vmatprep.mubr.f32.mxu0 0.0
      %5761 = vmatmul.mubr.f32.gmra.mrb[0].mxu0 %v4441
      %v5762 = vpop.f32.mrb[0].mxu0
      %v5763 = vadd.f32 %v5538, %v5762
      %v5764 = vpop.f32.mrb[0].mxu0
      %5765 = vmatprep.mubr.f32.mxu0 0.0
      %5766 = vmatmul.mubr.f32.gmra.mrb[0].mxu0 %v4450
      %v5767 = vpop.f32.mrb[0].mxu0
      %v5768 = vadd.f32 %v5543, %v5767
      %v5769 = vpop.f32.mrb[0].mxu0
      %5770 = vmatprep.mubr.f32.mxu0 0.0
      %5771 = vmatmul.mubr.f32.gmra.mrb[0].mxu0 %v4459
      %v5772 = vpop.f32.mrb[0].mxu0
      %v5773 = vadd.f32 %v5548, %v5772
      %v5774 = vpop.f32.mrb[0].mxu0
      %5775 = vmatprep.mubr.f32.mxu0 0.0
      %5776 = vmatmul.mubr.f32.gmra.mrb[0].mxu0 %v4468
      %v5777 = vpop.f32.mrb[0].mxu0
      %v5778 = vadd.f32 %v5553, %v5777
      %v5779 = vpop.f32.mrb[0].mxu0
      %5780 = vmatprep.mubr.f32.mxu0 0.0
      %5781 = vmatmul.mubr.f32.gmra.mrb[0].mxu0 %v4477
      %v5782 = vpop.f32.mrb[0].mxu0
      %v5783 = vadd.f32 %v5558, %v5782
      %v5784 = vpop.f32.mrb[0].mxu0
      %5785 = vmatprep.mubr.f32.mxu0 0.0
      %5786 = vmatmul.mubr.f32.gmra.mrb[0].mxu0 %v4486
      %v5787 = vpop.f32.mrb[0].mxu0
      %v5788 = vadd.f32 %v5563, %v5787
      %v5789 = vpop.f32.mrb[0].mxu0
      %5790 = vmatprep.mubr.f32.mxu0 0.0
      %5791 = vmatmul.mubr.f32.gmra.mrb[0].mxu0 %v4495
      %v5792 = vpop.f32.mrb[0].mxu0
      %v5793 = vadd.f32 %v5568, %v5792
      %v5794 = vpop.f32.mrb[0].mxu0
      %5795 = vmatprep.mubr.f32.mxu0 0.0
      %5796 = vmatmul.mubr.f32.gmra.mrb[0].mxu0 %v4504
      %v5797 = vpop.f32.mrb[0].mxu0
      %v5798 = vadd.f32 %v5573, %v5797
      %v5799 = vpop.f32.mrb[0].mxu0
      %5800 = vmatprep.mubr.f32.mxu0 0.0
      %5801 = vmatmul.mubr.f32.gmra.mrb[0].mxu0 %v4513
      %v5802 = vpop.f32.mrb[0].mxu0
      %v5803 = vadd.f32 %v5578, %v5802
      %v5804 = vpop.f32.mrb[0].mxu0
      %5805 = vmatprep.mubr.f32.mxu0 0.0
      %5806 = vmatmul.mubr.f32.gmra.mrb[0].mxu0 %v4522
      %v5807 = vpop.f32.mrb[0].mxu0
      %v5808 = vadd.f32 %v5583, %v5807
      %v5809 = vpop.f32.mrb[0].mxu0
      %5810 = vmatprep.mubr.f32.mxu0 0.0
      %5811 = vmatmul.mubr.f32.gmra.mrb[0].mxu0 %v4531
      %v5812 = vpop.f32.mrb[0].mxu0
      %v5813 = vadd.f32 %v5588, %v5812
      %v5814 = vpop.f32.mrb[0].mxu0
      %5815 = vmatprep.mubr.f32.mxu0 0.0
      %5816 = vmatmul.mubr.f32.gmra.mrb[0].mxu0 %v4540
      %v5817 = vpop.f32.mrb[0].mxu0
      %v5818 = vadd.f32 %v5593, %v5817
      %v5819 = vpop.f32.mrb[0].mxu0
      %5820 = vmatprep.mubr.f32.mxu0 0.0
      %5821 = vmatmul.mubr.f32.gmra.mrb[0].mxu0 %v4549
      %v5822 = vpop.f32.mrb[0].mxu0
      %v5823 = vadd.f32 %v5598, %v5822
      %v5824 = vpop.f32.mrb[0].mxu0
      %5825 = vdwg.mxu0
      %v5826 = vmax.f32 %v5668, 0.0
      %v5827 = vmax.f32 %v5673, 0.0
      %v5828 = vmax.f32 %v5678, 0.0
      %v5829 = vmax.f32 %v5683, 0.0
      %v5830 = vmax.f32 %v5688, 0.0
      %v5831 = vmax.f32 %v5693, 0.0
      %v5832 = vmax.f32 %v5698, 0.0
      %v5833 = vmax.f32 %v5703, 0.0
      %v5834 = vmax.f32 %v5708, 0.0
      %v5835 = vmax.f32 %v5713, 0.0
      %v5836 = vmax.f32 %v5718, 0.0
      %v5837 = vmax.f32 %v5723, 0.0
      %v5838 = vmax.f32 %v5728, 0.0
      %v5839 = vmax.f32 %v5733, 0.0
      %v5840 = vmax.f32 %v5738, 0.0
      %v5841 = vmax.f32 %v5743, 0.0
      %v5842 = vmax.f32 %v5748, 0.0
      %v5843 = vmax.f32 %v5753, 0.0
      %v5844 = vmax.f32 %v5758, 0.0
      %v5845 = vmax.f32 %v5763, 0.0
      %v5846 = vmax.f32 %v5768, 0.0
      %v5847 = vmax.f32 %v5773, 0.0
      %v5848 = vmax.f32 %v5778, 0.0
      %v5849 = vmax.f32 %v5783, 0.0
      %v5850 = vmax.f32 %v5788, 0.0
      %v5851 = vmax.f32 %v5793, 0.0
      %v5852 = vmax.f32 %v5798, 0.0
      %v5853 = vmax.f32 %v5803, 0.0
      %v5854 = vmax.f32 %v5808, 0.0
      %v5855 = vmax.f32 %v5813, 0.0
      %v5856 = vmax.f32 %v5818, 0.0
      %v5857 = vmax.f32 %v5823, 0.0
      %v5858 = vld [vmem:[%s9] sm:$0xff]
      %v5859 = vld [vmem:[%s9 + $0x8] sm:$0xff]
      %v5860 = vld [vmem:[%s9 + $0x10] sm:$0xff]
      %v5861 = vld [vmem:[%s9 + $0x18] sm:$0xff]
      %v5862 = vld [vmem:[%s9 + $0x20] sm:$0xff]
      %v5863 = vld [vmem:[%s9 + $0x28] sm:$0xff]
      %v5864 = vld [vmem:[%s9 + $0x30] sm:$0xff]
      %v5865 = vld [vmem:[%s9 + $0x38] sm:$0xff]
      %v5866 = vld [vmem:[%s9 + $0x40] sm:$0xff]
      %v5867 = vld [vmem:[%s9 + $0x48] sm:$0xff]
      %v5868 = vld [vmem:[%s9 + $0x50] sm:$0xff]
      %v5869 = vld [vmem:[%s9 + $0x58] sm:$0xff]
      %v5870 = vld [vmem:[%s9 + $0x60] sm:$0xff]
      %v5871 = vld [vmem:[%s9 + $0x68] sm:$0xff]
      %v5872 = vld [vmem:[%s9 + $0x70] sm:$0xff]
      %v5873 = vld [vmem:[%s9 + $0x78] sm:$0xff]
      %v5874 = vld [vmem:[%s10] sm:$0x1]
      %v5876 = vlaneseq
      %v5877 = vshrl.u32 %v5876, 7
      %v5878 = vsub.s32 0, %v5877
      %v5879 = vrot.slane %v5874, %v5878
      %5881 = vmatprep.subr.mxu0 0.0
      %5882 = vmatpush1.msra.mxu0 %v5858
      %5883 = vmatprep.subr.mxu0 0.0
      %5884 = vmatpush1.msra.mxu0 %v5859
      %5885 = vmatprep.subr.mxu0 0.0
      %5886 = vmatpush1.msra.mxu0 %v5860
      %5887 = vmatprep.subr.mxu0 0.0
      %5888 = vmatpush1.msra.mxu0 %v5861
      %5889 = vmatprep.subr.mxu0 0.0
      %5890 = vmatpush1.msra.mxu0 %v5862
      %5891 = vmatprep.subr.mxu0 0.0
      %5892 = vmatpush1.msra.mxu0 %v5863
      %5893 = vmatprep.subr.mxu0 0.0
      %5894 = vmatpush1.msra.mxu0 %v5864
      %5895 = vmatprep.subr.mxu0 0.0
      %5896 = vmatpush1.msra.mxu0 %v5865
      %5897 = vmatprep.subr.mxu0 0.0
      %5898 = vmatpush1.msra.mxu0 %v5866
      %5899 = vmatprep.subr.mxu0 0.0
      %5900 = vmatpush1.msra.mxu0 %v5867
      %5901 = vmatprep.subr.mxu0 0.0
      %5902 = vmatpush1.msra.mxu0 %v5868
      %5903 = vmatprep.subr.mxu0 0.0
      %5904 = vmatpush1.msra.mxu0 %v5869
      %5905 = vmatprep.subr.mxu0 0.0
      %5906 = vmatpush1.msra.mxu0 %v5870
      %5907 = vmatprep.subr.mxu0 0.0
      %5908 = vmatpush1.msra.mxu0 %v5871
      %5909 = vmatprep.subr.mxu0 0.0
      %5910 = vmatpush1.msra.mxu0 %v5872
      %5911 = vmatprep.subr.mxu0 0.0
      %5912 = vmatpush1.msra.mxu0 %v5873
      %5913 = vmatprep.subr.mxu0 0.0
      %5914 = vmatpush1.msra.mxu0 0.0
      %5915 = vmatprep.subr.mxu0 0.0
      %5916 = vmatpush1.msra.mxu0 0.0
      %5917 = vmatprep.subr.mxu0 0.0
      %5918 = vmatpush1.msra.mxu0 0.0
      %5919 = vmatprep.subr.mxu0 0.0
      %5920 = vmatpush1.msra.mxu0 0.0
      %5921 = vmatprep.subr.mxu0 0.0
      %5922 = vmatpush1.msra.mxu0 0.0
      %5923 = vmatprep.subr.mxu0 0.0
      %5924 = vmatpush1.msra.mxu0 0.0
      %5925 = vmatprep.subr.mxu0 0.0
      %5926 = vmatpush1.msra.mxu0 0.0
      %5927 = vmatprep.subr.mxu0 0.0
      %5928 = vmatpush1.msra.mxu0 0.0
      %5929 = vmatprep.subr.mxu0 0.0
      %5930 = vmatpush1.msra.mxu0 0.0
      %5931 = vmatprep.subr.mxu0 0.0
      %5932 = vmatpush1.msra.mxu0 0.0
      %5933 = vmatprep.subr.mxu0 0.0
      %5934 = vmatpush1.msra.mxu0 0.0
      %5935 = vmatprep.subr.mxu0 0.0
      %5936 = vmatpush1.msra.mxu0 0.0
      %5937 = vmatprep.subr.mxu0 0.0
      %5938 = vmatpush1.msra.mxu0 0.0
      %5939 = vmatprep.subr.mxu0 0.0
      %5940 = vmatpush1.msra.mxu0 0.0
      %5941 = vmatprep.subr.mxu0 0.0
      %5942 = vmatpush1.msra.mxu0 0.0
      %5943 = vmatprep.subr.mxu0 0.0
      %5944 = vmatpush1.msra.mxu0 0.0
      %5945 = vmatprep.mubr.f32.mxu0 0.0
      %5946 = vmatmul.mubr.f32.gmra.mrb[0].mxu0 %v5826
      %v5947 = vpop.f32.mrb[0].mxu0
      %v5948 = vadd.f32 %v5879, %v5947
      %v5949 = vpop.f32.mrb[0].mxu0
      %5950 = vmatprep.mubr.f32.mxu0 0.0
      %5951 = vmatmul.mubr.f32.gmra.mrb[0].mxu0 %v5827
      %v5952 = vpop.f32.mrb[0].mxu0
      %v5953 = vadd.f32 %v5879, %v5952
      %v5954 = vpop.f32.mrb[0].mxu0
      %5955 = vmatprep.mubr.f32.mxu0 0.0
      %5956 = vmatmul.mubr.f32.gmra.mrb[0].mxu0 %v5828
      %v5957 = vpop.f32.mrb[0].mxu0
      %v5958 = vadd.f32 %v5879, %v5957
      %v5959 = vpop.f32.mrb[0].mxu0
      %5960 = vmatprep.mubr.f32.mxu0 0.0
      %5961 = vmatmul.mubr.f32.gmra.mrb[0].mxu0 %v5829
      %v5962 = vpop.f32.mrb[0].mxu0
      %v5963 = vadd.f32 %v5879, %v5962
      %v5964 = vpop.f32.mrb[0].mxu0
      %5965 = vmatprep.mubr.f32.mxu0 0.0
      %5966 = vmatmul.mubr.f32.gmra.mrb[0].mxu0 %v5830
      %v5967 = vpop.f32.mrb[0].mxu0
      %v5968 = vadd.f32 %v5879, %v5967
      %v5969 = vpop.f32.mrb[0].mxu0
      %5970 = vmatprep.mubr.f32.mxu0 0.0
      %5971 = vmatmul.mubr.f32.gmra.mrb[0].mxu0 %v5831
      %v5972 = vpop.f32.mrb[0].mxu0
      %v5973 = vadd.f32 %v5879, %v5972
      %v5974 = vpop.f32.mrb[0].mxu0
      %5975 = vmatprep.mubr.f32.mxu0 0.0
      %5976 = vmatmul.mubr.f32.gmra.mrb[0].mxu0 %v5832
      %v5977 = vpop.f32.mrb[0].mxu0
      %v5978 = vadd.f32 %v5879, %v5977
      %v5979 = vpop.f32.mrb[0].mxu0
      %5980 = vmatprep.mubr.f32.mxu0 0.0
      %5981 = vmatmul.mubr.f32.gmra.mrb[0].mxu0 %v5833
      %v5982 = vpop.f32.mrb[0].mxu0
      %v5983 = vadd.f32 %v5879, %v5982
      %v5984 = vpop.f32.mrb[0].mxu0
      %5985 = vmatprep.mubr.f32.mxu0 0.0
      %5986 = vmatmul.mubr.f32.gmra.mrb[0].mxu0 %v5834
      %v5987 = vpop.f32.mrb[0].mxu0
      %v5988 = vadd.f32 %v5879, %v5987
      %v5989 = vpop.f32.mrb[0].mxu0
      %5990 = vmatprep.mubr.f32.mxu0 0.0
      %5991 = vmatmul.mubr.f32.gmra.mrb[0].mxu0 %v5835
      %v5992 = vpop.f32.mrb[0].mxu0
      %v5993 = vadd.f32 %v5879, %v5992
      %v5994 = vpop.f32.mrb[0].mxu0
      %5995 = vmatprep.mubr.f32.mxu0 0.0
      %5996 = vmatmul.mubr.f32.gmra.mrb[0].mxu0 %v5836
      %v5997 = vpop.f32.mrb[0].mxu0
      %v5998 = vadd.f32 %v5879, %v5997
      %v5999 = vpop.f32.mrb[0].mxu0
      %6000 = vmatprep.mubr.f32.mxu0 0.0
      %6001 = vmatmul.mubr.f32.gmra.mrb[0].mxu0 %v5837
      %v6002 = vpop.f32.mrb[0].mxu0
      %v6003 = vadd.f32 %v5879, %v6002
      %v6004 = vpop.f32.mrb[0].mxu0
      %6005 = vmatprep.mubr.f32.mxu0 0.0
      %6006 = vmatmul.mubr.f32.gmra.mrb[0].mxu0 %v5838
      %v6007 = vpop.f32.mrb[0].mxu0
      %v6008 = vadd.f32 %v5879, %v6007
      %v6009 = vpop.f32.mrb[0].mxu0
      %6010 = vmatprep.mubr.f32.mxu0 0.0
      %6011 = vmatmul.mubr.f32.gmra.mrb[0].mxu0 %v5839
      %v6012 = vpop.f32.mrb[0].mxu0
      %v6013 = vadd.f32 %v5879, %v6012
      %v6014 = vpop.f32.mrb[0].mxu0
      %6015 = vmatprep.mubr.f32.mxu0 0.0
      %6016 = vmatmul.mubr.f32.gmra.mrb[0].mxu0 %v5840
      %v6017 = vpop.f32.mrb[0].mxu0
      %v6018 = vadd.f32 %v5879, %v6017
      %v6019 = vpop.f32.mrb[0].mxu0
      %6020 = vmatprep.mubr.f32.mxu0 0.0
      %6021 = vmatmul.mubr.f32.gmra.mrb[0].mxu0 %v5841
      %v6022 = vpop.f32.mrb[0].mxu0
      %v6023 = vadd.f32 %v5879, %v6022
      %v6024 = vpop.f32.mrb[0].mxu0
      %6025 = vmatprep.mubr.f32.mxu0 0.0
      %6026 = vmatmul.mubr.f32.gmra.mrb[0].mxu0 %v5842
      %v6027 = vpop.f32.mrb[0].mxu0
      %v6028 = vadd.f32 %v5879, %v6027
      %v6029 = vpop.f32.mrb[0].mxu0
      %6030 = vmatprep.mubr.f32.mxu0 0.0
      %6031 = vmatmul.mubr.f32.gmra.mrb[0].mxu0 %v5843
      %v6032 = vpop.f32.mrb[0].mxu0
      %v6033 = vadd.f32 %v5879, %v6032
      %v6034 = vpop.f32.mrb[0].mxu0
      %6035 = vmatprep.mubr.f32.mxu0 0.0
      %6036 = vmatmul.mubr.f32.gmra.mrb[0].mxu0 %v5844
      %v6037 = vpop.f32.mrb[0].mxu0
      %v6038 = vadd.f32 %v5879, %v6037
      %v6039 = vpop.f32.mrb[0].mxu0
      %6040 = vmatprep.mubr.f32.mxu0 0.0
      %6041 = vmatmul.mubr.f32.gmra.mrb[0].mxu0 %v5845
      %v6042 = vpop.f32.mrb[0].mxu0
      %v6043 = vadd.f32 %v5879, %v6042
      %v6044 = vpop.f32.mrb[0].mxu0
      %6045 = vmatprep.mubr.f32.mxu0 0.0
      %6046 = vmatmul.mubr.f32.gmra.mrb[0].mxu0 %v5846
      %v6047 = vpop.f32.mrb[0].mxu0
      %v6048 = vadd.f32 %v5879, %v6047
      %v6049 = vpop.f32.mrb[0].mxu0
      %6050 = vmatprep.mubr.f32.mxu0 0.0
      %6051 = vmatmul.mubr.f32.gmra.mrb[0].mxu0 %v5847
      %v6052 = vpop.f32.mrb[0].mxu0
      %v6053 = vadd.f32 %v5879, %v6052
      %v6054 = vpop.f32.mrb[0].mxu0
      %6055 = vmatprep.mubr.f32.mxu0 0.0
      %6056 = vmatmul.mubr.f32.gmra.mrb[0].mxu0 %v5848
      %v6057 = vpop.f32.mrb[0].mxu0
      %v6058 = vadd.f32 %v5879, %v6057
      %v6059 = vpop.f32.mrb[0].mxu0
      %6060 = vmatprep.mubr.f32.mxu0 0.0
      %6061 = vmatmul.mubr.f32.gmra.mrb[0].mxu0 %v5849
      %v6062 = vpop.f32.mrb[0].mxu0
      %v6063 = vadd.f32 %v5879, %v6062
      %v6064 = vpop.f32.mrb[0].mxu0
      %6065 = vmatprep.mubr.f32.mxu0 0.0
      %6066 = vmatmul.mubr.f32.gmra.mrb[0].mxu0 %v5850
      %v6067 = vpop.f32.mrb[0].mxu0
      %v6068 = vadd.f32 %v5879, %v6067
      %v6069 = vpop.f32.mrb[0].mxu0
      %6070 = vmatprep.mubr.f32.mxu0 0.0
      %6071 = vmatmul.mubr.f32.gmra.mrb[0].mxu0 %v5851
      %v6072 = vpop.f32.mrb[0].mxu0
      %v6073 = vadd.f32 %v5879, %v6072
      %v6074 = vpop.f32.mrb[0].mxu0
      %6075 = vmatprep.mubr.f32.mxu0 0.0
      %6076 = vmatmul.mubr.f32.gmra.mrb[0].mxu0 %v5852
      %v6077 = vpop.f32.mrb[0].mxu0
      %v6078 = vadd.f32 %v5879, %v6077
      %v6079 = vpop.f32.mrb[0].mxu0
      %6080 = vmatprep.mubr.f32.mxu0 0.0
      %6081 = vmatmul.mubr.f32.gmra.mrb[0].mxu0 %v5853
      %v6082 = vpop.f32.mrb[0].mxu0
      %v6083 = vadd.f32 %v5879, %v6082
      %v6084 = vpop.f32.mrb[0].mxu0
      %6085 = vmatprep.mubr.f32.mxu0 0.0
      %6086 = vmatmul.mubr.f32.gmra.mrb[0].mxu0 %v5854
      %v6087 = vpop.f32.mrb[0].mxu0
      %v6088 = vadd.f32 %v5879, %v6087
      %v6089 = vpop.f32.mrb[0].mxu0
      %6090 = vmatprep.mubr.f32.mxu0 0.0
      %6091 = vmatmul.mubr.f32.gmra.mrb[0].mxu0 %v5855
      %v6092 = vpop.f32.mrb[0].mxu0
      %v6093 = vadd.f32 %v5879, %v6092
      %v6094 = vpop.f32.mrb[0].mxu0
      %6095 = vmatprep.mubr.f32.mxu0 0.0
      %6096 = vmatmul.mubr.f32.gmra.mrb[0].mxu0 %v5856
      %v6097 = vpop.f32.mrb[0].mxu0
      %v6098 = vadd.f32 %v5879, %v6097
      %v6099 = vpop.f32.mrb[0].mxu0
      %6100 = vmatprep.mubr.f32.mxu0 0.0
      %6101 = vmatmul.mubr.f32.gmra.mrb[0].mxu0 %v5857
      %v6102 = vpop.f32.mrb[0].mxu0
      %v6103 = vadd.f32 %v5879, %v6102
      %v6104 = vpop.f32.mrb[0].mxu0
      %6105 = vdwg.mxu0
      %v6106 = vsub.f32 0.0, %v5948
      %v6107 = vsub.f32 0.0, %v5953
      %v6108 = vsub.f32 0.0, %v5958
      %v6109 = vsub.f32 0.0, %v5963
      %v6110 = vsub.f32 0.0, %v5968
      %v6111 = vsub.f32 0.0, %v5973
      %v6112 = vsub.f32 0.0, %v5978
      %v6113 = vsub.f32 0.0, %v5983
      %v6114 = vsub.f32 0.0, %v5988
      %v6115 = vsub.f32 0.0, %v5993
      %v6116 = vsub.f32 0.0, %v5998
      %v6117 = vsub.f32 0.0, %v6003
      %v6118 = vsub.f32 0.0, %v6008
      %v6119 = vsub.f32 0.0, %v6013
      %v6120 = vsub.f32 0.0, %v6018
      %v6121 = vsub.f32 0.0, %v6023
      %v6122 = vsub.f32 0.0, %v6028
      %v6123 = vsub.f32 0.0, %v6033
      %v6124 = vsub.f32 0.0, %v6038
      %v6125 = vsub.f32 0.0, %v6043
      %v6126 = vsub.f32 0.0, %v6048
      %v6127 = vsub.f32 0.0, %v6053
      %v6128 = vsub.f32 0.0, %v6058
      %v6129 = vsub.f32 0.0, %v6063
      %v6130 = vsub.f32 0.0, %v6068
      %v6131 = vsub.f32 0.0, %v6073
      %v6132 = vsub.f32 0.0, %v6078
      %v6133 = vsub.f32 0.0, %v6083
      %v6134 = vsub.f32 0.0, %v6088
      %v6135 = vsub.f32 0.0, %v6093
      %v6136 = vsub.f32 0.0, %v6098
      %v6137 = vsub.f32 0.0, %v6103
      %v6138 = vmul.f32 %v6106, 1.442695
      %v6139 = vpow.pop %v6138
      %v6140 = vmul.f32 %v6107, 1.442695
      %v6141 = vpow.pop %v6140
      %v6142 = vmul.f32 %v6108, 1.442695
      %v6143 = vpow.pop %v6142
      %v6144 = vmul.f32 %v6109, 1.442695
      %v6145 = vpow.pop %v6144
      %v6146 = vmul.f32 %v6110, 1.442695
      %v6147 = vpow.pop %v6146
      %v6148 = vmul.f32 %v6111, 1.442695
      %v6149 = vpow.pop %v6148
      %v6150 = vmul.f32 %v6112, 1.442695
      %v6151 = vpow.pop %v6150
      %v6152 = vmul.f32 %v6113, 1.442695
      %v6153 = vpow.pop %v6152
      %v6154 = vmul.f32 %v6114, 1.442695
      %v6155 = vpow.pop %v6154
      %v6156 = vmul.f32 %v6115, 1.442695
      %v6157 = vpow.pop %v6156
      %v6158 = vmul.f32 %v6116, 1.442695
      %v6159 = vpow.pop %v6158
      %v6160 = vmul.f32 %v6117, 1.442695
      %v6161 = vpow.pop %v6160
      %v6162 = vmul.f32 %v6118, 1.442695
      %v6163 = vpow.pop %v6162
      %v6164 = vmul.f32 %v6119, 1.442695
      %v6165 = vpow.pop %v6164
      %v6166 = vmul.f32 %v6120, 1.442695
      %v6167 = vpow.pop %v6166
      %v6168 = vmul.f32 %v6121, 1.442695
      %v6169 = vpow.pop %v6168
      %v6170 = vmul.f32 %v6122, 1.442695
      %v6171 = vpow.pop %v6170
      %v6172 = vmul.f32 %v6123, 1.442695
      %v6173 = vpow.pop %v6172
      %v6174 = vmul.f32 %v6124, 1.442695
      %v6175 = vpow.pop %v6174
      %v6176 = vmul.f32 %v6125, 1.442695
      %v6177 = vpow.pop %v6176
      %v6178 = vmul.f32 %v6126, 1.442695
      %v6179 = vpow.pop %v6178
      %v6180 = vmul.f32 %v6127, 1.442695
      %v6181 = vpow.pop %v6180
      %v6182 = vmul.f32 %v6128, 1.442695
      %v6183 = vpow.pop %v6182
      %v6184 = vmul.f32 %v6129, 1.442695
      %v6185 = vpow.pop %v6184
      %v6186 = vmul.f32 %v6130, 1.442695
      %v6187 = vpow.pop %v6186
      %v6188 = vmul.f32 %v6131, 1.442695
      %v6189 = vpow.pop %v6188
      %v6190 = vmul.f32 %v6132, 1.442695
      %v6191 = vpow.pop %v6190
      %v6192 = vmul.f32 %v6133, 1.442695
      %v6193 = vpow.pop %v6192
      %v6194 = vmul.f32 %v6134, 1.442695
      %v6195 = vpow.pop %v6194
      %v6196 = vmul.f32 %v6135, 1.442695
      %v6197 = vpow.pop %v6196
      %v6198 = vmul.f32 %v6136, 1.442695
      %v6199 = vpow.pop %v6198
      %v6200 = vmul.f32 %v6137, 1.442695
      %v6201 = vpow.pop %v6200
      %v6202 = vadd.f32 %v6139, 1.0
      %v6203 = vadd.f32 %v6141, 1.0
      %v6204 = vadd.f32 %v6143, 1.0
      %v6205 = vadd.f32 %v6145, 1.0
      %v6206 = vadd.f32 %v6147, 1.0
      %v6207 = vadd.f32 %v6149, 1.0
      %v6208 = vadd.f32 %v6151, 1.0
      %v6209 = vadd.f32 %v6153, 1.0
      %v6210 = vadd.f32 %v6155, 1.0
      %v6211 = vadd.f32 %v6157, 1.0
      %v6212 = vadd.f32 %v6159, 1.0
      %v6213 = vadd.f32 %v6161, 1.0
      %v6214 = vadd.f32 %v6163, 1.0
      %v6215 = vadd.f32 %v6165, 1.0
      %v6216 = vadd.f32 %v6167, 1.0
      %v6217 = vadd.f32 %v6169, 1.0
      %v6218 = vadd.f32 %v6171, 1.0
      %v6219 = vadd.f32 %v6173, 1.0
      %v6220 = vadd.f32 %v6175, 1.0
      %v6221 = vadd.f32 %v6177, 1.0
      %v6222 = vadd.f32 %v6179, 1.0
      %v6223 = vadd.f32 %v6181, 1.0
      %v6224 = vadd.f32 %v6183, 1.0
      %v6225 = vadd.f32 %v6185, 1.0
      %v6226 = vadd.f32 %v6187, 1.0
      %v6227 = vadd.f32 %v6189, 1.0
      %v6228 = vadd.f32 %v6191, 1.0
      %v6229 = vadd.f32 %v6193, 1.0
      %v6230 = vadd.f32 %v6195, 1.0
      %v6231 = vadd.f32 %v6197, 1.0
      %v6232 = vadd.f32 %v6199, 1.0
      %v6233 = vadd.f32 %v6201, 1.0
      %v6234 = vrcp.pop %v6202
      %v6235 = vmul.f32 1.0, %v6234
      %v6236 = vrcp.pop %v6203
      %v6237 = vmul.f32 1.0, %v6236
      %v6238 = vrcp.pop %v6204
      %v6239 = vmul.f32 1.0, %v6238
      %v6240 = vrcp.pop %v6205
      %v6241 = vmul.f32 1.0, %v6240
      %v6242 = vrcp.pop %v6206
      %v6243 = vmul.f32 1.0, %v6242
      %v6244 = vrcp.pop %v6207
      %v6245 = vmul.f32 1.0, %v6244
      %v6246 = vrcp.pop %v6208
      %v6247 = vmul.f32 1.0, %v6246
      %v6248 = vrcp.pop %v6209
      %v6249 = vmul.f32 1.0, %v6248
      %v6250 = vrcp.pop %v6210
      %v6251 = vmul.f32 1.0, %v6250
      %v6252 = vrcp.pop %v6211
      %v6253 = vmul.f32 1.0, %v6252
      %v6254 = vrcp.pop %v6212
      %v6255 = vmul.f32 1.0, %v6254
      %v6256 = vrcp.pop %v6213
      %v6257 = vmul.f32 1.0, %v6256
      %v6258 = vrcp.pop %v6214
      %v6259 = vmul.f32 1.0, %v6258
      %v6260 = vrcp.pop %v6215
      %v6261 = vmul.f32 1.0, %v6260
      %v6262 = vrcp.pop %v6216
      %v6263 = vmul.f32 1.0, %v6262
      %v6264 = vrcp.pop %v6217
      %v6265 = vmul.f32 1.0, %v6264
      %v6266 = vrcp.pop %v6218
      %v6267 = vmul.f32 1.0, %v6266
      %v6268 = vrcp.pop %v6219
      %v6269 = vmul.f32 1.0, %v6268
      %v6270 = vrcp.pop %v6220
      %v6271 = vmul.f32 1.0, %v6270
      %v6272 = vrcp.pop %v6221
      %v6273 = vmul.f32 1.0, %v6272
      %v6274 = vrcp.pop %v6222
      %v6275 = vmul.f32 1.0, %v6274
      %v6276 = vrcp.pop %v6223
      %v6277 = vmul.f32 1.0, %v6276
      %v6278 = vrcp.pop %v6224
      %v6279 = vmul.f32 1.0, %v6278
      %v6280 = vrcp.pop %v6225
      %v6281 = vmul.f32 1.0, %v6280
      %v6282 = vrcp.pop %v6226
      %v6283 = vmul.f32 1.0, %v6282
      %v6284 = vrcp.pop %v6227
      %v6285 = vmul.f32 1.0, %v6284
      %v6286 = vrcp.pop %v6228
      %v6287 = vmul.f32 1.0, %v6286
      %v6288 = vrcp.pop %v6229
      %v6289 = vmul.f32 1.0, %v6288
      %v6290 = vrcp.pop %v6230
      %v6291 = vmul.f32 1.0, %v6290
      %v6292 = vrcp.pop %v6231
      %v6293 = vmul.f32 1.0, %v6292
      %v6294 = vrcp.pop %v6232
      %v6295 = vmul.f32 1.0, %v6294
      %v6296 = vrcp.pop %v6233
      %v6297 = vmul.f32 1.0, %v6296
      %v6298 = vsel %vm3396, %v6235, %v5948
      %v6299 = vsel %vm3396, %v6237, %v5953
      %v6300 = vsel %vm3396, %v6239, %v5958
      %v6301 = vsel %vm3396, %v6241, %v5963
      %v6302 = vsel %vm3396, %v6243, %v5968
      %v6303 = vsel %vm3396, %v6245, %v5973
      %v6304 = vsel %vm3396, %v6247, %v5978
      %v6305 = vsel %vm3396, %v6249, %v5983
      %v6306 = vsel %vm3396, %v6251, %v5988
      %v6307 = vsel %vm3396, %v6253, %v5993
      %v6308 = vsel %vm3396, %v6255, %v5998
      %v6309 = vsel %vm3396, %v6257, %v6003
      %v6310 = vsel %vm3396, %v6259, %v6008
      %v6311 = vsel %vm3396, %v6261, %v6013
      %v6312 = vsel %vm3396, %v6263, %v6018
      %v6313 = vsel %vm3396, %v6265, %v6023
      %v6314 = vsel %vm3396, %v6267, %v6028
      %v6315 = vsel %vm3396, %v6269, %v6033
      %v6316 = vsel %vm3396, %v6271, %v6038
      %v6317 = vsel %vm3396, %v6273, %v6043
      %v6318 = vsel %vm3396, %v6275, %v6048
      %v6319 = vsel %vm3396, %v6277, %v6053
      %v6320 = vsel %vm3396, %v6279, %v6058
      %v6321 = vsel %vm3396, %v6281, %v6063
      %v6322 = vsel %vm3396, %v6283, %v6068
      %v6323 = vsel %vm3396, %v6285, %v6073
      %v6324 = vsel %vm3396, %v6287, %v6078
      %v6325 = vsel %vm3396, %v6289, %v6083
      %v6326 = vsel %vm3396, %v6291, %v6088
      %v6327 = vsel %vm3396, %v6293, %v6093
      %v6328 = vsel %vm3396, %v6295, %v6098
      %v6329 = vsel %vm3396, %v6297, %v6103
      %6330 = vst [vmem:[%s494] sm:$0xff] %v6298
      %6331 = vst [vmem:[%s494 + $0x8] sm:$0xff] %v6299
      %6332 = vst [vmem:[%s494 + $0x10] sm:$0xff] %v6300
      %6333 = vst [vmem:[%s494 + $0x18] sm:$0xff] %v6301
      %6334 = vst [vmem:[%s494 + $0x20] sm:$0xff] %v6302
      %6335 = vst [vmem:[%s494 + $0x28] sm:$0xff] %v6303
      %6336 = vst [vmem:[%s494 + $0x30] sm:$0xff] %v6304
      %6337 = vst [vmem:[%s494 + $0x38] sm:$0xff] %v6305
      %6338 = vst [vmem:[%s494 + $0x40] sm:$0xff] %v6306
      %6339 = vst [vmem:[%s494 + $0x48] sm:$0xff] %v6307
      %6340 = vst [vmem:[%s494 + $0x50] sm:$0xff] %v6308
      %6341 = vst [vmem:[%s494 + $0x58] sm:$0xff] %v6309
      %6342 = vst [vmem:[%s494 + $0x60] sm:$0xff] %v6310
      %6343 = vst [vmem:[%s494 + $0x68] sm:$0xff] %v6311
      %6344 = vst [vmem:[%s494 + $0x70] sm:$0xff] %v6312
      %6345 = vst [vmem:[%s494 + $0x78] sm:$0xff] %v6313
      %6346 = vst [vmem:[%s494 + $0x80] sm:$0xff] %v6314
      %6347 = vst [vmem:[%s494 + $0x88] sm:$0xff] %v6315
      %6348 = vst [vmem:[%s494 + $0x90] sm:$0xff] %v6316
      %6349 = vst [vmem:[%s494 + $0x98] sm:$0xff] %v6317
      %6350 = vst [vmem:[%s494 + $0xa0] sm:$0xff] %v6318
      %6351 = vst [vmem:[%s494 + $0xa8] sm:$0xff] %v6319
      %6352 = vst [vmem:[%s494 + $0xb0] sm:$0xff] %v6320
      %6353 = vst [vmem:[%s494 + $0xb8] sm:$0xff] %v6321
      %6354 = vst [vmem:[%s494 + $0xc0] sm:$0xff] %v6322
      %6355 = vst [vmem:[%s494 + $0xc8] sm:$0xff] %v6323
      %6356 = vst [vmem:[%s494 + $0xd0] sm:$0xff] %v6324
      %6357 = vst [vmem:[%s494 + $0xd8] sm:$0xff] %v6325
      %6358 = vst [vmem:[%s494 + $0xe0] sm:$0xff] %v6326
      %6359 = vst [vmem:[%s494 + $0xe8] sm:$0xff] %v6327
      %6360 = vst [vmem:[%s494 + $0xf0] sm:$0xff] %v6328
      %6361 = vst [vmem:[%s494 + $0xf8] sm:$0xff] %v6329
      %v6378 = vcombine.high %v3114, %v3114
      %v6380 = vunpack.c.l.s4 1983009808
      %v6381 = vunpack.c.0.s8 %v6380
      %v6382 = vlaneseq
      %v6383 = vshrl.u32 %v6382, 7
      %v6384 = vsub.s32 %v6381, %v6383
      %v6385 = vrot.slane %v3114, %v6384
      %v6387 = vunpack.c.l.s4 1983009808
      %v6388 = vunpack.c.0.s8 %v6387
      %v6389 = vlaneseq
      %v6390 = vshrl.u32 %v6389, 7
      %v6391 = vsub.s32 %v6388, %v6390
      %v6392 = vrot.slane %v6378, %v6391
      %v6393 = vcombine.high %v6385, %v6385
      %v6394 = vcombine.high %v6392, %v6392
      %v6395 = vcombine.high %v3115, %v3115
      %v6397 = vunpack.c.l.s4 1983009808
      %v6398 = vunpack.c.0.s8 %v6397
      %v6399 = vlaneseq
      %v6400 = vshrl.u32 %v6399, 7
      %v6401 = vsub.s32 %v6398, %v6400
      %v6402 = vrot.slane %v3115, %v6401
      %v6404 = vunpack.c.l.s4 1983009808
      %v6405 = vunpack.c.0.s8 %v6404
      %v6406 = vlaneseq
      %v6407 = vshrl.u32 %v6406, 7
      %v6408 = vsub.s32 %v6405, %v6407
      %v6409 = vrot.slane %v6395, %v6408
      %v6410 = vcombine.high %v6402, %v6402
      %v6411 = vcombine.high %v6409, %v6409
      %v6412 = vcombine.high %v3118, %v3118
      %v6414 = vunpack.c.l.s4 1983009808
      %v6415 = vunpack.c.0.s8 %v6414
      %v6416 = vlaneseq
      %v6417 = vshrl.u32 %v6416, 7
      %v6418 = vsub.s32 %v6415, %v6417
      %v6419 = vrot.slane %v3118, %v6418
      %v6421 = vunpack.c.l.s4 1983009808
      %v6422 = vunpack.c.0.s8 %v6421
      %v6423 = vlaneseq
      %v6424 = vshrl.u32 %v6423, 7
      %v6425 = vsub.s32 %v6422, %v6424
      %v6426 = vrot.slane %v6412, %v6425
      %v6427 = vcombine.high %v6419, %v6419
      %v6428 = vcombine.high %v6426, %v6426
      %v6429 = vcombine.high %v3119, %v3119
      %v6431 = vunpack.c.l.s4 1983009808
      %v6432 = vunpack.c.0.s8 %v6431
      %v6433 = vlaneseq
      %v6434 = vshrl.u32 %v6433, 7
      %v6435 = vsub.s32 %v6432, %v6434
      %v6436 = vrot.slane %v3119, %v6435
      %v6438 = vunpack.c.l.s4 1983009808
      %v6439 = vunpack.c.0.s8 %v6438
      %v6440 = vlaneseq
      %v6441 = vshrl.u32 %v6440, 7
      %v6442 = vsub.s32 %v6439, %v6441
      %v6443 = vrot.slane %v6429, %v6442
      %v6444 = vcombine.high %v6436, %v6436
      %v6445 = vcombine.high %v6443, %v6443
      %v6446 = vcombine.high %v3122, %v3122
      %v6448 = vunpack.c.l.s4 1983009808
      %v6449 = vunpack.c.0.s8 %v6448
      %v6450 = vlaneseq
      %v6451 = vshrl.u32 %v6450, 7
      %v6452 = vsub.s32 %v6449, %v6451
      %v6453 = vrot.slane %v3122, %v6452
      %v6455 = vunpack.c.l.s4 1983009808
      %v6456 = vunpack.c.0.s8 %v6455
      %v6457 = vlaneseq
      %v6458 = vshrl.u32 %v6457, 7
      %v6459 = vsub.s32 %v6456, %v6458
      %v6460 = vrot.slane %v6446, %v6459
      %v6461 = vcombine.high %v6453, %v6453
      %v6462 = vcombine.high %v6460, %v6460
      %v6463 = vcombine.high %v3123, %v3123
      %v6465 = vunpack.c.l.s4 1983009808
      %v6466 = vunpack.c.0.s8 %v6465
      %v6467 = vlaneseq
      %v6468 = vshrl.u32 %v6467, 7
      %v6469 = vsub.s32 %v6466, %v6468
      %v6470 = vrot.slane %v3123, %v6469
      %v6472 = vunpack.c.l.s4 1983009808
      %v6473 = vunpack.c.0.s8 %v6472
      %v6474 = vlaneseq
      %v6475 = vshrl.u32 %v6474, 7
      %v6476 = vsub.s32 %v6473, %v6475
      %v6477 = vrot.slane %v6463, %v6476
      %v6478 = vcombine.high %v6470, %v6470
      %v6479 = vcombine.high %v6477, %v6477
      %v6480 = vcombine.high %v3126, %v3126
      %v6482 = vunpack.c.l.s4 1983009808
      %v6483 = vunpack.c.0.s8 %v6482
      %v6484 = vlaneseq
      %v6485 = vshrl.u32 %v6484, 7
      %v6486 = vsub.s32 %v6483, %v6485
      %v6487 = vrot.slane %v3126, %v6486
      %v6489 = vunpack.c.l.s4 1983009808
      %v6490 = vunpack.c.0.s8 %v6489
      %v6491 = vlaneseq
      %v6492 = vshrl.u32 %v6491, 7
      %v6493 = vsub.s32 %v6490, %v6492
      %v6494 = vrot.slane %v6480, %v6493
      %v6495 = vcombine.high %v6487, %v6487
      %v6496 = vcombine.high %v6494, %v6494
      %v6497 = vcombine.high %v3127, %v3127
      %v6499 = vunpack.c.l.s4 1983009808
      %v6500 = vunpack.c.0.s8 %v6499
      %v6501 = vlaneseq
      %v6502 = vshrl.u32 %v6501, 7
      %v6503 = vsub.s32 %v6500, %v6502
      %v6504 = vrot.slane %v3127, %v6503
      %v6506 = vunpack.c.l.s4 1983009808
      %v6507 = vunpack.c.0.s8 %v6506
      %v6508 = vlaneseq
      %v6509 = vshrl.u32 %v6508, 7
      %v6510 = vsub.s32 %v6507, %v6509
      %v6511 = vrot.slane %v6497, %v6510
      %v6512 = vcombine.high %v6504, %v6504
      %v6513 = vcombine.high %v6511, %v6511
      %v6514 = vcombine.high %v3130, %v3130
      %v6516 = vunpack.c.l.s4 1983009808
      %v6517 = vunpack.c.0.s8 %v6516
      %v6518 = vlaneseq
      %v6519 = vshrl.u32 %v6518, 7
      %v6520 = vsub.s32 %v6517, %v6519
      %v6521 = vrot.slane %v3130, %v6520
      %v6523 = vunpack.c.l.s4 1983009808
      %v6524 = vunpack.c.0.s8 %v6523
      %v6525 = vlaneseq
      %v6526 = vshrl.u32 %v6525, 7
      %v6527 = vsub.s32 %v6524, %v6526
      %v6528 = vrot.slane %v6514, %v6527
      %v6529 = vcombine.high %v6521, %v6521
      %v6530 = vcombine.high %v6528, %v6528
      %v6531 = vcombine.high %v3131, %v3131
      %v6533 = vunpack.c.l.s4 1983009808
      %v6534 = vunpack.c.0.s8 %v6533
      %v6535 = vlaneseq
      %v6536 = vshrl.u32 %v6535, 7
      %v6537 = vsub.s32 %v6534, %v6536
      %v6538 = vrot.slane %v3131, %v6537
      %v6540 = vunpack.c.l.s4 1983009808
      %v6541 = vunpack.c.0.s8 %v6540
      %v6542 = vlaneseq
      %v6543 = vshrl.u32 %v6542, 7
      %v6544 = vsub.s32 %v6541, %v6543
      %v6545 = vrot.slane %v6531, %v6544
      %v6546 = vcombine.high %v6538, %v6538
      %v6547 = vcombine.high %v6545, %v6545
      %v6548 = vcombine.high %v3134, %v3134
      %v6550 = vunpack.c.l.s4 1983009808
      %v6551 = vunpack.c.0.s8 %v6550
      %v6552 = vlaneseq
      %v6553 = vshrl.u32 %v6552, 7
      %v6554 = vsub.s32 %v6551, %v6553
      %v6555 = vrot.slane %v3134, %v6554
      %v6557 = vunpack.c.l.s4 1983009808
      %v6558 = vunpack.c.0.s8 %v6557
      %v6559 = vlaneseq
      %v6560 = vshrl.u32 %v6559, 7
      %v6561 = vsub.s32 %v6558, %v6560
      %v6562 = vrot.slane %v6548, %v6561
      %v6563 = vcombine.high %v6555, %v6555
      %v6564 = vcombine.high %v6562, %v6562
      %v6565 = vcombine.high %v3135, %v3135
      %v6567 = vunpack.c.l.s4 1983009808
      %v6568 = vunpack.c.0.s8 %v6567
      %v6569 = vlaneseq
      %v6570 = vshrl.u32 %v6569, 7
      %v6571 = vsub.s32 %v6568, %v6570
      %v6572 = vrot.slane %v3135, %v6571
      %v6574 = vunpack.c.l.s4 1983009808
      %v6575 = vunpack.c.0.s8 %v6574
      %v6576 = vlaneseq
      %v6577 = vshrl.u32 %v6576, 7
      %v6578 = vsub.s32 %v6575, %v6577
      %v6579 = vrot.slane %v6565, %v6578
      %v6580 = vcombine.high %v6572, %v6572
      %v6581 = vcombine.high %v6579, %v6579
      %v6582 = vcombine.high %v3138, %v3138
      %v6584 = vunpack.c.l.s4 1983009808
      %v6585 = vunpack.c.0.s8 %v6584
      %v6586 = vlaneseq
      %v6587 = vshrl.u32 %v6586, 7
      %v6588 = vsub.s32 %v6585, %v6587
      %v6589 = vrot.slane %v3138, %v6588
      %v6591 = vunpack.c.l.s4 1983009808
      %v6592 = vunpack.c.0.s8 %v6591
      %v6593 = vlaneseq
      %v6594 = vshrl.u32 %v6593, 7
      %v6595 = vsub.s32 %v6592, %v6594
      %v6596 = vrot.slane %v6582, %v6595
      %v6597 = vcombine.high %v6589, %v6589
      %v6598 = vcombine.high %v6596, %v6596
      %v6599 = vcombine.high %v3139, %v3139
      %v6601 = vunpack.c.l.s4 1983009808
      %v6602 = vunpack.c.0.s8 %v6601
      %v6603 = vlaneseq
      %v6604 = vshrl.u32 %v6603, 7
      %v6605 = vsub.s32 %v6602, %v6604
      %v6606 = vrot.slane %v3139, %v6605
      %v6608 = vunpack.c.l.s4 1983009808
      %v6609 = vunpack.c.0.s8 %v6608
      %v6610 = vlaneseq
      %v6611 = vshrl.u32 %v6610, 7
      %v6612 = vsub.s32 %v6609, %v6611
      %v6613 = vrot.slane %v6599, %v6612
      %v6614 = vcombine.high %v6606, %v6606
      %v6615 = vcombine.high %v6613, %v6613
      %v6616 = vcombine.high %v3142, %v3142
      %v6618 = vunpack.c.l.s4 1983009808
      %v6619 = vunpack.c.0.s8 %v6618
      %v6620 = vlaneseq
      %v6621 = vshrl.u32 %v6620, 7
      %v6622 = vsub.s32 %v6619, %v6621
      %v6623 = vrot.slane %v3142, %v6622
      %v6625 = vunpack.c.l.s4 1983009808
      %v6626 = vunpack.c.0.s8 %v6625
      %v6627 = vlaneseq
      %v6628 = vshrl.u32 %v6627, 7
      %v6629 = vsub.s32 %v6626, %v6628
      %v6630 = vrot.slane %v6616, %v6629
      %v6631 = vcombine.high %v6623, %v6623
      %v6632 = vcombine.high %v6630, %v6630
      %v6633 = vcombine.high %v3143, %v3143
      %v6635 = vunpack.c.l.s4 1983009808
      %v6636 = vunpack.c.0.s8 %v6635
      %v6637 = vlaneseq
      %v6638 = vshrl.u32 %v6637, 7
      %v6639 = vsub.s32 %v6636, %v6638
      %v6640 = vrot.slane %v3143, %v6639
      %v6642 = vunpack.c.l.s4 1983009808
      %v6643 = vunpack.c.0.s8 %v6642
      %v6644 = vlaneseq
      %v6645 = vshrl.u32 %v6644, 7
      %v6646 = vsub.s32 %v6643, %v6645
      %v6647 = vrot.slane %v6633, %v6646
      %v6648 = vcombine.high %v6640, %v6640
      %v6649 = vcombine.high %v6647, %v6647
      %v6650 = vlaneseq
      %v6651 = vshrl.u32 %v6650, 7
      %v6652 = vsub.s32 0, %v6651
      %v6653 = vrot.slane %v6385, %v6652
      %v6654 = vlaneseq
      %v6655 = vshrl.u32 %v6654, 7
      %v6656 = vsub.s32 0, %v6655
      %v6657 = vrot.slane %v6393, %v6656
      %v6658 = vlaneseq
      %v6659 = vshrl.u32 %v6658, 7
      %v6660 = vsub.s32 0, %v6659
      %v6661 = vrot.slane %v6392, %v6660
      %v6662 = vlaneseq
      %v6663 = vshrl.u32 %v6662, 7
      %v6664 = vsub.s32 0, %v6663
      %v6665 = vrot.slane %v6394, %v6664
      %v6666 = vlaneseq
      %v6667 = vshrl.u32 %v6666, 7
      %v6668 = vsub.s32 0, %v6667
      %v6669 = vrot.slane %v6402, %v6668
      %v6670 = vlaneseq
      %v6671 = vshrl.u32 %v6670, 7
      %v6672 = vsub.s32 0, %v6671
      %v6673 = vrot.slane %v6410, %v6672
      %v6674 = vlaneseq
      %v6675 = vshrl.u32 %v6674, 7
      %v6676 = vsub.s32 0, %v6675
      %v6677 = vrot.slane %v6409, %v6676
      %v6678 = vlaneseq
      %v6679 = vshrl.u32 %v6678, 7
      %v6680 = vsub.s32 0, %v6679
      %v6681 = vrot.slane %v6411, %v6680
      %v6682 = vlaneseq
      %v6683 = vshrl.u32 %v6682, 7
      %v6684 = vsub.s32 0, %v6683
      %v6685 = vrot.slane %v6419, %v6684
      %v6686 = vlaneseq
      %v6687 = vshrl.u32 %v6686, 7
      %v6688 = vsub.s32 0, %v6687
      %v6689 = vrot.slane %v6427, %v6688
      %v6690 = vlaneseq
      %v6691 = vshrl.u32 %v6690, 7
      %v6692 = vsub.s32 0, %v6691
      %v6693 = vrot.slane %v6426, %v6692
      %v6694 = vlaneseq
      %v6695 = vshrl.u32 %v6694, 7
      %v6696 = vsub.s32 0, %v6695
      %v6697 = vrot.slane %v6428, %v6696
      %v6698 = vlaneseq
      %v6699 = vshrl.u32 %v6698, 7
      %v6700 = vsub.s32 0, %v6699
      %v6701 = vrot.slane %v6436, %v6700
      %v6702 = vlaneseq
      %v6703 = vshrl.u32 %v6702, 7
      %v6704 = vsub.s32 0, %v6703
      %v6705 = vrot.slane %v6444, %v6704
      %v6706 = vlaneseq
      %v6707 = vshrl.u32 %v6706, 7
      %v6708 = vsub.s32 0, %v6707
      %v6709 = vrot.slane %v6443, %v6708
      %v6710 = vlaneseq
      %v6711 = vshrl.u32 %v6710, 7
      %v6712 = vsub.s32 0, %v6711
      %v6713 = vrot.slane %v6445, %v6712
      %v6714 = vlaneseq
      %v6715 = vshrl.u32 %v6714, 7
      %v6716 = vsub.s32 0, %v6715
      %v6717 = vrot.slane %v6453, %v6716
      %v6718 = vlaneseq
      %v6719 = vshrl.u32 %v6718, 7
      %v6720 = vsub.s32 0, %v6719
      %v6721 = vrot.slane %v6461, %v6720
      %v6722 = vlaneseq
      %v6723 = vshrl.u32 %v6722, 7
      %v6724 = vsub.s32 0, %v6723
      %v6725 = vrot.slane %v6460, %v6724
      %v6726 = vlaneseq
      %v6727 = vshrl.u32 %v6726, 7
      %v6728 = vsub.s32 0, %v6727
      %v6729 = vrot.slane %v6462, %v6728
      %v6730 = vlaneseq
      %v6731 = vshrl.u32 %v6730, 7
      %v6732 = vsub.s32 0, %v6731
      %v6733 = vrot.slane %v6470, %v6732
      %v6734 = vlaneseq
      %v6735 = vshrl.u32 %v6734, 7
      %v6736 = vsub.s32 0, %v6735
      %v6737 = vrot.slane %v6478, %v6736
      %v6738 = vlaneseq
      %v6739 = vshrl.u32 %v6738, 7
      %v6740 = vsub.s32 0, %v6739
      %v6741 = vrot.slane %v6477, %v6740
      %v6742 = vlaneseq
      %v6743 = vshrl.u32 %v6742, 7
      %v6744 = vsub.s32 0, %v6743
      %v6745 = vrot.slane %v6479, %v6744
      %v6746 = vlaneseq
      %v6747 = vshrl.u32 %v6746, 7
      %v6748 = vsub.s32 0, %v6747
      %v6749 = vrot.slane %v6487, %v6748
      %v6750 = vlaneseq
      %v6751 = vshrl.u32 %v6750, 7
      %v6752 = vsub.s32 0, %v6751
      %v6753 = vrot.slane %v6495, %v6752
      %v6754 = vlaneseq
      %v6755 = vshrl.u32 %v6754, 7
      %v6756 = vsub.s32 0, %v6755
      %v6757 = vrot.slane %v6494, %v6756
      %v6758 = vlaneseq
      %v6759 = vshrl.u32 %v6758, 7
      %v6760 = vsub.s32 0, %v6759
      %v6761 = vrot.slane %v6496, %v6760
      %v6762 = vlaneseq
      %v6763 = vshrl.u32 %v6762, 7
      %v6764 = vsub.s32 0, %v6763
      %v6765 = vrot.slane %v6504, %v6764
      %v6766 = vlaneseq
      %v6767 = vshrl.u32 %v6766, 7
      %v6768 = vsub.s32 0, %v6767
      %v6769 = vrot.slane %v6512, %v6768
      %v6770 = vlaneseq
      %v6771 = vshrl.u32 %v6770, 7
      %v6772 = vsub.s32 0, %v6771
      %v6773 = vrot.slane %v6511, %v6772
      %v6774 = vlaneseq
      %v6775 = vshrl.u32 %v6774, 7
      %v6776 = vsub.s32 0, %v6775
      %v6777 = vrot.slane %v6513, %v6776
      %v6778 = vlaneseq
      %v6779 = vshrl.u32 %v6778, 7
      %v6780 = vsub.s32 0, %v6779
      %v6781 = vrot.slane %v6521, %v6780
      %v6782 = vlaneseq
      %v6783 = vshrl.u32 %v6782, 7
      %v6784 = vsub.s32 0, %v6783
      %v6785 = vrot.slane %v6529, %v6784
      %v6786 = vlaneseq
      %v6787 = vshrl.u32 %v6786, 7
      %v6788 = vsub.s32 0, %v6787
      %v6789 = vrot.slane %v6528, %v6788
      %v6790 = vlaneseq
      %v6791 = vshrl.u32 %v6790, 7
      %v6792 = vsub.s32 0, %v6791
      %v6793 = vrot.slane %v6530, %v6792
      %v6794 = vlaneseq
      %v6795 = vshrl.u32 %v6794, 7
      %v6796 = vsub.s32 0, %v6795
      %v6797 = vrot.slane %v6538, %v6796
      %v6798 = vlaneseq
      %v6799 = vshrl.u32 %v6798, 7
      %v6800 = vsub.s32 0, %v6799
      %v6801 = vrot.slane %v6546, %v6800
      %v6802 = vlaneseq
      %v6803 = vshrl.u32 %v6802, 7
      %v6804 = vsub.s32 0, %v6803
      %v6805 = vrot.slane %v6545, %v6804
      %v6806 = vlaneseq
      %v6807 = vshrl.u32 %v6806, 7
      %v6808 = vsub.s32 0, %v6807
      %v6809 = vrot.slane %v6547, %v6808
      %v6810 = vlaneseq
      %v6811 = vshrl.u32 %v6810, 7
      %v6812 = vsub.s32 0, %v6811
      %v6813 = vrot.slane %v6555, %v6812
      %v6814 = vlaneseq
      %v6815 = vshrl.u32 %v6814, 7
      %v6816 = vsub.s32 0, %v6815
      %v6817 = vrot.slane %v6563, %v6816
      %v6818 = vlaneseq
      %v6819 = vshrl.u32 %v6818, 7
      %v6820 = vsub.s32 0, %v6819
      %v6821 = vrot.slane %v6562, %v6820
      %v6822 = vlaneseq
      %v6823 = vshrl.u32 %v6822, 7
      %v6824 = vsub.s32 0, %v6823
      %v6825 = vrot.slane %v6564, %v6824
      %v6826 = vlaneseq
      %v6827 = vshrl.u32 %v6826, 7
      %v6828 = vsub.s32 0, %v6827
      %v6829 = vrot.slane %v6572, %v6828
      %v6830 = vlaneseq
      %v6831 = vshrl.u32 %v6830, 7
      %v6832 = vsub.s32 0, %v6831
      %v6833 = vrot.slane %v6580, %v6832
      %v6834 = vlaneseq
      %v6835 = vshrl.u32 %v6834, 7
      %v6836 = vsub.s32 0, %v6835
      %v6837 = vrot.slane %v6579, %v6836
      %v6838 = vlaneseq
      %v6839 = vshrl.u32 %v6838, 7
      %v6840 = vsub.s32 0, %v6839
      %v6841 = vrot.slane %v6581, %v6840
      %v6842 = vlaneseq
      %v6843 = vshrl.u32 %v6842, 7
      %v6844 = vsub.s32 0, %v6843
      %v6845 = vrot.slane %v6589, %v6844
      %v6846 = vlaneseq
      %v6847 = vshrl.u32 %v6846, 7
      %v6848 = vsub.s32 0, %v6847
      %v6849 = vrot.slane %v6597, %v6848
      %v6850 = vlaneseq
      %v6851 = vshrl.u32 %v6850, 7
      %v6852 = vsub.s32 0, %v6851
      %v6853 = vrot.slane %v6596, %v6852
      %v6854 = vlaneseq
      %v6855 = vshrl.u32 %v6854, 7
      %v6856 = vsub.s32 0, %v6855
      %v6857 = vrot.slane %v6598, %v6856
      %v6858 = vlaneseq
      %v6859 = vshrl.u32 %v6858, 7
      %v6860 = vsub.s32 0, %v6859
      %v6861 = vrot.slane %v6606, %v6860
      %v6862 = vlaneseq
      %v6863 = vshrl.u32 %v6862, 7
      %v6864 = vsub.s32 0, %v6863
      %v6865 = vrot.slane %v6614, %v6864
      %v6866 = vlaneseq
      %v6867 = vshrl.u32 %v6866, 7
      %v6868 = vsub.s32 0, %v6867
      %v6869 = vrot.slane %v6613, %v6868
      %v6870 = vlaneseq
      %v6871 = vshrl.u32 %v6870, 7
      %v6872 = vsub.s32 0, %v6871
      %v6873 = vrot.slane %v6615, %v6872
      %v6874 = vlaneseq
      %v6875 = vshrl.u32 %v6874, 7
      %v6876 = vsub.s32 0, %v6875
      %v6877 = vrot.slane %v6623, %v6876
      %v6878 = vlaneseq
      %v6879 = vshrl.u32 %v6878, 7
      %v6880 = vsub.s32 0, %v6879
      %v6881 = vrot.slane %v6631, %v6880
      %v6882 = vlaneseq
      %v6883 = vshrl.u32 %v6882, 7
      %v6884 = vsub.s32 0, %v6883
      %v6885 = vrot.slane %v6630, %v6884
      %v6886 = vlaneseq
      %v6887 = vshrl.u32 %v6886, 7
      %v6888 = vsub.s32 0, %v6887
      %v6889 = vrot.slane %v6632, %v6888
      %v6890 = vlaneseq
      %v6891 = vshrl.u32 %v6890, 7
      %v6892 = vsub.s32 0, %v6891
      %v6893 = vrot.slane %v6640, %v6892
      %v6894 = vlaneseq
      %v6895 = vshrl.u32 %v6894, 7
      %v6896 = vsub.s32 0, %v6895
      %v6897 = vrot.slane %v6648, %v6896
      %v6898 = vlaneseq
      %v6899 = vshrl.u32 %v6898, 7
      %v6900 = vsub.s32 0, %v6899
      %v6901 = vrot.slane %v6647, %v6900
      %v6902 = vlaneseq
      %v6903 = vshrl.u32 %v6902, 7
      %v6904 = vsub.s32 0, %v6903
      %v6905 = vrot.slane %v6649, %v6904
      %vm6906 = vcmask 1041409
      %v6907 = vsel %vm6906, %v6657, %v6653
      %vm6908 = vcmask 1042434
      %v6909 = vsel %vm6908, %v6661, %v6907
      %vm6910 = vcmask 1043459
      %v6911 = vsel %vm6910, %v6665, %v6909
      %vm6912 = vcmask 1044484
      %v6913 = vsel %vm6912, %v6669, %v6911
      %vm6914 = vcmask 1045509
      %v6915 = vsel %vm6914, %v6673, %v6913
      %vm6916 = vcmask 1046534
      %v6917 = vsel %vm6916, %v6677, %v6915
      %vm6918 = vcmask 1047559
      %v6919 = vsel %vm6918, %v6681, %v6917
      %v6920 = vsel %vm6906, %v6689, %v6685
      %v6921 = vsel %vm6908, %v6693, %v6920
      %v6922 = vsel %vm6910, %v6697, %v6921
      %v6923 = vsel %vm6912, %v6701, %v6922
      %v6924 = vsel %vm6914, %v6705, %v6923
      %v6925 = vsel %vm6916, %v6709, %v6924
      %v6926 = vsel %vm6918, %v6713, %v6925
      %v6927 = vsel %vm6906, %v6721, %v6717
      %v6928 = vsel %vm6908, %v6725, %v6927
      %v6929 = vsel %vm6910, %v6729, %v6928
      %v6930 = vsel %vm6912, %v6733, %v6929
      %v6931 = vsel %vm6914, %v6737, %v6930
      %v6932 = vsel %vm6916, %v6741, %v6931
      %v6933 = vsel %vm6918, %v6745, %v6932
      %v6934 = vsel %vm6906, %v6753, %v6749
      %v6935 = vsel %vm6908, %v6757, %v6934
      %v6936 = vsel %vm6910, %v6761, %v6935
      %v6937 = vsel %vm6912, %v6765, %v6936
      %v6938 = vsel %vm6914, %v6769, %v6937
      %v6939 = vsel %vm6916, %v6773, %v6938
      %v6940 = vsel %vm6918, %v6777, %v6939
      %v6941 = vsel %vm6906, %v6785, %v6781
      %v6942 = vsel %vm6908, %v6789, %v6941
      %v6943 = vsel %vm6910, %v6793, %v6942
      %v6944 = vsel %vm6912, %v6797, %v6943
      %v6945 = vsel %vm6914, %v6801, %v6944
      %v6946 = vsel %vm6916, %v6805, %v6945
      %v6947 = vsel %vm6918, %v6809, %v6946
      %v6948 = vsel %vm6906, %v6817, %v6813
      %v6949 = vsel %vm6908, %v6821, %v6948
      %v6950 = vsel %vm6910, %v6825, %v6949
      %v6951 = vsel %vm6912, %v6829, %v6950
      %v6952 = vsel %vm6914, %v6833, %v6951
      %v6953 = vsel %vm6916, %v6837, %v6952
      %v6954 = vsel %vm6918, %v6841, %v6953
      %v6955 = vsel %vm6906, %v6849, %v6845
      %v6956 = vsel %vm6908, %v6853, %v6955
      %v6957 = vsel %vm6910, %v6857, %v6956
      %v6958 = vsel %vm6912, %v6861, %v6957
      %v6959 = vsel %vm6914, %v6865, %v6958
      %v6960 = vsel %vm6916, %v6869, %v6959
      %v6961 = vsel %vm6918, %v6873, %v6960
      %v6962 = vsel %vm6906, %v6881, %v6877
      %v6963 = vsel %vm6908, %v6885, %v6962
      %v6964 = vsel %vm6910, %v6889, %v6963
      %v6965 = vsel %vm6912, %v6893, %v6964
      %v6966 = vsel %vm6914, %v6897, %v6965
      %v6967 = vsel %vm6916, %v6901, %v6966
      %v6968 = vsel %vm6918, %v6905, %v6967
      %6977 = vst [vmem:[%s590 + $0x1] sm:$0xff] %v6919
      %6978 = vst [vmem:[%s590 + $0x11] sm:$0xff] %v6926
      %6979 = vst [vmem:[%s590 + $0x21] sm:$0xff] %v6933
      %6980 = vst [vmem:[%s590 + $0x31] sm:$0xff] %v6940
      %6981 = vst [vmem:[%s590 + $0x41] sm:$0xff] %v6947
      %6982 = vst [vmem:[%s590 + $0x51] sm:$0xff] %v6954
      %6983 = vst [vmem:[%s590 + $0x61] sm:$0xff] %v6961
      %6984 = vst [vmem:[%s590 + $0x71] sm:$0xff] %v6968
      %v6985 = vld [vmem:[#allocation4] sm:$0xff]
      %v6986 = vld [vmem:[#allocation4 + $0x10] sm:$0xff]
      %v6987 = vld [vmem:[#allocation4 + $0x20] sm:$0xff]
      %v6988 = vld [vmem:[#allocation4 + $0x30] sm:$0xff]
      %v6989 = vld [vmem:[#allocation4 + $0x40] sm:$0xff]
      %v6990 = vld [vmem:[#allocation4 + $0x50] sm:$0xff]
      %v6991 = vld [vmem:[#allocation4 + $0x60] sm:$0xff]
      %v6992 = vld [vmem:[#allocation4 + $0x70] sm:$0xff]
      %6993 = vst [vmem:[#allocation6] sm:$0xff] %v6985
      %6994 = vst [vmem:[#allocation6 + $0x48] sm:$0xff] %v6986
      %6995 = vst [vmem:[#allocation6 + $0x90] sm:$0xff] %v6987
      %6996 = vst [vmem:[#allocation6 + $0xd8] sm:$0xff] %v6988
      %6997 = vst [vmem:[#allocation6 + $0x120] sm:$0xff] %v6989
      %6998 = vst [vmem:[#allocation6 + $0x168] sm:$0xff] %v6990
      %6999 = vst [vmem:[#allocation6 + $0x1b0] sm:$0xff] %v6991
      %7000 = vst [vmem:[#allocation6 + $0x1f8] sm:$0xff] %v6992
      %v7001 = vld [vmem:[#allocation4 + $0x1] sm:$0xff]
      %v7002 = vld [vmem:[#allocation4 + $0x11] sm:$0xff]
      %v7003 = vld [vmem:[#allocation4 + $0x21] sm:$0xff]
      %v7004 = vld [vmem:[#allocation4 + $0x31] sm:$0xff]
      %v7005 = vld [vmem:[#allocation4 + $0x41] sm:$0xff]
      %v7006 = vld [vmem:[#allocation4 + $0x51] sm:$0xff]
      %v7007 = vld [vmem:[#allocation4 + $0x61] sm:$0xff]
      %v7008 = vld [vmem:[#allocation4 + $0x71] sm:$0xff]
      %7009 = vst [vmem:[#allocation6 + $0x8] sm:$0xff] %v7001
      %7010 = vst [vmem:[#allocation6 + $0x50] sm:$0xff] %v7002
      %7011 = vst [vmem:[#allocation6 + $0x98] sm:$0xff] %v7003
      %7012 = vst [vmem:[#allocation6 + $0xe0] sm:$0xff] %v7004
      %7013 = vst [vmem:[#allocation6 + $0x128] sm:$0xff] %v7005
      %7014 = vst [vmem:[#allocation6 + $0x170] sm:$0xff] %v7006
      %7015 = vst [vmem:[#allocation6 + $0x1b8] sm:$0xff] %v7007
      %7016 = vst [vmem:[#allocation6 + $0x200] sm:$0xff] %v7008
      %v7017 = vld [vmem:[#allocation4 + $0x2] sm:$0xff]
      %v7018 = vld [vmem:[#allocation4 + $0x12] sm:$0xff]
      %v7019 = vld [vmem:[#allocation4 + $0x22] sm:$0xff]
      %v7020 = vld [vmem:[#allocation4 + $0x32] sm:$0xff]
      %v7021 = vld [vmem:[#allocation4 + $0x42] sm:$0xff]
      %v7022 = vld [vmem:[#allocation4 + $0x52] sm:$0xff]
      %v7023 = vld [vmem:[#allocation4 + $0x62] sm:$0xff]
      %v7024 = vld [vmem:[#allocation4 + $0x72] sm:$0xff]
      %7025 = vst [vmem:[#allocation6 + $0x10] sm:$0xff] %v7017
      %7026 = vst [vmem:[#allocation6 + $0x58] sm:$0xff] %v7018
      %7027 = vst [vmem:[#allocation6 + $0xa0] sm:$0xff] %v7019
      %7028 = vst [vmem:[#allocation6 + $0xe8] sm:$0xff] %v7020
      %7029 = vst [vmem:[#allocation6 + $0x130] sm:$0xff] %v7021
      %7030 = vst [vmem:[#allocation6 + $0x178] sm:$0xff] %v7022
      %7031 = vst [vmem:[#allocation6 + $0x1c0] sm:$0xff] %v7023
      %7032 = vst [vmem:[#allocation6 + $0x208] sm:$0xff] %v7024
      %v7033 = vld [vmem:[%s590] sm:$0xff]
      %v7034 = vld [vmem:[%s590 + $0x10] sm:$0xff]
      %v7035 = vld [vmem:[%s590 + $0x20] sm:$0xff]
      %v7036 = vld [vmem:[%s590 + $0x30] sm:$0xff]
      %v7037 = vld [vmem:[%s590 + $0x40] sm:$0xff]
      %v7038 = vld [vmem:[%s590 + $0x50] sm:$0xff]
      %v7039 = vld [vmem:[%s590 + $0x60] sm:$0xff]
      %v7040 = vld [vmem:[%s590 + $0x70] sm:$0xff]
      %7041 = vst [vmem:[#allocation6 + $0x18] sm:$0xff] %v7033
      %7042 = vst [vmem:[#allocation6 + $0x60] sm:$0xff] %v7034
      %7043 = vst [vmem:[#allocation6 + $0xa8] sm:$0xff] %v7035
      %7044 = vst [vmem:[#allocation6 + $0xf0] sm:$0xff] %v7036
      %7045 = vst [vmem:[#allocation6 + $0x138] sm:$0xff] %v7037
      %7046 = vst [vmem:[#allocation6 + $0x180] sm:$0xff] %v7038
      %7047 = vst [vmem:[#allocation6 + $0x1c8] sm:$0xff] %v7039
      %7048 = vst [vmem:[#allocation6 + $0x210] sm:$0xff] %v7040
      %v7049 = vld [vmem:[%s590 + $0x1] sm:$0xff]
      %v7050 = vld [vmem:[%s590 + $0x11] sm:$0xff]
      %v7051 = vld [vmem:[%s590 + $0x21] sm:$0xff]
      %v7052 = vld [vmem:[%s590 + $0x31] sm:$0xff]
      %v7053 = vld [vmem:[%s590 + $0x41] sm:$0xff]
      %v7054 = vld [vmem:[%s590 + $0x51] sm:$0xff]
      %v7055 = vld [vmem:[%s590 + $0x61] sm:$0xff]
      %v7056 = vld [vmem:[%s590 + $0x71] sm:$0xff]
      %7057 = vst [vmem:[#allocation6 + $0x20] sm:$0xff] %v7049
      %7058 = vst [vmem:[#allocation6 + $0x68] sm:$0xff] %v7050
      %7059 = vst [vmem:[#allocation6 + $0xb0] sm:$0xff] %v7051
      %7060 = vst [vmem:[#allocation6 + $0xf8] sm:$0xff] %v7052
      %7061 = vst [vmem:[#allocation6 + $0x140] sm:$0xff] %v7053
      %7062 = vst [vmem:[#allocation6 + $0x188] sm:$0xff] %v7054
      %7063 = vst [vmem:[#allocation6 + $0x1d0] sm:$0xff] %v7055
      %7064 = vst [vmem:[#allocation6 + $0x218] sm:$0xff] %v7056
      %v7065 = vld [vmem:[%s590 + $0x2] sm:$0xff]
      %v7066 = vld [vmem:[%s590 + $0x12] sm:$0xff]
      %v7067 = vld [vmem:[%s590 + $0x22] sm:$0xff]
      %v7068 = vld [vmem:[%s590 + $0x32] sm:$0xff]
      %v7069 = vld [vmem:[%s590 + $0x42] sm:$0xff]
      %v7070 = vld [vmem:[%s590 + $0x52] sm:$0xff]
      %v7071 = vld [vmem:[%s590 + $0x62] sm:$0xff]
      %v7072 = vld [vmem:[%s590 + $0x72] sm:$0xff]
      %7073 = vst [vmem:[#allocation6 + $0x28] sm:$0xff] %v7065
      %7074 = vst [vmem:[#allocation6 + $0x70] sm:$0xff] %v7066
      %7075 = vst [vmem:[#allocation6 + $0xb8] sm:$0xff] %v7067
      %7076 = vst [vmem:[#allocation6 + $0x100] sm:$0xff] %v7068
      %7077 = vst [vmem:[#allocation6 + $0x148] sm:$0xff] %v7069
      %7078 = vst [vmem:[#allocation6 + $0x190] sm:$0xff] %v7070
      %7079 = vst [vmem:[#allocation6 + $0x1d8] sm:$0xff] %v7071
      %7080 = vst [vmem:[#allocation6 + $0x220] sm:$0xff] %v7072
      %s7081 = scalar_lea.vmem [#allocation4], 32
      %v7082 = vld [vmem:[%s7081] sm:$0xff]
      %v7083 = vld [vmem:[%s7081 + $0x10] sm:$0xff]
      %v7084 = vld [vmem:[%s7081 + $0x20] sm:$0xff]
      %v7085 = vld [vmem:[%s7081 + $0x30] sm:$0xff]
      %v7086 = vld [vmem:[%s7081 + $0x40] sm:$0xff]
      %v7087 = vld [vmem:[%s7081 + $0x50] sm:$0xff]
      %v7088 = vld [vmem:[%s7081 + $0x60] sm:$0xff]
      %v7089 = vld [vmem:[%s7081 + $0x70] sm:$0xff]
      %7090 = vst [vmem:[#allocation6 + $0x30] sm:$0xff] %v7082
      %7091 = vst [vmem:[#allocation6 + $0x78] sm:$0xff] %v7083
      %7092 = vst [vmem:[#allocation6 + $0xc0] sm:$0xff] %v7084
      %7093 = vst [vmem:[#allocation6 + $0x108] sm:$0xff] %v7085
      %7094 = vst [vmem:[#allocation6 + $0x150] sm:$0xff] %v7086
      %7095 = vst [vmem:[#allocation6 + $0x198] sm:$0xff] %v7087
      %7096 = vst [vmem:[#allocation6 + $0x1e0] sm:$0xff] %v7088
      %7097 = vst [vmem:[#allocation6 + $0x228] sm:$0xff] %v7089
      %v7098 = vld [vmem:[%s7081 + $0x1] sm:$0xff]
      %v7099 = vld [vmem:[%s7081 + $0x11] sm:$0xff]
      %v7100 = vld [vmem:[%s7081 + $0x21] sm:$0xff]
      %v7101 = vld [vmem:[%s7081 + $0x31] sm:$0xff]
      %v7102 = vld [vmem:[%s7081 + $0x41] sm:$0xff]
      %v7103 = vld [vmem:[%s7081 + $0x51] sm:$0xff]
      %v7104 = vld [vmem:[%s7081 + $0x61] sm:$0xff]
      %v7105 = vld [vmem:[%s7081 + $0x71] sm:$0xff]
      %7106 = vst [vmem:[#allocation6 + $0x38] sm:$0xff] %v7098
      %7107 = vst [vmem:[#allocation6 + $0x80] sm:$0xff] %v7099
      %7108 = vst [vmem:[#allocation6 + $0xc8] sm:$0xff] %v7100
      %7109 = vst [vmem:[#allocation6 + $0x110] sm:$0xff] %v7101
      %7110 = vst [vmem:[#allocation6 + $0x158] sm:$0xff] %v7102
      %7111 = vst [vmem:[#allocation6 + $0x1a0] sm:$0xff] %v7103
      %7112 = vst [vmem:[#allocation6 + $0x1e8] sm:$0xff] %v7104
      %7113 = vst [vmem:[#allocation6 + $0x230] sm:$0xff] %v7105
      %v7114 = vld [vmem:[%s7081 + $0x2] sm:$0xff]
      %v7115 = vld [vmem:[%s7081 + $0x12] sm:$0xff]
      %v7116 = vld [vmem:[%s7081 + $0x22] sm:$0xff]
      %v7117 = vld [vmem:[%s7081 + $0x32] sm:$0xff]
      %v7118 = vld [vmem:[%s7081 + $0x42] sm:$0xff]
      %v7119 = vld [vmem:[%s7081 + $0x52] sm:$0xff]
      %v7120 = vld [vmem:[%s7081 + $0x62] sm:$0xff]
      %v7121 = vld [vmem:[%s7081 + $0x72] sm:$0xff]
      %7122 = vst [vmem:[#allocation6 + $0x40] sm:$0xff] %v7114
      %7123 = vst [vmem:[#allocation6 + $0x88] sm:$0xff] %v7115
      %7124 = vst [vmem:[#allocation6 + $0xd0] sm:$0xff] %v7116
      %7125 = vst [vmem:[#allocation6 + $0x118] sm:$0xff] %v7117
      %7126 = vst [vmem:[#allocation6 + $0x160] sm:$0xff] %v7118
      %7127 = vst [vmem:[#allocation6 + $0x1a8] sm:$0xff] %v7119
      %7128 = vst [vmem:[#allocation6 + $0x1f0] sm:$0xff] %v7120
      %7129 = vst [vmem:[#allocation6 + $0x238] sm:$0xff] %v7121
      %v7130 = vld [vmem:[#allocation6] sm:$0xff]
      %v7131 = vld [vmem:[#allocation6 + $0x8] sm:$0xff]
      %v7132 = vld [vmem:[#allocation6 + $0x10] sm:$0xff]
      %v7133 = vld [vmem:[#allocation6 + $0x18] sm:$0xff]
      %v7134 = vld [vmem:[#allocation6 + $0x20] sm:$0xff]
      %v7135 = vld [vmem:[#allocation6 + $0x28] sm:$0xff]
      %v7136 = vld [vmem:[#allocation6 + $0x30] sm:$0xff]
      %v7137 = vld [vmem:[#allocation6 + $0x38] sm:$0xff]
      %v7138 = vld [vmem:[#allocation6 + $0x40] sm:$0xff]
      %v7139 = vld [vmem:[#allocation6 + $0x48] sm:$0xff]
      %v7140 = vld [vmem:[#allocation6 + $0x50] sm:$0xff]
      %v7141 = vld [vmem:[#allocation6 + $0x58] sm:$0xff]
      %v7142 = vld [vmem:[#allocation6 + $0x60] sm:$0xff]
      %v7143 = vld [vmem:[#allocation6 + $0x68] sm:$0xff]
      %v7144 = vld [vmem:[#allocation6 + $0x70] sm:$0xff]
      %v7145 = vld [vmem:[#allocation6 + $0x78] sm:$0xff]
      %v7146 = vld [vmem:[#allocation6 + $0x80] sm:$0xff]
      %v7147 = vld [vmem:[#allocation6 + $0x88] sm:$0xff]
      %v7148 = vld [vmem:[#allocation6 + $0x90] sm:$0xff]
      %v7149 = vld [vmem:[#allocation6 + $0x98] sm:$0xff]
      %v7150 = vld [vmem:[#allocation6 + $0xa0] sm:$0xff]
      %v7151 = vld [vmem:[#allocation6 + $0xa8] sm:$0xff]
      %v7152 = vld [vmem:[#allocation6 + $0xb0] sm:$0xff]
      %v7153 = vld [vmem:[#allocation6 + $0xb8] sm:$0xff]
      %v7154 = vld [vmem:[#allocation6 + $0xc0] sm:$0xff]
      %v7155 = vld [vmem:[#allocation6 + $0xc8] sm:$0xff]
      %v7156 = vld [vmem:[#allocation6 + $0xd0] sm:$0xff]
      %v7157 = vld [vmem:[#allocation6 + $0xd8] sm:$0xff]
      %v7158 = vld [vmem:[#allocation6 + $0xe0] sm:$0xff]
      %v7159 = vld [vmem:[#allocation6 + $0xe8] sm:$0xff]
      %v7160 = vld [vmem:[#allocation6 + $0xf0] sm:$0xff]
      %v7161 = vld [vmem:[#allocation6 + $0xf8] sm:$0xff]
      %v7162 = vld [vmem:[#allocation6 + $0x100] sm:$0xff]
      %v7163 = vld [vmem:[#allocation6 + $0x108] sm:$0xff]
      %v7164 = vld [vmem:[#allocation6 + $0x110] sm:$0xff]
      %v7165 = vld [vmem:[#allocation6 + $0x118] sm:$0xff]
      %v7166 = vld [vmem:[#allocation6 + $0x120] sm:$0xff]
      %v7167 = vld [vmem:[#allocation6 + $0x128] sm:$0xff]
      %v7168 = vld [vmem:[#allocation6 + $0x130] sm:$0xff]
      %v7169 = vld [vmem:[#allocation6 + $0x138] sm:$0xff]
      %v7170 = vld [vmem:[#allocation6 + $0x140] sm:$0xff]
      %v7171 = vld [vmem:[#allocation6 + $0x148] sm:$0xff]
      %v7172 = vld [vmem:[#allocation6 + $0x150] sm:$0xff]
      %v7173 = vld [vmem:[#allocation6 + $0x158] sm:$0xff]
      %v7174 = vld [vmem:[#allocation6 + $0x160] sm:$0xff]
      %v7175 = vld [vmem:[#allocation6 + $0x168] sm:$0xff]
      %v7176 = vld [vmem:[#allocation6 + $0x170] sm:$0xff]
      %v7177 = vld [vmem:[#allocation6 + $0x178] sm:$0xff]
      %v7178 = vld [vmem:[#allocation6 + $0x180] sm:$0xff]
      %v7179 = vld [vmem:[#allocation6 + $0x188] sm:$0xff]
      %v7180 = vld [vmem:[#allocation6 + $0x190] sm:$0xff]
      %v7181 = vld [vmem:[#allocation6 + $0x198] sm:$0xff]
      %v7182 = vld [vmem:[#allocation6 + $0x1a0] sm:$0xff]
      %v7183 = vld [vmem:[#allocation6 + $0x1a8] sm:$0xff]
      %v7184 = vld [vmem:[#allocation6 + $0x1b0] sm:$0xff]
      %v7185 = vld [vmem:[#allocation6 + $0x1b8] sm:$0xff]
      %v7186 = vld [vmem:[#allocation6 + $0x1c0] sm:$0xff]
      %v7187 = vld [vmem:[#allocation6 + $0x1c8] sm:$0xff]
      %v7188 = vld [vmem:[#allocation6 + $0x1d0] sm:$0xff]
      %v7189 = vld [vmem:[#allocation6 + $0x1d8] sm:$0xff]
      %v7190 = vld [vmem:[#allocation6 + $0x1e0] sm:$0xff]
      %v7191 = vld [vmem:[#allocation6 + $0x1e8] sm:$0xff]
      %v7192 = vld [vmem:[#allocation6 + $0x1f0] sm:$0xff]
      %v7193 = vld [vmem:[#allocation6 + $0x1f8] sm:$0xff]
      %v7194 = vld [vmem:[#allocation6 + $0x200] sm:$0xff]
      %v7195 = vld [vmem:[#allocation6 + $0x208] sm:$0xff]
      %v7196 = vld [vmem:[#allocation6 + $0x210] sm:$0xff]
      %v7197 = vld [vmem:[#allocation6 + $0x218] sm:$0xff]
      %v7198 = vld [vmem:[#allocation6 + $0x220] sm:$0xff]
      %v7199 = vld [vmem:[#allocation6 + $0x228] sm:$0xff]
      %v7200 = vld [vmem:[#allocation6 + $0x230] sm:$0xff]
      %v7201 = vld [vmem:[#allocation6 + $0x238] sm:$0xff]
      %v7202 = vld [vmem:[%s5] sm:$0xff]
      %v7203 = vld [vmem:[%s5 + $0x8] sm:$0xff]
      %v7204 = vld [vmem:[%s5 + $0x10] sm:$0xff]
      %v7205 = vld [vmem:[%s5 + $0x18] sm:$0xff]
      %v7206 = vld [vmem:[%s5 + $0x20] sm:$0xff]
      %v7207 = vld [vmem:[%s5 + $0x28] sm:$0xff]
      %v7208 = vld [vmem:[%s5 + $0x30] sm:$0xff]
      %v7209 = vld [vmem:[%s5 + $0x38] sm:$0xff]
      %v7210 = vld [vmem:[%s5 + $0x40] sm:$0xff]
      %v7211 = vld [vmem:[%s5 + $0x48] sm:$0xff]
      %v7212 = vld [vmem:[%s5 + $0x50] sm:$0xff]
      %v7213 = vld [vmem:[%s5 + $0x58] sm:$0xff]
      %v7214 = vld [vmem:[%s5 + $0x60] sm:$0xff]
      %v7215 = vld [vmem:[%s5 + $0x68] sm:$0xff]
      %v7216 = vld [vmem:[%s5 + $0x70] sm:$0xff]
      %v7217 = vld [vmem:[%s5 + $0x78] sm:$0xff]
      %v7218 = vld [vmem:[%s5 + $0x80] sm:$0xff]
      %v7219 = vld [vmem:[%s5 + $0x88] sm:$0xff]
      %v7220 = vld [vmem:[%s5 + $0x90] sm:$0xff]
      %v7221 = vld [vmem:[%s5 + $0x98] sm:$0xff]
      %v7222 = vld [vmem:[%s5 + $0xa0] sm:$0xff]
      %v7223 = vld [vmem:[%s5 + $0xa8] sm:$0xff]
      %v7224 = vld [vmem:[%s5 + $0xb0] sm:$0xff]
      %v7225 = vld [vmem:[%s5 + $0xb8] sm:$0xff]
      %v7226 = vld [vmem:[%s5 + $0xc0] sm:$0xff]
      %v7227 = vld [vmem:[%s5 + $0xc8] sm:$0xff]
      %v7228 = vld [vmem:[%s5 + $0xd0] sm:$0xff]
      %v7229 = vld [vmem:[%s5 + $0xd8] sm:$0xff]
      %v7230 = vld [vmem:[%s5 + $0xe0] sm:$0xff]
      %v7231 = vld [vmem:[%s5 + $0xe8] sm:$0xff]
      %v7232 = vld [vmem:[%s5 + $0xf0] sm:$0xff]
      %v7233 = vld [vmem:[%s5 + $0xf8] sm:$0xff]
      %v7234 = vld [vmem:[%s5 + $0x100] sm:$0xff]
      %v7235 = vld [vmem:[%s5 + $0x108] sm:$0xff]
      %v7236 = vld [vmem:[%s5 + $0x110] sm:$0xff]
      %v7237 = vld [vmem:[%s5 + $0x118] sm:$0xff]
      %v7238 = vld [vmem:[%s5 + $0x120] sm:$0xff]
      %v7239 = vld [vmem:[%s5 + $0x128] sm:$0xff]
      %v7240 = vld [vmem:[%s5 + $0x130] sm:$0xff]
      %v7241 = vld [vmem:[%s5 + $0x138] sm:$0xff]
      %v7242 = vld [vmem:[%s5 + $0x140] sm:$0xff]
      %v7243 = vld [vmem:[%s5 + $0x148] sm:$0xff]
      %v7244 = vld [vmem:[%s5 + $0x150] sm:$0xff]
      %v7245 = vld [vmem:[%s5 + $0x158] sm:$0xff]
      %v7246 = vld [vmem:[%s5 + $0x160] sm:$0xff]
      %v7247 = vld [vmem:[%s5 + $0x168] sm:$0xff]
      %v7248 = vld [vmem:[%s5 + $0x170] sm:$0xff]
      %v7249 = vld [vmem:[%s5 + $0x178] sm:$0xff]
      %v7250 = vld [vmem:[%s5 + $0x180] sm:$0xff]
      %v7251 = vld [vmem:[%s5 + $0x188] sm:$0xff]
      %v7252 = vld [vmem:[%s5 + $0x190] sm:$0xff]
      %v7253 = vld [vmem:[%s5 + $0x198] sm:$0xff]
      %v7254 = vld [vmem:[%s5 + $0x1a0] sm:$0xff]
      %v7255 = vld [vmem:[%s5 + $0x1a8] sm:$0xff]
      %v7256 = vld [vmem:[%s5 + $0x1b0] sm:$0xff]
      %v7257 = vld [vmem:[%s5 + $0x1b8] sm:$0xff]
      %v7258 = vld [vmem:[%s5 + $0x1c0] sm:$0xff]
      %v7259 = vld [vmem:[%s5 + $0x1c8] sm:$0xff]
      %v7260 = vld [vmem:[%s5 + $0x1d0] sm:$0xff]
      %v7261 = vld [vmem:[%s5 + $0x1d8] sm:$0xff]
      %v7262 = vld [vmem:[%s5 + $0x1e0] sm:$0xff]
      %v7263 = vld [vmem:[%s5 + $0x1e8] sm:$0xff]
      %v7264 = vld [vmem:[%s5 + $0x1f0] sm:$0xff]
      %v7265 = vld [vmem:[%s5 + $0x1f8] sm:$0xff]
      %v7266 = vld [vmem:[%s5 + $0x200] sm:$0xff]
      %v7267 = vld [vmem:[%s5 + $0x208] sm:$0xff]
      %v7268 = vld [vmem:[%s5 + $0x210] sm:$0xff]
      %v7269 = vld [vmem:[%s5 + $0x218] sm:$0xff]
      %v7270 = vld [vmem:[%s5 + $0x220] sm:$0xff]
      %v7271 = vld [vmem:[%s5 + $0x228] sm:$0xff]
      %v7272 = vld [vmem:[%s5 + $0x230] sm:$0xff]
      %v7273 = vld [vmem:[%s5 + $0x238] sm:$0xff]
      %v7274 = vld [vmem:[%s5 + $0x240] sm:$0xff]
      %v7275 = vld [vmem:[%s5 + $0x248] sm:$0xff]
      %v7276 = vld [vmem:[%s5 + $0x250] sm:$0xff]
      %v7277 = vld [vmem:[%s5 + $0x258] sm:$0xff]
      %v7278 = vld [vmem:[%s5 + $0x260] sm:$0xff]
      %v7279 = vld [vmem:[%s5 + $0x268] sm:$0xff]
      %v7280 = vld [vmem:[%s5 + $0x270] sm:$0xff]
      %v7281 = vld [vmem:[%s5 + $0x278] sm:$0xff]
      %v7282 = vld [vmem:[%s5 + $0x280] sm:$0xff]
      %v7283 = vld [vmem:[%s5 + $0x288] sm:$0xff]
      %v7284 = vld [vmem:[%s5 + $0x290] sm:$0xff]
      %v7285 = vld [vmem:[%s5 + $0x298] sm:$0xff]
      %v7286 = vld [vmem:[%s5 + $0x2a0] sm:$0xff]
      %v7287 = vld [vmem:[%s5 + $0x2a8] sm:$0xff]
      %v7288 = vld [vmem:[%s5 + $0x2b0] sm:$0xff]
      %v7289 = vld [vmem:[%s5 + $0x2b8] sm:$0xff]
      %v7290 = vld [vmem:[%s5 + $0x2c0] sm:$0xff]
      %v7291 = vld [vmem:[%s5 + $0x2c8] sm:$0xff]
      %v7292 = vld [vmem:[%s5 + $0x2d0] sm:$0xff]
      %v7293 = vld [vmem:[%s5 + $0x2d8] sm:$0xff]
      %v7294 = vld [vmem:[%s5 + $0x2e0] sm:$0xff]
      %v7295 = vld [vmem:[%s5 + $0x2e8] sm:$0xff]
      %v7296 = vld [vmem:[%s5 + $0x2f0] sm:$0xff]
      %v7297 = vld [vmem:[%s5 + $0x2f8] sm:$0xff]
      %v7298 = vld [vmem:[%s5 + $0x300] sm:$0xff]
      %v7299 = vld [vmem:[%s5 + $0x308] sm:$0xff]
      %v7300 = vld [vmem:[%s5 + $0x310] sm:$0xff]
      %v7301 = vld [vmem:[%s5 + $0x318] sm:$0xff]
      %v7302 = vld [vmem:[%s5 + $0x320] sm:$0xff]
      %v7303 = vld [vmem:[%s5 + $0x328] sm:$0xff]
      %v7304 = vld [vmem:[%s5 + $0x330] sm:$0xff]
      %v7305 = vld [vmem:[%s5 + $0x338] sm:$0xff]
      %v7306 = vld [vmem:[%s5 + $0x340] sm:$0xff]
      %v7307 = vld [vmem:[%s5 + $0x348] sm:$0xff]
      %v7308 = vld [vmem:[%s5 + $0x350] sm:$0xff]
      %v7309 = vld [vmem:[%s5 + $0x358] sm:$0xff]
      %v7310 = vld [vmem:[%s5 + $0x360] sm:$0xff]
      %v7311 = vld [vmem:[%s5 + $0x368] sm:$0xff]
      %v7312 = vld [vmem:[%s5 + $0x370] sm:$0xff]
      %v7313 = vld [vmem:[%s5 + $0x378] sm:$0xff]
      %v7314 = vld [vmem:[%s5 + $0x380] sm:$0xff]
      %v7315 = vld [vmem:[%s5 + $0x388] sm:$0xff]
      %v7316 = vld [vmem:[%s5 + $0x390] sm:$0xff]
      %v7317 = vld [vmem:[%s5 + $0x398] sm:$0xff]
      %v7318 = vld [vmem:[%s5 + $0x3a0] sm:$0xff]
      %v7319 = vld [vmem:[%s5 + $0x3a8] sm:$0xff]
      %v7320 = vld [vmem:[%s5 + $0x3b0] sm:$0xff]
      %v7321 = vld [vmem:[%s5 + $0x3b8] sm:$0xff]
      %v7322 = vld [vmem:[%s5 + $0x3c0] sm:$0xff]
      %v7323 = vld [vmem:[%s5 + $0x3c8] sm:$0xff]
      %v7324 = vld [vmem:[%s5 + $0x3d0] sm:$0xff]
      %v7325 = vld [vmem:[%s5 + $0x3d8] sm:$0xff]
      %v7326 = vld [vmem:[%s5 + $0x3e0] sm:$0xff]
      %v7327 = vld [vmem:[%s5 + $0x3e8] sm:$0xff]
      %v7328 = vld [vmem:[%s5 + $0x3f0] sm:$0xff]
      %v7329 = vld [vmem:[%s5 + $0x3f8] sm:$0xff]
      %v7330 = vld [vmem:[%s5 + $0x400] sm:$0xff]
      %v7331 = vld [vmem:[%s5 + $0x408] sm:$0xff]
      %v7332 = vld [vmem:[%s5 + $0x410] sm:$0xff]
      %v7333 = vld [vmem:[%s5 + $0x418] sm:$0xff]
      %v7334 = vld [vmem:[%s5 + $0x420] sm:$0xff]
      %v7335 = vld [vmem:[%s5 + $0x428] sm:$0xff]
      %v7336 = vld [vmem:[%s5 + $0x430] sm:$0xff]
      %v7337 = vld [vmem:[%s5 + $0x438] sm:$0xff]
      %v7338 = vld [vmem:[%s5 + $0x440] sm:$0xff]
      %v7339 = vld [vmem:[%s5 + $0x448] sm:$0xff]
      %v7340 = vld [vmem:[%s5 + $0x450] sm:$0xff]
      %v7341 = vld [vmem:[%s5 + $0x458] sm:$0xff]
      %v7342 = vld [vmem:[%s5 + $0x460] sm:$0xff]
      %v7343 = vld [vmem:[%s5 + $0x468] sm:$0xff]
      %v7344 = vld [vmem:[%s5 + $0x470] sm:$0xff]
      %v7345 = vld [vmem:[%s5 + $0x478] sm:$0xff]
      %v7346 = vld [vmem:[%s6] sm:$0x1]
      %v7348 = vlaneseq
      %v7349 = vshrl.u32 %v7348, 7
      %v7350 = vsub.s32 0, %v7349
      %v7351 = vrot.slane %v7346, %v7350
      %7353 = vmatprep.subr.mxu0 0.0
      %7354 = vmatpush1.msra.mxu0 %v7202
      %7355 = vmatprep.subr.mxu0 0.0
      %7356 = vmatpush1.msra.mxu0 %v7203
      %7357 = vmatprep.subr.mxu0 0.0
      %7358 = vmatpush1.msra.mxu0 %v7204
      %7359 = vmatprep.subr.mxu0 0.0
      %7360 = vmatpush1.msra.mxu0 %v7205
      %7361 = vmatprep.subr.mxu0 0.0
      %7362 = vmatpush1.msra.mxu0 %v7206
      %7363 = vmatprep.subr.mxu0 0.0
      %7364 = vmatpush1.msra.mxu0 %v7207
      %7365 = vmatprep.subr.mxu0 0.0
      %7366 = vmatpush1.msra.mxu0 %v7208
      %7367 = vmatprep.subr.mxu0 0.0
      %7368 = vmatpush1.msra.mxu0 %v7209
      %7369 = vmatprep.subr.mxu0 0.0
      %7370 = vmatpush1.msra.mxu0 %v7210
      %7371 = vmatprep.subr.mxu0 0.0
      %7372 = vmatpush1.msra.mxu0 %v7211
      %7373 = vmatprep.subr.mxu0 0.0
      %7374 = vmatpush1.msra.mxu0 %v7212
      %7375 = vmatprep.subr.mxu0 0.0
      %7376 = vmatpush1.msra.mxu0 %v7213
      %7377 = vmatprep.subr.mxu0 0.0
      %7378 = vmatpush1.msra.mxu0 %v7214
      %7379 = vmatprep.subr.mxu0 0.0
      %7380 = vmatpush1.msra.mxu0 %v7215
      %7381 = vmatprep.subr.mxu0 0.0
      %7382 = vmatpush1.msra.mxu0 %v7216
      %7383 = vmatprep.subr.mxu0 0.0
      %7384 = vmatpush1.msra.mxu0 %v7217
      %7385 = vmatprep.subr.mxu0 0.0
      %7386 = vmatpush1.msra.mxu0 %v7218
      %7387 = vmatprep.subr.mxu0 0.0
      %7388 = vmatpush1.msra.mxu0 %v7219
      %7389 = vmatprep.subr.mxu0 0.0
      %7390 = vmatpush1.msra.mxu0 %v7220
      %7391 = vmatprep.subr.mxu0 0.0
      %7392 = vmatpush1.msra.mxu0 %v7221
      %7393 = vmatprep.subr.mxu0 0.0
      %7394 = vmatpush1.msra.mxu0 %v7222
      %7395 = vmatprep.subr.mxu0 0.0
      %7396 = vmatpush1.msra.mxu0 %v7223
      %7397 = vmatprep.subr.mxu0 0.0
      %7398 = vmatpush1.msra.mxu0 %v7224
      %7399 = vmatprep.subr.mxu0 0.0
      %7400 = vmatpush1.msra.mxu0 %v7225
      %7401 = vmatprep.subr.mxu0 0.0
      %7402 = vmatpush1.msra.mxu0 %v7226
      %7403 = vmatprep.subr.mxu0 0.0
      %7404 = vmatpush1.msra.mxu0 %v7227
      %7405 = vmatprep.subr.mxu0 0.0
      %7406 = vmatpush1.msra.mxu0 %v7228
      %7407 = vmatprep.subr.mxu0 0.0
      %7408 = vmatpush1.msra.mxu0 %v7229
      %7409 = vmatprep.subr.mxu0 0.0
      %7410 = vmatpush1.msra.mxu0 %v7230
      %7411 = vmatprep.subr.mxu0 0.0
      %7412 = vmatpush1.msra.mxu0 %v7231
      %7413 = vmatprep.subr.mxu0 0.0
      %7414 = vmatpush1.msra.mxu0 %v7232
      %7415 = vmatprep.subr.mxu0 0.0
      %7416 = vmatpush1.msra.mxu0 %v7233
      %7417 = vmatprep.mubr.f32.mxu0 %v7131
      %7418 = vmatmul.mubr.f32.gmra.mrb[0].mxu0 %v7130
      %v7419 = vpop.f32.mrb[0].mxu0
      %v7420 = vadd.f32 %v7351, %v7419
      %v7421 = vpop.f32.mrb[0].mxu0
      %7422 = vmatprep.mubr.f32.mxu0 %v7140
      %7423 = vmatmul.mubr.f32.gmra.mrb[0].mxu0 %v7139
      %v7424 = vpop.f32.mrb[0].mxu0
      %v7425 = vadd.f32 %v7351, %v7424
      %v7426 = vpop.f32.mrb[0].mxu0
      %7427 = vmatprep.mubr.f32.mxu0 %v7149
      %7428 = vmatmul.mubr.f32.gmra.mrb[0].mxu0 %v7148
      %v7429 = vpop.f32.mrb[0].mxu0
      %v7430 = vadd.f32 %v7351, %v7429
      %v7431 = vpop.f32.mrb[0].mxu0
      %7432 = vmatprep.mubr.f32.mxu0 %v7158
      %7433 = vmatmul.mubr.f32.gmra.mrb[0].mxu0 %v7157
      %v7434 = vpop.f32.mrb[0].mxu0
      %v7435 = vadd.f32 %v7351, %v7434
      %v7436 = vpop.f32.mrb[0].mxu0
      %7437 = vmatprep.mubr.f32.mxu0 %v7167
      %7438 = vmatmul.mubr.f32.gmra.mrb[0].mxu0 %v7166
      %v7439 = vpop.f32.mrb[0].mxu0
      %v7440 = vadd.f32 %v7351, %v7439
      %v7441 = vpop.f32.mrb[0].mxu0
      %7442 = vmatprep.mubr.f32.mxu0 %v7176
      %7443 = vmatmul.mubr.f32.gmra.mrb[0].mxu0 %v7175
      %v7444 = vpop.f32.mrb[0].mxu0
      %v7445 = vadd.f32 %v7351, %v7444
      %v7446 = vpop.f32.mrb[0].mxu0
      %7447 = vmatprep.mubr.f32.mxu0 %v7185
      %7448 = vmatmul.mubr.f32.gmra.mrb[0].mxu0 %v7184
      %v7449 = vpop.f32.mrb[0].mxu0
      %v7450 = vadd.f32 %v7351, %v7449
      %v7451 = vpop.f32.mrb[0].mxu0
      %7452 = vmatprep.mubr.f32.mxu0 %v7194
      %7453 = vmatmul.mubr.f32.gmra.mrb[0].mxu0 %v7193
      %v7454 = vpop.f32.mrb[0].mxu0
      %v7455 = vadd.f32 %v7351, %v7454
      %v7456 = vpop.f32.mrb[0].mxu0
      %7457 = vdwg.mxu0
      %7458 = vmatprep.subr.mxu0 0.0
      %7459 = vmatpush1.msra.mxu0 %v7234
      %7460 = vmatprep.subr.mxu0 0.0
      %7461 = vmatpush1.msra.mxu0 %v7235
      %7462 = vmatprep.subr.mxu0 0.0
      %7463 = vmatpush1.msra.mxu0 %v7236
      %7464 = vmatprep.subr.mxu0 0.0
      %7465 = vmatpush1.msra.mxu0 %v7237
      %7466 = vmatprep.subr.mxu0 0.0
      %7467 = vmatpush1.msra.mxu0 %v7238
      %7468 = vmatprep.subr.mxu0 0.0
      %7469 = vmatpush1.msra.mxu0 %v7239
      %7470 = vmatprep.subr.mxu0 0.0
      %7471 = vmatpush1.msra.mxu0 %v7240
      %7472 = vmatprep.subr.mxu0 0.0
      %7473 = vmatpush1.msra.mxu0 %v7241
      %7474 = vmatprep.subr.mxu0 0.0
      %7475 = vmatpush1.msra.mxu0 %v7242
      %7476 = vmatprep.subr.mxu0 0.0
      %7477 = vmatpush1.msra.mxu0 %v7243
      %7478 = vmatprep.subr.mxu0 0.0
      %7479 = vmatpush1.msra.mxu0 %v7244
      %7480 = vmatprep.subr.mxu0 0.0
      %7481 = vmatpush1.msra.mxu0 %v7245
      %7482 = vmatprep.subr.mxu0 0.0
      %7483 = vmatpush1.msra.mxu0 %v7246
      %7484 = vmatprep.subr.mxu0 0.0
      %7485 = vmatpush1.msra.mxu0 %v7247
      %7486 = vmatprep.subr.mxu0 0.0
      %7487 = vmatpush1.msra.mxu0 %v7248
      %7488 = vmatprep.subr.mxu0 0.0
      %7489 = vmatpush1.msra.mxu0 %v7249
      %7490 = vmatprep.subr.mxu0 0.0
      %7491 = vmatpush1.msra.mxu0 %v7250
      %7492 = vmatprep.subr.mxu0 0.0
      %7493 = vmatpush1.msra.mxu0 %v7251
      %7494 = vmatprep.subr.mxu0 0.0
      %7495 = vmatpush1.msra.mxu0 %v7252
      %7496 = vmatprep.subr.mxu0 0.0
      %7497 = vmatpush1.msra.mxu0 %v7253
      %7498 = vmatprep.subr.mxu0 0.0
      %7499 = vmatpush1.msra.mxu0 %v7254
      %7500 = vmatprep.subr.mxu0 0.0
      %7501 = vmatpush1.msra.mxu0 %v7255
      %7502 = vmatprep.subr.mxu0 0.0
      %7503 = vmatpush1.msra.mxu0 %v7256
      %7504 = vmatprep.subr.mxu0 0.0
      %7505 = vmatpush1.msra.mxu0 %v7257
      %7506 = vmatprep.subr.mxu0 0.0
      %7507 = vmatpush1.msra.mxu0 %v7258
      %7508 = vmatprep.subr.mxu0 0.0
      %7509 = vmatpush1.msra.mxu0 %v7259
      %7510 = vmatprep.subr.mxu0 0.0
      %7511 = vmatpush1.msra.mxu0 %v7260
      %7512 = vmatprep.subr.mxu0 0.0
      %7513 = vmatpush1.msra.mxu0 %v7261
      %7514 = vmatprep.subr.mxu0 0.0
      %7515 = vmatpush1.msra.mxu0 %v7262
      %7516 = vmatprep.subr.mxu0 0.0
      %7517 = vmatpush1.msra.mxu0 %v7263
      %7518 = vmatprep.subr.mxu0 0.0
      %7519 = vmatpush1.msra.mxu0 %v7264
      %7520 = vmatprep.subr.mxu0 0.0
      %7521 = vmatpush1.msra.mxu0 %v7265
      %7522 = vmatprep.mubr.f32.mxu0 %v7133
      %7523 = vmatmul.mubr.f32.gmra.mrb[0].mxu0 %v7132
      %v7524 = vpop.f32.mrb[0].mxu0
      %v7525 = vadd.f32 %v7420, %v7524
      %v7526 = vpop.f32.mrb[0].mxu0
      %7527 = vmatprep.mubr.f32.mxu0 %v7142
      %7528 = vmatmul.mubr.f32.gmra.mrb[0].mxu0 %v7141
      %v7529 = vpop.f32.mrb[0].mxu0
      %v7530 = vadd.f32 %v7425, %v7529
      %v7531 = vpop.f32.mrb[0].mxu0
      %7532 = vmatprep.mubr.f32.mxu0 %v7151
      %7533 = vmatmul.mubr.f32.gmra.mrb[0].mxu0 %v7150
      %v7534 = vpop.f32.mrb[0].mxu0
      %v7535 = vadd.f32 %v7430, %v7534
      %v7536 = vpop.f32.mrb[0].mxu0
      %7537 = vmatprep.mubr.f32.mxu0 %v7160
      %7538 = vmatmul.mubr.f32.gmra.mrb[0].mxu0 %v7159
      %v7539 = vpop.f32.mrb[0].mxu0
      %v7540 = vadd.f32 %v7435, %v7539
      %v7541 = vpop.f32.mrb[0].mxu0
      %7542 = vmatprep.mubr.f32.mxu0 %v7169
      %7543 = vmatmul.mubr.f32.gmra.mrb[0].mxu0 %v7168
      %v7544 = vpop.f32.mrb[0].mxu0
      %v7545 = vadd.f32 %v7440, %v7544
      %v7546 = vpop.f32.mrb[0].mxu0
      %7547 = vmatprep.mubr.f32.mxu0 %v7178
      %7548 = vmatmul.mubr.f32.gmra.mrb[0].mxu0 %v7177
      %v7549 = vpop.f32.mrb[0].mxu0
      %v7550 = vadd.f32 %v7445, %v7549
      %v7551 = vpop.f32.mrb[0].mxu0
      %7552 = vmatprep.mubr.f32.mxu0 %v7187
      %7553 = vmatmul.mubr.f32.gmra.mrb[0].mxu0 %v7186
      %v7554 = vpop.f32.mrb[0].mxu0
      %v7555 = vadd.f32 %v7450, %v7554
      %v7556 = vpop.f32.mrb[0].mxu0
      %7557 = vmatprep.mubr.f32.mxu0 %v7196
      %7558 = vmatmul.mubr.f32.gmra.mrb[0].mxu0 %v7195
      %v7559 = vpop.f32.mrb[0].mxu0
      %v7560 = vadd.f32 %v7455, %v7559
      %v7561 = vpop.f32.mrb[0].mxu0
      %7562 = vdwg.mxu0
      %7563 = vmatprep.subr.mxu0 0.0
      %7564 = vmatpush1.msra.mxu0 %v7266
      %7565 = vmatprep.subr.mxu0 0.0
      %7566 = vmatpush1.msra.mxu0 %v7267
      %7567 = vmatprep.subr.mxu0 0.0
      %7568 = vmatpush1.msra.mxu0 %v7268
      %7569 = vmatprep.subr.mxu0 0.0
      %7570 = vmatpush1.msra.mxu0 %v7269
      %7571 = vmatprep.subr.mxu0 0.0
      %7572 = vmatpush1.msra.mxu0 %v7270
      %7573 = vmatprep.subr.mxu0 0.0
      %7574 = vmatpush1.msra.mxu0 %v7271
      %7575 = vmatprep.subr.mxu0 0.0
      %7576 = vmatpush1.msra.mxu0 %v7272
      %7577 = vmatprep.subr.mxu0 0.0
      %7578 = vmatpush1.msra.mxu0 %v7273
      %7579 = vmatprep.subr.mxu0 0.0
      %7580 = vmatpush1.msra.mxu0 %v7274
      %7581 = vmatprep.subr.mxu0 0.0
      %7582 = vmatpush1.msra.mxu0 %v7275
      %7583 = vmatprep.subr.mxu0 0.0
      %7584 = vmatpush1.msra.mxu0 %v7276
      %7585 = vmatprep.subr.mxu0 0.0
      %7586 = vmatpush1.msra.mxu0 %v7277
      %7587 = vmatprep.subr.mxu0 0.0
      %7588 = vmatpush1.msra.mxu0 %v7278
      %7589 = vmatprep.subr.mxu0 0.0
      %7590 = vmatpush1.msra.mxu0 %v7279
      %7591 = vmatprep.subr.mxu0 0.0
      %7592 = vmatpush1.msra.mxu0 %v7280
      %7593 = vmatprep.subr.mxu0 0.0
      %7594 = vmatpush1.msra.mxu0 %v7281
      %7595 = vmatprep.subr.mxu0 0.0
      %7596 = vmatpush1.msra.mxu0 %v7282
      %7597 = vmatprep.subr.mxu0 0.0
      %7598 = vmatpush1.msra.mxu0 %v7283
      %7599 = vmatprep.subr.mxu0 0.0
      %7600 = vmatpush1.msra.mxu0 %v7284
      %7601 = vmatprep.subr.mxu0 0.0
      %7602 = vmatpush1.msra.mxu0 %v7285
      %7603 = vmatprep.subr.mxu0 0.0
      %7604 = vmatpush1.msra.mxu0 %v7286
      %7605 = vmatprep.subr.mxu0 0.0
      %7606 = vmatpush1.msra.mxu0 %v7287
      %7607 = vmatprep.subr.mxu0 0.0
      %7608 = vmatpush1.msra.mxu0 %v7288
      %7609 = vmatprep.subr.mxu0 0.0
      %7610 = vmatpush1.msra.mxu0 %v7289
      %7611 = vmatprep.subr.mxu0 0.0
      %7612 = vmatpush1.msra.mxu0 %v7290
      %7613 = vmatprep.subr.mxu0 0.0
      %7614 = vmatpush1.msra.mxu0 %v7291
      %7615 = vmatprep.subr.mxu0 0.0
      %7616 = vmatpush1.msra.mxu0 %v7292
      %7617 = vmatprep.subr.mxu0 0.0
      %7618 = vmatpush1.msra.mxu0 %v7293
      %7619 = vmatprep.subr.mxu0 0.0
      %7620 = vmatpush1.msra.mxu0 %v7294
      %7621 = vmatprep.subr.mxu0 0.0
      %7622 = vmatpush1.msra.mxu0 %v7295
      %7623 = vmatprep.subr.mxu0 0.0
      %7624 = vmatpush1.msra.mxu0 %v7296
      %7625 = vmatprep.subr.mxu0 0.0
      %7626 = vmatpush1.msra.mxu0 %v7297
      %7627 = vmatprep.mubr.f32.mxu0 %v7135
      %7628 = vmatmul.mubr.f32.gmra.mrb[0].mxu0 %v7134
      %v7629 = vpop.f32.mrb[0].mxu0
      %v7630 = vadd.f32 %v7525, %v7629
      %v7631 = vpop.f32.mrb[0].mxu0
      %7632 = vmatprep.mubr.f32.mxu0 %v7144
      %7633 = vmatmul.mubr.f32.gmra.mrb[0].mxu0 %v7143
      %v7634 = vpop.f32.mrb[0].mxu0
      %v7635 = vadd.f32 %v7530, %v7634
      %v7636 = vpop.f32.mrb[0].mxu0
      %7637 = vmatprep.mubr.f32.mxu0 %v7153
      %7638 = vmatmul.mubr.f32.gmra.mrb[0].mxu0 %v7152
      %v7639 = vpop.f32.mrb[0].mxu0
      %v7640 = vadd.f32 %v7535, %v7639
      %v7641 = vpop.f32.mrb[0].mxu0
      %7642 = vmatprep.mubr.f32.mxu0 %v7162
      %7643 = vmatmul.mubr.f32.gmra.mrb[0].mxu0 %v7161
      %v7644 = vpop.f32.mrb[0].mxu0
      %v7645 = vadd.f32 %v7540, %v7644
      %v7646 = vpop.f32.mrb[0].mxu0
      %7647 = vmatprep.mubr.f32.mxu0 %v7171
      %7648 = vmatmul.mubr.f32.gmra.mrb[0].mxu0 %v7170
      %v7649 = vpop.f32.mrb[0].mxu0
      %v7650 = vadd.f32 %v7545, %v7649
      %v7651 = vpop.f32.mrb[0].mxu0
      %7652 = vmatprep.mubr.f32.mxu0 %v7180
      %7653 = vmatmul.mubr.f32.gmra.mrb[0].mxu0 %v7179
      %v7654 = vpop.f32.mrb[0].mxu0
      %v7655 = vadd.f32 %v7550, %v7654
      %v7656 = vpop.f32.mrb[0].mxu0
      %7657 = vmatprep.mubr.f32.mxu0 %v7189
      %7658 = vmatmul.mubr.f32.gmra.mrb[0].mxu0 %v7188
      %v7659 = vpop.f32.mrb[0].mxu0
      %v7660 = vadd.f32 %v7555, %v7659
      %v7661 = vpop.f32.mrb[0].mxu0
      %7662 = vmatprep.mubr.f32.mxu0 %v7198
      %7663 = vmatmul.mubr.f32.gmra.mrb[0].mxu0 %v7197
      %v7664 = vpop.f32.mrb[0].mxu0
      %v7665 = vadd.f32 %v7560, %v7664
      %v7666 = vpop.f32.mrb[0].mxu0
      %7667 = vdwg.mxu0
      %7668 = vmatprep.subr.mxu0 0.0
      %7669 = vmatpush1.msra.mxu0 %v7298
      %7670 = vmatprep.subr.mxu0 0.0
      %7671 = vmatpush1.msra.mxu0 %v7299
      %7672 = vmatprep.subr.mxu0 0.0
      %7673 = vmatpush1.msra.mxu0 %v7300
      %7674 = vmatprep.subr.mxu0 0.0
      %7675 = vmatpush1.msra.mxu0 %v7301
      %7676 = vmatprep.subr.mxu0 0.0
      %7677 = vmatpush1.msra.mxu0 %v7302
      %7678 = vmatprep.subr.mxu0 0.0
      %7679 = vmatpush1.msra.mxu0 %v7303
      %7680 = vmatprep.subr.mxu0 0.0
      %7681 = vmatpush1.msra.mxu0 %v7304
      %7682 = vmatprep.subr.mxu0 0.0
      %7683 = vmatpush1.msra.mxu0 %v7305
      %7684 = vmatprep.subr.mxu0 0.0
      %7685 = vmatpush1.msra.mxu0 %v7306
      %7686 = vmatprep.subr.mxu0 0.0
      %7687 = vmatpush1.msra.mxu0 %v7307
      %7688 = vmatprep.subr.mxu0 0.0
      %7689 = vmatpush1.msra.mxu0 %v7308
      %7690 = vmatprep.subr.mxu0 0.0
      %7691 = vmatpush1.msra.mxu0 %v7309
      %7692 = vmatprep.subr.mxu0 0.0
      %7693 = vmatpush1.msra.mxu0 %v7310
      %7694 = vmatprep.subr.mxu0 0.0
      %7695 = vmatpush1.msra.mxu0 %v7311
      %7696 = vmatprep.subr.mxu0 0.0
      %7697 = vmatpush1.msra.mxu0 %v7312
      %7698 = vmatprep.subr.mxu0 0.0
      %7699 = vmatpush1.msra.mxu0 %v7313
      %7700 = vmatprep.subr.mxu0 0.0
      %7701 = vmatpush1.msra.mxu0 %v7314
      %7702 = vmatprep.subr.mxu0 0.0
      %7703 = vmatpush1.msra.mxu0 %v7315
      %7704 = vmatprep.subr.mxu0 0.0
      %7705 = vmatpush1.msra.mxu0 %v7316
      %7706 = vmatprep.subr.mxu0 0.0
      %7707 = vmatpush1.msra.mxu0 %v7317
      %7708 = vmatprep.subr.mxu0 0.0
      %7709 = vmatpush1.msra.mxu0 %v7318
      %7710 = vmatprep.subr.mxu0 0.0
      %7711 = vmatpush1.msra.mxu0 %v7319
      %7712 = vmatprep.subr.mxu0 0.0
      %7713 = vmatpush1.msra.mxu0 %v7320
      %7714 = vmatprep.subr.mxu0 0.0
      %7715 = vmatpush1.msra.mxu0 %v7321
      %7716 = vmatprep.subr.mxu0 0.0
      %7717 = vmatpush1.msra.mxu0 %v7322
      %7718 = vmatprep.subr.mxu0 0.0
      %7719 = vmatpush1.msra.mxu0 %v7323
      %7720 = vmatprep.subr.mxu0 0.0
      %7721 = vmatpush1.msra.mxu0 %v7324
      %7722 = vmatprep.subr.mxu0 0.0
      %7723 = vmatpush1.msra.mxu0 %v7325
      %7724 = vmatprep.subr.mxu0 0.0
      %7725 = vmatpush1.msra.mxu0 %v7326
      %7726 = vmatprep.subr.mxu0 0.0
      %7727 = vmatpush1.msra.mxu0 %v7327
      %7728 = vmatprep.subr.mxu0 0.0
      %7729 = vmatpush1.msra.mxu0 %v7328
      %7730 = vmatprep.subr.mxu0 0.0
      %7731 = vmatpush1.msra.mxu0 %v7329
      %7732 = vmatprep.mubr.f32.mxu0 %v7137
      %7733 = vmatmul.mubr.f32.gmra.mrb[0].mxu0 %v7136
      %v7734 = vpop.f32.mrb[0].mxu0
      %v7735 = vadd.f32 %v7630, %v7734
      %v7736 = vpop.f32.mrb[0].mxu0
      %7737 = vmatprep.mubr.f32.mxu0 %v7146
      %7738 = vmatmul.mubr.f32.gmra.mrb[0].mxu0 %v7145
      %v7739 = vpop.f32.mrb[0].mxu0
      %v7740 = vadd.f32 %v7635, %v7739
      %v7741 = vpop.f32.mrb[0].mxu0
      %7742 = vmatprep.mubr.f32.mxu0 %v7155
      %7743 = vmatmul.mubr.f32.gmra.mrb[0].mxu0 %v7154
      %v7744 = vpop.f32.mrb[0].mxu0
      %v7745 = vadd.f32 %v7640, %v7744
      %v7746 = vpop.f32.mrb[0].mxu0
      %7747 = vmatprep.mubr.f32.mxu0 %v7164
      %7748 = vmatmul.mubr.f32.gmra.mrb[0].mxu0 %v7163
      %v7749 = vpop.f32.mrb[0].mxu0
      %v7750 = vadd.f32 %v7645, %v7749
      %v7751 = vpop.f32.mrb[0].mxu0
      %7752 = vmatprep.mubr.f32.mxu0 %v7173
      %7753 = vmatmul.mubr.f32.gmra.mrb[0].mxu0 %v7172
      %v7754 = vpop.f32.mrb[0].mxu0
      %v7755 = vadd.f32 %v7650, %v7754
      %v7756 = vpop.f32.mrb[0].mxu0
      %7757 = vmatprep.mubr.f32.mxu0 %v7182
      %7758 = vmatmul.mubr.f32.gmra.mrb[0].mxu0 %v7181
      %v7759 = vpop.f32.mrb[0].mxu0
      %v7760 = vadd.f32 %v7655, %v7759
      %v7761 = vpop.f32.mrb[0].mxu0
      %7762 = vmatprep.mubr.f32.mxu0 %v7191
      %7763 = vmatmul.mubr.f32.gmra.mrb[0].mxu0 %v7190
      %v7764 = vpop.f32.mrb[0].mxu0
      %v7765 = vadd.f32 %v7660, %v7764
      %v7766 = vpop.f32.mrb[0].mxu0
      %7767 = vmatprep.mubr.f32.mxu0 %v7200
      %7768 = vmatmul.mubr.f32.gmra.mrb[0].mxu0 %v7199
      %v7769 = vpop.f32.mrb[0].mxu0
      %v7770 = vadd.f32 %v7665, %v7769
      %v7771 = vpop.f32.mrb[0].mxu0
      %7772 = vdwg.mxu0
      %7773 = vmatprep.subr.mxu0 0.0
      %7774 = vmatpush1.msra.mxu0 %v7330
      %7775 = vmatprep.subr.mxu0 0.0
      %7776 = vmatpush1.msra.mxu0 %v7331
      %7777 = vmatprep.subr.mxu0 0.0
      %7778 = vmatpush1.msra.mxu0 %v7332
      %7779 = vmatprep.subr.mxu0 0.0
      %7780 = vmatpush1.msra.mxu0 %v7333
      %7781 = vmatprep.subr.mxu0 0.0
      %7782 = vmatpush1.msra.mxu0 %v7334
      %7783 = vmatprep.subr.mxu0 0.0
      %7784 = vmatpush1.msra.mxu0 %v7335
      %7785 = vmatprep.subr.mxu0 0.0
      %7786 = vmatpush1.msra.mxu0 %v7336
      %7787 = vmatprep.subr.mxu0 0.0
      %7788 = vmatpush1.msra.mxu0 %v7337
      %7789 = vmatprep.subr.mxu0 0.0
      %7790 = vmatpush1.msra.mxu0 %v7338
      %7791 = vmatprep.subr.mxu0 0.0
      %7792 = vmatpush1.msra.mxu0 %v7339
      %7793 = vmatprep.subr.mxu0 0.0
      %7794 = vmatpush1.msra.mxu0 %v7340
      %7795 = vmatprep.subr.mxu0 0.0
      %7796 = vmatpush1.msra.mxu0 %v7341
      %7797 = vmatprep.subr.mxu0 0.0
      %7798 = vmatpush1.msra.mxu0 %v7342
      %7799 = vmatprep.subr.mxu0 0.0
      %7800 = vmatpush1.msra.mxu0 %v7343
      %7801 = vmatprep.subr.mxu0 0.0
      %7802 = vmatpush1.msra.mxu0 %v7344
      %7803 = vmatprep.subr.mxu0 0.0
      %7804 = vmatpush1.msra.mxu0 %v7345
      %7805 = vmatprep.subr.mxu0 0.0
      %7806 = vmatpush1.msra.mxu0 0.0
      %7807 = vmatprep.subr.mxu0 0.0
      %7808 = vmatpush1.msra.mxu0 0.0
      %7809 = vmatprep.subr.mxu0 0.0
      %7810 = vmatpush1.msra.mxu0 0.0
      %7811 = vmatprep.subr.mxu0 0.0
      %7812 = vmatpush1.msra.mxu0 0.0
      %7813 = vmatprep.subr.mxu0 0.0
      %7814 = vmatpush1.msra.mxu0 0.0
      %7815 = vmatprep.subr.mxu0 0.0
      %7816 = vmatpush1.msra.mxu0 0.0
      %7817 = vmatprep.subr.mxu0 0.0
      %7818 = vmatpush1.msra.mxu0 0.0
      %7819 = vmatprep.subr.mxu0 0.0
      %7820 = vmatpush1.msra.mxu0 0.0
      %7821 = vmatprep.subr.mxu0 0.0
      %7822 = vmatpush1.msra.mxu0 0.0
      %7823 = vmatprep.subr.mxu0 0.0
      %7824 = vmatpush1.msra.mxu0 0.0
      %7825 = vmatprep.subr.mxu0 0.0
      %7826 = vmatpush1.msra.mxu0 0.0
      %7827 = vmatprep.subr.mxu0 0.0
      %7828 = vmatpush1.msra.mxu0 0.0
      %7829 = vmatprep.subr.mxu0 0.0
      %7830 = vmatpush1.msra.mxu0 0.0
      %7831 = vmatprep.subr.mxu0 0.0
      %7832 = vmatpush1.msra.mxu0 0.0
      %7833 = vmatprep.subr.mxu0 0.0
      %7834 = vmatpush1.msra.mxu0 0.0
      %7835 = vmatprep.subr.mxu0 0.0
      %7836 = vmatpush1.msra.mxu0 0.0
      %7837 = vmatprep.mubr.f32.mxu0 0.0
      %7838 = vmatmul.mubr.f32.gmra.mrb[0].mxu0 %v7138
      %v7839 = vpop.f32.mrb[0].mxu0
      %v7840 = vadd.f32 %v7735, %v7839
      %v7841 = vpop.f32.mrb[0].mxu0
      %7842 = vmatprep.mubr.f32.mxu0 0.0
      %7843 = vmatmul.mubr.f32.gmra.mrb[0].mxu0 %v7147
      %v7844 = vpop.f32.mrb[0].mxu0
      %v7845 = vadd.f32 %v7740, %v7844
      %v7846 = vpop.f32.mrb[0].mxu0
      %7847 = vmatprep.mubr.f32.mxu0 0.0
      %7848 = vmatmul.mubr.f32.gmra.mrb[0].mxu0 %v7156
      %v7849 = vpop.f32.mrb[0].mxu0
      %v7850 = vadd.f32 %v7745, %v7849
      %v7851 = vpop.f32.mrb[0].mxu0
      %7852 = vmatprep.mubr.f32.mxu0 0.0
      %7853 = vmatmul.mubr.f32.gmra.mrb[0].mxu0 %v7165
      %v7854 = vpop.f32.mrb[0].mxu0
      %v7855 = vadd.f32 %v7750, %v7854
      %v7856 = vpop.f32.mrb[0].mxu0
      %7857 = vmatprep.mubr.f32.mxu0 0.0
      %7858 = vmatmul.mubr.f32.gmra.mrb[0].mxu0 %v7174
      %v7859 = vpop.f32.mrb[0].mxu0
      %v7860 = vadd.f32 %v7755, %v7859
      %v7861 = vpop.f32.mrb[0].mxu0
      %7862 = vmatprep.mubr.f32.mxu0 0.0
      %7863 = vmatmul.mubr.f32.gmra.mrb[0].mxu0 %v7183
      %v7864 = vpop.f32.mrb[0].mxu0
      %v7865 = vadd.f32 %v7760, %v7864
      %v7866 = vpop.f32.mrb[0].mxu0
      %7867 = vmatprep.mubr.f32.mxu0 0.0
      %7868 = vmatmul.mubr.f32.gmra.mrb[0].mxu0 %v7192
      %v7869 = vpop.f32.mrb[0].mxu0
      %v7870 = vadd.f32 %v7765, %v7869
      %v7871 = vpop.f32.mrb[0].mxu0
      %7872 = vmatprep.mubr.f32.mxu0 0.0
      %7873 = vmatmul.mubr.f32.gmra.mrb[0].mxu0 %v7201
      %v7874 = vpop.f32.mrb[0].mxu0
      %v7875 = vadd.f32 %v7770, %v7874
      %v7876 = vpop.f32.mrb[0].mxu0
      %7877 = vdwg.mxu0
      %v7878 = vmax.f32 %v7840, 0.0
      %v7879 = vmax.f32 %v7845, 0.0
      %v7880 = vmax.f32 %v7850, 0.0
      %v7881 = vmax.f32 %v7855, 0.0
      %v7882 = vmax.f32 %v7860, 0.0
      %v7883 = vmax.f32 %v7865, 0.0
      %v7884 = vmax.f32 %v7870, 0.0
      %v7885 = vmax.f32 %v7875, 0.0
      %v7886 = vld [vmem:[%s9] sm:$0xff]
      %v7887 = vld [vmem:[%s9 + $0x8] sm:$0xff]
      %v7888 = vld [vmem:[%s9 + $0x10] sm:$0xff]
      %v7889 = vld [vmem:[%s9 + $0x18] sm:$0xff]
      %v7890 = vld [vmem:[%s9 + $0x20] sm:$0xff]
      %v7891 = vld [vmem:[%s9 + $0x28] sm:$0xff]
      %v7892 = vld [vmem:[%s9 + $0x30] sm:$0xff]
      %v7893 = vld [vmem:[%s9 + $0x38] sm:$0xff]
      %v7894 = vld [vmem:[%s9 + $0x40] sm:$0xff]
      %v7895 = vld [vmem:[%s9 + $0x48] sm:$0xff]
      %v7896 = vld [vmem:[%s9 + $0x50] sm:$0xff]
      %v7897 = vld [vmem:[%s9 + $0x58] sm:$0xff]
      %v7898 = vld [vmem:[%s9 + $0x60] sm:$0xff]
      %v7899 = vld [vmem:[%s9 + $0x68] sm:$0xff]
      %v7900 = vld [vmem:[%s9 + $0x70] sm:$0xff]
      %v7901 = vld [vmem:[%s9 + $0x78] sm:$0xff]
      %v7902 = vld [vmem:[%s10] sm:$0x1]
      %v7904 = vlaneseq
      %v7905 = vshrl.u32 %v7904, 7
      %v7906 = vsub.s32 0, %v7905
      %v7907 = vrot.slane %v7902, %v7906
      %7909 = vmatprep.subr.mxu0 0.0
      %7910 = vmatpush1.msra.mxu0 %v7886
      %7911 = vmatprep.subr.mxu0 0.0
      %7912 = vmatpush1.msra.mxu0 %v7887
      %7913 = vmatprep.subr.mxu0 0.0
      %7914 = vmatpush1.msra.mxu0 %v7888
      %7915 = vmatprep.subr.mxu0 0.0
      %7916 = vmatpush1.msra.mxu0 %v7889
      %7917 = vmatprep.subr.mxu0 0.0
      %7918 = vmatpush1.msra.mxu0 %v7890
      %7919 = vmatprep.subr.mxu0 0.0
      %7920 = vmatpush1.msra.mxu0 %v7891
      %7921 = vmatprep.subr.mxu0 0.0
      %7922 = vmatpush1.msra.mxu0 %v7892
      %7923 = vmatprep.subr.mxu0 0.0
      %7924 = vmatpush1.msra.mxu0 %v7893
      %7925 = vmatprep.subr.mxu0 0.0
      %7926 = vmatpush1.msra.mxu0 %v7894
      %7927 = vmatprep.subr.mxu0 0.0
      %7928 = vmatpush1.msra.mxu0 %v7895
      %7929 = vmatprep.subr.mxu0 0.0
      %7930 = vmatpush1.msra.mxu0 %v7896
      %7931 = vmatprep.subr.mxu0 0.0
      %7932 = vmatpush1.msra.mxu0 %v7897
      %7933 = vmatprep.subr.mxu0 0.0
      %7934 = vmatpush1.msra.mxu0 %v7898
      %7935 = vmatprep.subr.mxu0 0.0
      %7936 = vmatpush1.msra.mxu0 %v7899
      %7937 = vmatprep.subr.mxu0 0.0
      %7938 = vmatpush1.msra.mxu0 %v7900
      %7939 = vmatprep.subr.mxu0 0.0
      %7940 = vmatpush1.msra.mxu0 %v7901
      %7941 = vmatprep.subr.mxu0 0.0
      %7942 = vmatpush1.msra.mxu0 0.0
      %7943 = vmatprep.subr.mxu0 0.0
      %7944 = vmatpush1.msra.mxu0 0.0
      %7945 = vmatprep.subr.mxu0 0.0
      %7946 = vmatpush1.msra.mxu0 0.0
      %7947 = vmatprep.subr.mxu0 0.0
      %7948 = vmatpush1.msra.mxu0 0.0
      %7949 = vmatprep.subr.mxu0 0.0
      %7950 = vmatpush1.msra.mxu0 0.0
      %7951 = vmatprep.subr.mxu0 0.0
      %7952 = vmatpush1.msra.mxu0 0.0
      %7953 = vmatprep.subr.mxu0 0.0
      %7954 = vmatpush1.msra.mxu0 0.0
      %7955 = vmatprep.subr.mxu0 0.0
      %7956 = vmatpush1.msra.mxu0 0.0
      %7957 = vmatprep.subr.mxu0 0.0
      %7958 = vmatpush1.msra.mxu0 0.0
      %7959 = vmatprep.subr.mxu0 0.0
      %7960 = vmatpush1.msra.mxu0 0.0
      %7961 = vmatprep.subr.mxu0 0.0
      %7962 = vmatpush1.msra.mxu0 0.0
      %7963 = vmatprep.subr.mxu0 0.0
      %7964 = vmatpush1.msra.mxu0 0.0
      %7965 = vmatprep.subr.mxu0 0.0
      %7966 = vmatpush1.msra.mxu0 0.0
      %7967 = vmatprep.subr.mxu0 0.0
      %7968 = vmatpush1.msra.mxu0 0.0
      %7969 = vmatprep.subr.mxu0 0.0
      %7970 = vmatpush1.msra.mxu0 0.0
      %7971 = vmatprep.subr.mxu0 0.0
      %7972 = vmatpush1.msra.mxu0 0.0
      %7973 = vmatprep.mubr.f32.mxu0 0.0
      %7974 = vmatmul.mubr.f32.gmra.mrb[0].mxu0 %v7878
      %v7975 = vpop.f32.mrb[0].mxu0
      %v7976 = vadd.f32 %v7907, %v7975
      %v7977 = vpop.f32.mrb[0].mxu0
      %7978 = vmatprep.mubr.f32.mxu0 0.0
      %7979 = vmatmul.mubr.f32.gmra.mrb[0].mxu0 %v7879
      %v7980 = vpop.f32.mrb[0].mxu0
      %v7981 = vadd.f32 %v7907, %v7980
      %v7982 = vpop.f32.mrb[0].mxu0
      %7983 = vmatprep.mubr.f32.mxu0 0.0
      %7984 = vmatmul.mubr.f32.gmra.mrb[0].mxu0 %v7880
      %v7985 = vpop.f32.mrb[0].mxu0
      %v7986 = vadd.f32 %v7907, %v7985
      %v7987 = vpop.f32.mrb[0].mxu0
      %7988 = vmatprep.mubr.f32.mxu0 0.0
      %7989 = vmatmul.mubr.f32.gmra.mrb[0].mxu0 %v7881
      %v7990 = vpop.f32.mrb[0].mxu0
      %v7991 = vadd.f32 %v7907, %v7990
      %v7992 = vpop.f32.mrb[0].mxu0
      %7993 = vmatprep.mubr.f32.mxu0 0.0
      %7994 = vmatmul.mubr.f32.gmra.mrb[0].mxu0 %v7882
      %v7995 = vpop.f32.mrb[0].mxu0
      %v7996 = vadd.f32 %v7907, %v7995
      %v7997 = vpop.f32.mrb[0].mxu0
      %7998 = vmatprep.mubr.f32.mxu0 0.0
      %7999 = vmatmul.mubr.f32.gmra.mrb[0].mxu0 %v7883
      %v8000 = vpop.f32.mrb[0].mxu0
      %v8001 = vadd.f32 %v7907, %v8000
      %v8002 = vpop.f32.mrb[0].mxu0
      %8003 = vmatprep.mubr.f32.mxu0 0.0
      %8004 = vmatmul.mubr.f32.gmra.mrb[0].mxu0 %v7884
      %v8005 = vpop.f32.mrb[0].mxu0
      %v8006 = vadd.f32 %v7907, %v8005
      %v8007 = vpop.f32.mrb[0].mxu0
      %8008 = vmatprep.mubr.f32.mxu0 0.0
      %8009 = vmatmul.mubr.f32.gmra.mrb[0].mxu0 %v7885
      %v8010 = vpop.f32.mrb[0].mxu0
      %v8011 = vadd.f32 %v7907, %v8010
      %v8012 = vpop.f32.mrb[0].mxu0
      %8013 = vdwg.mxu0
      %v8014 = vsub.f32 0.0, %v7976
      %v8015 = vsub.f32 0.0, %v7981
      %v8016 = vsub.f32 0.0, %v7986
      %v8017 = vsub.f32 0.0, %v7991
      %v8018 = vsub.f32 0.0, %v7996
      %v8019 = vsub.f32 0.0, %v8001
      %v8020 = vsub.f32 0.0, %v8006
      %v8021 = vsub.f32 0.0, %v8011
      %v8022 = vmul.f32 %v8014, 1.442695
      %v8023 = vpow.pop %v8022
      %v8024 = vmul.f32 %v8015, 1.442695
      %v8025 = vpow.pop %v8024
      %v8026 = vmul.f32 %v8016, 1.442695
      %v8027 = vpow.pop %v8026
      %v8028 = vmul.f32 %v8017, 1.442695
      %v8029 = vpow.pop %v8028
      %v8030 = vmul.f32 %v8018, 1.442695
      %v8031 = vpow.pop %v8030
      %v8032 = vmul.f32 %v8019, 1.442695
      %v8033 = vpow.pop %v8032
      %v8034 = vmul.f32 %v8020, 1.442695
      %v8035 = vpow.pop %v8034
      %v8036 = vmul.f32 %v8021, 1.442695
      %v8037 = vpow.pop %v8036
      %v8038 = vadd.f32 %v8023, 1.0
      %v8039 = vadd.f32 %v8025, 1.0
      %v8040 = vadd.f32 %v8027, 1.0
      %v8041 = vadd.f32 %v8029, 1.0
      %v8042 = vadd.f32 %v8031, 1.0
      %v8043 = vadd.f32 %v8033, 1.0
      %v8044 = vadd.f32 %v8035, 1.0
      %v8045 = vadd.f32 %v8037, 1.0
      %v8046 = vrcp.pop %v8038
      %v8047 = vmul.f32 1.0, %v8046
      %v8048 = vrcp.pop %v8039
      %v8049 = vmul.f32 1.0, %v8048
      %v8050 = vrcp.pop %v8040
      %v8051 = vmul.f32 1.0, %v8050
      %v8052 = vrcp.pop %v8041
      %v8053 = vmul.f32 1.0, %v8052
      %v8054 = vrcp.pop %v8042
      %v8055 = vmul.f32 1.0, %v8054
      %v8056 = vrcp.pop %v8043
      %v8057 = vmul.f32 1.0, %v8056
      %v8058 = vrcp.pop %v8044
      %v8059 = vmul.f32 1.0, %v8058
      %v8060 = vrcp.pop %v8045
      %v8061 = vmul.f32 1.0, %v8060
      %v8062 = vsel %vm3396, %v8047, %v7976
      %v8063 = vsel %vm3396, %v8049, %v7981
      %v8064 = vsel %vm3396, %v8051, %v7986
      %v8065 = vsel %vm3396, %v8053, %v7991
      %v8066 = vsel %vm3396, %v8055, %v7996
      %v8067 = vsel %vm3396, %v8057, %v8001
      %v8068 = vsel %vm3396, %v8059, %v8006
      %v8069 = vsel %vm3396, %v8061, %v8011
      %8070 = vst [vmem:[%s499] sm:$0xff] %v8062
      %8071 = vst [vmem:[%s499 + $0x8] sm:$0xff] %v8063
      %8072 = vst [vmem:[%s499 + $0x10] sm:$0xff] %v8064
      %8073 = vst [vmem:[%s499 + $0x18] sm:$0xff] %v8065
      %8074 = vst [vmem:[%s499 + $0x20] sm:$0xff] %v8066
      %8075 = vst [vmem:[%s499 + $0x28] sm:$0xff] %v8067
      %8076 = vst [vmem:[%s499 + $0x30] sm:$0xff] %v8068
      %8077 = vst [vmem:[%s499 + $0x38] sm:$0xff] %v8069
      %8078 = vst [vmem:[%s612 + $0x1] sm:$0xff] %v7878
      %8079 = vst [vmem:[%s612 + $0x11] sm:$0xff] %v7879
      %8080 = vst [vmem:[%s612 + $0x21] sm:$0xff] %v7880
      %8081 = vst [vmem:[%s612 + $0x31] sm:$0xff] %v7881
      %8082 = vst [vmem:[%s612 + $0x41] sm:$0xff] %v7882
      %8083 = vst [vmem:[%s612 + $0x51] sm:$0xff] %v7883
      %8084 = vst [vmem:[%s612 + $0x61] sm:$0xff] %v7884
      %8085 = vst [vmem:[%s612 + $0x71] sm:$0xff] %v7885
      %v8086 = vld [vmem:[#allocation5] sm:$0xff]
      %v8087 = vld [vmem:[#allocation5 + $0x10] sm:$0xff]
      %v8088 = vld [vmem:[#allocation5 + $0x20] sm:$0xff]
      %v8089 = vld [vmem:[#allocation5 + $0x30] sm:$0xff]
      %v8090 = vld [vmem:[#allocation5 + $0x40] sm:$0xff]
      %v8091 = vld [vmem:[#allocation5 + $0x50] sm:$0xff]
      %v8092 = vld [vmem:[#allocation5 + $0x60] sm:$0xff]
      %v8093 = vld [vmem:[#allocation5 + $0x70] sm:$0xff]
      %8094 = vst [vmem:[#allocation6] sm:$0xff] %v8086
      %8095 = vst [vmem:[#allocation6 + $0x48] sm:$0xff] %v8087
      %8096 = vst [vmem:[#allocation6 + $0x90] sm:$0xff] %v8088
      %8097 = vst [vmem:[#allocation6 + $0xd8] sm:$0xff] %v8089
      %8098 = vst [vmem:[#allocation6 + $0x120] sm:$0xff] %v8090
      %8099 = vst [vmem:[#allocation6 + $0x168] sm:$0xff] %v8091
      %8100 = vst [vmem:[#allocation6 + $0x1b0] sm:$0xff] %v8092
      %8101 = vst [vmem:[#allocation6 + $0x1f8] sm:$0xff] %v8093
      %v8102 = vld [vmem:[#allocation5 + $0x1] sm:$0xff]
      %v8103 = vld [vmem:[#allocation5 + $0x11] sm:$0xff]
      %v8104 = vld [vmem:[#allocation5 + $0x21] sm:$0xff]
      %v8105 = vld [vmem:[#allocation5 + $0x31] sm:$0xff]
      %v8106 = vld [vmem:[#allocation5 + $0x41] sm:$0xff]
      %v8107 = vld [vmem:[#allocation5 + $0x51] sm:$0xff]
      %v8108 = vld [vmem:[#allocation5 + $0x61] sm:$0xff]
      %v8109 = vld [vmem:[#allocation5 + $0x71] sm:$0xff]
      %8110 = vst [vmem:[#allocation6 + $0x8] sm:$0xff] %v8102
      %8111 = vst [vmem:[#allocation6 + $0x50] sm:$0xff] %v8103
      %8112 = vst [vmem:[#allocation6 + $0x98] sm:$0xff] %v8104
      %8113 = vst [vmem:[#allocation6 + $0xe0] sm:$0xff] %v8105
      %8114 = vst [vmem:[#allocation6 + $0x128] sm:$0xff] %v8106
      %8115 = vst [vmem:[#allocation6 + $0x170] sm:$0xff] %v8107
      %8116 = vst [vmem:[#allocation6 + $0x1b8] sm:$0xff] %v8108
      %8117 = vst [vmem:[#allocation6 + $0x200] sm:$0xff] %v8109
      %v8118 = vld [vmem:[#allocation5 + $0x2] sm:$0xff]
      %v8119 = vld [vmem:[#allocation5 + $0x12] sm:$0xff]
      %v8120 = vld [vmem:[#allocation5 + $0x22] sm:$0xff]
      %v8121 = vld [vmem:[#allocation5 + $0x32] sm:$0xff]
      %v8122 = vld [vmem:[#allocation5 + $0x42] sm:$0xff]
      %v8123 = vld [vmem:[#allocation5 + $0x52] sm:$0xff]
      %v8124 = vld [vmem:[#allocation5 + $0x62] sm:$0xff]
      %v8125 = vld [vmem:[#allocation5 + $0x72] sm:$0xff]
      %8126 = vst [vmem:[#allocation6 + $0x10] sm:$0xff] %v8118
      %8127 = vst [vmem:[#allocation6 + $0x58] sm:$0xff] %v8119
      %8128 = vst [vmem:[#allocation6 + $0xa0] sm:$0xff] %v8120
      %8129 = vst [vmem:[#allocation6 + $0xe8] sm:$0xff] %v8121
      %8130 = vst [vmem:[#allocation6 + $0x130] sm:$0xff] %v8122
      %8131 = vst [vmem:[#allocation6 + $0x178] sm:$0xff] %v8123
      %8132 = vst [vmem:[#allocation6 + $0x1c0] sm:$0xff] %v8124
      %8133 = vst [vmem:[#allocation6 + $0x208] sm:$0xff] %v8125
      %v8134 = vld [vmem:[%s612] sm:$0xff]
      %v8135 = vld [vmem:[%s612 + $0x10] sm:$0xff]
      %v8136 = vld [vmem:[%s612 + $0x20] sm:$0xff]
      %v8137 = vld [vmem:[%s612 + $0x30] sm:$0xff]
      %v8138 = vld [vmem:[%s612 + $0x40] sm:$0xff]
      %v8139 = vld [vmem:[%s612 + $0x50] sm:$0xff]
      %v8140 = vld [vmem:[%s612 + $0x60] sm:$0xff]
      %v8141 = vld [vmem:[%s612 + $0x70] sm:$0xff]
      %8142 = vst [vmem:[#allocation6 + $0x18] sm:$0xff] %v8134
      %8143 = vst [vmem:[#allocation6 + $0x60] sm:$0xff] %v8135
      %8144 = vst [vmem:[#allocation6 + $0xa8] sm:$0xff] %v8136
      %8145 = vst [vmem:[#allocation6 + $0xf0] sm:$0xff] %v8137
      %8146 = vst [vmem:[#allocation6 + $0x138] sm:$0xff] %v8138
      %8147 = vst [vmem:[#allocation6 + $0x180] sm:$0xff] %v8139
      %8148 = vst [vmem:[#allocation6 + $0x1c8] sm:$0xff] %v8140
      %8149 = vst [vmem:[#allocation6 + $0x210] sm:$0xff] %v8141
      %v8150 = vld [vmem:[%s612 + $0x1] sm:$0xff]
      %v8151 = vld [vmem:[%s612 + $0x11] sm:$0xff]
      %v8152 = vld [vmem:[%s612 + $0x21] sm:$0xff]
      %v8153 = vld [vmem:[%s612 + $0x31] sm:$0xff]
      %v8154 = vld [vmem:[%s612 + $0x41] sm:$0xff]
      %v8155 = vld [vmem:[%s612 + $0x51] sm:$0xff]
      %v8156 = vld [vmem:[%s612 + $0x61] sm:$0xff]
      %v8157 = vld [vmem:[%s612 + $0x71] sm:$0xff]
      %8158 = vst [vmem:[#allocation6 + $0x20] sm:$0xff] %v8150
      %8159 = vst [vmem:[#allocation6 + $0x68] sm:$0xff] %v8151
      %8160 = vst [vmem:[#allocation6 + $0xb0] sm:$0xff] %v8152
      %8161 = vst [vmem:[#allocation6 + $0xf8] sm:$0xff] %v8153
      %8162 = vst [vmem:[#allocation6 + $0x140] sm:$0xff] %v8154
      %8163 = vst [vmem:[#allocation6 + $0x188] sm:$0xff] %v8155
      %8164 = vst [vmem:[#allocation6 + $0x1d0] sm:$0xff] %v8156
      %8165 = vst [vmem:[#allocation6 + $0x218] sm:$0xff] %v8157
      %v8166 = vld [vmem:[%s612 + $0x2] sm:$0xff]
      %v8167 = vld [vmem:[%s612 + $0x12] sm:$0xff]
      %v8168 = vld [vmem:[%s612 + $0x22] sm:$0xff]
      %v8169 = vld [vmem:[%s612 + $0x32] sm:$0xff]
      %v8170 = vld [vmem:[%s612 + $0x42] sm:$0xff]
      %v8171 = vld [vmem:[%s612 + $0x52] sm:$0xff]
      %v8172 = vld [vmem:[%s612 + $0x62] sm:$0xff]
      %v8173 = vld [vmem:[%s612 + $0x72] sm:$0xff]
      %8174 = vst [vmem:[#allocation6 + $0x28] sm:$0xff] %v8166
      %8175 = vst [vmem:[#allocation6 + $0x70] sm:$0xff] %v8167
      %8176 = vst [vmem:[#allocation6 + $0xb8] sm:$0xff] %v8168
      %8177 = vst [vmem:[#allocation6 + $0x100] sm:$0xff] %v8169
      %8178 = vst [vmem:[#allocation6 + $0x148] sm:$0xff] %v8170
      %8179 = vst [vmem:[#allocation6 + $0x190] sm:$0xff] %v8171
      %8180 = vst [vmem:[#allocation6 + $0x1d8] sm:$0xff] %v8172
      %8181 = vst [vmem:[#allocation6 + $0x220] sm:$0xff] %v8173
      %s8182 = scalar_lea.vmem [#allocation5], 32
      %v8183 = vld [vmem:[%s8182] sm:$0xff]
      %v8184 = vld [vmem:[%s8182 + $0x10] sm:$0xff]
      %v8185 = vld [vmem:[%s8182 + $0x20] sm:$0xff]
      %v8186 = vld [vmem:[%s8182 + $0x30] sm:$0xff]
      %v8187 = vld [vmem:[%s8182 + $0x40] sm:$0xff]
      %v8188 = vld [vmem:[%s8182 + $0x50] sm:$0xff]
      %v8189 = vld [vmem:[%s8182 + $0x60] sm:$0xff]
      %v8190 = vld [vmem:[%s8182 + $0x70] sm:$0xff]
      %8191 = vst [vmem:[#allocation6 + $0x30] sm:$0xff] %v8183
      %8192 = vst [vmem:[#allocation6 + $0x78] sm:$0xff] %v8184
      %8193 = vst [vmem:[#allocation6 + $0xc0] sm:$0xff] %v8185
      %8194 = vst [vmem:[#allocation6 + $0x108] sm:$0xff] %v8186
      %8195 = vst [vmem:[#allocation6 + $0x150] sm:$0xff] %v8187
      %8196 = vst [vmem:[#allocation6 + $0x198] sm:$0xff] %v8188
      %8197 = vst [vmem:[#allocation6 + $0x1e0] sm:$0xff] %v8189
      %8198 = vst [vmem:[#allocation6 + $0x228] sm:$0xff] %v8190
      %v8199 = vld [vmem:[%s8182 + $0x1] sm:$0xff]
      %v8200 = vld [vmem:[%s8182 + $0x11] sm:$0xff]
      %v8201 = vld [vmem:[%s8182 + $0x21] sm:$0xff]
      %v8202 = vld [vmem:[%s8182 + $0x31] sm:$0xff]
      %v8203 = vld [vmem:[%s8182 + $0x41] sm:$0xff]
      %v8204 = vld [vmem:[%s8182 + $0x51] sm:$0xff]
      %v8205 = vld [vmem:[%s8182 + $0x61] sm:$0xff]
      %v8206 = vld [vmem:[%s8182 + $0x71] sm:$0xff]
      %8207 = vst [vmem:[#allocation6 + $0x38] sm:$0xff] %v8199
      %8208 = vst [vmem:[#allocation6 + $0x80] sm:$0xff] %v8200
      %8209 = vst [vmem:[#allocation6 + $0xc8] sm:$0xff] %v8201
      %8210 = vst [vmem:[#allocation6 + $0x110] sm:$0xff] %v8202
      %8211 = vst [vmem:[#allocation6 + $0x158] sm:$0xff] %v8203
      %8212 = vst [vmem:[#allocation6 + $0x1a0] sm:$0xff] %v8204
      %8213 = vst [vmem:[#allocation6 + $0x1e8] sm:$0xff] %v8205
      %8214 = vst [vmem:[#allocation6 + $0x230] sm:$0xff] %v8206
      %v8215 = vld [vmem:[%s8182 + $0x2] sm:$0xff]
      %v8216 = vld [vmem:[%s8182 + $0x12] sm:$0xff]
      %v8217 = vld [vmem:[%s8182 + $0x22] sm:$0xff]
      %v8218 = vld [vmem:[%s8182 + $0x32] sm:$0xff]
      %v8219 = vld [vmem:[%s8182 + $0x42] sm:$0xff]
      %v8220 = vld [vmem:[%s8182 + $0x52] sm:$0xff]
      %v8221 = vld [vmem:[%s8182 + $0x62] sm:$0xff]
      %v8222 = vld [vmem:[%s8182 + $0x72] sm:$0xff]
      %8223 = vst [vmem:[#allocation6 + $0x40] sm:$0xff] %v8215
      %8224 = vst [vmem:[#allocation6 + $0x88] sm:$0xff] %v8216
      %8225 = vst [vmem:[#allocation6 + $0xd0] sm:$0xff] %v8217
      %8226 = vst [vmem:[#allocation6 + $0x118] sm:$0xff] %v8218
      %8227 = vst [vmem:[#allocation6 + $0x160] sm:$0xff] %v8219
      %8228 = vst [vmem:[#allocation6 + $0x1a8] sm:$0xff] %v8220
      %8229 = vst [vmem:[#allocation6 + $0x1f0] sm:$0xff] %v8221
      %8230 = vst [vmem:[#allocation6 + $0x238] sm:$0xff] %v8222
      %v8231 = vld [vmem:[#allocation6] sm:$0xff]
      %v8232 = vld [vmem:[#allocation6 + $0x8] sm:$0xff]
      %v8233 = vld [vmem:[#allocation6 + $0x10] sm:$0xff]
      %v8234 = vld [vmem:[#allocation6 + $0x18] sm:$0xff]
      %v8235 = vld [vmem:[#allocation6 + $0x20] sm:$0xff]
      %v8236 = vld [vmem:[#allocation6 + $0x28] sm:$0xff]
      %v8237 = vld [vmem:[#allocation6 + $0x30] sm:$0xff]
      %v8238 = vld [vmem:[#allocation6 + $0x38] sm:$0xff]
      %v8239 = vld [vmem:[#allocation6 + $0x40] sm:$0xff]
      %v8240 = vld [vmem:[#allocation6 + $0x48] sm:$0xff]
      %v8241 = vld [vmem:[#allocation6 + $0x50] sm:$0xff]
      %v8242 = vld [vmem:[#allocation6 + $0x58] sm:$0xff]
      %v8243 = vld [vmem:[#allocation6 + $0x60] sm:$0xff]
      %v8244 = vld [vmem:[#allocation6 + $0x68] sm:$0xff]
      %v8245 = vld [vmem:[#allocation6 + $0x70] sm:$0xff]
      %v8246 = vld [vmem:[#allocation6 + $0x78] sm:$0xff]
      %v8247 = vld [vmem:[#allocation6 + $0x80] sm:$0xff]
      %v8248 = vld [vmem:[#allocation6 + $0x88] sm:$0xff]
      %v8249 = vld [vmem:[#allocation6 + $0x90] sm:$0xff]
      %v8250 = vld [vmem:[#allocation6 + $0x98] sm:$0xff]
      %v8251 = vld [vmem:[#allocation6 + $0xa0] sm:$0xff]
      %v8252 = vld [vmem:[#allocation6 + $0xa8] sm:$0xff]
      %v8253 = vld [vmem:[#allocation6 + $0xb0] sm:$0xff]
      %v8254 = vld [vmem:[#allocation6 + $0xb8] sm:$0xff]
      %v8255 = vld [vmem:[#allocation6 + $0xc0] sm:$0xff]
      %v8256 = vld [vmem:[#allocation6 + $0xc8] sm:$0xff]
      %v8257 = vld [vmem:[#allocation6 + $0xd0] sm:$0xff]
      %v8258 = vld [vmem:[#allocation6 + $0xd8] sm:$0xff]
      %v8259 = vld [vmem:[#allocation6 + $0xe0] sm:$0xff]
      %v8260 = vld [vmem:[#allocation6 + $0xe8] sm:$0xff]
      %v8261 = vld [vmem:[#allocation6 + $0xf0] sm:$0xff]
      %v8262 = vld [vmem:[#allocation6 + $0xf8] sm:$0xff]
      %v8263 = vld [vmem:[#allocation6 + $0x100] sm:$0xff]
      %v8264 = vld [vmem:[#allocation6 + $0x108] sm:$0xff]
      %v8265 = vld [vmem:[#allocation6 + $0x110] sm:$0xff]
      %v8266 = vld [vmem:[#allocation6 + $0x118] sm:$0xff]
      %v8267 = vld [vmem:[#allocation6 + $0x120] sm:$0xff]
      %v8268 = vld [vmem:[#allocation6 + $0x128] sm:$0xff]
      %v8269 = vld [vmem:[#allocation6 + $0x130] sm:$0xff]
      %v8270 = vld [vmem:[#allocation6 + $0x138] sm:$0xff]
      %v8271 = vld [vmem:[#allocation6 + $0x140] sm:$0xff]
      %v8272 = vld [vmem:[#allocation6 + $0x148] sm:$0xff]
      %v8273 = vld [vmem:[#allocation6 + $0x150] sm:$0xff]
      %v8274 = vld [vmem:[#allocation6 + $0x158] sm:$0xff]
      %v8275 = vld [vmem:[#allocation6 + $0x160] sm:$0xff]
      %v8276 = vld [vmem:[#allocation6 + $0x168] sm:$0xff]
      %v8277 = vld [vmem:[#allocation6 + $0x170] sm:$0xff]
      %v8278 = vld [vmem:[#allocation6 + $0x178] sm:$0xff]
      %v8279 = vld [vmem:[#allocation6 + $0x180] sm:$0xff]
      %v8280 = vld [vmem:[#allocation6 + $0x188] sm:$0xff]
      %v8281 = vld [vmem:[#allocation6 + $0x190] sm:$0xff]
      %v8282 = vld [vmem:[#allocation6 + $0x198] sm:$0xff]
      %v8283 = vld [vmem:[#allocation6 + $0x1a0] sm:$0xff]
      %v8284 = vld [vmem:[#allocation6 + $0x1a8] sm:$0xff]
      %v8285 = vld [vmem:[#allocation6 + $0x1b0] sm:$0xff]
      %v8286 = vld [vmem:[#allocation6 + $0x1b8] sm:$0xff]
      %v8287 = vld [vmem:[#allocation6 + $0x1c0] sm:$0xff]
      %v8288 = vld [vmem:[#allocation6 + $0x1c8] sm:$0xff]
      %v8289 = vld [vmem:[#allocation6 + $0x1d0] sm:$0xff]
      %v8290 = vld [vmem:[#allocation6 + $0x1d8] sm:$0xff]
      %v8291 = vld [vmem:[#allocation6 + $0x1e0] sm:$0xff]
      %v8292 = vld [vmem:[#allocation6 + $0x1e8] sm:$0xff]
      %v8293 = vld [vmem:[#allocation6 + $0x1f0] sm:$0xff]
      %v8294 = vld [vmem:[#allocation6 + $0x1f8] sm:$0xff]
      %v8295 = vld [vmem:[#allocation6 + $0x200] sm:$0xff]
      %v8296 = vld [vmem:[#allocation6 + $0x208] sm:$0xff]
      %v8297 = vld [vmem:[#allocation6 + $0x210] sm:$0xff]
      %v8298 = vld [vmem:[#allocation6 + $0x218] sm:$0xff]
      %v8299 = vld [vmem:[#allocation6 + $0x220] sm:$0xff]
      %v8300 = vld [vmem:[#allocation6 + $0x228] sm:$0xff]
      %v8301 = vld [vmem:[#allocation6 + $0x230] sm:$0xff]
      %v8302 = vld [vmem:[#allocation6 + $0x238] sm:$0xff]
      %v8303 = vld [vmem:[%s7] sm:$0xff]
      %v8304 = vld [vmem:[%s7 + $0x8] sm:$0xff]
      %v8305 = vld [vmem:[%s7 + $0x10] sm:$0xff]
      %v8306 = vld [vmem:[%s7 + $0x18] sm:$0xff]
      %v8307 = vld [vmem:[%s7 + $0x20] sm:$0xff]
      %v8308 = vld [vmem:[%s7 + $0x28] sm:$0xff]
      %v8309 = vld [vmem:[%s7 + $0x30] sm:$0xff]
      %v8310 = vld [vmem:[%s7 + $0x38] sm:$0xff]
      %v8311 = vld [vmem:[%s7 + $0x40] sm:$0xff]
      %v8312 = vld [vmem:[%s7 + $0x48] sm:$0xff]
      %v8313 = vld [vmem:[%s7 + $0x50] sm:$0xff]
      %v8314 = vld [vmem:[%s7 + $0x58] sm:$0xff]
      %v8315 = vld [vmem:[%s7 + $0x60] sm:$0xff]
      %v8316 = vld [vmem:[%s7 + $0x68] sm:$0xff]
      %v8317 = vld [vmem:[%s7 + $0x70] sm:$0xff]
      %v8318 = vld [vmem:[%s7 + $0x78] sm:$0xff]
      %v8319 = vld [vmem:[%s7 + $0x80] sm:$0xff]
      %v8320 = vld [vmem:[%s7 + $0x88] sm:$0xff]
      %v8321 = vld [vmem:[%s7 + $0x90] sm:$0xff]
      %v8322 = vld [vmem:[%s7 + $0x98] sm:$0xff]
      %v8323 = vld [vmem:[%s7 + $0xa0] sm:$0xff]
      %v8324 = vld [vmem:[%s7 + $0xa8] sm:$0xff]
      %v8325 = vld [vmem:[%s7 + $0xb0] sm:$0xff]
      %v8326 = vld [vmem:[%s7 + $0xb8] sm:$0xff]
      %v8327 = vld [vmem:[%s7 + $0xc0] sm:$0xff]
      %v8328 = vld [vmem:[%s7 + $0xc8] sm:$0xff]
      %v8329 = vld [vmem:[%s7 + $0xd0] sm:$0xff]
      %v8330 = vld [vmem:[%s7 + $0xd8] sm:$0xff]
      %v8331 = vld [vmem:[%s7 + $0xe0] sm:$0xff]
      %v8332 = vld [vmem:[%s7 + $0xe8] sm:$0xff]
      %v8333 = vld [vmem:[%s7 + $0xf0] sm:$0xff]
      %v8334 = vld [vmem:[%s7 + $0xf8] sm:$0xff]
      %v8335 = vld [vmem:[%s7 + $0x100] sm:$0xff]
      %v8336 = vld [vmem:[%s7 + $0x108] sm:$0xff]
      %v8337 = vld [vmem:[%s7 + $0x110] sm:$0xff]
      %v8338 = vld [vmem:[%s7 + $0x118] sm:$0xff]
      %v8339 = vld [vmem:[%s7 + $0x120] sm:$0xff]
      %v8340 = vld [vmem:[%s7 + $0x128] sm:$0xff]
      %v8341 = vld [vmem:[%s7 + $0x130] sm:$0xff]
      %v8342 = vld [vmem:[%s7 + $0x138] sm:$0xff]
      %v8343 = vld [vmem:[%s7 + $0x140] sm:$0xff]
      %v8344 = vld [vmem:[%s7 + $0x148] sm:$0xff]
      %v8345 = vld [vmem:[%s7 + $0x150] sm:$0xff]
      %v8346 = vld [vmem:[%s7 + $0x158] sm:$0xff]
      %v8347 = vld [vmem:[%s7 + $0x160] sm:$0xff]
      %v8348 = vld [vmem:[%s7 + $0x168] sm:$0xff]
      %v8349 = vld [vmem:[%s7 + $0x170] sm:$0xff]
      %v8350 = vld [vmem:[%s7 + $0x178] sm:$0xff]
      %v8351 = vld [vmem:[%s7 + $0x180] sm:$0xff]
      %v8352 = vld [vmem:[%s7 + $0x188] sm:$0xff]
      %v8353 = vld [vmem:[%s7 + $0x190] sm:$0xff]
      %v8354 = vld [vmem:[%s7 + $0x198] sm:$0xff]
      %v8355 = vld [vmem:[%s7 + $0x1a0] sm:$0xff]
      %v8356 = vld [vmem:[%s7 + $0x1a8] sm:$0xff]
      %v8357 = vld [vmem:[%s7 + $0x1b0] sm:$0xff]
      %v8358 = vld [vmem:[%s7 + $0x1b8] sm:$0xff]
      %v8359 = vld [vmem:[%s7 + $0x1c0] sm:$0xff]
      %v8360 = vld [vmem:[%s7 + $0x1c8] sm:$0xff]
      %v8361 = vld [vmem:[%s7 + $0x1d0] sm:$0xff]
      %v8362 = vld [vmem:[%s7 + $0x1d8] sm:$0xff]
      %v8363 = vld [vmem:[%s7 + $0x1e0] sm:$0xff]
      %v8364 = vld [vmem:[%s7 + $0x1e8] sm:$0xff]
      %v8365 = vld [vmem:[%s7 + $0x1f0] sm:$0xff]
      %v8366 = vld [vmem:[%s7 + $0x1f8] sm:$0xff]
      %v8367 = vld [vmem:[%s7 + $0x200] sm:$0xff]
      %v8368 = vld [vmem:[%s7 + $0x208] sm:$0xff]
      %v8369 = vld [vmem:[%s7 + $0x210] sm:$0xff]
      %v8370 = vld [vmem:[%s7 + $0x218] sm:$0xff]
      %v8371 = vld [vmem:[%s7 + $0x220] sm:$0xff]
      %v8372 = vld [vmem:[%s7 + $0x228] sm:$0xff]
      %v8373 = vld [vmem:[%s7 + $0x230] sm:$0xff]
      %v8374 = vld [vmem:[%s7 + $0x238] sm:$0xff]
      %v8375 = vld [vmem:[%s7 + $0x240] sm:$0xff]
      %v8376 = vld [vmem:[%s7 + $0x248] sm:$0xff]
      %v8377 = vld [vmem:[%s7 + $0x250] sm:$0xff]
      %v8378 = vld [vmem:[%s7 + $0x258] sm:$0xff]
      %v8379 = vld [vmem:[%s7 + $0x260] sm:$0xff]
      %v8380 = vld [vmem:[%s7 + $0x268] sm:$0xff]
      %v8381 = vld [vmem:[%s7 + $0x270] sm:$0xff]
      %v8382 = vld [vmem:[%s7 + $0x278] sm:$0xff]
      %v8383 = vld [vmem:[%s7 + $0x280] sm:$0xff]
      %v8384 = vld [vmem:[%s7 + $0x288] sm:$0xff]
      %v8385 = vld [vmem:[%s7 + $0x290] sm:$0xff]
      %v8386 = vld [vmem:[%s7 + $0x298] sm:$0xff]
      %v8387 = vld [vmem:[%s7 + $0x2a0] sm:$0xff]
      %v8388 = vld [vmem:[%s7 + $0x2a8] sm:$0xff]
      %v8389 = vld [vmem:[%s7 + $0x2b0] sm:$0xff]
      %v8390 = vld [vmem:[%s7 + $0x2b8] sm:$0xff]
      %v8391 = vld [vmem:[%s7 + $0x2c0] sm:$0xff]
      %v8392 = vld [vmem:[%s7 + $0x2c8] sm:$0xff]
      %v8393 = vld [vmem:[%s7 + $0x2d0] sm:$0xff]
      %v8394 = vld [vmem:[%s7 + $0x2d8] sm:$0xff]
      %v8395 = vld [vmem:[%s7 + $0x2e0] sm:$0xff]
      %v8396 = vld [vmem:[%s7 + $0x2e8] sm:$0xff]
      %v8397 = vld [vmem:[%s7 + $0x2f0] sm:$0xff]
      %v8398 = vld [vmem:[%s7 + $0x2f8] sm:$0xff]
      %v8399 = vld [vmem:[%s7 + $0x300] sm:$0xff]
      %v8400 = vld [vmem:[%s7 + $0x308] sm:$0xff]
      %v8401 = vld [vmem:[%s7 + $0x310] sm:$0xff]
      %v8402 = vld [vmem:[%s7 + $0x318] sm:$0xff]
      %v8403 = vld [vmem:[%s7 + $0x320] sm:$0xff]
      %v8404 = vld [vmem:[%s7 + $0x328] sm:$0xff]
      %v8405 = vld [vmem:[%s7 + $0x330] sm:$0xff]
      %v8406 = vld [vmem:[%s7 + $0x338] sm:$0xff]
      %v8407 = vld [vmem:[%s7 + $0x340] sm:$0xff]
      %v8408 = vld [vmem:[%s7 + $0x348] sm:$0xff]
      %v8409 = vld [vmem:[%s7 + $0x350] sm:$0xff]
      %v8410 = vld [vmem:[%s7 + $0x358] sm:$0xff]
      %v8411 = vld [vmem:[%s7 + $0x360] sm:$0xff]
      %v8412 = vld [vmem:[%s7 + $0x368] sm:$0xff]
      %v8413 = vld [vmem:[%s7 + $0x370] sm:$0xff]
      %v8414 = vld [vmem:[%s7 + $0x378] sm:$0xff]
      %v8415 = vld [vmem:[%s7 + $0x380] sm:$0xff]
      %v8416 = vld [vmem:[%s7 + $0x388] sm:$0xff]
      %v8417 = vld [vmem:[%s7 + $0x390] sm:$0xff]
      %v8418 = vld [vmem:[%s7 + $0x398] sm:$0xff]
      %v8419 = vld [vmem:[%s7 + $0x3a0] sm:$0xff]
      %v8420 = vld [vmem:[%s7 + $0x3a8] sm:$0xff]
      %v8421 = vld [vmem:[%s7 + $0x3b0] sm:$0xff]
      %v8422 = vld [vmem:[%s7 + $0x3b8] sm:$0xff]
      %v8423 = vld [vmem:[%s7 + $0x3c0] sm:$0xff]
      %v8424 = vld [vmem:[%s7 + $0x3c8] sm:$0xff]
      %v8425 = vld [vmem:[%s7 + $0x3d0] sm:$0xff]
      %v8426 = vld [vmem:[%s7 + $0x3d8] sm:$0xff]
      %v8427 = vld [vmem:[%s7 + $0x3e0] sm:$0xff]
      %v8428 = vld [vmem:[%s7 + $0x3e8] sm:$0xff]
      %v8429 = vld [vmem:[%s7 + $0x3f0] sm:$0xff]
      %v8430 = vld [vmem:[%s7 + $0x3f8] sm:$0xff]
      %v8431 = vld [vmem:[%s7 + $0x400] sm:$0xff]
      %v8432 = vld [vmem:[%s7 + $0x408] sm:$0xff]
      %v8433 = vld [vmem:[%s7 + $0x410] sm:$0xff]
      %v8434 = vld [vmem:[%s7 + $0x418] sm:$0xff]
      %v8435 = vld [vmem:[%s7 + $0x420] sm:$0xff]
      %v8436 = vld [vmem:[%s7 + $0x428] sm:$0xff]
      %v8437 = vld [vmem:[%s7 + $0x430] sm:$0xff]
      %v8438 = vld [vmem:[%s7 + $0x438] sm:$0xff]
      %v8439 = vld [vmem:[%s7 + $0x440] sm:$0xff]
      %v8440 = vld [vmem:[%s7 + $0x448] sm:$0xff]
      %v8441 = vld [vmem:[%s7 + $0x450] sm:$0xff]
      %v8442 = vld [vmem:[%s7 + $0x458] sm:$0xff]
      %v8443 = vld [vmem:[%s7 + $0x460] sm:$0xff]
      %v8444 = vld [vmem:[%s7 + $0x468] sm:$0xff]
      %v8445 = vld [vmem:[%s7 + $0x470] sm:$0xff]
      %v8446 = vld [vmem:[%s7 + $0x478] sm:$0xff]
      %v8447 = vld [vmem:[%s8] sm:$0x1]
      %v8449 = vlaneseq
      %v8450 = vshrl.u32 %v8449, 7
      %v8451 = vsub.s32 0, %v8450
      %v8452 = vrot.slane %v8447, %v8451
      %8454 = vmatprep.subr.mxu0 0.0
      %8455 = vmatpush1.msra.mxu0 %v8303
      %8456 = vmatprep.subr.mxu0 0.0
      %8457 = vmatpush1.msra.mxu0 %v8304
      %8458 = vmatprep.subr.mxu0 0.0
      %8459 = vmatpush1.msra.mxu0 %v8305
      %8460 = vmatprep.subr.mxu0 0.0
      %8461 = vmatpush1.msra.mxu0 %v8306
      %8462 = vmatprep.subr.mxu0 0.0
      %8463 = vmatpush1.msra.mxu0 %v8307
      %8464 = vmatprep.subr.mxu0 0.0
      %8465 = vmatpush1.msra.mxu0 %v8308
      %8466 = vmatprep.subr.mxu0 0.0
      %8467 = vmatpush1.msra.mxu0 %v8309
      %8468 = vmatprep.subr.mxu0 0.0
      %8469 = vmatpush1.msra.mxu0 %v8310
      %8470 = vmatprep.subr.mxu0 0.0
      %8471 = vmatpush1.msra.mxu0 %v8311
      %8472 = vmatprep.subr.mxu0 0.0
      %8473 = vmatpush1.msra.mxu0 %v8312
      %8474 = vmatprep.subr.mxu0 0.0
      %8475 = vmatpush1.msra.mxu0 %v8313
      %8476 = vmatprep.subr.mxu0 0.0
      %8477 = vmatpush1.msra.mxu0 %v8314
      %8478 = vmatprep.subr.mxu0 0.0
      %8479 = vmatpush1.msra.mxu0 %v8315
      %8480 = vmatprep.subr.mxu0 0.0
      %8481 = vmatpush1.msra.mxu0 %v8316
      %8482 = vmatprep.subr.mxu0 0.0
      %8483 = vmatpush1.msra.mxu0 %v8317
      %8484 = vmatprep.subr.mxu0 0.0
      %8485 = vmatpush1.msra.mxu0 %v8318
      %8486 = vmatprep.subr.mxu0 0.0
      %8487 = vmatpush1.msra.mxu0 %v8319
      %8488 = vmatprep.subr.mxu0 0.0
      %8489 = vmatpush1.msra.mxu0 %v8320
      %8490 = vmatprep.subr.mxu0 0.0
      %8491 = vmatpush1.msra.mxu0 %v8321
      %8492 = vmatprep.subr.mxu0 0.0
      %8493 = vmatpush1.msra.mxu0 %v8322
      %8494 = vmatprep.subr.mxu0 0.0
      %8495 = vmatpush1.msra.mxu0 %v8323
      %8496 = vmatprep.subr.mxu0 0.0
      %8497 = vmatpush1.msra.mxu0 %v8324
      %8498 = vmatprep.subr.mxu0 0.0
      %8499 = vmatpush1.msra.mxu0 %v8325
      %8500 = vmatprep.subr.mxu0 0.0
      %8501 = vmatpush1.msra.mxu0 %v8326
      %8502 = vmatprep.subr.mxu0 0.0
      %8503 = vmatpush1.msra.mxu0 %v8327
      %8504 = vmatprep.subr.mxu0 0.0
      %8505 = vmatpush1.msra.mxu0 %v8328
      %8506 = vmatprep.subr.mxu0 0.0
      %8507 = vmatpush1.msra.mxu0 %v8329
      %8508 = vmatprep.subr.mxu0 0.0
      %8509 = vmatpush1.msra.mxu0 %v8330
      %8510 = vmatprep.subr.mxu0 0.0
      %8511 = vmatpush1.msra.mxu0 %v8331
      %8512 = vmatprep.subr.mxu0 0.0
      %8513 = vmatpush1.msra.mxu0 %v8332
      %8514 = vmatprep.subr.mxu0 0.0
      %8515 = vmatpush1.msra.mxu0 %v8333
      %8516 = vmatprep.subr.mxu0 0.0
      %8517 = vmatpush1.msra.mxu0 %v8334
      %8518 = vmatprep.mubr.f32.mxu0 %v8232
      %8519 = vmatmul.mubr.f32.gmra.mrb[0].mxu0 %v8231
      %v8520 = vpop.f32.mrb[0].mxu0
      %v8521 = vadd.f32 %v8452, %v8520
      %v8522 = vpop.f32.mrb[0].mxu0
      %8523 = vmatprep.mubr.f32.mxu0 %v8241
      %8524 = vmatmul.mubr.f32.gmra.mrb[0].mxu0 %v8240
      %v8525 = vpop.f32.mrb[0].mxu0
      %v8526 = vadd.f32 %v8452, %v8525
      %v8527 = vpop.f32.mrb[0].mxu0
      %8528 = vmatprep.mubr.f32.mxu0 %v8250
      %8529 = vmatmul.mubr.f32.gmra.mrb[0].mxu0 %v8249
      %v8530 = vpop.f32.mrb[0].mxu0
      %v8531 = vadd.f32 %v8452, %v8530
      %v8532 = vpop.f32.mrb[0].mxu0
      %8533 = vmatprep.mubr.f32.mxu0 %v8259
      %8534 = vmatmul.mubr.f32.gmra.mrb[0].mxu0 %v8258
      %v8535 = vpop.f32.mrb[0].mxu0
      %v8536 = vadd.f32 %v8452, %v8535
      %v8537 = vpop.f32.mrb[0].mxu0
      %8538 = vmatprep.mubr.f32.mxu0 %v8268
      %8539 = vmatmul.mubr.f32.gmra.mrb[0].mxu0 %v8267
      %v8540 = vpop.f32.mrb[0].mxu0
      %v8541 = vadd.f32 %v8452, %v8540
      %v8542 = vpop.f32.mrb[0].mxu0
      %8543 = vmatprep.mubr.f32.mxu0 %v8277
      %8544 = vmatmul.mubr.f32.gmra.mrb[0].mxu0 %v8276
      %v8545 = vpop.f32.mrb[0].mxu0
      %v8546 = vadd.f32 %v8452, %v8545
      %v8547 = vpop.f32.mrb[0].mxu0
      %8548 = vmatprep.mubr.f32.mxu0 %v8286
      %8549 = vmatmul.mubr.f32.gmra.mrb[0].mxu0 %v8285
      %v8550 = vpop.f32.mrb[0].mxu0
      %v8551 = vadd.f32 %v8452, %v8550
      %v8552 = vpop.f32.mrb[0].mxu0
      %8553 = vmatprep.mubr.f32.mxu0 %v8295
      %8554 = vmatmul.mubr.f32.gmra.mrb[0].mxu0 %v8294
      %v8555 = vpop.f32.mrb[0].mxu0
      %v8556 = vadd.f32 %v8452, %v8555
      %v8557 = vpop.f32.mrb[0].mxu0
      %8558 = vdwg.mxu0
      %8559 = vmatprep.subr.mxu0 0.0
      %8560 = vmatpush1.msra.mxu0 %v8335
      %8561 = vmatprep.subr.mxu0 0.0
      %8562 = vmatpush1.msra.mxu0 %v8336
      %8563 = vmatprep.subr.mxu0 0.0
      %8564 = vmatpush1.msra.mxu0 %v8337
      %8565 = vmatprep.subr.mxu0 0.0
      %8566 = vmatpush1.msra.mxu0 %v8338
      %8567 = vmatprep.subr.mxu0 0.0
      %8568 = vmatpush1.msra.mxu0 %v8339
      %8569 = vmatprep.subr.mxu0 0.0
      %8570 = vmatpush1.msra.mxu0 %v8340
      %8571 = vmatprep.subr.mxu0 0.0
      %8572 = vmatpush1.msra.mxu0 %v8341
      %8573 = vmatprep.subr.mxu0 0.0
      %8574 = vmatpush1.msra.mxu0 %v8342
      %8575 = vmatprep.subr.mxu0 0.0
      %8576 = vmatpush1.msra.mxu0 %v8343
      %8577 = vmatprep.subr.mxu0 0.0
      %8578 = vmatpush1.msra.mxu0 %v8344
      %8579 = vmatprep.subr.mxu0 0.0
      %8580 = vmatpush1.msra.mxu0 %v8345
      %8581 = vmatprep.subr.mxu0 0.0
      %8582 = vmatpush1.msra.mxu0 %v8346
      %8583 = vmatprep.subr.mxu0 0.0
      %8584 = vmatpush1.msra.mxu0 %v8347
      %8585 = vmatprep.subr.mxu0 0.0
      %8586 = vmatpush1.msra.mxu0 %v8348
      %8587 = vmatprep.subr.mxu0 0.0
      %8588 = vmatpush1.msra.mxu0 %v8349
      %8589 = vmatprep.subr.mxu0 0.0
      %8590 = vmatpush1.msra.mxu0 %v8350
      %8591 = vmatprep.subr.mxu0 0.0
      %8592 = vmatpush1.msra.mxu0 %v8351
      %8593 = vmatprep.subr.mxu0 0.0
      %8594 = vmatpush1.msra.mxu0 %v8352
      %8595 = vmatprep.subr.mxu0 0.0
      %8596 = vmatpush1.msra.mxu0 %v8353
      %8597 = vmatprep.subr.mxu0 0.0
      %8598 = vmatpush1.msra.mxu0 %v8354
      %8599 = vmatprep.subr.mxu0 0.0
      %8600 = vmatpush1.msra.mxu0 %v8355
      %8601 = vmatprep.subr.mxu0 0.0
      %8602 = vmatpush1.msra.mxu0 %v8356
      %8603 = vmatprep.subr.mxu0 0.0
      %8604 = vmatpush1.msra.mxu0 %v8357
      %8605 = vmatprep.subr.mxu0 0.0
      %8606 = vmatpush1.msra.mxu0 %v8358
      %8607 = vmatprep.subr.mxu0 0.0
      %8608 = vmatpush1.msra.mxu0 %v8359
      %8609 = vmatprep.subr.mxu0 0.0
      %8610 = vmatpush1.msra.mxu0 %v8360
      %8611 = vmatprep.subr.mxu0 0.0
      %8612 = vmatpush1.msra.mxu0 %v8361
      %8613 = vmatprep.subr.mxu0 0.0
      %8614 = vmatpush1.msra.mxu0 %v8362
      %8615 = vmatprep.subr.mxu0 0.0
      %8616 = vmatpush1.msra.mxu0 %v8363
      %8617 = vmatprep.subr.mxu0 0.0
      %8618 = vmatpush1.msra.mxu0 %v8364
      %8619 = vmatprep.subr.mxu0 0.0
      %8620 = vmatpush1.msra.mxu0 %v8365
      %8621 = vmatprep.subr.mxu0 0.0
      %8622 = vmatpush1.msra.mxu0 %v8366
      %8623 = vmatprep.mubr.f32.mxu0 %v8234
      %8624 = vmatmul.mubr.f32.gmra.mrb[0].mxu0 %v8233
      %v8625 = vpop.f32.mrb[0].mxu0
      %v8626 = vadd.f32 %v8521, %v8625
      %v8627 = vpop.f32.mrb[0].mxu0
      %8628 = vmatprep.mubr.f32.mxu0 %v8243
      %8629 = vmatmul.mubr.f32.gmra.mrb[0].mxu0 %v8242
      %v8630 = vpop.f32.mrb[0].mxu0
      %v8631 = vadd.f32 %v8526, %v8630
      %v8632 = vpop.f32.mrb[0].mxu0
      %8633 = vmatprep.mubr.f32.mxu0 %v8252
      %8634 = vmatmul.mubr.f32.gmra.mrb[0].mxu0 %v8251
      %v8635 = vpop.f32.mrb[0].mxu0
      %v8636 = vadd.f32 %v8531, %v8635
      %v8637 = vpop.f32.mrb[0].mxu0
      %8638 = vmatprep.mubr.f32.mxu0 %v8261
      %8639 = vmatmul.mubr.f32.gmra.mrb[0].mxu0 %v8260
      %v8640 = vpop.f32.mrb[0].mxu0
      %v8641 = vadd.f32 %v8536, %v8640
      %v8642 = vpop.f32.mrb[0].mxu0
      %8643 = vmatprep.mubr.f32.mxu0 %v8270
      %8644 = vmatmul.mubr.f32.gmra.mrb[0].mxu0 %v8269
      %v8645 = vpop.f32.mrb[0].mxu0
      %v8646 = vadd.f32 %v8541, %v8645
      %v8647 = vpop.f32.mrb[0].mxu0
      %8648 = vmatprep.mubr.f32.mxu0 %v8279
      %8649 = vmatmul.mubr.f32.gmra.mrb[0].mxu0 %v8278
      %v8650 = vpop.f32.mrb[0].mxu0
      %v8651 = vadd.f32 %v8546, %v8650
      %v8652 = vpop.f32.mrb[0].mxu0
      %8653 = vmatprep.mubr.f32.mxu0 %v8288
      %8654 = vmatmul.mubr.f32.gmra.mrb[0].mxu0 %v8287
      %v8655 = vpop.f32.mrb[0].mxu0
      %v8656 = vadd.f32 %v8551, %v8655
      %v8657 = vpop.f32.mrb[0].mxu0
      %8658 = vmatprep.mubr.f32.mxu0 %v8297
      %8659 = vmatmul.mubr.f32.gmra.mrb[0].mxu0 %v8296
      %v8660 = vpop.f32.mrb[0].mxu0
      %v8661 = vadd.f32 %v8556, %v8660
      %v8662 = vpop.f32.mrb[0].mxu0
      %8663 = vdwg.mxu0
      %8664 = vmatprep.subr.mxu0 0.0
      %8665 = vmatpush1.msra.mxu0 %v8367
      %8666 = vmatprep.subr.mxu0 0.0
      %8667 = vmatpush1.msra.mxu0 %v8368
      %8668 = vmatprep.subr.mxu0 0.0
      %8669 = vmatpush1.msra.mxu0 %v8369
      %8670 = vmatprep.subr.mxu0 0.0
      %8671 = vmatpush1.msra.mxu0 %v8370
      %8672 = vmatprep.subr.mxu0 0.0
      %8673 = vmatpush1.msra.mxu0 %v8371
      %8674 = vmatprep.subr.mxu0 0.0
      %8675 = vmatpush1.msra.mxu0 %v8372
      %8676 = vmatprep.subr.mxu0 0.0
      %8677 = vmatpush1.msra.mxu0 %v8373
      %8678 = vmatprep.subr.mxu0 0.0
      %8679 = vmatpush1.msra.mxu0 %v8374
      %8680 = vmatprep.subr.mxu0 0.0
      %8681 = vmatpush1.msra.mxu0 %v8375
      %8682 = vmatprep.subr.mxu0 0.0
      %8683 = vmatpush1.msra.mxu0 %v8376
      %8684 = vmatprep.subr.mxu0 0.0
      %8685 = vmatpush1.msra.mxu0 %v8377
      %8686 = vmatprep.subr.mxu0 0.0
      %8687 = vmatpush1.msra.mxu0 %v8378
      %8688 = vmatprep.subr.mxu0 0.0
      %8689 = vmatpush1.msra.mxu0 %v8379
      %8690 = vmatprep.subr.mxu0 0.0
      %8691 = vmatpush1.msra.mxu0 %v8380
      %8692 = vmatprep.subr.mxu0 0.0
      %8693 = vmatpush1.msra.mxu0 %v8381
      %8694 = vmatprep.subr.mxu0 0.0
      %8695 = vmatpush1.msra.mxu0 %v8382
      %8696 = vmatprep.subr.mxu0 0.0
      %8697 = vmatpush1.msra.mxu0 %v8383
      %8698 = vmatprep.subr.mxu0 0.0
      %8699 = vmatpush1.msra.mxu0 %v8384
      %8700 = vmatprep.subr.mxu0 0.0
      %8701 = vmatpush1.msra.mxu0 %v8385
      %8702 = vmatprep.subr.mxu0 0.0
      %8703 = vmatpush1.msra.mxu0 %v8386
      %8704 = vmatprep.subr.mxu0 0.0
      %8705 = vmatpush1.msra.mxu0 %v8387
      %8706 = vmatprep.subr.mxu0 0.0
      %8707 = vmatpush1.msra.mxu0 %v8388
      %8708 = vmatprep.subr.mxu0 0.0
      %8709 = vmatpush1.msra.mxu0 %v8389
      %8710 = vmatprep.subr.mxu0 0.0
      %8711 = vmatpush1.msra.mxu0 %v8390
      %8712 = vmatprep.subr.mxu0 0.0
      %8713 = vmatpush1.msra.mxu0 %v8391
      %8714 = vmatprep.subr.mxu0 0.0
      %8715 = vmatpush1.msra.mxu0 %v8392
      %8716 = vmatprep.subr.mxu0 0.0
      %8717 = vmatpush1.msra.mxu0 %v8393
      %8718 = vmatprep.subr.mxu0 0.0
      %8719 = vmatpush1.msra.mxu0 %v8394
      %8720 = vmatprep.subr.mxu0 0.0
      %8721 = vmatpush1.msra.mxu0 %v8395
      %8722 = vmatprep.subr.mxu0 0.0
      %8723 = vmatpush1.msra.mxu0 %v8396
      %8724 = vmatprep.subr.mxu0 0.0
      %8725 = vmatpush1.msra.mxu0 %v8397
      %8726 = vmatprep.subr.mxu0 0.0
      %8727 = vmatpush1.msra.mxu0 %v8398
      %8728 = vmatprep.mubr.f32.mxu0 %v8236
      %8729 = vmatmul.mubr.f32.gmra.mrb[0].mxu0 %v8235
      %v8730 = vpop.f32.mrb[0].mxu0
      %v8731 = vadd.f32 %v8626, %v8730
      %v8732 = vpop.f32.mrb[0].mxu0
      %8733 = vmatprep.mubr.f32.mxu0 %v8245
      %8734 = vmatmul.mubr.f32.gmra.mrb[0].mxu0 %v8244
      %v8735 = vpop.f32.mrb[0].mxu0
      %v8736 = vadd.f32 %v8631, %v8735
      %v8737 = vpop.f32.mrb[0].mxu0
      %8738 = vmatprep.mubr.f32.mxu0 %v8254
      %8739 = vmatmul.mubr.f32.gmra.mrb[0].mxu0 %v8253
      %v8740 = vpop.f32.mrb[0].mxu0
      %v8741 = vadd.f32 %v8636, %v8740
      %v8742 = vpop.f32.mrb[0].mxu0
      %8743 = vmatprep.mubr.f32.mxu0 %v8263
      %8744 = vmatmul.mubr.f32.gmra.mrb[0].mxu0 %v8262
      %v8745 = vpop.f32.mrb[0].mxu0
      %v8746 = vadd.f32 %v8641, %v8745
      %v8747 = vpop.f32.mrb[0].mxu0
      %8748 = vmatprep.mubr.f32.mxu0 %v8272
      %8749 = vmatmul.mubr.f32.gmra.mrb[0].mxu0 %v8271
      %v8750 = vpop.f32.mrb[0].mxu0
      %v8751 = vadd.f32 %v8646, %v8750
      %v8752 = vpop.f32.mrb[0].mxu0
      %8753 = vmatprep.mubr.f32.mxu0 %v8281
      %8754 = vmatmul.mubr.f32.gmra.mrb[0].mxu0 %v8280
      %v8755 = vpop.f32.mrb[0].mxu0
      %v8756 = vadd.f32 %v8651, %v8755
      %v8757 = vpop.f32.mrb[0].mxu0
      %8758 = vmatprep.mubr.f32.mxu0 %v8290
      %8759 = vmatmul.mubr.f32.gmra.mrb[0].mxu0 %v8289
      %v8760 = vpop.f32.mrb[0].mxu0
      %v8761 = vadd.f32 %v8656, %v8760
      %v8762 = vpop.f32.mrb[0].mxu0
      %8763 = vmatprep.mubr.f32.mxu0 %v8299
      %8764 = vmatmul.mubr.f32.gmra.mrb[0].mxu0 %v8298
      %v8765 = vpop.f32.mrb[0].mxu0
      %v8766 = vadd.f32 %v8661, %v8765
      %v8767 = vpop.f32.mrb[0].mxu0
      %8768 = vdwg.mxu0
      %8769 = vmatprep.subr.mxu0 0.0
      %8770 = vmatpush1.msra.mxu0 %v8399
      %8771 = vmatprep.subr.mxu0 0.0
      %8772 = vmatpush1.msra.mxu0 %v8400
      %8773 = vmatprep.subr.mxu0 0.0
      %8774 = vmatpush1.msra.mxu0 %v8401
      %8775 = vmatprep.subr.mxu0 0.0
      %8776 = vmatpush1.msra.mxu0 %v8402
      %8777 = vmatprep.subr.mxu0 0.0
      %8778 = vmatpush1.msra.mxu0 %v8403
      %8779 = vmatprep.subr.mxu0 0.0
      %8780 = vmatpush1.msra.mxu0 %v8404
      %8781 = vmatprep.subr.mxu0 0.0
      %8782 = vmatpush1.msra.mxu0 %v8405
      %8783 = vmatprep.subr.mxu0 0.0
      %8784 = vmatpush1.msra.mxu0 %v8406
      %8785 = vmatprep.subr.mxu0 0.0
      %8786 = vmatpush1.msra.mxu0 %v8407
      %8787 = vmatprep.subr.mxu0 0.0
      %8788 = vmatpush1.msra.mxu0 %v8408
      %8789 = vmatprep.subr.mxu0 0.0
      %8790 = vmatpush1.msra.mxu0 %v8409
      %8791 = vmatprep.subr.mxu0 0.0
      %8792 = vmatpush1.msra.mxu0 %v8410
      %8793 = vmatprep.subr.mxu0 0.0
      %8794 = vmatpush1.msra.mxu0 %v8411
      %8795 = vmatprep.subr.mxu0 0.0
      %8796 = vmatpush1.msra.mxu0 %v8412
      %8797 = vmatprep.subr.mxu0 0.0
      %8798 = vmatpush1.msra.mxu0 %v8413
      %8799 = vmatprep.subr.mxu0 0.0
      %8800 = vmatpush1.msra.mxu0 %v8414
      %8801 = vmatprep.subr.mxu0 0.0
      %8802 = vmatpush1.msra.mxu0 %v8415
      %8803 = vmatprep.subr.mxu0 0.0
      %8804 = vmatpush1.msra.mxu0 %v8416
      %8805 = vmatprep.subr.mxu0 0.0
      %8806 = vmatpush1.msra.mxu0 %v8417
      %8807 = vmatprep.subr.mxu0 0.0
      %8808 = vmatpush1.msra.mxu0 %v8418
      %8809 = vmatprep.subr.mxu0 0.0
      %8810 = vmatpush1.msra.mxu0 %v8419
      %8811 = vmatprep.subr.mxu0 0.0
      %8812 = vmatpush1.msra.mxu0 %v8420
      %8813 = vmatprep.subr.mxu0 0.0
      %8814 = vmatpush1.msra.mxu0 %v8421
      %8815 = vmatprep.subr.mxu0 0.0
      %8816 = vmatpush1.msra.mxu0 %v8422
      %8817 = vmatprep.subr.mxu0 0.0
      %8818 = vmatpush1.msra.mxu0 %v8423
      %8819 = vmatprep.subr.mxu0 0.0
      %8820 = vmatpush1.msra.mxu0 %v8424
      %8821 = vmatprep.subr.mxu0 0.0
      %8822 = vmatpush1.msra.mxu0 %v8425
      %8823 = vmatprep.subr.mxu0 0.0
      %8824 = vmatpush1.msra.mxu0 %v8426
      %8825 = vmatprep.subr.mxu0 0.0
      %8826 = vmatpush1.msra.mxu0 %v8427
      %8827 = vmatprep.subr.mxu0 0.0
      %8828 = vmatpush1.msra.mxu0 %v8428
      %8829 = vmatprep.subr.mxu0 0.0
      %8830 = vmatpush1.msra.mxu0 %v8429
      %8831 = vmatprep.subr.mxu0 0.0
      %8832 = vmatpush1.msra.mxu0 %v8430
      %8833 = vmatprep.mubr.f32.mxu0 %v8238
      %8834 = vmatmul.mubr.f32.gmra.mrb[0].mxu0 %v8237
      %v8835 = vpop.f32.mrb[0].mxu0
      %v8836 = vadd.f32 %v8731, %v8835
      %v8837 = vpop.f32.mrb[0].mxu0
      %8838 = vmatprep.mubr.f32.mxu0 %v8247
      %8839 = vmatmul.mubr.f32.gmra.mrb[0].mxu0 %v8246
      %v8840 = vpop.f32.mrb[0].mxu0
      %v8841 = vadd.f32 %v8736, %v8840
      %v8842 = vpop.f32.mrb[0].mxu0
      %8843 = vmatprep.mubr.f32.mxu0 %v8256
      %8844 = vmatmul.mubr.f32.gmra.mrb[0].mxu0 %v8255
      %v8845 = vpop.f32.mrb[0].mxu0
      %v8846 = vadd.f32 %v8741, %v8845
      %v8847 = vpop.f32.mrb[0].mxu0
      %8848 = vmatprep.mubr.f32.mxu0 %v8265
      %8849 = vmatmul.mubr.f32.gmra.mrb[0].mxu0 %v8264
      %v8850 = vpop.f32.mrb[0].mxu0
      %v8851 = vadd.f32 %v8746, %v8850
      %v8852 = vpop.f32.mrb[0].mxu0
      %8853 = vmatprep.mubr.f32.mxu0 %v8274
      %8854 = vmatmul.mubr.f32.gmra.mrb[0].mxu0 %v8273
      %v8855 = vpop.f32.mrb[0].mxu0
      %v8856 = vadd.f32 %v8751, %v8855
      %v8857 = vpop.f32.mrb[0].mxu0
      %8858 = vmatprep.mubr.f32.mxu0 %v8283
      %8859 = vmatmul.mubr.f32.gmra.mrb[0].mxu0 %v8282
      %v8860 = vpop.f32.mrb[0].mxu0
      %v8861 = vadd.f32 %v8756, %v8860
      %v8862 = vpop.f32.mrb[0].mxu0
      %8863 = vmatprep.mubr.f32.mxu0 %v8292
      %8864 = vmatmul.mubr.f32.gmra.mrb[0].mxu0 %v8291
      %v8865 = vpop.f32.mrb[0].mxu0
      %v8866 = vadd.f32 %v8761, %v8865
      %v8867 = vpop.f32.mrb[0].mxu0
      %8868 = vmatprep.mubr.f32.mxu0 %v8301
      %8869 = vmatmul.mubr.f32.gmra.mrb[0].mxu0 %v8300
      %v8870 = vpop.f32.mrb[0].mxu0
      %v8871 = vadd.f32 %v8766, %v8870
      %v8872 = vpop.f32.mrb[0].mxu0
      %8873 = vdwg.mxu0
      %8874 = vmatprep.subr.mxu0 0.0
      %8875 = vmatpush1.msra.mxu0 %v8431
      %8876 = vmatprep.subr.mxu0 0.0
      %8877 = vmatpush1.msra.mxu0 %v8432
      %8878 = vmatprep.subr.mxu0 0.0
      %8879 = vmatpush1.msra.mxu0 %v8433
      %8880 = vmatprep.subr.mxu0 0.0
      %8881 = vmatpush1.msra.mxu0 %v8434
      %8882 = vmatprep.subr.mxu0 0.0
      %8883 = vmatpush1.msra.mxu0 %v8435
      %8884 = vmatprep.subr.mxu0 0.0
      %8885 = vmatpush1.msra.mxu0 %v8436
      %8886 = vmatprep.subr.mxu0 0.0
      %8887 = vmatpush1.msra.mxu0 %v8437
      %8888 = vmatprep.subr.mxu0 0.0
      %8889 = vmatpush1.msra.mxu0 %v8438
      %8890 = vmatprep.subr.mxu0 0.0
      %8891 = vmatpush1.msra.mxu0 %v8439
      %8892 = vmatprep.subr.mxu0 0.0
      %8893 = vmatpush1.msra.mxu0 %v8440
      %8894 = vmatprep.subr.mxu0 0.0
      %8895 = vmatpush1.msra.mxu0 %v8441
      %8896 = vmatprep.subr.mxu0 0.0
      %8897 = vmatpush1.msra.mxu0 %v8442
      %8898 = vmatprep.subr.mxu0 0.0
      %8899 = vmatpush1.msra.mxu0 %v8443
      %8900 = vmatprep.subr.mxu0 0.0
      %8901 = vmatpush1.msra.mxu0 %v8444
      %8902 = vmatprep.subr.mxu0 0.0
      %8903 = vmatpush1.msra.mxu0 %v8445
      %8904 = vmatprep.subr.mxu0 0.0
      %8905 = vmatpush1.msra.mxu0 %v8446
      %8906 = vmatprep.subr.mxu0 0.0
      %8907 = vmatpush1.msra.mxu0 0.0
      %8908 = vmatprep.subr.mxu0 0.0
      %8909 = vmatpush1.msra.mxu0 0.0
      %8910 = vmatprep.subr.mxu0 0.0
      %8911 = vmatpush1.msra.mxu0 0.0
      %8912 = vmatprep.subr.mxu0 0.0
      %8913 = vmatpush1.msra.mxu0 0.0
      %8914 = vmatprep.subr.mxu0 0.0
      %8915 = vmatpush1.msra.mxu0 0.0
      %8916 = vmatprep.subr.mxu0 0.0
      %8917 = vmatpush1.msra.mxu0 0.0
      %8918 = vmatprep.subr.mxu0 0.0
      %8919 = vmatpush1.msra.mxu0 0.0
      %8920 = vmatprep.subr.mxu0 0.0
      %8921 = vmatpush1.msra.mxu0 0.0
      %8922 = vmatprep.subr.mxu0 0.0
      %8923 = vmatpush1.msra.mxu0 0.0
      %8924 = vmatprep.subr.mxu0 0.0
      %8925 = vmatpush1.msra.mxu0 0.0
      %8926 = vmatprep.subr.mxu0 0.0
      %8927 = vmatpush1.msra.mxu0 0.0
      %8928 = vmatprep.subr.mxu0 0.0
      %8929 = vmatpush1.msra.mxu0 0.0
      %8930 = vmatprep.subr.mxu0 0.0
      %8931 = vmatpush1.msra.mxu0 0.0
      %8932 = vmatprep.subr.mxu0 0.0
      %8933 = vmatpush1.msra.mxu0 0.0
      %8934 = vmatprep.subr.mxu0 0.0
      %8935 = vmatpush1.msra.mxu0 0.0
      %8936 = vmatprep.subr.mxu0 0.0
      %8937 = vmatpush1.msra.mxu0 0.0
      %8938 = vmatprep.mubr.f32.mxu0 0.0
      %8939 = vmatmul.mubr.f32.gmra.mrb[0].mxu0 %v8239
      %v8940 = vpop.f32.mrb[0].mxu0
      %v8941 = vadd.f32 %v8836, %v8940
      %v8942 = vpop.f32.mrb[0].mxu0
      %8943 = vmatprep.mubr.f32.mxu0 0.0
      %8944 = vmatmul.mubr.f32.gmra.mrb[0].mxu0 %v8248
      %v8945 = vpop.f32.mrb[0].mxu0
      %v8946 = vadd.f32 %v8841, %v8945
      %v8947 = vpop.f32.mrb[0].mxu0
      %8948 = vmatprep.mubr.f32.mxu0 0.0
      %8949 = vmatmul.mubr.f32.gmra.mrb[0].mxu0 %v8257
      %v8950 = vpop.f32.mrb[0].mxu0
      %v8951 = vadd.f32 %v8846, %v8950
      %v8952 = vpop.f32.mrb[0].mxu0
      %8953 = vmatprep.mubr.f32.mxu0 0.0
      %8954 = vmatmul.mubr.f32.gmra.mrb[0].mxu0 %v8266
      %v8955 = vpop.f32.mrb[0].mxu0
      %v8956 = vadd.f32 %v8851, %v8955
      %v8957 = vpop.f32.mrb[0].mxu0
      %8958 = vmatprep.mubr.f32.mxu0 0.0
      %8959 = vmatmul.mubr.f32.gmra.mrb[0].mxu0 %v8275
      %v8960 = vpop.f32.mrb[0].mxu0
      %v8961 = vadd.f32 %v8856, %v8960
      %v8962 = vpop.f32.mrb[0].mxu0
      %8963 = vmatprep.mubr.f32.mxu0 0.0
      %8964 = vmatmul.mubr.f32.gmra.mrb[0].mxu0 %v8284
      %v8965 = vpop.f32.mrb[0].mxu0
      %v8966 = vadd.f32 %v8861, %v8965
      %v8967 = vpop.f32.mrb[0].mxu0
      %8968 = vmatprep.mubr.f32.mxu0 0.0
      %8969 = vmatmul.mubr.f32.gmra.mrb[0].mxu0 %v8293
      %v8970 = vpop.f32.mrb[0].mxu0
      %v8971 = vadd.f32 %v8866, %v8970
      %v8972 = vpop.f32.mrb[0].mxu0
      %8973 = vmatprep.mubr.f32.mxu0 0.0
      %8974 = vmatmul.mubr.f32.gmra.mrb[0].mxu0 %v8302
      %v8975 = vpop.f32.mrb[0].mxu0
      %v8976 = vadd.f32 %v8871, %v8975
      %v8977 = vpop.f32.mrb[0].mxu0
      %8978 = vdwg.mxu0
      %v8979 = vmax.f32 %v8941, 0.0
      %v8980 = vmax.f32 %v8946, 0.0
      %v8981 = vmax.f32 %v8951, 0.0
      %v8982 = vmax.f32 %v8956, 0.0
      %v8983 = vmax.f32 %v8961, 0.0
      %v8984 = vmax.f32 %v8966, 0.0
      %v8985 = vmax.f32 %v8971, 0.0
      %v8986 = vmax.f32 %v8976, 0.0
      %v8987 = vld [vmem:[%s9] sm:$0xff]
      %v8988 = vld [vmem:[%s9 + $0x8] sm:$0xff]
      %v8989 = vld [vmem:[%s9 + $0x10] sm:$0xff]
      %v8990 = vld [vmem:[%s9 + $0x18] sm:$0xff]
      %v8991 = vld [vmem:[%s9 + $0x20] sm:$0xff]
      %v8992 = vld [vmem:[%s9 + $0x28] sm:$0xff]
      %v8993 = vld [vmem:[%s9 + $0x30] sm:$0xff]
      %v8994 = vld [vmem:[%s9 + $0x38] sm:$0xff]
      %v8995 = vld [vmem:[%s9 + $0x40] sm:$0xff]
      %v8996 = vld [vmem:[%s9 + $0x48] sm:$0xff]
      %v8997 = vld [vmem:[%s9 + $0x50] sm:$0xff]
      %v8998 = vld [vmem:[%s9 + $0x58] sm:$0xff]
      %v8999 = vld [vmem:[%s9 + $0x60] sm:$0xff]
      %v9000 = vld [vmem:[%s9 + $0x68] sm:$0xff]
      %v9001 = vld [vmem:[%s9 + $0x70] sm:$0xff]
      %v9002 = vld [vmem:[%s9 + $0x78] sm:$0xff]
      %v9003 = vld [vmem:[%s10] sm:$0x1]
      %v9005 = vlaneseq
      %v9006 = vshrl.u32 %v9005, 7
      %v9007 = vsub.s32 0, %v9006
      %v9008 = vrot.slane %v9003, %v9007
      %9010 = vmatprep.subr.mxu0 0.0
      %9011 = vmatpush1.msra.mxu0 %v8987
      %9012 = vmatprep.subr.mxu0 0.0
      %9013 = vmatpush1.msra.mxu0 %v8988
      %9014 = vmatprep.subr.mxu0 0.0
      %9015 = vmatpush1.msra.mxu0 %v8989
      %9016 = vmatprep.subr.mxu0 0.0
      %9017 = vmatpush1.msra.mxu0 %v8990
      %9018 = vmatprep.subr.mxu0 0.0
      %9019 = vmatpush1.msra.mxu0 %v8991
      %9020 = vmatprep.subr.mxu0 0.0
      %9021 = vmatpush1.msra.mxu0 %v8992
      %9022 = vmatprep.subr.mxu0 0.0
      %9023 = vmatpush1.msra.mxu0 %v8993
      %9024 = vmatprep.subr.mxu0 0.0
      %9025 = vmatpush1.msra.mxu0 %v8994
      %9026 = vmatprep.subr.mxu0 0.0
      %9027 = vmatpush1.msra.mxu0 %v8995
      %9028 = vmatprep.subr.mxu0 0.0
      %9029 = vmatpush1.msra.mxu0 %v8996
      %9030 = vmatprep.subr.mxu0 0.0
      %9031 = vmatpush1.msra.mxu0 %v8997
      %9032 = vmatprep.subr.mxu0 0.0
      %9033 = vmatpush1.msra.mxu0 %v8998
      %9034 = vmatprep.subr.mxu0 0.0
      %9035 = vmatpush1.msra.mxu0 %v8999
      %9036 = vmatprep.subr.mxu0 0.0
      %9037 = vmatpush1.msra.mxu0 %v9000
      %9038 = vmatprep.subr.mxu0 0.0
      %9039 = vmatpush1.msra.mxu0 %v9001
      %9040 = vmatprep.subr.mxu0 0.0
      %9041 = vmatpush1.msra.mxu0 %v9002
      %9042 = vmatprep.subr.mxu0 0.0
      %9043 = vmatpush1.msra.mxu0 0.0
      %9044 = vmatprep.subr.mxu0 0.0
      %9045 = vmatpush1.msra.mxu0 0.0
      %9046 = vmatprep.subr.mxu0 0.0
      %9047 = vmatpush1.msra.mxu0 0.0
      %9048 = vmatprep.subr.mxu0 0.0
      %9049 = vmatpush1.msra.mxu0 0.0
      %9050 = vmatprep.subr.mxu0 0.0
      %9051 = vmatpush1.msra.mxu0 0.0
      %9052 = vmatprep.subr.mxu0 0.0
      %9053 = vmatpush1.msra.mxu0 0.0
      %9054 = vmatprep.subr.mxu0 0.0
      %9055 = vmatpush1.msra.mxu0 0.0
      %9056 = vmatprep.subr.mxu0 0.0
      %9057 = vmatpush1.msra.mxu0 0.0
      %9058 = vmatprep.subr.mxu0 0.0
      %9059 = vmatpush1.msra.mxu0 0.0
      %9060 = vmatprep.subr.mxu0 0.0
      %9061 = vmatpush1.msra.mxu0 0.0
      %9062 = vmatprep.subr.mxu0 0.0
      %9063 = vmatpush1.msra.mxu0 0.0
      %9064 = vmatprep.subr.mxu0 0.0
      %9065 = vmatpush1.msra.mxu0 0.0
      %9066 = vmatprep.subr.mxu0 0.0
      %9067 = vmatpush1.msra.mxu0 0.0
      %9068 = vmatprep.subr.mxu0 0.0
      %9069 = vmatpush1.msra.mxu0 0.0
      %9070 = vmatprep.subr.mxu0 0.0
      %9071 = vmatpush1.msra.mxu0 0.0
      %9072 = vmatprep.subr.mxu0 0.0
      %9073 = vmatpush1.msra.mxu0 0.0
      %9074 = vmatprep.mubr.f32.mxu0 0.0
      %9075 = vmatmul.mubr.f32.gmra.mrb[0].mxu0 %v8979
      %v9076 = vpop.f32.mrb[0].mxu0
      %v9077 = vadd.f32 %v9008, %v9076
      %v9078 = vpop.f32.mrb[0].mxu0
      %9079 = vmatprep.mubr.f32.mxu0 0.0
      %9080 = vmatmul.mubr.f32.gmra.mrb[0].mxu0 %v8980
      %v9081 = vpop.f32.mrb[0].mxu0
      %v9082 = vadd.f32 %v9008, %v9081
      %v9083 = vpop.f32.mrb[0].mxu0
      %9084 = vmatprep.mubr.f32.mxu0 0.0
      %9085 = vmatmul.mubr.f32.gmra.mrb[0].mxu0 %v8981
      %v9086 = vpop.f32.mrb[0].mxu0
      %v9087 = vadd.f32 %v9008, %v9086
      %v9088 = vpop.f32.mrb[0].mxu0
      %9089 = vmatprep.mubr.f32.mxu0 0.0
      %9090 = vmatmul.mubr.f32.gmra.mrb[0].mxu0 %v8982
      %v9091 = vpop.f32.mrb[0].mxu0
      %v9092 = vadd.f32 %v9008, %v9091
      %v9093 = vpop.f32.mrb[0].mxu0
      %9094 = vmatprep.mubr.f32.mxu0 0.0
      %9095 = vmatmul.mubr.f32.gmra.mrb[0].mxu0 %v8983
      %v9096 = vpop.f32.mrb[0].mxu0
      %v9097 = vadd.f32 %v9008, %v9096
      %v9098 = vpop.f32.mrb[0].mxu0
      %9099 = vmatprep.mubr.f32.mxu0 0.0
      %9100 = vmatmul.mubr.f32.gmra.mrb[0].mxu0 %v8984
      %v9101 = vpop.f32.mrb[0].mxu0
      %v9102 = vadd.f32 %v9008, %v9101
      %v9103 = vpop.f32.mrb[0].mxu0
      %9104 = vmatprep.mubr.f32.mxu0 0.0
      %9105 = vmatmul.mubr.f32.gmra.mrb[0].mxu0 %v8985
      %v9106 = vpop.f32.mrb[0].mxu0
      %v9107 = vadd.f32 %v9008, %v9106
      %v9108 = vpop.f32.mrb[0].mxu0
      %9109 = vmatprep.mubr.f32.mxu0 0.0
      %9110 = vmatmul.mubr.f32.gmra.mrb[0].mxu0 %v8986
      %v9111 = vpop.f32.mrb[0].mxu0
      %v9112 = vadd.f32 %v9008, %v9111
      %v9113 = vpop.f32.mrb[0].mxu0
      %9114 = vdwg.mxu0
      %v9115 = vsub.f32 0.0, %v9077
      %v9116 = vsub.f32 0.0, %v9082
      %v9117 = vsub.f32 0.0, %v9087
      %v9118 = vsub.f32 0.0, %v9092
      %v9119 = vsub.f32 0.0, %v9097
      %v9120 = vsub.f32 0.0, %v9102
      %v9121 = vsub.f32 0.0, %v9107
      %v9122 = vsub.f32 0.0, %v9112
      %v9123 = vmul.f32 %v9115, 1.442695
      %v9124 = vpow.pop %v9123
      %v9125 = vmul.f32 %v9116, 1.442695
      %v9126 = vpow.pop %v9125
      %v9127 = vmul.f32 %v9117, 1.442695
      %v9128 = vpow.pop %v9127
      %v9129 = vmul.f32 %v9118, 1.442695
      %v9130 = vpow.pop %v9129
      %v9131 = vmul.f32 %v9119, 1.442695
      %v9132 = vpow.pop %v9131
      %v9133 = vmul.f32 %v9120, 1.442695
      %v9134 = vpow.pop %v9133
      %v9135 = vmul.f32 %v9121, 1.442695
      %v9136 = vpow.pop %v9135
      %v9137 = vmul.f32 %v9122, 1.442695
      %v9138 = vpow.pop %v9137
      %v9139 = vadd.f32 %v9124, 1.0
      %v9140 = vadd.f32 %v9126, 1.0
      %v9141 = vadd.f32 %v9128, 1.0
      %v9142 = vadd.f32 %v9130, 1.0
      %v9143 = vadd.f32 %v9132, 1.0
      %v9144 = vadd.f32 %v9134, 1.0
      %v9145 = vadd.f32 %v9136, 1.0
      %v9146 = vadd.f32 %v9138, 1.0
      %v9147 = vrcp.pop %v9139
      %v9148 = vmul.f32 1.0, %v9147
      %v9149 = vrcp.pop %v9140
      %v9150 = vmul.f32 1.0, %v9149
      %v9151 = vrcp.pop %v9141
      %v9152 = vmul.f32 1.0, %v9151
      %v9153 = vrcp.pop %v9142
      %v9154 = vmul.f32 1.0, %v9153
      %v9155 = vrcp.pop %v9143
      %v9156 = vmul.f32 1.0, %v9155
      %v9157 = vrcp.pop %v9144
      %v9158 = vmul.f32 1.0, %v9157
      %v9159 = vrcp.pop %v9145
      %v9160 = vmul.f32 1.0, %v9159
      %v9161 = vrcp.pop %v9146
      %v9162 = vmul.f32 1.0, %v9161
      %v9163 = vsel %vm3396, %v9148, %v9077
      %v9164 = vsel %vm3396, %v9150, %v9082
      %v9165 = vsel %vm3396, %v9152, %v9087
      %v9166 = vsel %vm3396, %v9154, %v9092
      %v9167 = vsel %vm3396, %v9156, %v9097
      %v9168 = vsel %vm3396, %v9158, %v9102
      %v9169 = vsel %vm3396, %v9160, %v9107
      %v9170 = vsel %vm3396, %v9162, %v9112
      %9171 = vst [vmem:[%s504] sm:$0xff] %v9163
      %9172 = vst [vmem:[%s504 + $0x8] sm:$0xff] %v9164
      %9173 = vst [vmem:[%s504 + $0x10] sm:$0xff] %v9165
      %9174 = vst [vmem:[%s504 + $0x18] sm:$0xff] %v9166
      %9175 = vst [vmem:[%s504 + $0x20] sm:$0xff] %v9167
      %9176 = vst [vmem:[%s504 + $0x28] sm:$0xff] %v9168
      %9177 = vst [vmem:[%s504 + $0x30] sm:$0xff] %v9169
      %9178 = vst [vmem:[%s504 + $0x38] sm:$0xff] %v9170
      %p9179 = scmp.lt.s32.totalorder %s26, 1
      %s9180 = scalar_select %p9179, %s26, 1
      %s9181 = smul.addr %s9180, 32
      %s9182 = smul.addr %s9181, 8
      %s9183 = scalar_lea.vmem %s11, %s9182
      %p9184 = scmp.lt.s32.totalorder %s26, 1
      %s9185 = scalar_select %p9184, %s26, 1
      %s9186 = smul.addr %s9185, 32
      %s9187 = smul.addr %s9186, 8
      %s9188 = scalar_lea.vmem %s12, %s9187
      %p9189 = scmp.lt.s32.totalorder %s26, 1
      %s9190 = scalar_select %p9189, %s26, 1
      %s9191 = smul.addr %s9190, 8
      %s9192 = smul.addr %s9191, 8
      %s9193 = scalar_lea.vmem %s13, %s9192
      %p9194 = scmp.lt.s32.totalorder %s26, 1
      %s9195 = scalar_select %p9194, %s26, 1
      %s9196 = smul.addr %s9195, 8
      %s9197 = smul.addr %s9196, 8
      %s9198 = scalar_lea.vmem %s14, %s9197
      // Predicated region
      $region65: #{srn_forward.1} parent=63 // pred_check
        %p9199 = pneg %p280
      $region66: #{srn_forward.1} parent=63 // pred_check_branch
        %9201 = sbr.rel (%p9199) target = $region68
      $region67: #{srn_forward.1} parent=63 // pred_region
        _
      $region68: #{srn_forward.1} parent=63 // pred_fallthru
        _
      // Predicated region
      $region69: #{srn_forward.1} parent=63 // pred_check
        %p9202 = pneg %p306
      $region70: #{srn_forward.1} parent=63 // pred_check_branch
        %9204 = sbr.rel (%p9202) target = $region72
      $region71: #{srn_forward.1} parent=63 // pred_region
        _
      $region72: #{srn_forward.1} parent=63 // pred_fallthru
        _
      // Predicated region
      $region73: #{srn_forward.1} parent=63 // pred_check
        %p9205 = pneg %p332
      $region74: #{srn_forward.1} parent=63 // pred_check_branch
        %9207 = sbr.rel (%p9205) target = $region76
      $region75: #{srn_forward.1} parent=63 // pred_region
        _
      $region76: #{srn_forward.1} parent=63 // pred_fallthru
        _
      // Predicated region
      $region77: #{srn_forward.1} parent=63 // pred_check
        %p9208 = pneg %p358
      $region78: #{srn_forward.1} parent=63 // pred_check_branch
        %9210 = sbr.rel (%p9208) target = $region80
      $region79: #{srn_forward.1} parent=63 // pred_region
        _
      $region80: #{srn_forward.1} parent=63 // pred_fallthru
        _
    $region64: #{srn_forward.1} parent=5 // pred_fallthru
      _
    %p9211 = scmp.le.s32.totalorder 2, %s21
    // Predicated region
    $region81: #{srn_forward.1} parent=5 // pred_check
      %p9212 = pneg %p9211
    $region82: #{srn_forward.1} parent=5 // pred_check_branch
      %9214 = sbr.rel (%p9212) target = $region84
    $region83: #{srn_forward.1} parent=5 // pred_region
      %s9215 = ssub.s32 %s21, 2
      // Predicated region
      $region85: #{srn_forward.1} parent=83 // pred_check
        %p9216 = pneg %p286
      $region86: #{srn_forward.1} parent=83 // pred_check_branch
        %9218 = sbr.rel (%p9216) target = $region88
      $region87: #{srn_forward.1} parent=83 // pred_region
        %p9219 = scmp.lt.s32.totalorder %s27, 1
        %s9220 = scalar_select %p9219, %s27, 1
        %s9221 = smul.addr %s9220, 32
        %s9222 = smul.addr %s9221, 8
        %s9223 = scalar_lea.vmem %s11, %s9222
      $region88: #{srn_forward.1} parent=83 // pred_fallthru
        _
      // Predicated region
      $region89: #{srn_forward.1} parent=83 // pred_check
        %p9224 = pneg %p312
      $region90: #{srn_forward.1} parent=83 // pred_check_branch
        %9226 = sbr.rel (%p9224) target = $region92
      $region91: #{srn_forward.1} parent=83 // pred_region
        %p9227 = scmp.lt.s32.totalorder %s27, 1
        %s9228 = scalar_select %p9227, %s27, 1
        %s9229 = smul.addr %s9228, 32
        %s9230 = smul.addr %s9229, 8
        %s9231 = scalar_lea.vmem %s12, %s9230
      $region92: #{srn_forward.1} parent=83 // pred_fallthru
        _
      // Predicated region
      $region93: #{srn_forward.1} parent=83 // pred_check
        %p9232 = pneg %p338
      $region94: #{srn_forward.1} parent=83 // pred_check_branch
        %9234 = sbr.rel (%p9232) target = $region96
      $region95: #{srn_forward.1} parent=83 // pred_region
        %p9235 = scmp.lt.s32.totalorder %s27, 1
        %s9236 = scalar_select %p9235, %s27, 1
        %s9237 = smul.addr %s9236, 8
        %s9238 = smul.addr %s9237, 8
        %s9239 = scalar_lea.vmem %s13, %s9238
      $region96: #{srn_forward.1} parent=83 // pred_fallthru
        _
      // Predicated region
      $region97: #{srn_forward.1} parent=83 // pred_check
        %p9240 = pneg %p364
      $region98: #{srn_forward.1} parent=83 // pred_check_branch
        %9242 = sbr.rel (%p9240) target = $region100
      $region99: #{srn_forward.1} parent=83 // pred_region
        %p9243 = scmp.lt.s32.totalorder %s27, 1
        %s9244 = scalar_select %p9243, %s27, 1
        %s9245 = smul.addr %s9244, 8
        %s9246 = smul.addr %s9245, 8
        %s9247 = scalar_lea.vmem %s14, %s9246
      $region100: #{srn_forward.1} parent=83 // pred_fallthru
        _
    $region84: #{srn_forward.1} parent=5 // pred_fallthru
      _
  $region6: #{srn_forward.1} parent=0 // loop_footer
    %s25 = sadd.s32 1, %s21
  $region7: #{srn_forward.1} parent=0 // loop_footer_branch
    %20 = sbr.rel target = $region3
  $region8: #{srn_forward.1} parent=0 // loop_exit
    _

</llo_original>
